<compile_context>
chip_gen: v7x
topology: tpu7x:2x2x1
jax: 0.10.0
libtpu: 0.0.40
codegen_flags: <defaults>
</compile_context>

<pallas_src>
import functools

import numpy as np
import jax
import jax.numpy as jnp
from jax import lax
from jax.experimental import pallas as pl
from jax.experimental.pallas import tpu as pltpu

# ----------------------------- configuration --------------------------------
VOCAB = 32                 # char vocab size == char_out_size
EMB = 32                   # char embedding dim
HID = 32                   # GRU hidden size
NLAYERS = 2                # GRU num_layers (encoder and decoder) -- kernel assumes 2
CHAR_OUT = VOCAB
MAX_CHAR_LEN = 8           # input chars per token
MAX_FORM_LEN = 8           # max_out_char_seq_len
NUM_TOKENS = 3
XTOKEN_VOCAB = 50
XTOKEN_LEN = NUM_TOKENS + 2
PAD, SOS, EOS, SEP = 0, 1, 2, 3

TB = 8                     # token block (sublane tile): tokens per kernel body

assert NLAYERS == 2, "kernel below is written for the 2-layer configuration"


# ------------------------------- kernel -------------------------------------
def _fused_gru_step(x_cat, w_ref, b_ref, h_prev):
    """One GRU cell with pre-fused weights.

    x_cat : (TB, I+H) -- [input | previous hidden]
    w_ref : (I+H, 4H) -- columns [r_sum | z_sum | gi_n | gh_n]
    b_ref : (1, 4H)   -- [bir+bhr | biz+bhz | bin | bhn]
    """
    s = jnp.dot(x_cat, w_ref[...], preferred_element_type=jnp.float32) + b_ref[...]
    r = jax.nn.sigmoid(s[:, 0:HID])
    z = jax.nn.sigmoid(s[:, HID:2 * HID])
    n = jnp.tanh(s[:, 2 * HID:3 * HID] + r * s[:, 3 * HID:4 * HID])
    return (1.0 - z) * n + z * h_prev


def morph_kernel(h_init_ref,                    # (NLAYERS, TB, HID)
                 enc_gi0_ref,                   # (TB, MAX_CHAR_LEN, 3H) precomputed x-gates (+bih)
                 cvalid_ref,                    # (TB, MAX_CHAR_LEN) f32 mask (char != 0)
                 enc_whh0_ref, enc_bhh0_ref,    # (HID, 3H), (1, 3H)
                 enc_w1_ref, enc_b1_ref,        # (2H, 4H), (1, 4H)
                 dec_w0_ref, dec_b0_ref,        # (VOCAB+H, 4H), (1, 4H)   (emb folded in)
                 dec_w1_ref, dec_b1_ref,        # (2H, 4H), (1, 4H)
                 out_w_ref, out_b_ref,          # (HID, C), (1, C)
                 scores_out_ref,                # (TB, MAX_FORM_LEN, C)
                 states_out_ref):               # (TB, MAX_FORM_LEN, NLAYERS*HID)
    H = HID

    # ---- encoder: GRU over the char sequence, masked on pad chars ----------
    h0 = h_init_ref[0]                          # (TB, H)  layer-0 hidden
    h1 = h_init_ref[1]                          # (TB, H)  layer-1 hidden
    enc_bhh0 = enc_bhh0_ref[...]
    for j in range(MAX_CHAR_LEN):               # fully unrolled (trip count 8)
        gi = enc_gi0_ref[:, j, :]               # (TB, 3H), includes bih
        gh = jnp.dot(h0, enc_whh0_ref[...],
                     preferred_element_type=jnp.float32) + enc_bhh0
        r = jax.nn.sigmoid(gi[:, 0:H] + gh[:, 0:H])
        z = jax.nn.sigmoid(gi[:, H:2 * H] + gh[:, H:2 * H])
        n = jnp.tanh(gi[:, 2 * H:3 * H] + r * gh[:, 2 * H:3 * H])
        h0_new = (1.0 - z) * n + z * h0
        h1_new = _fused_gru_step(jnp.concatenate([h0_new, h1], axis=-1),
                                 enc_w1_ref, enc_b1_ref, h1)
        m = cvalid_ref[:, j:j + 1]              # (TB, 1): 1.0 if char != 0
        h0 = m * h0_new + (1.0 - m) * h0
        h1 = m * h1_new + (1.0 - m) * h1

    # ---- greedy decoder: argmax feedback, masked after per-token EOS -------
    lane = lax.broadcasted_iota(jnp.int32, (TB, VOCAB), 1)   # VOCAB == CHAR_OUT
    dec_onehot = (lane == SOS).astype(jnp.float32)           # (TB, VOCAB)
    done = jnp.zeros((TB, 1), jnp.bool_)
    out_w = out_w_ref[...]
    out_b = out_b_ref[...]
    for step in range(MAX_FORM_LEN):            # fully unrolled (trip count 8)
        h0 = _fused_gru_step(jnp.concatenate([dec_onehot, h0], axis=-1),
                             dec_w0_ref, dec_b0_ref, h0)
        h1 = _fused_gru_step(jnp.concatenate([h0, h1], axis=-1),
                             dec_w1_ref, dec_b1_ref, h1)
        scores = jnp.dot(h1, out_w, preferred_element_type=jnp.float32) + out_b  # (TB, C)

        active = jnp.logical_not(done)                               # (TB, 1)
        scores_out_ref[:, step, :] = jnp.where(active, scores, 0.0)
        state_row = jnp.concatenate([h0, h1], axis=-1)               # (TB, L*H)
        states_out_ref[:, step, :] = jnp.where(active, state_row, 0.0)

        # first-maximum argmax, kept fully vectorised
        mx = jnp.max(scores, axis=-1, keepdims=True)
        next_char = jnp.min(jnp.where(scores == mx, lane, CHAR_OUT),
                            axis=-1, keepdims=True)                  # (TB, 1) i32
        done = jnp.logical_or(done, next_char == EOS)
        dec_onehot = (lane == next_char).astype(jnp.float32)


# ------------------------------- wrapper -------------------------------------
def _fuse_gru_layer(wih, whh, bih, bhh):
    """Pack a GRU layer so one (I+H, 4H) matmul yields [r_sum | z_sum | gi_n | gh_n]."""
    I = wih.shape[0]
    H = HID
    top = jnp.concatenate([wih[:, 0:H], wih[:, H:2 * H], wih[:, 2 * H:3 * H],
                           jnp.zeros((I, H), jnp.float32)], axis=1)
    bot = jnp.concatenate([whh[:, 0:H], whh[:, H:2 * H],
                           jnp.zeros((H, H), jnp.float32), whh[:, 2 * H:3 * H]], axis=1)
    w = jnp.concatenate([top, bot], axis=0)                          # (I+H, 4H)
    b = jnp.concatenate([bih[:, 0:H] + bhh[:, 0:H],
                         bih[:, H:2 * H] + bhh[:, H:2 * H],
                         bih[:, 2 * H:3 * H],
                         bhh[:, 2 * H:3 * H]], axis=1)               # (1, 4H)
    return w, b


@functools.partial(jax.jit, static_argnames=("num_tokens",))
def morph_sequence_forward(xtoken_seq, char_seq, params, num_tokens):
    T = num_tokens
    Tp = ((T + TB - 1) // TB) * TB
    nblk = Tp // TB

    # Token-context "embedding" (stands in for BertEmbedding) -> per-layer init state.
    token_ctx = params["xtoken_emb"][xtoken_seq]                      # (XTOKEN_LEN, L*H)
    h_init = token_ctx[1:T + 1].reshape(T, NLAYERS, HID).transpose(1, 0, 2)  # (L, T, H)
    h_init = jnp.pad(h_init, ((0, 0), (0, Tp - T), (0, 0)))

    # Encoder layer-0 input gates precomputed (embedding + W_ih folded; free XLA glue).
    cs = char_seq.astype(jnp.int32)
    emb_chars = params["char_emb"][cs]                                # (T, Lc, EMB)
    enc_gi0 = jnp.matmul(emb_chars, params["enc_wih"][0]) + params["enc_bih"][0]
    enc_gi0 = jnp.pad(enc_gi0, ((0, Tp - T), (0, 0), (0, 0)))         # (Tp, Lc, 3H)
    cvalid = jnp.pad((cs != 0).astype(jnp.float32), ((0, Tp - T), (0, 0)))

    # Fused weight matrices.
    enc_whh0 = params["enc_whh"][0]
    enc_bhh0 = params["enc_bhh"][0]
    enc_w1, enc_b1 = _fuse_gru_layer(params["enc_wih"][1], params["enc_whh"][1],
                                     params["enc_bih"][1], params["enc_bhh"][1])
    dec_w0, dec_b0 = _fuse_gru_layer(params["char_emb"] @ params["dec_wih"][0],
                                     params["dec_whh"][0],
                                     params["dec_bih"][0], params["dec_bhh"][0])
    dec_w1, dec_b1 = _fuse_gru_layer(params["dec_wih"][1], params["dec_whh"][1],
                                     params["dec_bih"][1], params["dec_bhh"][1])

    full2 = lambda shape: pl.BlockSpec(shape, lambda i: (0, 0))
    grid_spec = pltpu.PrefetchScalarGridSpec(
        num_scalar_prefetch=0,
        grid=(nblk,),
        in_specs=[
            pl.BlockSpec((NLAYERS, TB, HID), lambda i: (0, i, 0)),
            pl.BlockSpec((TB, MAX_CHAR_LEN, 3 * HID), lambda i: (i, 0, 0)),
            pl.BlockSpec((TB, MAX_CHAR_LEN), lambda i: (i, 0)),
            full2((HID, 3 * HID)), full2((1, 3 * HID)),
            full2((2 * HID, 4 * HID)), full2((1, 4 * HID)),
            full2((VOCAB + HID, 4 * HID)), full2((1, 4 * HID)),
            full2((2 * HID, 4 * HID)), full2((1, 4 * HID)),
            full2((HID, CHAR_OUT)), full2((1, CHAR_OUT)),
        ],
        out_specs=[
            pl.BlockSpec((TB, MAX_FORM_LEN, CHAR_OUT), lambda i: (i, 0, 0)),
            pl.BlockSpec((TB, MAX_FORM_LEN, NLAYERS * HID), lambda i: (i, 0, 0)),
        ],
    )
    out_shapes = (
        jax.ShapeDtypeStruct((Tp, MAX_FORM_LEN, CHAR_OUT), jnp.float32),
        jax.ShapeDtypeStruct((Tp, MAX_FORM_LEN, NLAYERS * HID), jnp.float32),
    )
    scores, states = pl.pallas_call(
        morph_kernel,
        out_shape=out_shapes,
        grid_spec=grid_spec,
        compiler_params=pltpu.CompilerParams(
            dimension_semantics=("parallel",)),   # token-blocks independent -> v7x 2-TC split
    )(h_init, enc_gi0, cvalid,
      enc_whh0, enc_bhh0, enc_w1, enc_b1,
      dec_w0, dec_b0, dec_w1, dec_b1,
      params["out_w"], params["out_b"])
    # Drop padded tokens; no SequenceLabelClassifier configs -> [].
    return scores[:T], states[:T], []


# --------------------------- parameter init ----------------------------------
def init_params(key):
    ks = jax.random.split(key, 16)
    s = 1.0 / np.sqrt(HID)
    u = lambda k, shape: jax.random.uniform(k, shape, jnp.float32, -s, s)
    return dict(
        xtoken_emb=0.5 * jax.random.normal(ks[0], (XTOKEN_VOCAB, NLAYERS * HID), jnp.float32),
        char_emb=0.5 * jax.random.normal(ks[1], (VOCAB, EMB), jnp.float32),
        enc_wih=u(ks[2], (NLAYERS, EMB, 3 * HID)),
        enc_whh=u(ks[3], (NLAYERS, HID, 3 * HID)),
        enc_bih=u(ks[4], (NLAYERS, 1, 3 * HID)),
        enc_bhh=u(ks[5], (NLAYERS, 1, 3 * HID)),
        dec_wih=u(ks[6], (NLAYERS, EMB, 3 * HID)),
        dec_whh=u(ks[7], (NLAYERS, HID, 3 * HID)),
        dec_bih=u(ks[8], (NLAYERS, 1, 3 * HID)),
        dec_bhh=u(ks[9], (NLAYERS, 1, 3 * HID)),
        out_w=u(ks[10], (HID, CHAR_OUT)),
        out_b=u(ks[11], (1, CHAR_OUT)),
    )


# ------------------------ pure-numpy reference -------------------------------
def _ref_gru_stack(x, h, wih, whh, bih, bhh):
    inp, rows = x, []
    for l in range(NLAYERS):
        hl = h[l:l + 1, :]
        gi = inp @ wih[l] + bih[l]
        gh = hl @ whh[l] + bhh[l]
        r = 1.0 / (1.0 + np.exp(-(gi[:, :HID] + gh[:, :HID])))
        z = 1.0 / (1.0 + np.exp(-(gi[:, HID:2 * HID] + gh[:, HID:2 * HID])))
        n = np.tanh(gi[:, 2 * HID:] + r * gh[:, 2 * HID:])
        hl = (1.0 - z) * n + z * hl
        rows.append(hl)
        inp = hl
    return np.concatenate(rows, axis=0), inp


def reference_forward(xtoken_seq, char_seq, params, num_tokens):
    p = {k: np.asarray(v, np.float32) for k, v in params.items()}
    token_ctx = p["xtoken_emb"][np.asarray(xtoken_seq)]
    cs = np.asarray(char_seq)
    all_scores, all_states = [], []
    for t in range(num_tokens):
        h = token_ctx[t + 1].reshape(NLAYERS, HID).copy()
        for c in cs[t]:
            if c != 0:
                h, _ = _ref_gru_stack(p["char_emb"][c:c + 1], h,
                                      p["enc_wih"], p["enc_whh"], p["enc_bih"], p["enc_bhh"])
        scores_rows = np.zeros((MAX_FORM_LEN, CHAR_OUT), np.float32)
        states_rows = np.zeros((MAX_FORM_LEN, NLAYERS * HID), np.float32)
        dec_char = SOS
        for step in range(MAX_FORM_LEN):
            h, y = _ref_gru_stack(p["char_emb"][dec_char:dec_char + 1], h,
                                  p["dec_wih"], p["dec_whh"], p["dec_bih"], p["dec_bhh"])
            sc = y @ p["out_w"] + p["out_b"]
            scores_rows[step] = sc[0]
            states_rows[step] = h.reshape(-1)
            dec_char = int(np.argmax(sc[0]))
            if dec_char == EOS:
                break
        all_scores.append(scores_rows)
        all_states.append(states_rows)
    return np.stack(all_scores), np.stack(all_states)


# --------------------------------- main ---------------------------------------
if __name__ == "__main__":
    key = jax.random.PRNGKey(0)
    k_chars, k_xtok, k_params = jax.random.split(key, 3)

    params = init_params(k_params)

    # per-token char sequences (0 = pad), deterministic lengths
    tok_lens = jnp.array([5, 3, 7])
    char_ids = jax.random.randint(k_chars, (NUM_TOKENS, MAX_CHAR_LEN), 4, VOCAB)
    valid = jnp.arange(MAX_CHAR_LEN)[None, :] < tok_lens[:, None]
    char_seq = jnp.where(valid, char_ids, 0).astype(jnp.int32)          # (3, 8)

    xtoken_seq = jax.random.randint(k_xtok, (XTOKEN_LEN,), 1, XTOKEN_VOCAB).astype(jnp.int32)

    scores, states, label_scores = morph_sequence_forward(
        xtoken_seq, char_seq, params, num_tokens=NUM_TOKENS)
    jax.block_until_ready((scores, states))

    ref_scores, ref_states = reference_forward(xtoken_seq, char_seq, params, NUM_TOKENS)
    np.testing.assert_allclose(np.asarray(scores), ref_scores, rtol=1e-3, atol=1e-3)
    np.testing.assert_allclose(np.asarray(states), ref_states, rtol=1e-3, atol=1e-3)
    assert label_scores == []

    print("KERNEL_OK")
</pallas_src>

<mosaic_0001>
module attributes {stable_mosaic.version = 11 : i64} {
  func.func @morph_kernel(%arg0: i32, %arg1: memref<2x8x32xf32, #tpu.memory_space<vmem>>, %arg2: memref<8x8x96xf32, #tpu.memory_space<vmem>>, %arg3: memref<8x8xf32, #tpu.memory_space<vmem>>, %arg4: memref<32x96xf32, #tpu.memory_space<vmem>>, %arg5: memref<1x96xf32, #tpu.memory_space<vmem>>, %arg6: memref<64x128xf32, #tpu.memory_space<vmem>>, %arg7: memref<1x128xf32, #tpu.memory_space<vmem>>, %arg8: memref<64x128xf32, #tpu.memory_space<vmem>>, %arg9: memref<1x128xf32, #tpu.memory_space<vmem>>, %arg10: memref<64x128xf32, #tpu.memory_space<vmem>>, %arg11: memref<1x128xf32, #tpu.memory_space<vmem>>, %arg12: memref<32x32xf32, #tpu.memory_space<vmem>>, %arg13: memref<1x32xf32, #tpu.memory_space<vmem>>, %arg14: memref<8x8x32xf32, #tpu.memory_space<vmem>>, %arg15: memref<8x8x64xf32, #tpu.memory_space<vmem>>) attributes {dimension_semantics = [#tpu.dimension_semantics<parallel>], iteration_bounds = array<i64: 1>, scalar_prefetch = 0 : i64, scratch_operands = 0 : i64, tpu.core_type = #tpu.core_type<tc>, window_params = [{transform_indices = @transform_0, window_bounds = array<i64: 2, 8, 32>}, {transform_indices = @transform_1, window_bounds = array<i64: 8, 8, 96>}, {transform_indices = @transform_2, window_bounds = array<i64: 8, 8>}, {pipeline_mode = #tpu.pipeline_mode<synchronous>, transform_indices = @transform_3, window_bounds = array<i64: 32, 96>}, {pipeline_mode = #tpu.pipeline_mode<synchronous>, transform_indices = @transform_4, window_bounds = array<i64: 1, 96>}, {pipeline_mode = #tpu.pipeline_mode<synchronous>, transform_indices = @transform_5, window_bounds = array<i64: 64, 128>}, {pipeline_mode = #tpu.pipeline_mode<synchronous>, transform_indices = @transform_6, window_bounds = array<i64: 1, 128>}, {pipeline_mode = #tpu.pipeline_mode<synchronous>, transform_indices = @transform_7, window_bounds = array<i64: 64, 128>}, {pipeline_mode = #tpu.pipeline_mode<synchronous>, transform_indices = @transform_8, window_bounds = array<i64: 1, 128>}, {pipeline_mode = #tpu.pipeline_mode<synchronous>, transform_indices = @transform_9, window_bounds = array<i64: 64, 128>}, {pipeline_mode = #tpu.pipeline_mode<synchronous>, transform_indices = @transform_10, window_bounds = array<i64: 1, 128>}, {pipeline_mode = #tpu.pipeline_mode<synchronous>, transform_indices = @transform_11, window_bounds = array<i64: 32, 32>}, {pipeline_mode = #tpu.pipeline_mode<synchronous>, transform_indices = @transform_12, window_bounds = array<i64: 1, 32>}, {transform_indices = @transform_13, window_bounds = array<i64: 8, 8, 32>}, {transform_indices = @transform_14, window_bounds = array<i64: 8, 8, 64>}]} {
    %c0 = arith.constant 0 : index
    %c0_0 = arith.constant 0 : index
    %c0_1 = arith.constant 0 : index
    %0 = vector.load %arg1[%c0, %c0_0, %c0_1] : memref<2x8x32xf32, #tpu.memory_space<vmem>>, vector<1x8x32xf32>
    %1 = vector.shape_cast %0 : vector<1x8x32xf32> to vector<8x32xf32>
    %c1 = arith.constant 1 : index
    %c0_2 = arith.constant 0 : index
    %c0_3 = arith.constant 0 : index
    %2 = vector.load %arg1[%c1, %c0_2, %c0_3] : memref<2x8x32xf32, #tpu.memory_space<vmem>>, vector<1x8x32xf32>
    %3 = vector.shape_cast %2 : vector<1x8x32xf32> to vector<8x32xf32>
    %c0_4 = arith.constant 0 : index
    %c0_5 = arith.constant 0 : index
    %4 = vector.load %arg5[%c0_4, %c0_5] : memref<1x96xf32, #tpu.memory_space<vmem>>, vector<1x96xf32>
    %c0_6 = arith.constant 0 : index
    %c0_7 = arith.constant 0 : index
    %c0_8 = arith.constant 0 : index
    %5 = vector.load %arg2[%c0_6, %c0_7, %c0_8] : memref<8x8x96xf32, #tpu.memory_space<vmem>>, vector<8x1x96xf32>
    %6 = vector.shape_cast %5 : vector<8x1x96xf32> to vector<8x96xf32>
    %c0_9 = arith.constant 0 : index
    %c0_10 = arith.constant 0 : index
    %7 = vector.load %arg4[%c0_9, %c0_10] : memref<32x96xf32, #tpu.memory_space<vmem>>, vector<32x96xf32>
    %cst = arith.constant dense<0.000000e+00> : vector<8x96xf32>
    %8 = tpu.matmul %1, %7, %cst {dimension_numbers = #tpu.dot_dimension_numbers<[1], [0], [0], [1], [0, 0, 1, 1], [], []>} : vector<8x32xf32>, vector<32x96xf32>, vector<8x96xf32> -> vector<8x96xf32>
    %9 = vector.broadcast %4 : vector<1x96xf32> to vector<8x96xf32>
    %10 = arith.addf %8, %9 : vector<8x96xf32>
    %11 = vector.extract_strided_slice %6 {offsets = [0, 0], sizes = [8, 32], strides = [1, 1]} : vector<8x96xf32> to vector<8x32xf32>
    %12 = vector.extract_strided_slice %10 {offsets = [0, 0], sizes = [8, 32], strides = [1, 1]} : vector<8x96xf32> to vector<8x32xf32>
    %13 = arith.addf %11, %12 : vector<8x32xf32>
    %14 = arith.negf %13 : vector<8x32xf32>
    %15 = math.exp %14 : vector<8x32xf32>
    %cst_11 = arith.constant 1.000000e+00 : f32
    %16 = vector.broadcast %cst_11 : f32 to vector<8x32xf32>
    %17 = arith.addf %16, %15 : vector<8x32xf32>
    %18 = arith.divf %16, %17 : vector<8x32xf32>
    %19 = vector.extract_strided_slice %6 {offsets = [0, 32], sizes = [8, 32], strides = [1, 1]} : vector<8x96xf32> to vector<8x32xf32>
    %20 = vector.extract_strided_slice %10 {offsets = [0, 32], sizes = [8, 32], strides = [1, 1]} : vector<8x96xf32> to vector<8x32xf32>
    %21 = arith.addf %19, %20 : vector<8x32xf32>
    %22 = arith.negf %21 : vector<8x32xf32>
    %23 = math.exp %22 : vector<8x32xf32>
    %cst_12 = arith.constant 1.000000e+00 : f32
    %24 = vector.broadcast %cst_12 : f32 to vector<8x32xf32>
    %25 = arith.addf %24, %23 : vector<8x32xf32>
    %26 = arith.divf %24, %25 : vector<8x32xf32>
    %27 = vector.extract_strided_slice %6 {offsets = [0, 64], sizes = [8, 32], strides = [1, 1]} : vector<8x96xf32> to vector<8x32xf32>
    %28 = vector.extract_strided_slice %10 {offsets = [0, 64], sizes = [8, 32], strides = [1, 1]} : vector<8x96xf32> to vector<8x32xf32>
    %29 = arith.mulf %18, %28 : vector<8x32xf32>
    %30 = arith.addf %27, %29 : vector<8x32xf32>
    %31 = math.tanh %30 : vector<8x32xf32>
    %cst_13 = arith.constant 1.000000e+00 : f32
    %32 = vector.broadcast %cst_13 : f32 to vector<8x32xf32>
    %33 = arith.subf %32, %26 : vector<8x32xf32>
    %34 = arith.mulf %33, %31 : vector<8x32xf32>
    %35 = arith.mulf %26, %1 : vector<8x32xf32>
    %36 = arith.addf %34, %35 : vector<8x32xf32>
    %37 = tpu.concatenate %36, %3 in 1 : vector<8x32xf32>, vector<8x32xf32> -> vector<8x64xf32>
    %c0_14 = arith.constant 0 : index
    %c0_15 = arith.constant 0 : index
    %38 = vector.load %arg6[%c0_14, %c0_15] : memref<64x128xf32, #tpu.memory_space<vmem>>, vector<64x128xf32>
    %cst_16 = arith.constant dense<0.000000e+00> : vector<8x128xf32>
    %39 = tpu.matmul %37, %38, %cst_16 {dimension_numbers = #tpu.dot_dimension_numbers<[1], [0], [0], [1], [0, 0, 1, 1], [], []>} : vector<8x64xf32>, vector<64x128xf32>, vector<8x128xf32> -> vector<8x128xf32>
    %c0_17 = arith.constant 0 : index
    %c0_18 = arith.constant 0 : index
    %40 = vector.load %arg7[%c0_17, %c0_18] : memref<1x128xf32, #tpu.memory_space<vmem>>, vector<1x128xf32>
    %41 = vector.broadcast %40 : vector<1x128xf32> to vector<8x128xf32>
    %42 = arith.addf %39, %41 : vector<8x128xf32>
    %43 = vector.extract_strided_slice %42 {offsets = [0, 0], sizes = [8, 32], strides = [1, 1]} : vector<8x128xf32> to vector<8x32xf32>
    %44 = arith.negf %43 : vector<8x32xf32>
    %45 = math.exp %44 : vector<8x32xf32>
    %cst_19 = arith.constant 1.000000e+00 : f32
    %46 = vector.broadcast %cst_19 : f32 to vector<8x32xf32>
    %47 = arith.addf %46, %45 : vector<8x32xf32>
    %48 = arith.divf %46, %47 : vector<8x32xf32>
    %49 = vector.extract_strided_slice %42 {offsets = [0, 32], sizes = [8, 32], strides = [1, 1]} : vector<8x128xf32> to vector<8x32xf32>
    %50 = arith.negf %49 : vector<8x32xf32>
    %51 = math.exp %50 : vector<8x32xf32>
    %cst_20 = arith.constant 1.000000e+00 : f32
    %52 = vector.broadcast %cst_20 : f32 to vector<8x32xf32>
    %53 = arith.addf %52, %51 : vector<8x32xf32>
    %54 = arith.divf %52, %53 : vector<8x32xf32>
    %55 = vector.extract_strided_slice %42 {offsets = [0, 64], sizes = [8, 32], strides = [1, 1]} : vector<8x128xf32> to vector<8x32xf32>
    %56 = vector.extract_strided_slice %42 {offsets = [0, 96], sizes = [8, 32], strides = [1, 1]} : vector<8x128xf32> to vector<8x32xf32>
    %57 = arith.mulf %48, %56 : vector<8x32xf32>
    %58 = arith.addf %55, %57 : vector<8x32xf32>
    %59 = math.tanh %58 : vector<8x32xf32>
    %cst_21 = arith.constant 1.000000e+00 : f32
    %60 = vector.broadcast %cst_21 : f32 to vector<8x32xf32>
    %61 = arith.subf %60, %54 : vector<8x32xf32>
    %62 = arith.mulf %61, %59 : vector<8x32xf32>
    %63 = arith.mulf %54, %3 : vector<8x32xf32>
    %64 = arith.addf %62, %63 : vector<8x32xf32>
    %c0_22 = arith.constant 0 : index
    %c0_23 = arith.constant 0 : index
    %65 = vector.load %arg3[%c0_22, %c0_23] : memref<8x8xf32, #tpu.memory_space<vmem>>, vector<8x1xf32>
    %66 = vector.broadcast %65 : vector<8x1xf32> to vector<8x32xf32>
    %67 = arith.mulf %66, %36 : vector<8x32xf32>
    %cst_24 = arith.constant 1.000000e+00 : f32
    %68 = vector.broadcast %cst_24 : f32 to vector<8x1xf32>
    %69 = arith.subf %68, %65 : vector<8x1xf32>
    %70 = vector.broadcast %69 : vector<8x1xf32> to vector<8x32xf32>
    %71 = arith.mulf %70, %1 : vector<8x32xf32>
    %72 = arith.addf %67, %71 : vector<8x32xf32>
    %73 = vector.broadcast %65 : vector<8x1xf32> to vector<8x32xf32>
    %74 = arith.mulf %73, %64 : vector<8x32xf32>
    %cst_25 = arith.constant 1.000000e+00 : f32
    %75 = vector.broadcast %cst_25 : f32 to vector<8x1xf32>
    %76 = arith.subf %75, %65 : vector<8x1xf32>
    %77 = vector.broadcast %76 : vector<8x1xf32> to vector<8x32xf32>
    %78 = arith.mulf %77, %3 : vector<8x32xf32>
    %79 = arith.addf %74, %78 : vector<8x32xf32>
    %c0_26 = arith.constant 0 : index
    %c1_27 = arith.constant 1 : index
    %c0_28 = arith.constant 0 : index
    %80 = vector.load %arg2[%c0_26, %c1_27, %c0_28] : memref<8x8x96xf32, #tpu.memory_space<vmem>>, vector<8x1x96xf32>
    %81 = vector.shape_cast %80 : vector<8x1x96xf32> to vector<8x96xf32>
    %c0_29 = arith.constant 0 : index
    %c0_30 = arith.constant 0 : index
    %82 = vector.load %arg4[%c0_29, %c0_30] : memref<32x96xf32, #tpu.memory_space<vmem>>, vector<32x96xf32>
    %cst_31 = arith.constant dense<0.000000e+00> : vector<8x96xf32>
    %83 = tpu.matmul %72, %82, %cst_31 {dimension_numbers = #tpu.dot_dimension_numbers<[1], [0], [0], [1], [0, 0, 1, 1], [], []>} : vector<8x32xf32>, vector<32x96xf32>, vector<8x96xf32> -> vector<8x96xf32>
    %84 = vector.broadcast %4 : vector<1x96xf32> to vector<8x96xf32>
    %85 = arith.addf %83, %84 : vector<8x96xf32>
    %86 = vector.extract_strided_slice %81 {offsets = [0, 0], sizes = [8, 32], strides = [1, 1]} : vector<8x96xf32> to vector<8x32xf32>
    %87 = vector.extract_strided_slice %85 {offsets = [0, 0], sizes = [8, 32], strides = [1, 1]} : vector<8x96xf32> to vector<8x32xf32>
    %88 = arith.addf %86, %87 : vector<8x32xf32>
    %89 = arith.negf %88 : vector<8x32xf32>
    %90 = math.exp %89 : vector<8x32xf32>
    %cst_32 = arith.constant 1.000000e+00 : f32
    %91 = vector.broadcast %cst_32 : f32 to vector<8x32xf32>
    %92 = arith.addf %91, %90 : vector<8x32xf32>
    %93 = arith.divf %91, %92 : vector<8x32xf32>
    %94 = vector.extract_strided_slice %81 {offsets = [0, 32], sizes = [8, 32], strides = [1, 1]} : vector<8x96xf32> to vector<8x32xf32>
    %95 = vector.extract_strided_slice %85 {offsets = [0, 32], sizes = [8, 32], strides = [1, 1]} : vector<8x96xf32> to vector<8x32xf32>
    %96 = arith.addf %94, %95 : vector<8x32xf32>
    %97 = arith.negf %96 : vector<8x32xf32>
    %98 = math.exp %97 : vector<8x32xf32>
    %cst_33 = arith.constant 1.000000e+00 : f32
    %99 = vector.broadcast %cst_33 : f32 to vector<8x32xf32>
    %100 = arith.addf %99, %98 : vector<8x32xf32>
    %101 = arith.divf %99, %100 : vector<8x32xf32>
    %102 = vector.extract_strided_slice %81 {offsets = [0, 64], sizes = [8, 32], strides = [1, 1]} : vector<8x96xf32> to vector<8x32xf32>
    %103 = vector.extract_strided_slice %85 {offsets = [0, 64], sizes = [8, 32], strides = [1, 1]} : vector<8x96xf32> to vector<8x32xf32>
    %104 = arith.mulf %93, %103 : vector<8x32xf32>
    %105 = arith.addf %102, %104 : vector<8x32xf32>
    %106 = math.tanh %105 : vector<8x32xf32>
    %cst_34 = arith.constant 1.000000e+00 : f32
    %107 = vector.broadcast %cst_34 : f32 to vector<8x32xf32>
    %108 = arith.subf %107, %101 : vector<8x32xf32>
    %109 = arith.mulf %108, %106 : vector<8x32xf32>
    %110 = arith.mulf %101, %72 : vector<8x32xf32>
    %111 = arith.addf %109, %110 : vector<8x32xf32>
    %112 = tpu.concatenate %111, %79 in 1 : vector<8x32xf32>, vector<8x32xf32> -> vector<8x64xf32>
    %c0_35 = arith.constant 0 : index
    %c0_36 = arith.constant 0 : index
    %113 = vector.load %arg6[%c0_35, %c0_36] : memref<64x128xf32, #tpu.memory_space<vmem>>, vector<64x128xf32>
    %cst_37 = arith.constant dense<0.000000e+00> : vector<8x128xf32>
    %114 = tpu.matmul %112, %113, %cst_37 {dimension_numbers = #tpu.dot_dimension_numbers<[1], [0], [0], [1], [0, 0, 1, 1], [], []>} : vector<8x64xf32>, vector<64x128xf32>, vector<8x128xf32> -> vector<8x128xf32>
    %c0_38 = arith.constant 0 : index
    %c0_39 = arith.constant 0 : index
    %115 = vector.load %arg7[%c0_38, %c0_39] : memref<1x128xf32, #tpu.memory_space<vmem>>, vector<1x128xf32>
    %116 = vector.broadcast %115 : vector<1x128xf32> to vector<8x128xf32>
    %117 = arith.addf %114, %116 : vector<8x128xf32>
    %118 = vector.extract_strided_slice %117 {offsets = [0, 0], sizes = [8, 32], strides = [1, 1]} : vector<8x128xf32> to vector<8x32xf32>
    %119 = arith.negf %118 : vector<8x32xf32>
    %120 = math.exp %119 : vector<8x32xf32>
    %cst_40 = arith.constant 1.000000e+00 : f32
    %121 = vector.broadcast %cst_40 : f32 to vector<8x32xf32>
    %122 = arith.addf %121, %120 : vector<8x32xf32>
    %123 = arith.divf %121, %122 : vector<8x32xf32>
    %124 = vector.extract_strided_slice %117 {offsets = [0, 32], sizes = [8, 32], strides = [1, 1]} : vector<8x128xf32> to vector<8x32xf32>
    %125 = arith.negf %124 : vector<8x32xf32>
    %126 = math.exp %125 : vector<8x32xf32>
    %cst_41 = arith.constant 1.000000e+00 : f32
    %127 = vector.broadcast %cst_41 : f32 to vector<8x32xf32>
    %128 = arith.addf %127, %126 : vector<8x32xf32>
    %129 = arith.divf %127, %128 : vector<8x32xf32>
    %130 = vector.extract_strided_slice %117 {offsets = [0, 64], sizes = [8, 32], strides = [1, 1]} : vector<8x128xf32> to vector<8x32xf32>
    %131 = vector.extract_strided_slice %117 {offsets = [0, 96], sizes = [8, 32], strides = [1, 1]} : vector<8x128xf32> to vector<8x32xf32>
    %132 = arith.mulf %123, %131 : vector<8x32xf32>
    %133 = arith.addf %130, %132 : vector<8x32xf32>
    %134 = math.tanh %133 : vector<8x32xf32>
    %cst_42 = arith.constant 1.000000e+00 : f32
    %135 = vector.broadcast %cst_42 : f32 to vector<8x32xf32>
    %136 = arith.subf %135, %129 : vector<8x32xf32>
    %137 = arith.mulf %136, %134 : vector<8x32xf32>
    %138 = arith.mulf %129, %79 : vector<8x32xf32>
    %139 = arith.addf %137, %138 : vector<8x32xf32>
    %c0_43 = arith.constant 0 : index
    %c1_44 = arith.constant 1 : index
    %140 = vector.load %arg3[%c0_43, %c1_44] : memref<8x8xf32, #tpu.memory_space<vmem>>, vector<8x1xf32>
    %141 = vector.broadcast %140 : vector<8x1xf32> to vector<8x32xf32>
    %142 = arith.mulf %141, %111 : vector<8x32xf32>
    %cst_45 = arith.constant 1.000000e+00 : f32
    %143 = vector.broadcast %cst_45 : f32 to vector<8x1xf32>
    %144 = arith.subf %143, %140 : vector<8x1xf32>
    %145 = vector.broadcast %144 : vector<8x1xf32> to vector<8x32xf32>
    %146 = arith.mulf %145, %72 : vector<8x32xf32>
    %147 = arith.addf %142, %146 : vector<8x32xf32>
    %148 = vector.broadcast %140 : vector<8x1xf32> to vector<8x32xf32>
    %149 = arith.mulf %148, %139 : vector<8x32xf32>
    %cst_46 = arith.constant 1.000000e+00 : f32
    %150 = vector.broadcast %cst_46 : f32 to vector<8x1xf32>
    %151 = arith.subf %150, %140 : vector<8x1xf32>
    %152 = vector.broadcast %151 : vector<8x1xf32> to vector<8x32xf32>
    %153 = arith.mulf %152, %79 : vector<8x32xf32>
    %154 = arith.addf %149, %153 : vector<8x32xf32>
    %c0_47 = arith.constant 0 : index
    %c2 = arith.constant 2 : index
    %c0_48 = arith.constant 0 : index
    %155 = vector.load %arg2[%c0_47, %c2, %c0_48] : memref<8x8x96xf32, #tpu.memory_space<vmem>>, vector<8x1x96xf32>
    %156 = vector.shape_cast %155 : vector<8x1x96xf32> to vector<8x96xf32>
    %c0_49 = arith.constant 0 : index
    %c0_50 = arith.constant 0 : index
    %157 = vector.load %arg4[%c0_49, %c0_50] : memref<32x96xf32, #tpu.memory_space<vmem>>, vector<32x96xf32>
    %cst_51 = arith.constant dense<0.000000e+00> : vector<8x96xf32>
    %158 = tpu.matmul %147, %157, %cst_51 {dimension_numbers = #tpu.dot_dimension_numbers<[1], [0], [0], [1], [0, 0, 1, 1], [], []>} : vector<8x32xf32>, vector<32x96xf32>, vector<8x96xf32> -> vector<8x96xf32>
    %159 = vector.broadcast %4 : vector<1x96xf32> to vector<8x96xf32>
    %160 = arith.addf %158, %159 : vector<8x96xf32>
    %161 = vector.extract_strided_slice %156 {offsets = [0, 0], sizes = [8, 32], strides = [1, 1]} : vector<8x96xf32> to vector<8x32xf32>
    %162 = vector.extract_strided_slice %160 {offsets = [0, 0], sizes = [8, 32], strides = [1, 1]} : vector<8x96xf32> to vector<8x32xf32>
    %163 = arith.addf %161, %162 : vector<8x32xf32>
    %164 = arith.negf %163 : vector<8x32xf32>
    %165 = math.exp %164 : vector<8x32xf32>
    %cst_52 = arith.constant 1.000000e+00 : f32
    %166 = vector.broadcast %cst_52 : f32 to vector<8x32xf32>
    %167 = arith.addf %166, %165 : vector<8x32xf32>
    %168 = arith.divf %166, %167 : vector<8x32xf32>
    %169 = vector.extract_strided_slice %156 {offsets = [0, 32], sizes = [8, 32], strides = [1, 1]} : vector<8x96xf32> to vector<8x32xf32>
    %170 = vector.extract_strided_slice %160 {offsets = [0, 32], sizes = [8, 32], strides = [1, 1]} : vector<8x96xf32> to vector<8x32xf32>
    %171 = arith.addf %169, %170 : vector<8x32xf32>
    %172 = arith.negf %171 : vector<8x32xf32>
    %173 = math.exp %172 : vector<8x32xf32>
    %cst_53 = arith.constant 1.000000e+00 : f32
    %174 = vector.broadcast %cst_53 : f32 to vector<8x32xf32>
    %175 = arith.addf %174, %173 : vector<8x32xf32>
    %176 = arith.divf %174, %175 : vector<8x32xf32>
    %177 = vector.extract_strided_slice %156 {offsets = [0, 64], sizes = [8, 32], strides = [1, 1]} : vector<8x96xf32> to vector<8x32xf32>
    %178 = vector.extract_strided_slice %160 {offsets = [0, 64], sizes = [8, 32], strides = [1, 1]} : vector<8x96xf32> to vector<8x32xf32>
    %179 = arith.mulf %168, %178 : vector<8x32xf32>
    %180 = arith.addf %177, %179 : vector<8x32xf32>
    %181 = math.tanh %180 : vector<8x32xf32>
    %cst_54 = arith.constant 1.000000e+00 : f32
    %182 = vector.broadcast %cst_54 : f32 to vector<8x32xf32>
    %183 = arith.subf %182, %176 : vector<8x32xf32>
    %184 = arith.mulf %183, %181 : vector<8x32xf32>
    %185 = arith.mulf %176, %147 : vector<8x32xf32>
    %186 = arith.addf %184, %185 : vector<8x32xf32>
    %187 = tpu.concatenate %186, %154 in 1 : vector<8x32xf32>, vector<8x32xf32> -> vector<8x64xf32>
    %c0_55 = arith.constant 0 : index
    %c0_56 = arith.constant 0 : index
    %188 = vector.load %arg6[%c0_55, %c0_56] : memref<64x128xf32, #tpu.memory_space<vmem>>, vector<64x128xf32>
    %cst_57 = arith.constant dense<0.000000e+00> : vector<8x128xf32>
    %189 = tpu.matmul %187, %188, %cst_57 {dimension_numbers = #tpu.dot_dimension_numbers<[1], [0], [0], [1], [0, 0, 1, 1], [], []>} : vector<8x64xf32>, vector<64x128xf32>, vector<8x128xf32> -> vector<8x128xf32>
    %c0_58 = arith.constant 0 : index
    %c0_59 = arith.constant 0 : index
    %190 = vector.load %arg7[%c0_58, %c0_59] : memref<1x128xf32, #tpu.memory_space<vmem>>, vector<1x128xf32>
    %191 = vector.broadcast %190 : vector<1x128xf32> to vector<8x128xf32>
    %192 = arith.addf %189, %191 : vector<8x128xf32>
    %193 = vector.extract_strided_slice %192 {offsets = [0, 0], sizes = [8, 32], strides = [1, 1]} : vector<8x128xf32> to vector<8x32xf32>
    %194 = arith.negf %193 : vector<8x32xf32>
    %195 = math.exp %194 : vector<8x32xf32>
    %cst_60 = arith.constant 1.000000e+00 : f32
    %196 = vector.broadcast %cst_60 : f32 to vector<8x32xf32>
    %197 = arith.addf %196, %195 : vector<8x32xf32>
    %198 = arith.divf %196, %197 : vector<8x32xf32>
    %199 = vector.extract_strided_slice %192 {offsets = [0, 32], sizes = [8, 32], strides = [1, 1]} : vector<8x128xf32> to vector<8x32xf32>
    %200 = arith.negf %199 : vector<8x32xf32>
    %201 = math.exp %200 : vector<8x32xf32>
    %cst_61 = arith.constant 1.000000e+00 : f32
    %202 = vector.broadcast %cst_61 : f32 to vector<8x32xf32>
    %203 = arith.addf %202, %201 : vector<8x32xf32>
    %204 = arith.divf %202, %203 : vector<8x32xf32>
    %205 = vector.extract_strided_slice %192 {offsets = [0, 64], sizes = [8, 32], strides = [1, 1]} : vector<8x128xf32> to vector<8x32xf32>
    %206 = vector.extract_strided_slice %192 {offsets = [0, 96], sizes = [8, 32], strides = [1, 1]} : vector<8x128xf32> to vector<8x32xf32>
    %207 = arith.mulf %198, %206 : vector<8x32xf32>
    %208 = arith.addf %205, %207 : vector<8x32xf32>
    %209 = math.tanh %208 : vector<8x32xf32>
    %cst_62 = arith.constant 1.000000e+00 : f32
    %210 = vector.broadcast %cst_62 : f32 to vector<8x32xf32>
    %211 = arith.subf %210, %204 : vector<8x32xf32>
    %212 = arith.mulf %211, %209 : vector<8x32xf32>
    %213 = arith.mulf %204, %154 : vector<8x32xf32>
    %214 = arith.addf %212, %213 : vector<8x32xf32>
    %c0_63 = arith.constant 0 : index
    %c2_64 = arith.constant 2 : index
    %215 = vector.load %arg3[%c0_63, %c2_64] : memref<8x8xf32, #tpu.memory_space<vmem>>, vector<8x1xf32>
    %216 = vector.broadcast %215 : vector<8x1xf32> to vector<8x32xf32>
    %217 = arith.mulf %216, %186 : vector<8x32xf32>
    %cst_65 = arith.constant 1.000000e+00 : f32
    %218 = vector.broadcast %cst_65 : f32 to vector<8x1xf32>
    %219 = arith.subf %218, %215 : vector<8x1xf32>
    %220 = vector.broadcast %219 : vector<8x1xf32> to vector<8x32xf32>
    %221 = arith.mulf %220, %147 : vector<8x32xf32>
    %222 = arith.addf %217, %221 : vector<8x32xf32>
    %223 = vector.broadcast %215 : vector<8x1xf32> to vector<8x32xf32>
    %224 = arith.mulf %223, %214 : vector<8x32xf32>
    %cst_66 = arith.constant 1.000000e+00 : f32
    %225 = vector.broadcast %cst_66 : f32 to vector<8x1xf32>
    %226 = arith.subf %225, %215 : vector<8x1xf32>
    %227 = vector.broadcast %226 : vector<8x1xf32> to vector<8x32xf32>
    %228 = arith.mulf %227, %154 : vector<8x32xf32>
    %229 = arith.addf %224, %228 : vector<8x32xf32>
    %c0_67 = arith.constant 0 : index
    %c3 = arith.constant 3 : index
    %c0_68 = arith.constant 0 : index
    %230 = vector.load %arg2[%c0_67, %c3, %c0_68] : memref<8x8x96xf32, #tpu.memory_space<vmem>>, vector<8x1x96xf32>
    %231 = vector.shape_cast %230 : vector<8x1x96xf32> to vector<8x96xf32>
    %c0_69 = arith.constant 0 : index
    %c0_70 = arith.constant 0 : index
    %232 = vector.load %arg4[%c0_69, %c0_70] : memref<32x96xf32, #tpu.memory_space<vmem>>, vector<32x96xf32>
    %cst_71 = arith.constant dense<0.000000e+00> : vector<8x96xf32>
    %233 = tpu.matmul %222, %232, %cst_71 {dimension_numbers = #tpu.dot_dimension_numbers<[1], [0], [0], [1], [0, 0, 1, 1], [], []>} : vector<8x32xf32>, vector<32x96xf32>, vector<8x96xf32> -> vector<8x96xf32>
    %234 = vector.broadcast %4 : vector<1x96xf32> to vector<8x96xf32>
    %235 = arith.addf %233, %234 : vector<8x96xf32>
    %236 = vector.extract_strided_slice %231 {offsets = [0, 0], sizes = [8, 32], strides = [1, 1]} : vector<8x96xf32> to vector<8x32xf32>
    %237 = vector.extract_strided_slice %235 {offsets = [0, 0], sizes = [8, 32], strides = [1, 1]} : vector<8x96xf32> to vector<8x32xf32>
    %238 = arith.addf %236, %237 : vector<8x32xf32>
    %239 = arith.negf %238 : vector<8x32xf32>
    %240 = math.exp %239 : vector<8x32xf32>
    %cst_72 = arith.constant 1.000000e+00 : f32
    %241 = vector.broadcast %cst_72 : f32 to vector<8x32xf32>
    %242 = arith.addf %241, %240 : vector<8x32xf32>
    %243 = arith.divf %241, %242 : vector<8x32xf32>
    %244 = vector.extract_strided_slice %231 {offsets = [0, 32], sizes = [8, 32], strides = [1, 1]} : vector<8x96xf32> to vector<8x32xf32>
    %245 = vector.extract_strided_slice %235 {offsets = [0, 32], sizes = [8, 32], strides = [1, 1]} : vector<8x96xf32> to vector<8x32xf32>
    %246 = arith.addf %244, %245 : vector<8x32xf32>
    %247 = arith.negf %246 : vector<8x32xf32>
    %248 = math.exp %247 : vector<8x32xf32>
    %cst_73 = arith.constant 1.000000e+00 : f32
    %249 = vector.broadcast %cst_73 : f32 to vector<8x32xf32>
    %250 = arith.addf %249, %248 : vector<8x32xf32>
    %251 = arith.divf %249, %250 : vector<8x32xf32>
    %252 = vector.extract_strided_slice %231 {offsets = [0, 64], sizes = [8, 32], strides = [1, 1]} : vector<8x96xf32> to vector<8x32xf32>
    %253 = vector.extract_strided_slice %235 {offsets = [0, 64], sizes = [8, 32], strides = [1, 1]} : vector<8x96xf32> to vector<8x32xf32>
    %254 = arith.mulf %243, %253 : vector<8x32xf32>
    %255 = arith.addf %252, %254 : vector<8x32xf32>
    %256 = math.tanh %255 : vector<8x32xf32>
    %cst_74 = arith.constant 1.000000e+00 : f32
    %257 = vector.broadcast %cst_74 : f32 to vector<8x32xf32>
    %258 = arith.subf %257, %251 : vector<8x32xf32>
    %259 = arith.mulf %258, %256 : vector<8x32xf32>
    %260 = arith.mulf %251, %222 : vector<8x32xf32>
    %261 = arith.addf %259, %260 : vector<8x32xf32>
    %262 = tpu.concatenate %261, %229 in 1 : vector<8x32xf32>, vector<8x32xf32> -> vector<8x64xf32>
    %c0_75 = arith.constant 0 : index
    %c0_76 = arith.constant 0 : index
    %263 = vector.load %arg6[%c0_75, %c0_76] : memref<64x128xf32, #tpu.memory_space<vmem>>, vector<64x128xf32>
    %cst_77 = arith.constant dense<0.000000e+00> : vector<8x128xf32>
    %264 = tpu.matmul %262, %263, %cst_77 {dimension_numbers = #tpu.dot_dimension_numbers<[1], [0], [0], [1], [0, 0, 1, 1], [], []>} : vector<8x64xf32>, vector<64x128xf32>, vector<8x128xf32> -> vector<8x128xf32>
    %c0_78 = arith.constant 0 : index
    %c0_79 = arith.constant 0 : index
    %265 = vector.load %arg7[%c0_78, %c0_79] : memref<1x128xf32, #tpu.memory_space<vmem>>, vector<1x128xf32>
    %266 = vector.broadcast %265 : vector<1x128xf32> to vector<8x128xf32>
    %267 = arith.addf %264, %266 : vector<8x128xf32>
    %268 = vector.extract_strided_slice %267 {offsets = [0, 0], sizes = [8, 32], strides = [1, 1]} : vector<8x128xf32> to vector<8x32xf32>
    %269 = arith.negf %268 : vector<8x32xf32>
    %270 = math.exp %269 : vector<8x32xf32>
    %cst_80 = arith.constant 1.000000e+00 : f32
    %271 = vector.broadcast %cst_80 : f32 to vector<8x32xf32>
    %272 = arith.addf %271, %270 : vector<8x32xf32>
    %273 = arith.divf %271, %272 : vector<8x32xf32>
    %274 = vector.extract_strided_slice %267 {offsets = [0, 32], sizes = [8, 32], strides = [1, 1]} : vector<8x128xf32> to vector<8x32xf32>
    %275 = arith.negf %274 : vector<8x32xf32>
    %276 = math.exp %275 : vector<8x32xf32>
    %cst_81 = arith.constant 1.000000e+00 : f32
    %277 = vector.broadcast %cst_81 : f32 to vector<8x32xf32>
    %278 = arith.addf %277, %276 : vector<8x32xf32>
    %279 = arith.divf %277, %278 : vector<8x32xf32>
    %280 = vector.extract_strided_slice %267 {offsets = [0, 64], sizes = [8, 32], strides = [1, 1]} : vector<8x128xf32> to vector<8x32xf32>
    %281 = vector.extract_strided_slice %267 {offsets = [0, 96], sizes = [8, 32], strides = [1, 1]} : vector<8x128xf32> to vector<8x32xf32>
    %282 = arith.mulf %273, %281 : vector<8x32xf32>
    %283 = arith.addf %280, %282 : vector<8x32xf32>
    %284 = math.tanh %283 : vector<8x32xf32>
    %cst_82 = arith.constant 1.000000e+00 : f32
    %285 = vector.broadcast %cst_82 : f32 to vector<8x32xf32>
    %286 = arith.subf %285, %279 : vector<8x32xf32>
    %287 = arith.mulf %286, %284 : vector<8x32xf32>
    %288 = arith.mulf %279, %229 : vector<8x32xf32>
    %289 = arith.addf %287, %288 : vector<8x32xf32>
    %c0_83 = arith.constant 0 : index
    %c3_84 = arith.constant 3 : index
    %290 = vector.load %arg3[%c0_83, %c3_84] : memref<8x8xf32, #tpu.memory_space<vmem>>, vector<8x1xf32>
    %291 = vector.broadcast %290 : vector<8x1xf32> to vector<8x32xf32>
    %292 = arith.mulf %291, %261 : vector<8x32xf32>
    %cst_85 = arith.constant 1.000000e+00 : f32
    %293 = vector.broadcast %cst_85 : f32 to vector<8x1xf32>
    %294 = arith.subf %293, %290 : vector<8x1xf32>
    %295 = vector.broadcast %294 : vector<8x1xf32> to vector<8x32xf32>
    %296 = arith.mulf %295, %222 : vector<8x32xf32>
    %297 = arith.addf %292, %296 : vector<8x32xf32>
    %298 = vector.broadcast %290 : vector<8x1xf32> to vector<8x32xf32>
    %299 = arith.mulf %298, %289 : vector<8x32xf32>
    %cst_86 = arith.constant 1.000000e+00 : f32
    %300 = vector.broadcast %cst_86 : f32 to vector<8x1xf32>
    %301 = arith.subf %300, %290 : vector<8x1xf32>
    %302 = vector.broadcast %301 : vector<8x1xf32> to vector<8x32xf32>
    %303 = arith.mulf %302, %229 : vector<8x32xf32>
    %304 = arith.addf %299, %303 : vector<8x32xf32>
    %c0_87 = arith.constant 0 : index
    %c4 = arith.constant 4 : index
    %c0_88 = arith.constant 0 : index
    %305 = vector.load %arg2[%c0_87, %c4, %c0_88] : memref<8x8x96xf32, #tpu.memory_space<vmem>>, vector<8x1x96xf32>
    %306 = vector.shape_cast %305 : vector<8x1x96xf32> to vector<8x96xf32>
    %c0_89 = arith.constant 0 : index
    %c0_90 = arith.constant 0 : index
    %307 = vector.load %arg4[%c0_89, %c0_90] : memref<32x96xf32, #tpu.memory_space<vmem>>, vector<32x96xf32>
    %cst_91 = arith.constant dense<0.000000e+00> : vector<8x96xf32>
    %308 = tpu.matmul %297, %307, %cst_91 {dimension_numbers = #tpu.dot_dimension_numbers<[1], [0], [0], [1], [0, 0, 1, 1], [], []>} : vector<8x32xf32>, vector<32x96xf32>, vector<8x96xf32> -> vector<8x96xf32>
    %309 = vector.broadcast %4 : vector<1x96xf32> to vector<8x96xf32>
    %310 = arith.addf %308, %309 : vector<8x96xf32>
    %311 = vector.extract_strided_slice %306 {offsets = [0, 0], sizes = [8, 32], strides = [1, 1]} : vector<8x96xf32> to vector<8x32xf32>
    %312 = vector.extract_strided_slice %310 {offsets = [0, 0], sizes = [8, 32], strides = [1, 1]} : vector<8x96xf32> to vector<8x32xf32>
    %313 = arith.addf %311, %312 : vector<8x32xf32>
    %314 = arith.negf %313 : vector<8x32xf32>
    %315 = math.exp %314 : vector<8x32xf32>
    %cst_92 = arith.constant 1.000000e+00 : f32
    %316 = vector.broadcast %cst_92 : f32 to vector<8x32xf32>
    %317 = arith.addf %316, %315 : vector<8x32xf32>
    %318 = arith.divf %316, %317 : vector<8x32xf32>
    %319 = vector.extract_strided_slice %306 {offsets = [0, 32], sizes = [8, 32], strides = [1, 1]} : vector<8x96xf32> to vector<8x32xf32>
    %320 = vector.extract_strided_slice %310 {offsets = [0, 32], sizes = [8, 32], strides = [1, 1]} : vector<8x96xf32> to vector<8x32xf32>
    %321 = arith.addf %319, %320 : vector<8x32xf32>
    %322 = arith.negf %321 : vector<8x32xf32>
    %323 = math.exp %322 : vector<8x32xf32>
    %cst_93 = arith.constant 1.000000e+00 : f32
    %324 = vector.broadcast %cst_93 : f32 to vector<8x32xf32>
    %325 = arith.addf %324, %323 : vector<8x32xf32>
    %326 = arith.divf %324, %325 : vector<8x32xf32>
    %327 = vector.extract_strided_slice %306 {offsets = [0, 64], sizes = [8, 32], strides = [1, 1]} : vector<8x96xf32> to vector<8x32xf32>
    %328 = vector.extract_strided_slice %310 {offsets = [0, 64], sizes = [8, 32], strides = [1, 1]} : vector<8x96xf32> to vector<8x32xf32>
    %329 = arith.mulf %318, %328 : vector<8x32xf32>
    %330 = arith.addf %327, %329 : vector<8x32xf32>
    %331 = math.tanh %330 : vector<8x32xf32>
    %cst_94 = arith.constant 1.000000e+00 : f32
    %332 = vector.broadcast %cst_94 : f32 to vector<8x32xf32>
    %333 = arith.subf %332, %326 : vector<8x32xf32>
    %334 = arith.mulf %333, %331 : vector<8x32xf32>
    %335 = arith.mulf %326, %297 : vector<8x32xf32>
    %336 = arith.addf %334, %335 : vector<8x32xf32>
    %337 = tpu.concatenate %336, %304 in 1 : vector<8x32xf32>, vector<8x32xf32> -> vector<8x64xf32>
    %c0_95 = arith.constant 0 : index
    %c0_96 = arith.constant 0 : index
    %338 = vector.load %arg6[%c0_95, %c0_96] : memref<64x128xf32, #tpu.memory_space<vmem>>, vector<64x128xf32>
    %cst_97 = arith.constant dense<0.000000e+00> : vector<8x128xf32>
    %339 = tpu.matmul %337, %338, %cst_97 {dimension_numbers = #tpu.dot_dimension_numbers<[1], [0], [0], [1], [0, 0, 1, 1], [], []>} : vector<8x64xf32>, vector<64x128xf32>, vector<8x128xf32> -> vector<8x128xf32>
    %c0_98 = arith.constant 0 : index
    %c0_99 = arith.constant 0 : index
    %340 = vector.load %arg7[%c0_98, %c0_99] : memref<1x128xf32, #tpu.memory_space<vmem>>, vector<1x128xf32>
    %341 = vector.broadcast %340 : vector<1x128xf32> to vector<8x128xf32>
    %342 = arith.addf %339, %341 : vector<8x128xf32>
    %343 = vector.extract_strided_slice %342 {offsets = [0, 0], sizes = [8, 32], strides = [1, 1]} : vector<8x128xf32> to vector<8x32xf32>
    %344 = arith.negf %343 : vector<8x32xf32>
    %345 = math.exp %344 : vector<8x32xf32>
    %cst_100 = arith.constant 1.000000e+00 : f32
    %346 = vector.broadcast %cst_100 : f32 to vector<8x32xf32>
    %347 = arith.addf %346, %345 : vector<8x32xf32>
    %348 = arith.divf %346, %347 : vector<8x32xf32>
    %349 = vector.extract_strided_slice %342 {offsets = [0, 32], sizes = [8, 32], strides = [1, 1]} : vector<8x128xf32> to vector<8x32xf32>
    %350 = arith.negf %349 : vector<8x32xf32>
    %351 = math.exp %350 : vector<8x32xf32>
    %cst_101 = arith.constant 1.000000e+00 : f32
    %352 = vector.broadcast %cst_101 : f32 to vector<8x32xf32>
    %353 = arith.addf %352, %351 : vector<8x32xf32>
    %354 = arith.divf %352, %353 : vector<8x32xf32>
    %355 = vector.extract_strided_slice %342 {offsets = [0, 64], sizes = [8, 32], strides = [1, 1]} : vector<8x128xf32> to vector<8x32xf32>
    %356 = vector.extract_strided_slice %342 {offsets = [0, 96], sizes = [8, 32], strides = [1, 1]} : vector<8x128xf32> to vector<8x32xf32>
    %357 = arith.mulf %348, %356 : vector<8x32xf32>
    %358 = arith.addf %355, %357 : vector<8x32xf32>
    %359 = math.tanh %358 : vector<8x32xf32>
    %cst_102 = arith.constant 1.000000e+00 : f32
    %360 = vector.broadcast %cst_102 : f32 to vector<8x32xf32>
    %361 = arith.subf %360, %354 : vector<8x32xf32>
    %362 = arith.mulf %361, %359 : vector<8x32xf32>
    %363 = arith.mulf %354, %304 : vector<8x32xf32>
    %364 = arith.addf %362, %363 : vector<8x32xf32>
    %c0_103 = arith.constant 0 : index
    %c4_104 = arith.constant 4 : index
    %365 = vector.load %arg3[%c0_103, %c4_104] : memref<8x8xf32, #tpu.memory_space<vmem>>, vector<8x1xf32>
    %366 = vector.broadcast %365 : vector<8x1xf32> to vector<8x32xf32>
    %367 = arith.mulf %366, %336 : vector<8x32xf32>
    %cst_105 = arith.constant 1.000000e+00 : f32
    %368 = vector.broadcast %cst_105 : f32 to vector<8x1xf32>
    %369 = arith.subf %368, %365 : vector<8x1xf32>
    %370 = vector.broadcast %369 : vector<8x1xf32> to vector<8x32xf32>
    %371 = arith.mulf %370, %297 : vector<8x32xf32>
    %372 = arith.addf %367, %371 : vector<8x32xf32>
    %373 = vector.broadcast %365 : vector<8x1xf32> to vector<8x32xf32>
    %374 = arith.mulf %373, %364 : vector<8x32xf32>
    %cst_106 = arith.constant 1.000000e+00 : f32
    %375 = vector.broadcast %cst_106 : f32 to vector<8x1xf32>
    %376 = arith.subf %375, %365 : vector<8x1xf32>
    %377 = vector.broadcast %376 : vector<8x1xf32> to vector<8x32xf32>
    %378 = arith.mulf %377, %304 : vector<8x32xf32>
    %379 = arith.addf %374, %378 : vector<8x32xf32>
    %c0_107 = arith.constant 0 : index
    %c5 = arith.constant 5 : index
    %c0_108 = arith.constant 0 : index
    %380 = vector.load %arg2[%c0_107, %c5, %c0_108] : memref<8x8x96xf32, #tpu.memory_space<vmem>>, vector<8x1x96xf32>
    %381 = vector.shape_cast %380 : vector<8x1x96xf32> to vector<8x96xf32>
    %c0_109 = arith.constant 0 : index
    %c0_110 = arith.constant 0 : index
    %382 = vector.load %arg4[%c0_109, %c0_110] : memref<32x96xf32, #tpu.memory_space<vmem>>, vector<32x96xf32>
    %cst_111 = arith.constant dense<0.000000e+00> : vector<8x96xf32>
    %383 = tpu.matmul %372, %382, %cst_111 {dimension_numbers = #tpu.dot_dimension_numbers<[1], [0], [0], [1], [0, 0, 1, 1], [], []>} : vector<8x32xf32>, vector<32x96xf32>, vector<8x96xf32> -> vector<8x96xf32>
    %384 = vector.broadcast %4 : vector<1x96xf32> to vector<8x96xf32>
    %385 = arith.addf %383, %384 : vector<8x96xf32>
    %386 = vector.extract_strided_slice %381 {offsets = [0, 0], sizes = [8, 32], strides = [1, 1]} : vector<8x96xf32> to vector<8x32xf32>
    %387 = vector.extract_strided_slice %385 {offsets = [0, 0], sizes = [8, 32], strides = [1, 1]} : vector<8x96xf32> to vector<8x32xf32>
    %388 = arith.addf %386, %387 : vector<8x32xf32>
    %389 = arith.negf %388 : vector<8x32xf32>
    %390 = math.exp %389 : vector<8x32xf32>
    %cst_112 = arith.constant 1.000000e+00 : f32
    %391 = vector.broadcast %cst_112 : f32 to vector<8x32xf32>
    %392 = arith.addf %391, %390 : vector<8x32xf32>
    %393 = arith.divf %391, %392 : vector<8x32xf32>
    %394 = vector.extract_strided_slice %381 {offsets = [0, 32], sizes = [8, 32], strides = [1, 1]} : vector<8x96xf32> to vector<8x32xf32>
    %395 = vector.extract_strided_slice %385 {offsets = [0, 32], sizes = [8, 32], strides = [1, 1]} : vector<8x96xf32> to vector<8x32xf32>
    %396 = arith.addf %394, %395 : vector<8x32xf32>
    %397 = arith.negf %396 : vector<8x32xf32>
    %398 = math.exp %397 : vector<8x32xf32>
    %cst_113 = arith.constant 1.000000e+00 : f32
    %399 = vector.broadcast %cst_113 : f32 to vector<8x32xf32>
    %400 = arith.addf %399, %398 : vector<8x32xf32>
    %401 = arith.divf %399, %400 : vector<8x32xf32>
    %402 = vector.extract_strided_slice %381 {offsets = [0, 64], sizes = [8, 32], strides = [1, 1]} : vector<8x96xf32> to vector<8x32xf32>
    %403 = vector.extract_strided_slice %385 {offsets = [0, 64], sizes = [8, 32], strides = [1, 1]} : vector<8x96xf32> to vector<8x32xf32>
    %404 = arith.mulf %393, %403 : vector<8x32xf32>
    %405 = arith.addf %402, %404 : vector<8x32xf32>
    %406 = math.tanh %405 : vector<8x32xf32>
    %cst_114 = arith.constant 1.000000e+00 : f32
    %407 = vector.broadcast %cst_114 : f32 to vector<8x32xf32>
    %408 = arith.subf %407, %401 : vector<8x32xf32>
    %409 = arith.mulf %408, %406 : vector<8x32xf32>
    %410 = arith.mulf %401, %372 : vector<8x32xf32>
    %411 = arith.addf %409, %410 : vector<8x32xf32>
    %412 = tpu.concatenate %411, %379 in 1 : vector<8x32xf32>, vector<8x32xf32> -> vector<8x64xf32>
    %c0_115 = arith.constant 0 : index
    %c0_116 = arith.constant 0 : index
    %413 = vector.load %arg6[%c0_115, %c0_116] : memref<64x128xf32, #tpu.memory_space<vmem>>, vector<64x128xf32>
    %cst_117 = arith.constant dense<0.000000e+00> : vector<8x128xf32>
    %414 = tpu.matmul %412, %413, %cst_117 {dimension_numbers = #tpu.dot_dimension_numbers<[1], [0], [0], [1], [0, 0, 1, 1], [], []>} : vector<8x64xf32>, vector<64x128xf32>, vector<8x128xf32> -> vector<8x128xf32>
    %c0_118 = arith.constant 0 : index
    %c0_119 = arith.constant 0 : index
    %415 = vector.load %arg7[%c0_118, %c0_119] : memref<1x128xf32, #tpu.memory_space<vmem>>, vector<1x128xf32>
    %416 = vector.broadcast %415 : vector<1x128xf32> to vector<8x128xf32>
    %417 = arith.addf %414, %416 : vector<8x128xf32>
    %418 = vector.extract_strided_slice %417 {offsets = [0, 0], sizes = [8, 32], strides = [1, 1]} : vector<8x128xf32> to vector<8x32xf32>
    %419 = arith.negf %418 : vector<8x32xf32>
    %420 = math.exp %419 : vector<8x32xf32>
    %cst_120 = arith.constant 1.000000e+00 : f32
    %421 = vector.broadcast %cst_120 : f32 to vector<8x32xf32>
    %422 = arith.addf %421, %420 : vector<8x32xf32>
    %423 = arith.divf %421, %422 : vector<8x32xf32>
    %424 = vector.extract_strided_slice %417 {offsets = [0, 32], sizes = [8, 32], strides = [1, 1]} : vector<8x128xf32> to vector<8x32xf32>
    %425 = arith.negf %424 : vector<8x32xf32>
    %426 = math.exp %425 : vector<8x32xf32>
    %cst_121 = arith.constant 1.000000e+00 : f32
    %427 = vector.broadcast %cst_121 : f32 to vector<8x32xf32>
    %428 = arith.addf %427, %426 : vector<8x32xf32>
    %429 = arith.divf %427, %428 : vector<8x32xf32>
    %430 = vector.extract_strided_slice %417 {offsets = [0, 64], sizes = [8, 32], strides = [1, 1]} : vector<8x128xf32> to vector<8x32xf32>
    %431 = vector.extract_strided_slice %417 {offsets = [0, 96], sizes = [8, 32], strides = [1, 1]} : vector<8x128xf32> to vector<8x32xf32>
    %432 = arith.mulf %423, %431 : vector<8x32xf32>
    %433 = arith.addf %430, %432 : vector<8x32xf32>
    %434 = math.tanh %433 : vector<8x32xf32>
    %cst_122 = arith.constant 1.000000e+00 : f32
    %435 = vector.broadcast %cst_122 : f32 to vector<8x32xf32>
    %436 = arith.subf %435, %429 : vector<8x32xf32>
    %437 = arith.mulf %436, %434 : vector<8x32xf32>
    %438 = arith.mulf %429, %379 : vector<8x32xf32>
    %439 = arith.addf %437, %438 : vector<8x32xf32>
    %c0_123 = arith.constant 0 : index
    %c5_124 = arith.constant 5 : index
    %440 = vector.load %arg3[%c0_123, %c5_124] : memref<8x8xf32, #tpu.memory_space<vmem>>, vector<8x1xf32>
    %441 = vector.broadcast %440 : vector<8x1xf32> to vector<8x32xf32>
    %442 = arith.mulf %441, %411 : vector<8x32xf32>
    %cst_125 = arith.constant 1.000000e+00 : f32
    %443 = vector.broadcast %cst_125 : f32 to vector<8x1xf32>
    %444 = arith.subf %443, %440 : vector<8x1xf32>
    %445 = vector.broadcast %444 : vector<8x1xf32> to vector<8x32xf32>
    %446 = arith.mulf %445, %372 : vector<8x32xf32>
    %447 = arith.addf %442, %446 : vector<8x32xf32>
    %448 = vector.broadcast %440 : vector<8x1xf32> to vector<8x32xf32>
    %449 = arith.mulf %448, %439 : vector<8x32xf32>
    %cst_126 = arith.constant 1.000000e+00 : f32
    %450 = vector.broadcast %cst_126 : f32 to vector<8x1xf32>
    %451 = arith.subf %450, %440 : vector<8x1xf32>
    %452 = vector.broadcast %451 : vector<8x1xf32> to vector<8x32xf32>
    %453 = arith.mulf %452, %379 : vector<8x32xf32>
    %454 = arith.addf %449, %453 : vector<8x32xf32>
    %c0_127 = arith.constant 0 : index
    %c6 = arith.constant 6 : index
    %c0_128 = arith.constant 0 : index
    %455 = vector.load %arg2[%c0_127, %c6, %c0_128] : memref<8x8x96xf32, #tpu.memory_space<vmem>>, vector<8x1x96xf32>
    %456 = vector.shape_cast %455 : vector<8x1x96xf32> to vector<8x96xf32>
    %c0_129 = arith.constant 0 : index
    %c0_130 = arith.constant 0 : index
    %457 = vector.load %arg4[%c0_129, %c0_130] : memref<32x96xf32, #tpu.memory_space<vmem>>, vector<32x96xf32>
    %cst_131 = arith.constant dense<0.000000e+00> : vector<8x96xf32>
    %458 = tpu.matmul %447, %457, %cst_131 {dimension_numbers = #tpu.dot_dimension_numbers<[1], [0], [0], [1], [0, 0, 1, 1], [], []>} : vector<8x32xf32>, vector<32x96xf32>, vector<8x96xf32> -> vector<8x96xf32>
    %459 = vector.broadcast %4 : vector<1x96xf32> to vector<8x96xf32>
    %460 = arith.addf %458, %459 : vector<8x96xf32>
    %461 = vector.extract_strided_slice %456 {offsets = [0, 0], sizes = [8, 32], strides = [1, 1]} : vector<8x96xf32> to vector<8x32xf32>
    %462 = vector.extract_strided_slice %460 {offsets = [0, 0], sizes = [8, 32], strides = [1, 1]} : vector<8x96xf32> to vector<8x32xf32>
    %463 = arith.addf %461, %462 : vector<8x32xf32>
    %464 = arith.negf %463 : vector<8x32xf32>
    %465 = math.exp %464 : vector<8x32xf32>
    %cst_132 = arith.constant 1.000000e+00 : f32
    %466 = vector.broadcast %cst_132 : f32 to vector<8x32xf32>
    %467 = arith.addf %466, %465 : vector<8x32xf32>
    %468 = arith.divf %466, %467 : vector<8x32xf32>
    %469 = vector.extract_strided_slice %456 {offsets = [0, 32], sizes = [8, 32], strides = [1, 1]} : vector<8x96xf32> to vector<8x32xf32>
    %470 = vector.extract_strided_slice %460 {offsets = [0, 32], sizes = [8, 32], strides = [1, 1]} : vector<8x96xf32> to vector<8x32xf32>
    %471 = arith.addf %469, %470 : vector<8x32xf32>
    %472 = arith.negf %471 : vector<8x32xf32>
    %473 = math.exp %472 : vector<8x32xf32>
    %cst_133 = arith.constant 1.000000e+00 : f32
    %474 = vector.broadcast %cst_133 : f32 to vector<8x32xf32>
    %475 = arith.addf %474, %473 : vector<8x32xf32>
    %476 = arith.divf %474, %475 : vector<8x32xf32>
    %477 = vector.extract_strided_slice %456 {offsets = [0, 64], sizes = [8, 32], strides = [1, 1]} : vector<8x96xf32> to vector<8x32xf32>
    %478 = vector.extract_strided_slice %460 {offsets = [0, 64], sizes = [8, 32], strides = [1, 1]} : vector<8x96xf32> to vector<8x32xf32>
    %479 = arith.mulf %468, %478 : vector<8x32xf32>
    %480 = arith.addf %477, %479 : vector<8x32xf32>
    %481 = math.tanh %480 : vector<8x32xf32>
    %cst_134 = arith.constant 1.000000e+00 : f32
    %482 = vector.broadcast %cst_134 : f32 to vector<8x32xf32>
    %483 = arith.subf %482, %476 : vector<8x32xf32>
    %484 = arith.mulf %483, %481 : vector<8x32xf32>
    %485 = arith.mulf %476, %447 : vector<8x32xf32>
    %486 = arith.addf %484, %485 : vector<8x32xf32>
    %487 = tpu.concatenate %486, %454 in 1 : vector<8x32xf32>, vector<8x32xf32> -> vector<8x64xf32>
    %c0_135 = arith.constant 0 : index
    %c0_136 = arith.constant 0 : index
    %488 = vector.load %arg6[%c0_135, %c0_136] : memref<64x128xf32, #tpu.memory_space<vmem>>, vector<64x128xf32>
    %cst_137 = arith.constant dense<0.000000e+00> : vector<8x128xf32>
    %489 = tpu.matmul %487, %488, %cst_137 {dimension_numbers = #tpu.dot_dimension_numbers<[1], [0], [0], [1], [0, 0, 1, 1], [], []>} : vector<8x64xf32>, vector<64x128xf32>, vector<8x128xf32> -> vector<8x128xf32>
    %c0_138 = arith.constant 0 : index
    %c0_139 = arith.constant 0 : index
    %490 = vector.load %arg7[%c0_138, %c0_139] : memref<1x128xf32, #tpu.memory_space<vmem>>, vector<1x128xf32>
    %491 = vector.broadcast %490 : vector<1x128xf32> to vector<8x128xf32>
    %492 = arith.addf %489, %491 : vector<8x128xf32>
    %493 = vector.extract_strided_slice %492 {offsets = [0, 0], sizes = [8, 32], strides = [1, 1]} : vector<8x128xf32> to vector<8x32xf32>
    %494 = arith.negf %493 : vector<8x32xf32>
    %495 = math.exp %494 : vector<8x32xf32>
    %cst_140 = arith.constant 1.000000e+00 : f32
    %496 = vector.broadcast %cst_140 : f32 to vector<8x32xf32>
    %497 = arith.addf %496, %495 : vector<8x32xf32>
    %498 = arith.divf %496, %497 : vector<8x32xf32>
    %499 = vector.extract_strided_slice %492 {offsets = [0, 32], sizes = [8, 32], strides = [1, 1]} : vector<8x128xf32> to vector<8x32xf32>
    %500 = arith.negf %499 : vector<8x32xf32>
    %501 = math.exp %500 : vector<8x32xf32>
    %cst_141 = arith.constant 1.000000e+00 : f32
    %502 = vector.broadcast %cst_141 : f32 to vector<8x32xf32>
    %503 = arith.addf %502, %501 : vector<8x32xf32>
    %504 = arith.divf %502, %503 : vector<8x32xf32>
    %505 = vector.extract_strided_slice %492 {offsets = [0, 64], sizes = [8, 32], strides = [1, 1]} : vector<8x128xf32> to vector<8x32xf32>
    %506 = vector.extract_strided_slice %492 {offsets = [0, 96], sizes = [8, 32], strides = [1, 1]} : vector<8x128xf32> to vector<8x32xf32>
    %507 = arith.mulf %498, %506 : vector<8x32xf32>
    %508 = arith.addf %505, %507 : vector<8x32xf32>
    %509 = math.tanh %508 : vector<8x32xf32>
    %cst_142 = arith.constant 1.000000e+00 : f32
    %510 = vector.broadcast %cst_142 : f32 to vector<8x32xf32>
    %511 = arith.subf %510, %504 : vector<8x32xf32>
    %512 = arith.mulf %511, %509 : vector<8x32xf32>
    %513 = arith.mulf %504, %454 : vector<8x32xf32>
    %514 = arith.addf %512, %513 : vector<8x32xf32>
    %c0_143 = arith.constant 0 : index
    %c6_144 = arith.constant 6 : index
    %515 = vector.load %arg3[%c0_143, %c6_144] : memref<8x8xf32, #tpu.memory_space<vmem>>, vector<8x1xf32>
    %516 = vector.broadcast %515 : vector<8x1xf32> to vector<8x32xf32>
    %517 = arith.mulf %516, %486 : vector<8x32xf32>
    %cst_145 = arith.constant 1.000000e+00 : f32
    %518 = vector.broadcast %cst_145 : f32 to vector<8x1xf32>
    %519 = arith.subf %518, %515 : vector<8x1xf32>
    %520 = vector.broadcast %519 : vector<8x1xf32> to vector<8x32xf32>
    %521 = arith.mulf %520, %447 : vector<8x32xf32>
    %522 = arith.addf %517, %521 : vector<8x32xf32>
    %523 = vector.broadcast %515 : vector<8x1xf32> to vector<8x32xf32>
    %524 = arith.mulf %523, %514 : vector<8x32xf32>
    %cst_146 = arith.constant 1.000000e+00 : f32
    %525 = vector.broadcast %cst_146 : f32 to vector<8x1xf32>
    %526 = arith.subf %525, %515 : vector<8x1xf32>
    %527 = vector.broadcast %526 : vector<8x1xf32> to vector<8x32xf32>
    %528 = arith.mulf %527, %454 : vector<8x32xf32>
    %529 = arith.addf %524, %528 : vector<8x32xf32>
    %c0_147 = arith.constant 0 : index
    %c7 = arith.constant 7 : index
    %c0_148 = arith.constant 0 : index
    %530 = vector.load %arg2[%c0_147, %c7, %c0_148] : memref<8x8x96xf32, #tpu.memory_space<vmem>>, vector<8x1x96xf32>
    %531 = vector.shape_cast %530 : vector<8x1x96xf32> to vector<8x96xf32>
    %c0_149 = arith.constant 0 : index
    %c0_150 = arith.constant 0 : index
    %532 = vector.load %arg4[%c0_149, %c0_150] : memref<32x96xf32, #tpu.memory_space<vmem>>, vector<32x96xf32>
    %cst_151 = arith.constant dense<0.000000e+00> : vector<8x96xf32>
    %533 = tpu.matmul %522, %532, %cst_151 {dimension_numbers = #tpu.dot_dimension_numbers<[1], [0], [0], [1], [0, 0, 1, 1], [], []>} : vector<8x32xf32>, vector<32x96xf32>, vector<8x96xf32> -> vector<8x96xf32>
    %534 = vector.broadcast %4 : vector<1x96xf32> to vector<8x96xf32>
    %535 = arith.addf %533, %534 : vector<8x96xf32>
    %536 = vector.extract_strided_slice %531 {offsets = [0, 0], sizes = [8, 32], strides = [1, 1]} : vector<8x96xf32> to vector<8x32xf32>
    %537 = vector.extract_strided_slice %535 {offsets = [0, 0], sizes = [8, 32], strides = [1, 1]} : vector<8x96xf32> to vector<8x32xf32>
    %538 = arith.addf %536, %537 : vector<8x32xf32>
    %539 = arith.negf %538 : vector<8x32xf32>
    %540 = math.exp %539 : vector<8x32xf32>
    %cst_152 = arith.constant 1.000000e+00 : f32
    %541 = vector.broadcast %cst_152 : f32 to vector<8x32xf32>
    %542 = arith.addf %541, %540 : vector<8x32xf32>
    %543 = arith.divf %541, %542 : vector<8x32xf32>
    %544 = vector.extract_strided_slice %531 {offsets = [0, 32], sizes = [8, 32], strides = [1, 1]} : vector<8x96xf32> to vector<8x32xf32>
    %545 = vector.extract_strided_slice %535 {offsets = [0, 32], sizes = [8, 32], strides = [1, 1]} : vector<8x96xf32> to vector<8x32xf32>
    %546 = arith.addf %544, %545 : vector<8x32xf32>
    %547 = arith.negf %546 : vector<8x32xf32>
    %548 = math.exp %547 : vector<8x32xf32>
    %cst_153 = arith.constant 1.000000e+00 : f32
    %549 = vector.broadcast %cst_153 : f32 to vector<8x32xf32>
    %550 = arith.addf %549, %548 : vector<8x32xf32>
    %551 = arith.divf %549, %550 : vector<8x32xf32>
    %552 = vector.extract_strided_slice %531 {offsets = [0, 64], sizes = [8, 32], strides = [1, 1]} : vector<8x96xf32> to vector<8x32xf32>
    %553 = vector.extract_strided_slice %535 {offsets = [0, 64], sizes = [8, 32], strides = [1, 1]} : vector<8x96xf32> to vector<8x32xf32>
    %554 = arith.mulf %543, %553 : vector<8x32xf32>
    %555 = arith.addf %552, %554 : vector<8x32xf32>
    %556 = math.tanh %555 : vector<8x32xf32>
    %cst_154 = arith.constant 1.000000e+00 : f32
    %557 = vector.broadcast %cst_154 : f32 to vector<8x32xf32>
    %558 = arith.subf %557, %551 : vector<8x32xf32>
    %559 = arith.mulf %558, %556 : vector<8x32xf32>
    %560 = arith.mulf %551, %522 : vector<8x32xf32>
    %561 = arith.addf %559, %560 : vector<8x32xf32>
    %562 = tpu.concatenate %561, %529 in 1 : vector<8x32xf32>, vector<8x32xf32> -> vector<8x64xf32>
    %c0_155 = arith.constant 0 : index
    %c0_156 = arith.constant 0 : index
    %563 = vector.load %arg6[%c0_155, %c0_156] : memref<64x128xf32, #tpu.memory_space<vmem>>, vector<64x128xf32>
    %cst_157 = arith.constant dense<0.000000e+00> : vector<8x128xf32>
    %564 = tpu.matmul %562, %563, %cst_157 {dimension_numbers = #tpu.dot_dimension_numbers<[1], [0], [0], [1], [0, 0, 1, 1], [], []>} : vector<8x64xf32>, vector<64x128xf32>, vector<8x128xf32> -> vector<8x128xf32>
    %c0_158 = arith.constant 0 : index
    %c0_159 = arith.constant 0 : index
    %565 = vector.load %arg7[%c0_158, %c0_159] : memref<1x128xf32, #tpu.memory_space<vmem>>, vector<1x128xf32>
    %566 = vector.broadcast %565 : vector<1x128xf32> to vector<8x128xf32>
    %567 = arith.addf %564, %566 : vector<8x128xf32>
    %568 = vector.extract_strided_slice %567 {offsets = [0, 0], sizes = [8, 32], strides = [1, 1]} : vector<8x128xf32> to vector<8x32xf32>
    %569 = arith.negf %568 : vector<8x32xf32>
    %570 = math.exp %569 : vector<8x32xf32>
    %cst_160 = arith.constant 1.000000e+00 : f32
    %571 = vector.broadcast %cst_160 : f32 to vector<8x32xf32>
    %572 = arith.addf %571, %570 : vector<8x32xf32>
    %573 = arith.divf %571, %572 : vector<8x32xf32>
    %574 = vector.extract_strided_slice %567 {offsets = [0, 32], sizes = [8, 32], strides = [1, 1]} : vector<8x128xf32> to vector<8x32xf32>
    %575 = arith.negf %574 : vector<8x32xf32>
    %576 = math.exp %575 : vector<8x32xf32>
    %cst_161 = arith.constant 1.000000e+00 : f32
    %577 = vector.broadcast %cst_161 : f32 to vector<8x32xf32>
    %578 = arith.addf %577, %576 : vector<8x32xf32>
    %579 = arith.divf %577, %578 : vector<8x32xf32>
    %580 = vector.extract_strided_slice %567 {offsets = [0, 64], sizes = [8, 32], strides = [1, 1]} : vector<8x128xf32> to vector<8x32xf32>
    %581 = vector.extract_strided_slice %567 {offsets = [0, 96], sizes = [8, 32], strides = [1, 1]} : vector<8x128xf32> to vector<8x32xf32>
    %582 = arith.mulf %573, %581 : vector<8x32xf32>
    %583 = arith.addf %580, %582 : vector<8x32xf32>
    %584 = math.tanh %583 : vector<8x32xf32>
    %cst_162 = arith.constant 1.000000e+00 : f32
    %585 = vector.broadcast %cst_162 : f32 to vector<8x32xf32>
    %586 = arith.subf %585, %579 : vector<8x32xf32>
    %587 = arith.mulf %586, %584 : vector<8x32xf32>
    %588 = arith.mulf %579, %529 : vector<8x32xf32>
    %589 = arith.addf %587, %588 : vector<8x32xf32>
    %c0_163 = arith.constant 0 : index
    %c7_164 = arith.constant 7 : index
    %590 = vector.load %arg3[%c0_163, %c7_164] : memref<8x8xf32, #tpu.memory_space<vmem>>, vector<8x1xf32>
    %591 = vector.broadcast %590 : vector<8x1xf32> to vector<8x32xf32>
    %592 = arith.mulf %591, %561 : vector<8x32xf32>
    %cst_165 = arith.constant 1.000000e+00 : f32
    %593 = vector.broadcast %cst_165 : f32 to vector<8x1xf32>
    %594 = arith.subf %593, %590 : vector<8x1xf32>
    %595 = vector.broadcast %594 : vector<8x1xf32> to vector<8x32xf32>
    %596 = arith.mulf %595, %522 : vector<8x32xf32>
    %597 = arith.addf %592, %596 : vector<8x32xf32>
    %598 = vector.broadcast %590 : vector<8x1xf32> to vector<8x32xf32>
    %599 = arith.mulf %598, %589 : vector<8x32xf32>
    %cst_166 = arith.constant 1.000000e+00 : f32
    %600 = vector.broadcast %cst_166 : f32 to vector<8x1xf32>
    %601 = arith.subf %600, %590 : vector<8x1xf32>
    %602 = vector.broadcast %601 : vector<8x1xf32> to vector<8x32xf32>
    %603 = arith.mulf %602, %529 : vector<8x32xf32>
    %604 = arith.addf %599, %603 : vector<8x32xf32>
    %605 = tpu.iota {dimensions = array<i32: 1>} : vector<8x32xi32>
    %c1_i32 = arith.constant 1 : i32
    %606 = vector.broadcast %c1_i32 : i32 to vector<8x32xi32>
    %607 = arith.cmpi eq, %605, %606 : vector<8x32xi32>
    %608 = arith.extui %607 : vector<8x32xi1> to vector<8x32xi32>
    %609 = arith.sitofp %608 : vector<8x32xi32> to vector<8x32xf32>
    %false = arith.constant false
    %610 = vector.broadcast %false : i1 to vector<8x1xi1>
    %c0_167 = arith.constant 0 : index
    %c0_168 = arith.constant 0 : index
    %611 = vector.load %arg12[%c0_167, %c0_168] : memref<32x32xf32, #tpu.memory_space<vmem>>, vector<32x32xf32>
    %c0_169 = arith.constant 0 : index
    %c0_170 = arith.constant 0 : index
    %612 = vector.load %arg13[%c0_169, %c0_170] : memref<1x32xf32, #tpu.memory_space<vmem>>, vector<1x32xf32>
    %613 = tpu.concatenate %609, %597 in 1 : vector<8x32xf32>, vector<8x32xf32> -> vector<8x64xf32>
    %c0_171 = arith.constant 0 : index
    %c0_172 = arith.constant 0 : index
    %614 = vector.load %arg8[%c0_171, %c0_172] : memref<64x128xf32, #tpu.memory_space<vmem>>, vector<64x128xf32>
    %cst_173 = arith.constant dense<0.000000e+00> : vector<8x128xf32>
    %615 = tpu.matmul %613, %614, %cst_173 {dimension_numbers = #tpu.dot_dimension_numbers<[1], [0], [0], [1], [0, 0, 1, 1], [], []>} : vector<8x64xf32>, vector<64x128xf32>, vector<8x128xf32> -> vector<8x128xf32>
    %c0_174 = arith.constant 0 : index
    %c0_175 = arith.constant 0 : index
    %616 = vector.load %arg9[%c0_174, %c0_175] : memref<1x128xf32, #tpu.memory_space<vmem>>, vector<1x128xf32>
    %617 = vector.broadcast %616 : vector<1x128xf32> to vector<8x128xf32>
    %618 = arith.addf %615, %617 : vector<8x128xf32>
    %619 = vector.extract_strided_slice %618 {offsets = [0, 0], sizes = [8, 32], strides = [1, 1]} : vector<8x128xf32> to vector<8x32xf32>
    %620 = arith.negf %619 : vector<8x32xf32>
    %621 = math.exp %620 : vector<8x32xf32>
    %cst_176 = arith.constant 1.000000e+00 : f32
    %622 = vector.broadcast %cst_176 : f32 to vector<8x32xf32>
    %623 = arith.addf %622, %621 : vector<8x32xf32>
    %624 = arith.divf %622, %623 : vector<8x32xf32>
    %625 = vector.extract_strided_slice %618 {offsets = [0, 32], sizes = [8, 32], strides = [1, 1]} : vector<8x128xf32> to vector<8x32xf32>
    %626 = arith.negf %625 : vector<8x32xf32>
    %627 = math.exp %626 : vector<8x32xf32>
    %cst_177 = arith.constant 1.000000e+00 : f32
    %628 = vector.broadcast %cst_177 : f32 to vector<8x32xf32>
    %629 = arith.addf %628, %627 : vector<8x32xf32>
    %630 = arith.divf %628, %629 : vector<8x32xf32>
    %631 = vector.extract_strided_slice %618 {offsets = [0, 64], sizes = [8, 32], strides = [1, 1]} : vector<8x128xf32> to vector<8x32xf32>
    %632 = vector.extract_strided_slice %618 {offsets = [0, 96], sizes = [8, 32], strides = [1, 1]} : vector<8x128xf32> to vector<8x32xf32>
    %633 = arith.mulf %624, %632 : vector<8x32xf32>
    %634 = arith.addf %631, %633 : vector<8x32xf32>
    %635 = math.tanh %634 : vector<8x32xf32>
    %cst_178 = arith.constant 1.000000e+00 : f32
    %636 = vector.broadcast %cst_178 : f32 to vector<8x32xf32>
    %637 = arith.subf %636, %630 : vector<8x32xf32>
    %638 = arith.mulf %637, %635 : vector<8x32xf32>
    %639 = arith.mulf %630, %597 : vector<8x32xf32>
    %640 = arith.addf %638, %639 : vector<8x32xf32>
    %641 = tpu.concatenate %640, %604 in 1 : vector<8x32xf32>, vector<8x32xf32> -> vector<8x64xf32>
    %c0_179 = arith.constant 0 : index
    %c0_180 = arith.constant 0 : index
    %642 = vector.load %arg10[%c0_179, %c0_180] : memref<64x128xf32, #tpu.memory_space<vmem>>, vector<64x128xf32>
    %cst_181 = arith.constant dense<0.000000e+00> : vector<8x128xf32>
    %643 = tpu.matmul %641, %642, %cst_181 {dimension_numbers = #tpu.dot_dimension_numbers<[1], [0], [0], [1], [0, 0, 1, 1], [], []>} : vector<8x64xf32>, vector<64x128xf32>, vector<8x128xf32> -> vector<8x128xf32>
    %c0_182 = arith.constant 0 : index
    %c0_183 = arith.constant 0 : index
    %644 = vector.load %arg11[%c0_182, %c0_183] : memref<1x128xf32, #tpu.memory_space<vmem>>, vector<1x128xf32>
    %645 = vector.broadcast %644 : vector<1x128xf32> to vector<8x128xf32>
    %646 = arith.addf %643, %645 : vector<8x128xf32>
    %647 = vector.extract_strided_slice %646 {offsets = [0, 0], sizes = [8, 32], strides = [1, 1]} : vector<8x128xf32> to vector<8x32xf32>
    %648 = arith.negf %647 : vector<8x32xf32>
    %649 = math.exp %648 : vector<8x32xf32>
    %cst_184 = arith.constant 1.000000e+00 : f32
    %650 = vector.broadcast %cst_184 : f32 to vector<8x32xf32>
    %651 = arith.addf %650, %649 : vector<8x32xf32>
    %652 = arith.divf %650, %651 : vector<8x32xf32>
    %653 = vector.extract_strided_slice %646 {offsets = [0, 32], sizes = [8, 32], strides = [1, 1]} : vector<8x128xf32> to vector<8x32xf32>
    %654 = arith.negf %653 : vector<8x32xf32>
    %655 = math.exp %654 : vector<8x32xf32>
    %cst_185 = arith.constant 1.000000e+00 : f32
    %656 = vector.broadcast %cst_185 : f32 to vector<8x32xf32>
    %657 = arith.addf %656, %655 : vector<8x32xf32>
    %658 = arith.divf %656, %657 : vector<8x32xf32>
    %659 = vector.extract_strided_slice %646 {offsets = [0, 64], sizes = [8, 32], strides = [1, 1]} : vector<8x128xf32> to vector<8x32xf32>
    %660 = vector.extract_strided_slice %646 {offsets = [0, 96], sizes = [8, 32], strides = [1, 1]} : vector<8x128xf32> to vector<8x32xf32>
    %661 = arith.mulf %652, %660 : vector<8x32xf32>
    %662 = arith.addf %659, %661 : vector<8x32xf32>
    %663 = math.tanh %662 : vector<8x32xf32>
    %cst_186 = arith.constant 1.000000e+00 : f32
    %664 = vector.broadcast %cst_186 : f32 to vector<8x32xf32>
    %665 = arith.subf %664, %658 : vector<8x32xf32>
    %666 = arith.mulf %665, %663 : vector<8x32xf32>
    %667 = arith.mulf %658, %604 : vector<8x32xf32>
    %668 = arith.addf %666, %667 : vector<8x32xf32>
    %cst_187 = arith.constant dense<0.000000e+00> : vector<8x32xf32>
    %669 = tpu.matmul %668, %611, %cst_187 {dimension_numbers = #tpu.dot_dimension_numbers<[1], [0], [0], [1], [0, 0, 1, 1], [], []>} : vector<8x32xf32>, vector<32x32xf32>, vector<8x32xf32> -> vector<8x32xf32>
    %670 = vector.broadcast %612 : vector<1x32xf32> to vector<8x32xf32>
    %671 = arith.addf %669, %670 : vector<8x32xf32>
    %cst_188 = arith.constant dense<true> : vector<8x1xi1>
    %672 = arith.xori %610, %cst_188 : vector<8x1xi1>
    %cst_189 = arith.constant 0.000000e+00 : f32
    %673 = vector.shape_cast %672 : vector<8x1xi1> to vector<8x1xi1>
    %674 = vector.broadcast %673 : vector<8x1xi1> to vector<8x32xi1>
    %675 = vector.broadcast %cst_189 : f32 to vector<8x32xf32>
    %676 = arith.select %674, %671, %675 : vector<8x32xi1>, vector<8x32xf32>
    %c0_190 = arith.constant 0 : index
    %c0_191 = arith.constant 0 : index
    %c0_192 = arith.constant 0 : index
    %677 = vector.load %arg14[%c0_190, %c0_191, %c0_192] : memref<8x8x32xf32, #tpu.memory_space<vmem>>, vector<8x1x32xf32>
    %678 = vector.shape_cast %677 : vector<8x1x32xf32> to vector<8x32xf32>
    %679 = vector.shape_cast %676 : vector<8x32xf32> to vector<8x1x32xf32>
    tpu.vector_store %arg14[%c0_190, %c0_191, %c0_192], %679 {strides = array<i32>} : memref<8x8x32xf32, #tpu.memory_space<vmem>>, vector<8x1x32xf32>,
    %680 = tpu.concatenate %640, %668 in 1 : vector<8x32xf32>, vector<8x32xf32> -> vector<8x64xf32>
    %cst_193 = arith.constant 0.000000e+00 : f32
    %681 = vector.shape_cast %672 : vector<8x1xi1> to vector<8x1xi1>
    %682 = vector.broadcast %681 : vector<8x1xi1> to vector<8x64xi1>
    %683 = vector.broadcast %cst_193 : f32 to vector<8x64xf32>
    %684 = arith.select %682, %680, %683 : vector<8x64xi1>, vector<8x64xf32>
    %c0_194 = arith.constant 0 : index
    %c0_195 = arith.constant 0 : index
    %c0_196 = arith.constant 0 : index
    %685 = vector.load %arg15[%c0_194, %c0_195, %c0_196] : memref<8x8x64xf32, #tpu.memory_space<vmem>>, vector<8x1x64xf32>
    %686 = vector.shape_cast %685 : vector<8x1x64xf32> to vector<8x64xf32>
    %687 = vector.shape_cast %684 : vector<8x64xf32> to vector<8x1x64xf32>
    tpu.vector_store %arg15[%c0_194, %c0_195, %c0_196], %687 {strides = array<i32>} : memref<8x8x64xf32, #tpu.memory_space<vmem>>, vector<8x1x64xf32>,
    %cst_197 = arith.constant dense<0xFF800000> : vector<8xf32>
    %688 = vector.multi_reduction <maximumf>, %671, %cst_197 [1] : vector<8x32xf32> to vector<8xf32>
    %689 = vector.shape_cast %688 : vector<8xf32> to vector<8x1xf32>
    %690 = vector.broadcast %689 : vector<8x1xf32> to vector<8x32xf32>
    %691 = arith.cmpf oeq, %671, %690 : vector<8x32xf32>
    %c32_i32 = arith.constant 32 : i32
    %692 = vector.broadcast %c32_i32 : i32 to vector<8x32xi32>
    %693 = arith.select %691, %605, %692 : vector<8x32xi1>, vector<8x32xi32>
    %cst_198 = arith.constant dense<2147483647> : vector<8xi32>
    %694 = vector.multi_reduction <minsi>, %693, %cst_198 [1] : vector<8x32xi32> to vector<8xi32>
    %695 = vector.shape_cast %694 : vector<8xi32> to vector<8x1xi32>
    %c2_i32 = arith.constant 2 : i32
    %696 = vector.broadcast %c2_i32 : i32 to vector<8x1xi32>
    %697 = arith.cmpi eq, %695, %696 : vector<8x1xi32>
    %698 = arith.ori %610, %697 : vector<8x1xi1>
    %699 = vector.broadcast %695 : vector<8x1xi32> to vector<8x32xi32>
    %700 = arith.cmpi eq, %605, %699 : vector<8x32xi32>
    %701 = arith.extui %700 : vector<8x32xi1> to vector<8x32xi32>
    %702 = arith.sitofp %701 : vector<8x32xi32> to vector<8x32xf32>
    %703 = tpu.concatenate %702, %640 in 1 : vector<8x32xf32>, vector<8x32xf32> -> vector<8x64xf32>
    %c0_199 = arith.constant 0 : index
    %c0_200 = arith.constant 0 : index
    %704 = vector.load %arg8[%c0_199, %c0_200] : memref<64x128xf32, #tpu.memory_space<vmem>>, vector<64x128xf32>
    %cst_201 = arith.constant dense<0.000000e+00> : vector<8x128xf32>
    %705 = tpu.matmul %703, %704, %cst_201 {dimension_numbers = #tpu.dot_dimension_numbers<[1], [0], [0], [1], [0, 0, 1, 1], [], []>} : vector<8x64xf32>, vector<64x128xf32>, vector<8x128xf32> -> vector<8x128xf32>
    %c0_202 = arith.constant 0 : index
    %c0_203 = arith.constant 0 : index
    %706 = vector.load %arg9[%c0_202, %c0_203] : memref<1x128xf32, #tpu.memory_space<vmem>>, vector<1x128xf32>
    %707 = vector.broadcast %706 : vector<1x128xf32> to vector<8x128xf32>
    %708 = arith.addf %705, %707 : vector<8x128xf32>
    %709 = vector.extract_strided_slice %708 {offsets = [0, 0], sizes = [8, 32], strides = [1, 1]} : vector<8x128xf32> to vector<8x32xf32>
    %710 = arith.negf %709 : vector<8x32xf32>
    %711 = math.exp %710 : vector<8x32xf32>
    %cst_204 = arith.constant 1.000000e+00 : f32
    %712 = vector.broadcast %cst_204 : f32 to vector<8x32xf32>
    %713 = arith.addf %712, %711 : vector<8x32xf32>
    %714 = arith.divf %712, %713 : vector<8x32xf32>
    %715 = vector.extract_strided_slice %708 {offsets = [0, 32], sizes = [8, 32], strides = [1, 1]} : vector<8x128xf32> to vector<8x32xf32>
    %716 = arith.negf %715 : vector<8x32xf32>
    %717 = math.exp %716 : vector<8x32xf32>
    %cst_205 = arith.constant 1.000000e+00 : f32
    %718 = vector.broadcast %cst_205 : f32 to vector<8x32xf32>
    %719 = arith.addf %718, %717 : vector<8x32xf32>
    %720 = arith.divf %718, %719 : vector<8x32xf32>
    %721 = vector.extract_strided_slice %708 {offsets = [0, 64], sizes = [8, 32], strides = [1, 1]} : vector<8x128xf32> to vector<8x32xf32>
    %722 = vector.extract_strided_slice %708 {offsets = [0, 96], sizes = [8, 32], strides = [1, 1]} : vector<8x128xf32> to vector<8x32xf32>
    %723 = arith.mulf %714, %722 : vector<8x32xf32>
    %724 = arith.addf %721, %723 : vector<8x32xf32>
    %725 = math.tanh %724 : vector<8x32xf32>
    %cst_206 = arith.constant 1.000000e+00 : f32
    %726 = vector.broadcast %cst_206 : f32 to vector<8x32xf32>
    %727 = arith.subf %726, %720 : vector<8x32xf32>
    %728 = arith.mulf %727, %725 : vector<8x32xf32>
    %729 = arith.mulf %720, %640 : vector<8x32xf32>
    %730 = arith.addf %728, %729 : vector<8x32xf32>
    %731 = tpu.concatenate %730, %668 in 1 : vector<8x32xf32>, vector<8x32xf32> -> vector<8x64xf32>
    %c0_207 = arith.constant 0 : index
    %c0_208 = arith.constant 0 : index
    %732 = vector.load %arg10[%c0_207, %c0_208] : memref<64x128xf32, #tpu.memory_space<vmem>>, vector<64x128xf32>
    %cst_209 = arith.constant dense<0.000000e+00> : vector<8x128xf32>
    %733 = tpu.matmul %731, %732, %cst_209 {dimension_numbers = #tpu.dot_dimension_numbers<[1], [0], [0], [1], [0, 0, 1, 1], [], []>} : vector<8x64xf32>, vector<64x128xf32>, vector<8x128xf32> -> vector<8x128xf32>
    %c0_210 = arith.constant 0 : index
    %c0_211 = arith.constant 0 : index
    %734 = vector.load %arg11[%c0_210, %c0_211] : memref<1x128xf32, #tpu.memory_space<vmem>>, vector<1x128xf32>
    %735 = vector.broadcast %734 : vector<1x128xf32> to vector<8x128xf32>
    %736 = arith.addf %733, %735 : vector<8x128xf32>
    %737 = vector.extract_strided_slice %736 {offsets = [0, 0], sizes = [8, 32], strides = [1, 1]} : vector<8x128xf32> to vector<8x32xf32>
    %738 = arith.negf %737 : vector<8x32xf32>
    %739 = math.exp %738 : vector<8x32xf32>
    %cst_212 = arith.constant 1.000000e+00 : f32
    %740 = vector.broadcast %cst_212 : f32 to vector<8x32xf32>
    %741 = arith.addf %740, %739 : vector<8x32xf32>
    %742 = arith.divf %740, %741 : vector<8x32xf32>
    %743 = vector.extract_strided_slice %736 {offsets = [0, 32], sizes = [8, 32], strides = [1, 1]} : vector<8x128xf32> to vector<8x32xf32>
    %744 = arith.negf %743 : vector<8x32xf32>
    %745 = math.exp %744 : vector<8x32xf32>
    %cst_213 = arith.constant 1.000000e+00 : f32
    %746 = vector.broadcast %cst_213 : f32 to vector<8x32xf32>
    %747 = arith.addf %746, %745 : vector<8x32xf32>
    %748 = arith.divf %746, %747 : vector<8x32xf32>
    %749 = vector.extract_strided_slice %736 {offsets = [0, 64], sizes = [8, 32], strides = [1, 1]} : vector<8x128xf32> to vector<8x32xf32>
    %750 = vector.extract_strided_slice %736 {offsets = [0, 96], sizes = [8, 32], strides = [1, 1]} : vector<8x128xf32> to vector<8x32xf32>
    %751 = arith.mulf %742, %750 : vector<8x32xf32>
    %752 = arith.addf %749, %751 : vector<8x32xf32>
    %753 = math.tanh %752 : vector<8x32xf32>
    %cst_214 = arith.constant 1.000000e+00 : f32
    %754 = vector.broadcast %cst_214 : f32 to vector<8x32xf32>
    %755 = arith.subf %754, %748 : vector<8x32xf32>
    %756 = arith.mulf %755, %753 : vector<8x32xf32>
    %757 = arith.mulf %748, %668 : vector<8x32xf32>
    %758 = arith.addf %756, %757 : vector<8x32xf32>
    %cst_215 = arith.constant dense<0.000000e+00> : vector<8x32xf32>
    %759 = tpu.matmul %758, %611, %cst_215 {dimension_numbers = #tpu.dot_dimension_numbers<[1], [0], [0], [1], [0, 0, 1, 1], [], []>} : vector<8x32xf32>, vector<32x32xf32>, vector<8x32xf32> -> vector<8x32xf32>
    %760 = vector.broadcast %612 : vector<1x32xf32> to vector<8x32xf32>
    %761 = arith.addf %759, %760 : vector<8x32xf32>
    %cst_216 = arith.constant dense<true> : vector<8x1xi1>
    %762 = arith.xori %698, %cst_216 : vector<8x1xi1>
    %cst_217 = arith.constant 0.000000e+00 : f32
    %763 = vector.shape_cast %762 : vector<8x1xi1> to vector<8x1xi1>
    %764 = vector.broadcast %763 : vector<8x1xi1> to vector<8x32xi1>
    %765 = vector.broadcast %cst_217 : f32 to vector<8x32xf32>
    %766 = arith.select %764, %761, %765 : vector<8x32xi1>, vector<8x32xf32>
    %c0_218 = arith.constant 0 : index
    %c1_219 = arith.constant 1 : index
    %c0_220 = arith.constant 0 : index
    %767 = vector.load %arg14[%c0_218, %c1_219, %c0_220] : memref<8x8x32xf32, #tpu.memory_space<vmem>>, vector<8x1x32xf32>
    %768 = vector.shape_cast %767 : vector<8x1x32xf32> to vector<8x32xf32>
    %769 = vector.shape_cast %766 : vector<8x32xf32> to vector<8x1x32xf32>
    tpu.vector_store %arg14[%c0_218, %c1_219, %c0_220], %769 {strides = array<i32>} : memref<8x8x32xf32, #tpu.memory_space<vmem>>, vector<8x1x32xf32>,
    %770 = tpu.concatenate %730, %758 in 1 : vector<8x32xf32>, vector<8x32xf32> -> vector<8x64xf32>
    %cst_221 = arith.constant 0.000000e+00 : f32
    %771 = vector.shape_cast %762 : vector<8x1xi1> to vector<8x1xi1>
    %772 = vector.broadcast %771 : vector<8x1xi1> to vector<8x64xi1>
    %773 = vector.broadcast %cst_221 : f32 to vector<8x64xf32>
    %774 = arith.select %772, %770, %773 : vector<8x64xi1>, vector<8x64xf32>
    %c0_222 = arith.constant 0 : index
    %c1_223 = arith.constant 1 : index
    %c0_224 = arith.constant 0 : index
    %775 = vector.load %arg15[%c0_222, %c1_223, %c0_224] : memref<8x8x64xf32, #tpu.memory_space<vmem>>, vector<8x1x64xf32>
    %776 = vector.shape_cast %775 : vector<8x1x64xf32> to vector<8x64xf32>
    %777 = vector.shape_cast %774 : vector<8x64xf32> to vector<8x1x64xf32>
    tpu.vector_store %arg15[%c0_222, %c1_223, %c0_224], %777 {strides = array<i32>} : memref<8x8x64xf32, #tpu.memory_space<vmem>>, vector<8x1x64xf32>,
    %cst_225 = arith.constant dense<0xFF800000> : vector<8xf32>
    %778 = vector.multi_reduction <maximumf>, %761, %cst_225 [1] : vector<8x32xf32> to vector<8xf32>
    %779 = vector.shape_cast %778 : vector<8xf32> to vector<8x1xf32>
    %780 = vector.broadcast %779 : vector<8x1xf32> to vector<8x32xf32>
    %781 = arith.cmpf oeq, %761, %780 : vector<8x32xf32>
    %c32_i32_226 = arith.constant 32 : i32
    %782 = vector.broadcast %c32_i32_226 : i32 to vector<8x32xi32>
    %783 = arith.select %781, %605, %782 : vector<8x32xi1>, vector<8x32xi32>
    %cst_227 = arith.constant dense<2147483647> : vector<8xi32>
    %784 = vector.multi_reduction <minsi>, %783, %cst_227 [1] : vector<8x32xi32> to vector<8xi32>
    %785 = vector.shape_cast %784 : vector<8xi32> to vector<8x1xi32>
    %c2_i32_228 = arith.constant 2 : i32
    %786 = vector.broadcast %c2_i32_228 : i32 to vector<8x1xi32>
    %787 = arith.cmpi eq, %785, %786 : vector<8x1xi32>
    %788 = arith.ori %698, %787 : vector<8x1xi1>
    %789 = vector.broadcast %785 : vector<8x1xi32> to vector<8x32xi32>
    %790 = arith.cmpi eq, %605, %789 : vector<8x32xi32>
    %791 = arith.extui %790 : vector<8x32xi1> to vector<8x32xi32>
    %792 = arith.sitofp %791 : vector<8x32xi32> to vector<8x32xf32>
    %793 = tpu.concatenate %792, %730 in 1 : vector<8x32xf32>, vector<8x32xf32> -> vector<8x64xf32>
    %c0_229 = arith.constant 0 : index
    %c0_230 = arith.constant 0 : index
    %794 = vector.load %arg8[%c0_229, %c0_230] : memref<64x128xf32, #tpu.memory_space<vmem>>, vector<64x128xf32>
    %cst_231 = arith.constant dense<0.000000e+00> : vector<8x128xf32>
    %795 = tpu.matmul %793, %794, %cst_231 {dimension_numbers = #tpu.dot_dimension_numbers<[1], [0], [0], [1], [0, 0, 1, 1], [], []>} : vector<8x64xf32>, vector<64x128xf32>, vector<8x128xf32> -> vector<8x128xf32>
    %c0_232 = arith.constant 0 : index
    %c0_233 = arith.constant 0 : index
    %796 = vector.load %arg9[%c0_232, %c0_233] : memref<1x128xf32, #tpu.memory_space<vmem>>, vector<1x128xf32>
    %797 = vector.broadcast %796 : vector<1x128xf32> to vector<8x128xf32>
    %798 = arith.addf %795, %797 : vector<8x128xf32>
    %799 = vector.extract_strided_slice %798 {offsets = [0, 0], sizes = [8, 32], strides = [1, 1]} : vector<8x128xf32> to vector<8x32xf32>
    %800 = arith.negf %799 : vector<8x32xf32>
    %801 = math.exp %800 : vector<8x32xf32>
    %cst_234 = arith.constant 1.000000e+00 : f32
    %802 = vector.broadcast %cst_234 : f32 to vector<8x32xf32>
    %803 = arith.addf %802, %801 : vector<8x32xf32>
    %804 = arith.divf %802, %803 : vector<8x32xf32>
    %805 = vector.extract_strided_slice %798 {offsets = [0, 32], sizes = [8, 32], strides = [1, 1]} : vector<8x128xf32> to vector<8x32xf32>
    %806 = arith.negf %805 : vector<8x32xf32>
    %807 = math.exp %806 : vector<8x32xf32>
    %cst_235 = arith.constant 1.000000e+00 : f32
    %808 = vector.broadcast %cst_235 : f32 to vector<8x32xf32>
    %809 = arith.addf %808, %807 : vector<8x32xf32>
    %810 = arith.divf %808, %809 : vector<8x32xf32>
    %811 = vector.extract_strided_slice %798 {offsets = [0, 64], sizes = [8, 32], strides = [1, 1]} : vector<8x128xf32> to vector<8x32xf32>
    %812 = vector.extract_strided_slice %798 {offsets = [0, 96], sizes = [8, 32], strides = [1, 1]} : vector<8x128xf32> to vector<8x32xf32>
    %813 = arith.mulf %804, %812 : vector<8x32xf32>
    %814 = arith.addf %811, %813 : vector<8x32xf32>
    %815 = math.tanh %814 : vector<8x32xf32>
    %cst_236 = arith.constant 1.000000e+00 : f32
    %816 = vector.broadcast %cst_236 : f32 to vector<8x32xf32>
    %817 = arith.subf %816, %810 : vector<8x32xf32>
    %818 = arith.mulf %817, %815 : vector<8x32xf32>
    %819 = arith.mulf %810, %730 : vector<8x32xf32>
    %820 = arith.addf %818, %819 : vector<8x32xf32>
    %821 = tpu.concatenate %820, %758 in 1 : vector<8x32xf32>, vector<8x32xf32> -> vector<8x64xf32>
    %c0_237 = arith.constant 0 : index
    %c0_238 = arith.constant 0 : index
    %822 = vector.load %arg10[%c0_237, %c0_238] : memref<64x128xf32, #tpu.memory_space<vmem>>, vector<64x128xf32>
    %cst_239 = arith.constant dense<0.000000e+00> : vector<8x128xf32>
    %823 = tpu.matmul %821, %822, %cst_239 {dimension_numbers = #tpu.dot_dimension_numbers<[1], [0], [0], [1], [0, 0, 1, 1], [], []>} : vector<8x64xf32>, vector<64x128xf32>, vector<8x128xf32> -> vector<8x128xf32>
    %c0_240 = arith.constant 0 : index
    %c0_241 = arith.constant 0 : index
    %824 = vector.load %arg11[%c0_240, %c0_241] : memref<1x128xf32, #tpu.memory_space<vmem>>, vector<1x128xf32>
    %825 = vector.broadcast %824 : vector<1x128xf32> to vector<8x128xf32>
    %826 = arith.addf %823, %825 : vector<8x128xf32>
    %827 = vector.extract_strided_slice %826 {offsets = [0, 0], sizes = [8, 32], strides = [1, 1]} : vector<8x128xf32> to vector<8x32xf32>
    %828 = arith.negf %827 : vector<8x32xf32>
    %829 = math.exp %828 : vector<8x32xf32>
    %cst_242 = arith.constant 1.000000e+00 : f32
    %830 = vector.broadcast %cst_242 : f32 to vector<8x32xf32>
    %831 = arith.addf %830, %829 : vector<8x32xf32>
    %832 = arith.divf %830, %831 : vector<8x32xf32>
    %833 = vector.extract_strided_slice %826 {offsets = [0, 32], sizes = [8, 32], strides = [1, 1]} : vector<8x128xf32> to vector<8x32xf32>
    %834 = arith.negf %833 : vector<8x32xf32>
    %835 = math.exp %834 : vector<8x32xf32>
    %cst_243 = arith.constant 1.000000e+00 : f32
    %836 = vector.broadcast %cst_243 : f32 to vector<8x32xf32>
    %837 = arith.addf %836, %835 : vector<8x32xf32>
    %838 = arith.divf %836, %837 : vector<8x32xf32>
    %839 = vector.extract_strided_slice %826 {offsets = [0, 64], sizes = [8, 32], strides = [1, 1]} : vector<8x128xf32> to vector<8x32xf32>
    %840 = vector.extract_strided_slice %826 {offsets = [0, 96], sizes = [8, 32], strides = [1, 1]} : vector<8x128xf32> to vector<8x32xf32>
    %841 = arith.mulf %832, %840 : vector<8x32xf32>
    %842 = arith.addf %839, %841 : vector<8x32xf32>
    %843 = math.tanh %842 : vector<8x32xf32>
    %cst_244 = arith.constant 1.000000e+00 : f32
    %844 = vector.broadcast %cst_244 : f32 to vector<8x32xf32>
    %845 = arith.subf %844, %838 : vector<8x32xf32>
    %846 = arith.mulf %845, %843 : vector<8x32xf32>
    %847 = arith.mulf %838, %758 : vector<8x32xf32>
    %848 = arith.addf %846, %847 : vector<8x32xf32>
    %cst_245 = arith.constant dense<0.000000e+00> : vector<8x32xf32>
    %849 = tpu.matmul %848, %611, %cst_245 {dimension_numbers = #tpu.dot_dimension_numbers<[1], [0], [0], [1], [0, 0, 1, 1], [], []>} : vector<8x32xf32>, vector<32x32xf32>, vector<8x32xf32> -> vector<8x32xf32>
    %850 = vector.broadcast %612 : vector<1x32xf32> to vector<8x32xf32>
    %851 = arith.addf %849, %850 : vector<8x32xf32>
    %cst_246 = arith.constant dense<true> : vector<8x1xi1>
    %852 = arith.xori %788, %cst_246 : vector<8x1xi1>
    %cst_247 = arith.constant 0.000000e+00 : f32
    %853 = vector.shape_cast %852 : vector<8x1xi1> to vector<8x1xi1>
    %854 = vector.broadcast %853 : vector<8x1xi1> to vector<8x32xi1>
    %855 = vector.broadcast %cst_247 : f32 to vector<8x32xf32>
    %856 = arith.select %854, %851, %855 : vector<8x32xi1>, vector<8x32xf32>
    %c0_248 = arith.constant 0 : index
    %c2_249 = arith.constant 2 : index
    %c0_250 = arith.constant 0 : index
    %857 = vector.load %arg14[%c0_248, %c2_249, %c0_250] : memref<8x8x32xf32, #tpu.memory_space<vmem>>, vector<8x1x32xf32>
    %858 = vector.shape_cast %857 : vector<8x1x32xf32> to vector<8x32xf32>
    %859 = vector.shape_cast %856 : vector<8x32xf32> to vector<8x1x32xf32>
    tpu.vector_store %arg14[%c0_248, %c2_249, %c0_250], %859 {strides = array<i32>} : memref<8x8x32xf32, #tpu.memory_space<vmem>>, vector<8x1x32xf32>,
    %860 = tpu.concatenate %820, %848 in 1 : vector<8x32xf32>, vector<8x32xf32> -> vector<8x64xf32>
    %cst_251 = arith.constant 0.000000e+00 : f32
    %861 = vector.shape_cast %852 : vector<8x1xi1> to vector<8x1xi1>
    %862 = vector.broadcast %861 : vector<8x1xi1> to vector<8x64xi1>
    %863 = vector.broadcast %cst_251 : f32 to vector<8x64xf32>
    %864 = arith.select %862, %860, %863 : vector<8x64xi1>, vector<8x64xf32>
    %c0_252 = arith.constant 0 : index
    %c2_253 = arith.constant 2 : index
    %c0_254 = arith.constant 0 : index
    %865 = vector.load %arg15[%c0_252, %c2_253, %c0_254] : memref<8x8x64xf32, #tpu.memory_space<vmem>>, vector<8x1x64xf32>
    %866 = vector.shape_cast %865 : vector<8x1x64xf32> to vector<8x64xf32>
    %867 = vector.shape_cast %864 : vector<8x64xf32> to vector<8x1x64xf32>
    tpu.vector_store %arg15[%c0_252, %c2_253, %c0_254], %867 {strides = array<i32>} : memref<8x8x64xf32, #tpu.memory_space<vmem>>, vector<8x1x64xf32>,
    %cst_255 = arith.constant dense<0xFF800000> : vector<8xf32>
    %868 = vector.multi_reduction <maximumf>, %851, %cst_255 [1] : vector<8x32xf32> to vector<8xf32>
    %869 = vector.shape_cast %868 : vector<8xf32> to vector<8x1xf32>
    %870 = vector.broadcast %869 : vector<8x1xf32> to vector<8x32xf32>
    %871 = arith.cmpf oeq, %851, %870 : vector<8x32xf32>
    %c32_i32_256 = arith.constant 32 : i32
    %872 = vector.broadcast %c32_i32_256 : i32 to vector<8x32xi32>
    %873 = arith.select %871, %605, %872 : vector<8x32xi1>, vector<8x32xi32>
    %cst_257 = arith.constant dense<2147483647> : vector<8xi32>
    %874 = vector.multi_reduction <minsi>, %873, %cst_257 [1] : vector<8x32xi32> to vector<8xi32>
    %875 = vector.shape_cast %874 : vector<8xi32> to vector<8x1xi32>
    %c2_i32_258 = arith.constant 2 : i32
    %876 = vector.broadcast %c2_i32_258 : i32 to vector<8x1xi32>
    %877 = arith.cmpi eq, %875, %876 : vector<8x1xi32>
    %878 = arith.ori %788, %877 : vector<8x1xi1>
    %879 = vector.broadcast %875 : vector<8x1xi32> to vector<8x32xi32>
    %880 = arith.cmpi eq, %605, %879 : vector<8x32xi32>
    %881 = arith.extui %880 : vector<8x32xi1> to vector<8x32xi32>
    %882 = arith.sitofp %881 : vector<8x32xi32> to vector<8x32xf32>
    %883 = tpu.concatenate %882, %820 in 1 : vector<8x32xf32>, vector<8x32xf32> -> vector<8x64xf32>
    %c0_259 = arith.constant 0 : index
    %c0_260 = arith.constant 0 : index
    %884 = vector.load %arg8[%c0_259, %c0_260] : memref<64x128xf32, #tpu.memory_space<vmem>>, vector<64x128xf32>
    %cst_261 = arith.constant dense<0.000000e+00> : vector<8x128xf32>
    %885 = tpu.matmul %883, %884, %cst_261 {dimension_numbers = #tpu.dot_dimension_numbers<[1], [0], [0], [1], [0, 0, 1, 1], [], []>} : vector<8x64xf32>, vector<64x128xf32>, vector<8x128xf32> -> vector<8x128xf32>
    %c0_262 = arith.constant 0 : index
    %c0_263 = arith.constant 0 : index
    %886 = vector.load %arg9[%c0_262, %c0_263] : memref<1x128xf32, #tpu.memory_space<vmem>>, vector<1x128xf32>
    %887 = vector.broadcast %886 : vector<1x128xf32> to vector<8x128xf32>
    %888 = arith.addf %885, %887 : vector<8x128xf32>
    %889 = vector.extract_strided_slice %888 {offsets = [0, 0], sizes = [8, 32], strides = [1, 1]} : vector<8x128xf32> to vector<8x32xf32>
    %890 = arith.negf %889 : vector<8x32xf32>
    %891 = math.exp %890 : vector<8x32xf32>
    %cst_264 = arith.constant 1.000000e+00 : f32
    %892 = vector.broadcast %cst_264 : f32 to vector<8x32xf32>
    %893 = arith.addf %892, %891 : vector<8x32xf32>
    %894 = arith.divf %892, %893 : vector<8x32xf32>
    %895 = vector.extract_strided_slice %888 {offsets = [0, 32], sizes = [8, 32], strides = [1, 1]} : vector<8x128xf32> to vector<8x32xf32>
    %896 = arith.negf %895 : vector<8x32xf32>
    %897 = math.exp %896 : vector<8x32xf32>
    %cst_265 = arith.constant 1.000000e+00 : f32
    %898 = vector.broadcast %cst_265 : f32 to vector<8x32xf32>
    %899 = arith.addf %898, %897 : vector<8x32xf32>
    %900 = arith.divf %898, %899 : vector<8x32xf32>
    %901 = vector.extract_strided_slice %888 {offsets = [0, 64], sizes = [8, 32], strides = [1, 1]} : vector<8x128xf32> to vector<8x32xf32>
    %902 = vector.extract_strided_slice %888 {offsets = [0, 96], sizes = [8, 32], strides = [1, 1]} : vector<8x128xf32> to vector<8x32xf32>
    %903 = arith.mulf %894, %902 : vector<8x32xf32>
    %904 = arith.addf %901, %903 : vector<8x32xf32>
    %905 = math.tanh %904 : vector<8x32xf32>
    %cst_266 = arith.constant 1.000000e+00 : f32
    %906 = vector.broadcast %cst_266 : f32 to vector<8x32xf32>
    %907 = arith.subf %906, %900 : vector<8x32xf32>
    %908 = arith.mulf %907, %905 : vector<8x32xf32>
    %909 = arith.mulf %900, %820 : vector<8x32xf32>
    %910 = arith.addf %908, %909 : vector<8x32xf32>
    %911 = tpu.concatenate %910, %848 in 1 : vector<8x32xf32>, vector<8x32xf32> -> vector<8x64xf32>
    %c0_267 = arith.constant 0 : index
    %c0_268 = arith.constant 0 : index
    %912 = vector.load %arg10[%c0_267, %c0_268] : memref<64x128xf32, #tpu.memory_space<vmem>>, vector<64x128xf32>
    %cst_269 = arith.constant dense<0.000000e+00> : vector<8x128xf32>
    %913 = tpu.matmul %911, %912, %cst_269 {dimension_numbers = #tpu.dot_dimension_numbers<[1], [0], [0], [1], [0, 0, 1, 1], [], []>} : vector<8x64xf32>, vector<64x128xf32>, vector<8x128xf32> -> vector<8x128xf32>
    %c0_270 = arith.constant 0 : index
    %c0_271 = arith.constant 0 : index
    %914 = vector.load %arg11[%c0_270, %c0_271] : memref<1x128xf32, #tpu.memory_space<vmem>>, vector<1x128xf32>
    %915 = vector.broadcast %914 : vector<1x128xf32> to vector<8x128xf32>
    %916 = arith.addf %913, %915 : vector<8x128xf32>
    %917 = vector.extract_strided_slice %916 {offsets = [0, 0], sizes = [8, 32], strides = [1, 1]} : vector<8x128xf32> to vector<8x32xf32>
    %918 = arith.negf %917 : vector<8x32xf32>
    %919 = math.exp %918 : vector<8x32xf32>
    %cst_272 = arith.constant 1.000000e+00 : f32
    %920 = vector.broadcast %cst_272 : f32 to vector<8x32xf32>
    %921 = arith.addf %920, %919 : vector<8x32xf32>
    %922 = arith.divf %920, %921 : vector<8x32xf32>
    %923 = vector.extract_strided_slice %916 {offsets = [0, 32], sizes = [8, 32], strides = [1, 1]} : vector<8x128xf32> to vector<8x32xf32>
    %924 = arith.negf %923 : vector<8x32xf32>
    %925 = math.exp %924 : vector<8x32xf32>
    %cst_273 = arith.constant 1.000000e+00 : f32
    %926 = vector.broadcast %cst_273 : f32 to vector<8x32xf32>
    %927 = arith.addf %926, %925 : vector<8x32xf32>
    %928 = arith.divf %926, %927 : vector<8x32xf32>
    %929 = vector.extract_strided_slice %916 {offsets = [0, 64], sizes = [8, 32], strides = [1, 1]} : vector<8x128xf32> to vector<8x32xf32>
    %930 = vector.extract_strided_slice %916 {offsets = [0, 96], sizes = [8, 32], strides = [1, 1]} : vector<8x128xf32> to vector<8x32xf32>
    %931 = arith.mulf %922, %930 : vector<8x32xf32>
    %932 = arith.addf %929, %931 : vector<8x32xf32>
    %933 = math.tanh %932 : vector<8x32xf32>
    %cst_274 = arith.constant 1.000000e+00 : f32
    %934 = vector.broadcast %cst_274 : f32 to vector<8x32xf32>
    %935 = arith.subf %934, %928 : vector<8x32xf32>
    %936 = arith.mulf %935, %933 : vector<8x32xf32>
    %937 = arith.mulf %928, %848 : vector<8x32xf32>
    %938 = arith.addf %936, %937 : vector<8x32xf32>
    %cst_275 = arith.constant dense<0.000000e+00> : vector<8x32xf32>
    %939 = tpu.matmul %938, %611, %cst_275 {dimension_numbers = #tpu.dot_dimension_numbers<[1], [0], [0], [1], [0, 0, 1, 1], [], []>} : vector<8x32xf32>, vector<32x32xf32>, vector<8x32xf32> -> vector<8x32xf32>
    %940 = vector.broadcast %612 : vector<1x32xf32> to vector<8x32xf32>
    %941 = arith.addf %939, %940 : vector<8x32xf32>
    %cst_276 = arith.constant dense<true> : vector<8x1xi1>
    %942 = arith.xori %878, %cst_276 : vector<8x1xi1>
    %cst_277 = arith.constant 0.000000e+00 : f32
    %943 = vector.shape_cast %942 : vector<8x1xi1> to vector<8x1xi1>
    %944 = vector.broadcast %943 : vector<8x1xi1> to vector<8x32xi1>
    %945 = vector.broadcast %cst_277 : f32 to vector<8x32xf32>
    %946 = arith.select %944, %941, %945 : vector<8x32xi1>, vector<8x32xf32>
    %c0_278 = arith.constant 0 : index
    %c3_279 = arith.constant 3 : index
    %c0_280 = arith.constant 0 : index
    %947 = vector.load %arg14[%c0_278, %c3_279, %c0_280] : memref<8x8x32xf32, #tpu.memory_space<vmem>>, vector<8x1x32xf32>
    %948 = vector.shape_cast %947 : vector<8x1x32xf32> to vector<8x32xf32>
    %949 = vector.shape_cast %946 : vector<8x32xf32> to vector<8x1x32xf32>
    tpu.vector_store %arg14[%c0_278, %c3_279, %c0_280], %949 {strides = array<i32>} : memref<8x8x32xf32, #tpu.memory_space<vmem>>, vector<8x1x32xf32>,
    %950 = tpu.concatenate %910, %938 in 1 : vector<8x32xf32>, vector<8x32xf32> -> vector<8x64xf32>
    %cst_281 = arith.constant 0.000000e+00 : f32
    %951 = vector.shape_cast %942 : vector<8x1xi1> to vector<8x1xi1>
    %952 = vector.broadcast %951 : vector<8x1xi1> to vector<8x64xi1>
    %953 = vector.broadcast %cst_281 : f32 to vector<8x64xf32>
    %954 = arith.select %952, %950, %953 : vector<8x64xi1>, vector<8x64xf32>
    %c0_282 = arith.constant 0 : index
    %c3_283 = arith.constant 3 : index
    %c0_284 = arith.constant 0 : index
    %955 = vector.load %arg15[%c0_282, %c3_283, %c0_284] : memref<8x8x64xf32, #tpu.memory_space<vmem>>, vector<8x1x64xf32>
    %956 = vector.shape_cast %955 : vector<8x1x64xf32> to vector<8x64xf32>
    %957 = vector.shape_cast %954 : vector<8x64xf32> to vector<8x1x64xf32>
    tpu.vector_store %arg15[%c0_282, %c3_283, %c0_284], %957 {strides = array<i32>} : memref<8x8x64xf32, #tpu.memory_space<vmem>>, vector<8x1x64xf32>,
    %cst_285 = arith.constant dense<0xFF800000> : vector<8xf32>
    %958 = vector.multi_reduction <maximumf>, %941, %cst_285 [1] : vector<8x32xf32> to vector<8xf32>
    %959 = vector.shape_cast %958 : vector<8xf32> to vector<8x1xf32>
    %960 = vector.broadcast %959 : vector<8x1xf32> to vector<8x32xf32>
    %961 = arith.cmpf oeq, %941, %960 : vector<8x32xf32>
    %c32_i32_286 = arith.constant 32 : i32
    %962 = vector.broadcast %c32_i32_286 : i32 to vector<8x32xi32>
    %963 = arith.select %961, %605, %962 : vector<8x32xi1>, vector<8x32xi32>
    %cst_287 = arith.constant dense<2147483647> : vector<8xi32>
    %964 = vector.multi_reduction <minsi>, %963, %cst_287 [1] : vector<8x32xi32> to vector<8xi32>
    %965 = vector.shape_cast %964 : vector<8xi32> to vector<8x1xi32>
    %c2_i32_288 = arith.constant 2 : i32
    %966 = vector.broadcast %c2_i32_288 : i32 to vector<8x1xi32>
    %967 = arith.cmpi eq, %965, %966 : vector<8x1xi32>
    %968 = arith.ori %878, %967 : vector<8x1xi1>
    %969 = vector.broadcast %965 : vector<8x1xi32> to vector<8x32xi32>
    %970 = arith.cmpi eq, %605, %969 : vector<8x32xi32>
    %971 = arith.extui %970 : vector<8x32xi1> to vector<8x32xi32>
    %972 = arith.sitofp %971 : vector<8x32xi32> to vector<8x32xf32>
    %973 = tpu.concatenate %972, %910 in 1 : vector<8x32xf32>, vector<8x32xf32> -> vector<8x64xf32>
    %c0_289 = arith.constant 0 : index
    %c0_290 = arith.constant 0 : index
    %974 = vector.load %arg8[%c0_289, %c0_290] : memref<64x128xf32, #tpu.memory_space<vmem>>, vector<64x128xf32>
    %cst_291 = arith.constant dense<0.000000e+00> : vector<8x128xf32>
    %975 = tpu.matmul %973, %974, %cst_291 {dimension_numbers = #tpu.dot_dimension_numbers<[1], [0], [0], [1], [0, 0, 1, 1], [], []>} : vector<8x64xf32>, vector<64x128xf32>, vector<8x128xf32> -> vector<8x128xf32>
    %c0_292 = arith.constant 0 : index
    %c0_293 = arith.constant 0 : index
    %976 = vector.load %arg9[%c0_292, %c0_293] : memref<1x128xf32, #tpu.memory_space<vmem>>, vector<1x128xf32>
    %977 = vector.broadcast %976 : vector<1x128xf32> to vector<8x128xf32>
    %978 = arith.addf %975, %977 : vector<8x128xf32>
    %979 = vector.extract_strided_slice %978 {offsets = [0, 0], sizes = [8, 32], strides = [1, 1]} : vector<8x128xf32> to vector<8x32xf32>
    %980 = arith.negf %979 : vector<8x32xf32>
    %981 = math.exp %980 : vector<8x32xf32>
    %cst_294 = arith.constant 1.000000e+00 : f32
    %982 = vector.broadcast %cst_294 : f32 to vector<8x32xf32>
    %983 = arith.addf %982, %981 : vector<8x32xf32>
    %984 = arith.divf %982, %983 : vector<8x32xf32>
    %985 = vector.extract_strided_slice %978 {offsets = [0, 32], sizes = [8, 32], strides = [1, 1]} : vector<8x128xf32> to vector<8x32xf32>
    %986 = arith.negf %985 : vector<8x32xf32>
    %987 = math.exp %986 : vector<8x32xf32>
    %cst_295 = arith.constant 1.000000e+00 : f32
    %988 = vector.broadcast %cst_295 : f32 to vector<8x32xf32>
    %989 = arith.addf %988, %987 : vector<8x32xf32>
    %990 = arith.divf %988, %989 : vector<8x32xf32>
    %991 = vector.extract_strided_slice %978 {offsets = [0, 64], sizes = [8, 32], strides = [1, 1]} : vector<8x128xf32> to vector<8x32xf32>
    %992 = vector.extract_strided_slice %978 {offsets = [0, 96], sizes = [8, 32], strides = [1, 1]} : vector<8x128xf32> to vector<8x32xf32>
    %993 = arith.mulf %984, %992 : vector<8x32xf32>
    %994 = arith.addf %991, %993 : vector<8x32xf32>
    %995 = math.tanh %994 : vector<8x32xf32>
    %cst_296 = arith.constant 1.000000e+00 : f32
    %996 = vector.broadcast %cst_296 : f32 to vector<8x32xf32>
    %997 = arith.subf %996, %990 : vector<8x32xf32>
    %998 = arith.mulf %997, %995 : vector<8x32xf32>
    %999 = arith.mulf %990, %910 : vector<8x32xf32>
    %1000 = arith.addf %998, %999 : vector<8x32xf32>
    %1001 = tpu.concatenate %1000, %938 in 1 : vector<8x32xf32>, vector<8x32xf32> -> vector<8x64xf32>
    %c0_297 = arith.constant 0 : index
    %c0_298 = arith.constant 0 : index
    %1002 = vector.load %arg10[%c0_297, %c0_298] : memref<64x128xf32, #tpu.memory_space<vmem>>, vector<64x128xf32>
    %cst_299 = arith.constant dense<0.000000e+00> : vector<8x128xf32>
    %1003 = tpu.matmul %1001, %1002, %cst_299 {dimension_numbers = #tpu.dot_dimension_numbers<[1], [0], [0], [1], [0, 0, 1, 1], [], []>} : vector<8x64xf32>, vector<64x128xf32>, vector<8x128xf32> -> vector<8x128xf32>
    %c0_300 = arith.constant 0 : index
    %c0_301 = arith.constant 0 : index
    %1004 = vector.load %arg11[%c0_300, %c0_301] : memref<1x128xf32, #tpu.memory_space<vmem>>, vector<1x128xf32>
    %1005 = vector.broadcast %1004 : vector<1x128xf32> to vector<8x128xf32>
    %1006 = arith.addf %1003, %1005 : vector<8x128xf32>
    %1007 = vector.extract_strided_slice %1006 {offsets = [0, 0], sizes = [8, 32], strides = [1, 1]} : vector<8x128xf32> to vector<8x32xf32>
    %1008 = arith.negf %1007 : vector<8x32xf32>
    %1009 = math.exp %1008 : vector<8x32xf32>
    %cst_302 = arith.constant 1.000000e+00 : f32
    %1010 = vector.broadcast %cst_302 : f32 to vector<8x32xf32>
    %1011 = arith.addf %1010, %1009 : vector<8x32xf32>
    %1012 = arith.divf %1010, %1011 : vector<8x32xf32>
    %1013 = vector.extract_strided_slice %1006 {offsets = [0, 32], sizes = [8, 32], strides = [1, 1]} : vector<8x128xf32> to vector<8x32xf32>
    %1014 = arith.negf %1013 : vector<8x32xf32>
    %1015 = math.exp %1014 : vector<8x32xf32>
    %cst_303 = arith.constant 1.000000e+00 : f32
    %1016 = vector.broadcast %cst_303 : f32 to vector<8x32xf32>
    %1017 = arith.addf %1016, %1015 : vector<8x32xf32>
    %1018 = arith.divf %1016, %1017 : vector<8x32xf32>
    %1019 = vector.extract_strided_slice %1006 {offsets = [0, 64], sizes = [8, 32], strides = [1, 1]} : vector<8x128xf32> to vector<8x32xf32>
    %1020 = vector.extract_strided_slice %1006 {offsets = [0, 96], sizes = [8, 32], strides = [1, 1]} : vector<8x128xf32> to vector<8x32xf32>
    %1021 = arith.mulf %1012, %1020 : vector<8x32xf32>
    %1022 = arith.addf %1019, %1021 : vector<8x32xf32>
    %1023 = math.tanh %1022 : vector<8x32xf32>
    %cst_304 = arith.constant 1.000000e+00 : f32
    %1024 = vector.broadcast %cst_304 : f32 to vector<8x32xf32>
    %1025 = arith.subf %1024, %1018 : vector<8x32xf32>
    %1026 = arith.mulf %1025, %1023 : vector<8x32xf32>
    %1027 = arith.mulf %1018, %938 : vector<8x32xf32>
    %1028 = arith.addf %1026, %1027 : vector<8x32xf32>
    %cst_305 = arith.constant dense<0.000000e+00> : vector<8x32xf32>
    %1029 = tpu.matmul %1028, %611, %cst_305 {dimension_numbers = #tpu.dot_dimension_numbers<[1], [0], [0], [1], [0, 0, 1, 1], [], []>} : vector<8x32xf32>, vector<32x32xf32>, vector<8x32xf32> -> vector<8x32xf32>
    %1030 = vector.broadcast %612 : vector<1x32xf32> to vector<8x32xf32>
    %1031 = arith.addf %1029, %1030 : vector<8x32xf32>
    %cst_306 = arith.constant dense<true> : vector<8x1xi1>
    %1032 = arith.xori %968, %cst_306 : vector<8x1xi1>
    %cst_307 = arith.constant 0.000000e+00 : f32
    %1033 = vector.shape_cast %1032 : vector<8x1xi1> to vector<8x1xi1>
    %1034 = vector.broadcast %1033 : vector<8x1xi1> to vector<8x32xi1>
    %1035 = vector.broadcast %cst_307 : f32 to vector<8x32xf32>
    %1036 = arith.select %1034, %1031, %1035 : vector<8x32xi1>, vector<8x32xf32>
    %c0_308 = arith.constant 0 : index
    %c4_309 = arith.constant 4 : index
    %c0_310 = arith.constant 0 : index
    %1037 = vector.load %arg14[%c0_308, %c4_309, %c0_310] : memref<8x8x32xf32, #tpu.memory_space<vmem>>, vector<8x1x32xf32>
    %1038 = vector.shape_cast %1037 : vector<8x1x32xf32> to vector<8x32xf32>
    %1039 = vector.shape_cast %1036 : vector<8x32xf32> to vector<8x1x32xf32>
    tpu.vector_store %arg14[%c0_308, %c4_309, %c0_310], %1039 {strides = array<i32>} : memref<8x8x32xf32, #tpu.memory_space<vmem>>, vector<8x1x32xf32>,
    %1040 = tpu.concatenate %1000, %1028 in 1 : vector<8x32xf32>, vector<8x32xf32> -> vector<8x64xf32>
    %cst_311 = arith.constant 0.000000e+00 : f32
    %1041 = vector.shape_cast %1032 : vector<8x1xi1> to vector<8x1xi1>
    %1042 = vector.broadcast %1041 : vector<8x1xi1> to vector<8x64xi1>
    %1043 = vector.broadcast %cst_311 : f32 to vector<8x64xf32>
    %1044 = arith.select %1042, %1040, %1043 : vector<8x64xi1>, vector<8x64xf32>
    %c0_312 = arith.constant 0 : index
    %c4_313 = arith.constant 4 : index
    %c0_314 = arith.constant 0 : index
    %1045 = vector.load %arg15[%c0_312, %c4_313, %c0_314] : memref<8x8x64xf32, #tpu.memory_space<vmem>>, vector<8x1x64xf32>
    %1046 = vector.shape_cast %1045 : vector<8x1x64xf32> to vector<8x64xf32>
    %1047 = vector.shape_cast %1044 : vector<8x64xf32> to vector<8x1x64xf32>
    tpu.vector_store %arg15[%c0_312, %c4_313, %c0_314], %1047 {strides = array<i32>} : memref<8x8x64xf32, #tpu.memory_space<vmem>>, vector<8x1x64xf32>,
    %cst_315 = arith.constant dense<0xFF800000> : vector<8xf32>
    %1048 = vector.multi_reduction <maximumf>, %1031, %cst_315 [1] : vector<8x32xf32> to vector<8xf32>
    %1049 = vector.shape_cast %1048 : vector<8xf32> to vector<8x1xf32>
    %1050 = vector.broadcast %1049 : vector<8x1xf32> to vector<8x32xf32>
    %1051 = arith.cmpf oeq, %1031, %1050 : vector<8x32xf32>
    %c32_i32_316 = arith.constant 32 : i32
    %1052 = vector.broadcast %c32_i32_316 : i32 to vector<8x32xi32>
    %1053 = arith.select %1051, %605, %1052 : vector<8x32xi1>, vector<8x32xi32>
    %cst_317 = arith.constant dense<2147483647> : vector<8xi32>
    %1054 = vector.multi_reduction <minsi>, %1053, %cst_317 [1] : vector<8x32xi32> to vector<8xi32>
    %1055 = vector.shape_cast %1054 : vector<8xi32> to vector<8x1xi32>
    %c2_i32_318 = arith.constant 2 : i32
    %1056 = vector.broadcast %c2_i32_318 : i32 to vector<8x1xi32>
    %1057 = arith.cmpi eq, %1055, %1056 : vector<8x1xi32>
    %1058 = arith.ori %968, %1057 : vector<8x1xi1>
    %1059 = vector.broadcast %1055 : vector<8x1xi32> to vector<8x32xi32>
    %1060 = arith.cmpi eq, %605, %1059 : vector<8x32xi32>
    %1061 = arith.extui %1060 : vector<8x32xi1> to vector<8x32xi32>
    %1062 = arith.sitofp %1061 : vector<8x32xi32> to vector<8x32xf32>
    %1063 = tpu.concatenate %1062, %1000 in 1 : vector<8x32xf32>, vector<8x32xf32> -> vector<8x64xf32>
    %c0_319 = arith.constant 0 : index
    %c0_320 = arith.constant 0 : index
    %1064 = vector.load %arg8[%c0_319, %c0_320] : memref<64x128xf32, #tpu.memory_space<vmem>>, vector<64x128xf32>
    %cst_321 = arith.constant dense<0.000000e+00> : vector<8x128xf32>
    %1065 = tpu.matmul %1063, %1064, %cst_321 {dimension_numbers = #tpu.dot_dimension_numbers<[1], [0], [0], [1], [0, 0, 1, 1], [], []>} : vector<8x64xf32>, vector<64x128xf32>, vector<8x128xf32> -> vector<8x128xf32>
    %c0_322 = arith.constant 0 : index
    %c0_323 = arith.constant 0 : index
    %1066 = vector.load %arg9[%c0_322, %c0_323] : memref<1x128xf32, #tpu.memory_space<vmem>>, vector<1x128xf32>
    %1067 = vector.broadcast %1066 : vector<1x128xf32> to vector<8x128xf32>
    %1068 = arith.addf %1065, %1067 : vector<8x128xf32>
    %1069 = vector.extract_strided_slice %1068 {offsets = [0, 0], sizes = [8, 32], strides = [1, 1]} : vector<8x128xf32> to vector<8x32xf32>
    %1070 = arith.negf %1069 : vector<8x32xf32>
    %1071 = math.exp %1070 : vector<8x32xf32>
    %cst_324 = arith.constant 1.000000e+00 : f32
    %1072 = vector.broadcast %cst_324 : f32 to vector<8x32xf32>
    %1073 = arith.addf %1072, %1071 : vector<8x32xf32>
    %1074 = arith.divf %1072, %1073 : vector<8x32xf32>
    %1075 = vector.extract_strided_slice %1068 {offsets = [0, 32], sizes = [8, 32], strides = [1, 1]} : vector<8x128xf32> to vector<8x32xf32>
    %1076 = arith.negf %1075 : vector<8x32xf32>
    %1077 = math.exp %1076 : vector<8x32xf32>
    %cst_325 = arith.constant 1.000000e+00 : f32
    %1078 = vector.broadcast %cst_325 : f32 to vector<8x32xf32>
    %1079 = arith.addf %1078, %1077 : vector<8x32xf32>
    %1080 = arith.divf %1078, %1079 : vector<8x32xf32>
    %1081 = vector.extract_strided_slice %1068 {offsets = [0, 64], sizes = [8, 32], strides = [1, 1]} : vector<8x128xf32> to vector<8x32xf32>
    %1082 = vector.extract_strided_slice %1068 {offsets = [0, 96], sizes = [8, 32], strides = [1, 1]} : vector<8x128xf32> to vector<8x32xf32>
    %1083 = arith.mulf %1074, %1082 : vector<8x32xf32>
    %1084 = arith.addf %1081, %1083 : vector<8x32xf32>
    %1085 = math.tanh %1084 : vector<8x32xf32>
    %cst_326 = arith.constant 1.000000e+00 : f32
    %1086 = vector.broadcast %cst_326 : f32 to vector<8x32xf32>
    %1087 = arith.subf %1086, %1080 : vector<8x32xf32>
    %1088 = arith.mulf %1087, %1085 : vector<8x32xf32>
    %1089 = arith.mulf %1080, %1000 : vector<8x32xf32>
    %1090 = arith.addf %1088, %1089 : vector<8x32xf32>
    %1091 = tpu.concatenate %1090, %1028 in 1 : vector<8x32xf32>, vector<8x32xf32> -> vector<8x64xf32>
    %c0_327 = arith.constant 0 : index
    %c0_328 = arith.constant 0 : index
    %1092 = vector.load %arg10[%c0_327, %c0_328] : memref<64x128xf32, #tpu.memory_space<vmem>>, vector<64x128xf32>
    %cst_329 = arith.constant dense<0.000000e+00> : vector<8x128xf32>
    %1093 = tpu.matmul %1091, %1092, %cst_329 {dimension_numbers = #tpu.dot_dimension_numbers<[1], [0], [0], [1], [0, 0, 1, 1], [], []>} : vector<8x64xf32>, vector<64x128xf32>, vector<8x128xf32> -> vector<8x128xf32>
    %c0_330 = arith.constant 0 : index
    %c0_331 = arith.constant 0 : index
    %1094 = vector.load %arg11[%c0_330, %c0_331] : memref<1x128xf32, #tpu.memory_space<vmem>>, vector<1x128xf32>
    %1095 = vector.broadcast %1094 : vector<1x128xf32> to vector<8x128xf32>
    %1096 = arith.addf %1093, %1095 : vector<8x128xf32>
    %1097 = vector.extract_strided_slice %1096 {offsets = [0, 0], sizes = [8, 32], strides = [1, 1]} : vector<8x128xf32> to vector<8x32xf32>
    %1098 = arith.negf %1097 : vector<8x32xf32>
    %1099 = math.exp %1098 : vector<8x32xf32>
    %cst_332 = arith.constant 1.000000e+00 : f32
    %1100 = vector.broadcast %cst_332 : f32 to vector<8x32xf32>
    %1101 = arith.addf %1100, %1099 : vector<8x32xf32>
    %1102 = arith.divf %1100, %1101 : vector<8x32xf32>
    %1103 = vector.extract_strided_slice %1096 {offsets = [0, 32], sizes = [8, 32], strides = [1, 1]} : vector<8x128xf32> to vector<8x32xf32>
    %1104 = arith.negf %1103 : vector<8x32xf32>
    %1105 = math.exp %1104 : vector<8x32xf32>
    %cst_333 = arith.constant 1.000000e+00 : f32
    %1106 = vector.broadcast %cst_333 : f32 to vector<8x32xf32>
    %1107 = arith.addf %1106, %1105 : vector<8x32xf32>
    %1108 = arith.divf %1106, %1107 : vector<8x32xf32>
    %1109 = vector.extract_strided_slice %1096 {offsets = [0, 64], sizes = [8, 32], strides = [1, 1]} : vector<8x128xf32> to vector<8x32xf32>
    %1110 = vector.extract_strided_slice %1096 {offsets = [0, 96], sizes = [8, 32], strides = [1, 1]} : vector<8x128xf32> to vector<8x32xf32>
    %1111 = arith.mulf %1102, %1110 : vector<8x32xf32>
    %1112 = arith.addf %1109, %1111 : vector<8x32xf32>
    %1113 = math.tanh %1112 : vector<8x32xf32>
    %cst_334 = arith.constant 1.000000e+00 : f32
    %1114 = vector.broadcast %cst_334 : f32 to vector<8x32xf32>
    %1115 = arith.subf %1114, %1108 : vector<8x32xf32>
    %1116 = arith.mulf %1115, %1113 : vector<8x32xf32>
    %1117 = arith.mulf %1108, %1028 : vector<8x32xf32>
    %1118 = arith.addf %1116, %1117 : vector<8x32xf32>
    %cst_335 = arith.constant dense<0.000000e+00> : vector<8x32xf32>
    %1119 = tpu.matmul %1118, %611, %cst_335 {dimension_numbers = #tpu.dot_dimension_numbers<[1], [0], [0], [1], [0, 0, 1, 1], [], []>} : vector<8x32xf32>, vector<32x32xf32>, vector<8x32xf32> -> vector<8x32xf32>
    %1120 = vector.broadcast %612 : vector<1x32xf32> to vector<8x32xf32>
    %1121 = arith.addf %1119, %1120 : vector<8x32xf32>
    %cst_336 = arith.constant dense<true> : vector<8x1xi1>
    %1122 = arith.xori %1058, %cst_336 : vector<8x1xi1>
    %cst_337 = arith.constant 0.000000e+00 : f32
    %1123 = vector.shape_cast %1122 : vector<8x1xi1> to vector<8x1xi1>
    %1124 = vector.broadcast %1123 : vector<8x1xi1> to vector<8x32xi1>
    %1125 = vector.broadcast %cst_337 : f32 to vector<8x32xf32>
    %1126 = arith.select %1124, %1121, %1125 : vector<8x32xi1>, vector<8x32xf32>
    %c0_338 = arith.constant 0 : index
    %c5_339 = arith.constant 5 : index
    %c0_340 = arith.constant 0 : index
    %1127 = vector.load %arg14[%c0_338, %c5_339, %c0_340] : memref<8x8x32xf32, #tpu.memory_space<vmem>>, vector<8x1x32xf32>
    %1128 = vector.shape_cast %1127 : vector<8x1x32xf32> to vector<8x32xf32>
    %1129 = vector.shape_cast %1126 : vector<8x32xf32> to vector<8x1x32xf32>
    tpu.vector_store %arg14[%c0_338, %c5_339, %c0_340], %1129 {strides = array<i32>} : memref<8x8x32xf32, #tpu.memory_space<vmem>>, vector<8x1x32xf32>,
    %1130 = tpu.concatenate %1090, %1118 in 1 : vector<8x32xf32>, vector<8x32xf32> -> vector<8x64xf32>
    %cst_341 = arith.constant 0.000000e+00 : f32
    %1131 = vector.shape_cast %1122 : vector<8x1xi1> to vector<8x1xi1>
    %1132 = vector.broadcast %1131 : vector<8x1xi1> to vector<8x64xi1>
    %1133 = vector.broadcast %cst_341 : f32 to vector<8x64xf32>
    %1134 = arith.select %1132, %1130, %1133 : vector<8x64xi1>, vector<8x64xf32>
    %c0_342 = arith.constant 0 : index
    %c5_343 = arith.constant 5 : index
    %c0_344 = arith.constant 0 : index
    %1135 = vector.load %arg15[%c0_342, %c5_343, %c0_344] : memref<8x8x64xf32, #tpu.memory_space<vmem>>, vector<8x1x64xf32>
    %1136 = vector.shape_cast %1135 : vector<8x1x64xf32> to vector<8x64xf32>
    %1137 = vector.shape_cast %1134 : vector<8x64xf32> to vector<8x1x64xf32>
    tpu.vector_store %arg15[%c0_342, %c5_343, %c0_344], %1137 {strides = array<i32>} : memref<8x8x64xf32, #tpu.memory_space<vmem>>, vector<8x1x64xf32>,
    %cst_345 = arith.constant dense<0xFF800000> : vector<8xf32>
    %1138 = vector.multi_reduction <maximumf>, %1121, %cst_345 [1] : vector<8x32xf32> to vector<8xf32>
    %1139 = vector.shape_cast %1138 : vector<8xf32> to vector<8x1xf32>
    %1140 = vector.broadcast %1139 : vector<8x1xf32> to vector<8x32xf32>
    %1141 = arith.cmpf oeq, %1121, %1140 : vector<8x32xf32>
    %c32_i32_346 = arith.constant 32 : i32
    %1142 = vector.broadcast %c32_i32_346 : i32 to vector<8x32xi32>
    %1143 = arith.select %1141, %605, %1142 : vector<8x32xi1>, vector<8x32xi32>
    %cst_347 = arith.constant dense<2147483647> : vector<8xi32>
    %1144 = vector.multi_reduction <minsi>, %1143, %cst_347 [1] : vector<8x32xi32> to vector<8xi32>
    %1145 = vector.shape_cast %1144 : vector<8xi32> to vector<8x1xi32>
    %c2_i32_348 = arith.constant 2 : i32
    %1146 = vector.broadcast %c2_i32_348 : i32 to vector<8x1xi32>
    %1147 = arith.cmpi eq, %1145, %1146 : vector<8x1xi32>
    %1148 = arith.ori %1058, %1147 : vector<8x1xi1>
    %1149 = vector.broadcast %1145 : vector<8x1xi32> to vector<8x32xi32>
    %1150 = arith.cmpi eq, %605, %1149 : vector<8x32xi32>
    %1151 = arith.extui %1150 : vector<8x32xi1> to vector<8x32xi32>
    %1152 = arith.sitofp %1151 : vector<8x32xi32> to vector<8x32xf32>
    %1153 = tpu.concatenate %1152, %1090 in 1 : vector<8x32xf32>, vector<8x32xf32> -> vector<8x64xf32>
    %c0_349 = arith.constant 0 : index
    %c0_350 = arith.constant 0 : index
    %1154 = vector.load %arg8[%c0_349, %c0_350] : memref<64x128xf32, #tpu.memory_space<vmem>>, vector<64x128xf32>
    %cst_351 = arith.constant dense<0.000000e+00> : vector<8x128xf32>
    %1155 = tpu.matmul %1153, %1154, %cst_351 {dimension_numbers = #tpu.dot_dimension_numbers<[1], [0], [0], [1], [0, 0, 1, 1], [], []>} : vector<8x64xf32>, vector<64x128xf32>, vector<8x128xf32> -> vector<8x128xf32>
    %c0_352 = arith.constant 0 : index
    %c0_353 = arith.constant 0 : index
    %1156 = vector.load %arg9[%c0_352, %c0_353] : memref<1x128xf32, #tpu.memory_space<vmem>>, vector<1x128xf32>
    %1157 = vector.broadcast %1156 : vector<1x128xf32> to vector<8x128xf32>
    %1158 = arith.addf %1155, %1157 : vector<8x128xf32>
    %1159 = vector.extract_strided_slice %1158 {offsets = [0, 0], sizes = [8, 32], strides = [1, 1]} : vector<8x128xf32> to vector<8x32xf32>
    %1160 = arith.negf %1159 : vector<8x32xf32>
    %1161 = math.exp %1160 : vector<8x32xf32>
    %cst_354 = arith.constant 1.000000e+00 : f32
    %1162 = vector.broadcast %cst_354 : f32 to vector<8x32xf32>
    %1163 = arith.addf %1162, %1161 : vector<8x32xf32>
    %1164 = arith.divf %1162, %1163 : vector<8x32xf32>
    %1165 = vector.extract_strided_slice %1158 {offsets = [0, 32], sizes = [8, 32], strides = [1, 1]} : vector<8x128xf32> to vector<8x32xf32>
    %1166 = arith.negf %1165 : vector<8x32xf32>
    %1167 = math.exp %1166 : vector<8x32xf32>
    %cst_355 = arith.constant 1.000000e+00 : f32
    %1168 = vector.broadcast %cst_355 : f32 to vector<8x32xf32>
    %1169 = arith.addf %1168, %1167 : vector<8x32xf32>
    %1170 = arith.divf %1168, %1169 : vector<8x32xf32>
    %1171 = vector.extract_strided_slice %1158 {offsets = [0, 64], sizes = [8, 32], strides = [1, 1]} : vector<8x128xf32> to vector<8x32xf32>
    %1172 = vector.extract_strided_slice %1158 {offsets = [0, 96], sizes = [8, 32], strides = [1, 1]} : vector<8x128xf32> to vector<8x32xf32>
    %1173 = arith.mulf %1164, %1172 : vector<8x32xf32>
    %1174 = arith.addf %1171, %1173 : vector<8x32xf32>
    %1175 = math.tanh %1174 : vector<8x32xf32>
    %cst_356 = arith.constant 1.000000e+00 : f32
    %1176 = vector.broadcast %cst_356 : f32 to vector<8x32xf32>
    %1177 = arith.subf %1176, %1170 : vector<8x32xf32>
    %1178 = arith.mulf %1177, %1175 : vector<8x32xf32>
    %1179 = arith.mulf %1170, %1090 : vector<8x32xf32>
    %1180 = arith.addf %1178, %1179 : vector<8x32xf32>
    %1181 = tpu.concatenate %1180, %1118 in 1 : vector<8x32xf32>, vector<8x32xf32> -> vector<8x64xf32>
    %c0_357 = arith.constant 0 : index
    %c0_358 = arith.constant 0 : index
    %1182 = vector.load %arg10[%c0_357, %c0_358] : memref<64x128xf32, #tpu.memory_space<vmem>>, vector<64x128xf32>
    %cst_359 = arith.constant dense<0.000000e+00> : vector<8x128xf32>
    %1183 = tpu.matmul %1181, %1182, %cst_359 {dimension_numbers = #tpu.dot_dimension_numbers<[1], [0], [0], [1], [0, 0, 1, 1], [], []>} : vector<8x64xf32>, vector<64x128xf32>, vector<8x128xf32> -> vector<8x128xf32>
    %c0_360 = arith.constant 0 : index
    %c0_361 = arith.constant 0 : index
    %1184 = vector.load %arg11[%c0_360, %c0_361] : memref<1x128xf32, #tpu.memory_space<vmem>>, vector<1x128xf32>
    %1185 = vector.broadcast %1184 : vector<1x128xf32> to vector<8x128xf32>
    %1186 = arith.addf %1183, %1185 : vector<8x128xf32>
    %1187 = vector.extract_strided_slice %1186 {offsets = [0, 0], sizes = [8, 32], strides = [1, 1]} : vector<8x128xf32> to vector<8x32xf32>
    %1188 = arith.negf %1187 : vector<8x32xf32>
    %1189 = math.exp %1188 : vector<8x32xf32>
    %cst_362 = arith.constant 1.000000e+00 : f32
    %1190 = vector.broadcast %cst_362 : f32 to vector<8x32xf32>
    %1191 = arith.addf %1190, %1189 : vector<8x32xf32>
    %1192 = arith.divf %1190, %1191 : vector<8x32xf32>
    %1193 = vector.extract_strided_slice %1186 {offsets = [0, 32], sizes = [8, 32], strides = [1, 1]} : vector<8x128xf32> to vector<8x32xf32>
    %1194 = arith.negf %1193 : vector<8x32xf32>
    %1195 = math.exp %1194 : vector<8x32xf32>
    %cst_363 = arith.constant 1.000000e+00 : f32
    %1196 = vector.broadcast %cst_363 : f32 to vector<8x32xf32>
    %1197 = arith.addf %1196, %1195 : vector<8x32xf32>
    %1198 = arith.divf %1196, %1197 : vector<8x32xf32>
    %1199 = vector.extract_strided_slice %1186 {offsets = [0, 64], sizes = [8, 32], strides = [1, 1]} : vector<8x128xf32> to vector<8x32xf32>
    %1200 = vector.extract_strided_slice %1186 {offsets = [0, 96], sizes = [8, 32], strides = [1, 1]} : vector<8x128xf32> to vector<8x32xf32>
    %1201 = arith.mulf %1192, %1200 : vector<8x32xf32>
    %1202 = arith.addf %1199, %1201 : vector<8x32xf32>
    %1203 = math.tanh %1202 : vector<8x32xf32>
    %cst_364 = arith.constant 1.000000e+00 : f32
    %1204 = vector.broadcast %cst_364 : f32 to vector<8x32xf32>
    %1205 = arith.subf %1204, %1198 : vector<8x32xf32>
    %1206 = arith.mulf %1205, %1203 : vector<8x32xf32>
    %1207 = arith.mulf %1198, %1118 : vector<8x32xf32>
    %1208 = arith.addf %1206, %1207 : vector<8x32xf32>
    %cst_365 = arith.constant dense<0.000000e+00> : vector<8x32xf32>
    %1209 = tpu.matmul %1208, %611, %cst_365 {dimension_numbers = #tpu.dot_dimension_numbers<[1], [0], [0], [1], [0, 0, 1, 1], [], []>} : vector<8x32xf32>, vector<32x32xf32>, vector<8x32xf32> -> vector<8x32xf32>
    %1210 = vector.broadcast %612 : vector<1x32xf32> to vector<8x32xf32>
    %1211 = arith.addf %1209, %1210 : vector<8x32xf32>
    %cst_366 = arith.constant dense<true> : vector<8x1xi1>
    %1212 = arith.xori %1148, %cst_366 : vector<8x1xi1>
    %cst_367 = arith.constant 0.000000e+00 : f32
    %1213 = vector.shape_cast %1212 : vector<8x1xi1> to vector<8x1xi1>
    %1214 = vector.broadcast %1213 : vector<8x1xi1> to vector<8x32xi1>
    %1215 = vector.broadcast %cst_367 : f32 to vector<8x32xf32>
    %1216 = arith.select %1214, %1211, %1215 : vector<8x32xi1>, vector<8x32xf32>
    %c0_368 = arith.constant 0 : index
    %c6_369 = arith.constant 6 : index
    %c0_370 = arith.constant 0 : index
    %1217 = vector.load %arg14[%c0_368, %c6_369, %c0_370] : memref<8x8x32xf32, #tpu.memory_space<vmem>>, vector<8x1x32xf32>
    %1218 = vector.shape_cast %1217 : vector<8x1x32xf32> to vector<8x32xf32>
    %1219 = vector.shape_cast %1216 : vector<8x32xf32> to vector<8x1x32xf32>
    tpu.vector_store %arg14[%c0_368, %c6_369, %c0_370], %1219 {strides = array<i32>} : memref<8x8x32xf32, #tpu.memory_space<vmem>>, vector<8x1x32xf32>,
    %1220 = tpu.concatenate %1180, %1208 in 1 : vector<8x32xf32>, vector<8x32xf32> -> vector<8x64xf32>
    %cst_371 = arith.constant 0.000000e+00 : f32
    %1221 = vector.shape_cast %1212 : vector<8x1xi1> to vector<8x1xi1>
    %1222 = vector.broadcast %1221 : vector<8x1xi1> to vector<8x64xi1>
    %1223 = vector.broadcast %cst_371 : f32 to vector<8x64xf32>
    %1224 = arith.select %1222, %1220, %1223 : vector<8x64xi1>, vector<8x64xf32>
    %c0_372 = arith.constant 0 : index
    %c6_373 = arith.constant 6 : index
    %c0_374 = arith.constant 0 : index
    %1225 = vector.load %arg15[%c0_372, %c6_373, %c0_374] : memref<8x8x64xf32, #tpu.memory_space<vmem>>, vector<8x1x64xf32>
    %1226 = vector.shape_cast %1225 : vector<8x1x64xf32> to vector<8x64xf32>
    %1227 = vector.shape_cast %1224 : vector<8x64xf32> to vector<8x1x64xf32>
    tpu.vector_store %arg15[%c0_372, %c6_373, %c0_374], %1227 {strides = array<i32>} : memref<8x8x64xf32, #tpu.memory_space<vmem>>, vector<8x1x64xf32>,
    %cst_375 = arith.constant dense<0xFF800000> : vector<8xf32>
    %1228 = vector.multi_reduction <maximumf>, %1211, %cst_375 [1] : vector<8x32xf32> to vector<8xf32>
    %1229 = vector.shape_cast %1228 : vector<8xf32> to vector<8x1xf32>
    %1230 = vector.broadcast %1229 : vector<8x1xf32> to vector<8x32xf32>
    %1231 = arith.cmpf oeq, %1211, %1230 : vector<8x32xf32>
    %c32_i32_376 = arith.constant 32 : i32
    %1232 = vector.broadcast %c32_i32_376 : i32 to vector<8x32xi32>
    %1233 = arith.select %1231, %605, %1232 : vector<8x32xi1>, vector<8x32xi32>
    %cst_377 = arith.constant dense<2147483647> : vector<8xi32>
    %1234 = vector.multi_reduction <minsi>, %1233, %cst_377 [1] : vector<8x32xi32> to vector<8xi32>
    %1235 = vector.shape_cast %1234 : vector<8xi32> to vector<8x1xi32>
    %c2_i32_378 = arith.constant 2 : i32
    %1236 = vector.broadcast %c2_i32_378 : i32 to vector<8x1xi32>
    %1237 = arith.cmpi eq, %1235, %1236 : vector<8x1xi32>
    %1238 = arith.ori %1148, %1237 : vector<8x1xi1>
    %1239 = vector.broadcast %1235 : vector<8x1xi32> to vector<8x32xi32>
    %1240 = arith.cmpi eq, %605, %1239 : vector<8x32xi32>
    %1241 = arith.extui %1240 : vector<8x32xi1> to vector<8x32xi32>
    %1242 = arith.sitofp %1241 : vector<8x32xi32> to vector<8x32xf32>
    %1243 = tpu.concatenate %1242, %1180 in 1 : vector<8x32xf32>, vector<8x32xf32> -> vector<8x64xf32>
    %c0_379 = arith.constant 0 : index
    %c0_380 = arith.constant 0 : index
    %1244 = vector.load %arg8[%c0_379, %c0_380] : memref<64x128xf32, #tpu.memory_space<vmem>>, vector<64x128xf32>
    %cst_381 = arith.constant dense<0.000000e+00> : vector<8x128xf32>
    %1245 = tpu.matmul %1243, %1244, %cst_381 {dimension_numbers = #tpu.dot_dimension_numbers<[1], [0], [0], [1], [0, 0, 1, 1], [], []>} : vector<8x64xf32>, vector<64x128xf32>, vector<8x128xf32> -> vector<8x128xf32>
    %c0_382 = arith.constant 0 : index
    %c0_383 = arith.constant 0 : index
    %1246 = vector.load %arg9[%c0_382, %c0_383] : memref<1x128xf32, #tpu.memory_space<vmem>>, vector<1x128xf32>
    %1247 = vector.broadcast %1246 : vector<1x128xf32> to vector<8x128xf32>
    %1248 = arith.addf %1245, %1247 : vector<8x128xf32>
    %1249 = vector.extract_strided_slice %1248 {offsets = [0, 0], sizes = [8, 32], strides = [1, 1]} : vector<8x128xf32> to vector<8x32xf32>
    %1250 = arith.negf %1249 : vector<8x32xf32>
    %1251 = math.exp %1250 : vector<8x32xf32>
    %cst_384 = arith.constant 1.000000e+00 : f32
    %1252 = vector.broadcast %cst_384 : f32 to vector<8x32xf32>
    %1253 = arith.addf %1252, %1251 : vector<8x32xf32>
    %1254 = arith.divf %1252, %1253 : vector<8x32xf32>
    %1255 = vector.extract_strided_slice %1248 {offsets = [0, 32], sizes = [8, 32], strides = [1, 1]} : vector<8x128xf32> to vector<8x32xf32>
    %1256 = arith.negf %1255 : vector<8x32xf32>
    %1257 = math.exp %1256 : vector<8x32xf32>
    %cst_385 = arith.constant 1.000000e+00 : f32
    %1258 = vector.broadcast %cst_385 : f32 to vector<8x32xf32>
    %1259 = arith.addf %1258, %1257 : vector<8x32xf32>
    %1260 = arith.divf %1258, %1259 : vector<8x32xf32>
    %1261 = vector.extract_strided_slice %1248 {offsets = [0, 64], sizes = [8, 32], strides = [1, 1]} : vector<8x128xf32> to vector<8x32xf32>
    %1262 = vector.extract_strided_slice %1248 {offsets = [0, 96], sizes = [8, 32], strides = [1, 1]} : vector<8x128xf32> to vector<8x32xf32>
    %1263 = arith.mulf %1254, %1262 : vector<8x32xf32>
    %1264 = arith.addf %1261, %1263 : vector<8x32xf32>
    %1265 = math.tanh %1264 : vector<8x32xf32>
    %cst_386 = arith.constant 1.000000e+00 : f32
    %1266 = vector.broadcast %cst_386 : f32 to vector<8x32xf32>
    %1267 = arith.subf %1266, %1260 : vector<8x32xf32>
    %1268 = arith.mulf %1267, %1265 : vector<8x32xf32>
    %1269 = arith.mulf %1260, %1180 : vector<8x32xf32>
    %1270 = arith.addf %1268, %1269 : vector<8x32xf32>
    %1271 = tpu.concatenate %1270, %1208 in 1 : vector<8x32xf32>, vector<8x32xf32> -> vector<8x64xf32>
    %c0_387 = arith.constant 0 : index
    %c0_388 = arith.constant 0 : index
    %1272 = vector.load %arg10[%c0_387, %c0_388] : memref<64x128xf32, #tpu.memory_space<vmem>>, vector<64x128xf32>
    %cst_389 = arith.constant dense<0.000000e+00> : vector<8x128xf32>
    %1273 = tpu.matmul %1271, %1272, %cst_389 {dimension_numbers = #tpu.dot_dimension_numbers<[1], [0], [0], [1], [0, 0, 1, 1], [], []>} : vector<8x64xf32>, vector<64x128xf32>, vector<8x128xf32> -> vector<8x128xf32>
    %c0_390 = arith.constant 0 : index
    %c0_391 = arith.constant 0 : index
    %1274 = vector.load %arg11[%c0_390, %c0_391] : memref<1x128xf32, #tpu.memory_space<vmem>>, vector<1x128xf32>
    %1275 = vector.broadcast %1274 : vector<1x128xf32> to vector<8x128xf32>
    %1276 = arith.addf %1273, %1275 : vector<8x128xf32>
    %1277 = vector.extract_strided_slice %1276 {offsets = [0, 0], sizes = [8, 32], strides = [1, 1]} : vector<8x128xf32> to vector<8x32xf32>
    %1278 = arith.negf %1277 : vector<8x32xf32>
    %1279 = math.exp %1278 : vector<8x32xf32>
    %cst_392 = arith.constant 1.000000e+00 : f32
    %1280 = vector.broadcast %cst_392 : f32 to vector<8x32xf32>
    %1281 = arith.addf %1280, %1279 : vector<8x32xf32>
    %1282 = arith.divf %1280, %1281 : vector<8x32xf32>
    %1283 = vector.extract_strided_slice %1276 {offsets = [0, 32], sizes = [8, 32], strides = [1, 1]} : vector<8x128xf32> to vector<8x32xf32>
    %1284 = arith.negf %1283 : vector<8x32xf32>
    %1285 = math.exp %1284 : vector<8x32xf32>
    %cst_393 = arith.constant 1.000000e+00 : f32
    %1286 = vector.broadcast %cst_393 : f32 to vector<8x32xf32>
    %1287 = arith.addf %1286, %1285 : vector<8x32xf32>
    %1288 = arith.divf %1286, %1287 : vector<8x32xf32>
    %1289 = vector.extract_strided_slice %1276 {offsets = [0, 64], sizes = [8, 32], strides = [1, 1]} : vector<8x128xf32> to vector<8x32xf32>
    %1290 = vector.extract_strided_slice %1276 {offsets = [0, 96], sizes = [8, 32], strides = [1, 1]} : vector<8x128xf32> to vector<8x32xf32>
    %1291 = arith.mulf %1282, %1290 : vector<8x32xf32>
    %1292 = arith.addf %1289, %1291 : vector<8x32xf32>
    %1293 = math.tanh %1292 : vector<8x32xf32>
    %cst_394 = arith.constant 1.000000e+00 : f32
    %1294 = vector.broadcast %cst_394 : f32 to vector<8x32xf32>
    %1295 = arith.subf %1294, %1288 : vector<8x32xf32>
    %1296 = arith.mulf %1295, %1293 : vector<8x32xf32>
    %1297 = arith.mulf %1288, %1208 : vector<8x32xf32>
    %1298 = arith.addf %1296, %1297 : vector<8x32xf32>
    %cst_395 = arith.constant dense<0.000000e+00> : vector<8x32xf32>
    %1299 = tpu.matmul %1298, %611, %cst_395 {dimension_numbers = #tpu.dot_dimension_numbers<[1], [0], [0], [1], [0, 0, 1, 1], [], []>} : vector<8x32xf32>, vector<32x32xf32>, vector<8x32xf32> -> vector<8x32xf32>
    %1300 = vector.broadcast %612 : vector<1x32xf32> to vector<8x32xf32>
    %1301 = arith.addf %1299, %1300 : vector<8x32xf32>
    %cst_396 = arith.constant dense<true> : vector<8x1xi1>
    %1302 = arith.xori %1238, %cst_396 : vector<8x1xi1>
    %cst_397 = arith.constant 0.000000e+00 : f32
    %1303 = vector.shape_cast %1302 : vector<8x1xi1> to vector<8x1xi1>
    %1304 = vector.broadcast %1303 : vector<8x1xi1> to vector<8x32xi1>
    %1305 = vector.broadcast %cst_397 : f32 to vector<8x32xf32>
    %1306 = arith.select %1304, %1301, %1305 : vector<8x32xi1>, vector<8x32xf32>
    %c0_398 = arith.constant 0 : index
    %c7_399 = arith.constant 7 : index
    %c0_400 = arith.constant 0 : index
    %1307 = vector.load %arg14[%c0_398, %c7_399, %c0_400] : memref<8x8x32xf32, #tpu.memory_space<vmem>>, vector<8x1x32xf32>
    %1308 = vector.shape_cast %1307 : vector<8x1x32xf32> to vector<8x32xf32>
    %1309 = vector.shape_cast %1306 : vector<8x32xf32> to vector<8x1x32xf32>
    tpu.vector_store %arg14[%c0_398, %c7_399, %c0_400], %1309 {strides = array<i32>} : memref<8x8x32xf32, #tpu.memory_space<vmem>>, vector<8x1x32xf32>,
    %1310 = tpu.concatenate %1270, %1298 in 1 : vector<8x32xf32>, vector<8x32xf32> -> vector<8x64xf32>
    %cst_401 = arith.constant 0.000000e+00 : f32
    %1311 = vector.shape_cast %1302 : vector<8x1xi1> to vector<8x1xi1>
    %1312 = vector.broadcast %1311 : vector<8x1xi1> to vector<8x64xi1>
    %1313 = vector.broadcast %cst_401 : f32 to vector<8x64xf32>
    %1314 = arith.select %1312, %1310, %1313 : vector<8x64xi1>, vector<8x64xf32>
    %c0_402 = arith.constant 0 : index
    %c7_403 = arith.constant 7 : index
    %c0_404 = arith.constant 0 : index
    %1315 = vector.load %arg15[%c0_402, %c7_403, %c0_404] : memref<8x8x64xf32, #tpu.memory_space<vmem>>, vector<8x1x64xf32>
    %1316 = vector.shape_cast %1315 : vector<8x1x64xf32> to vector<8x64xf32>
    %1317 = vector.shape_cast %1314 : vector<8x64xf32> to vector<8x1x64xf32>
    tpu.vector_store %arg15[%c0_402, %c7_403, %c0_404], %1317 {strides = array<i32>} : memref<8x8x64xf32, #tpu.memory_space<vmem>>, vector<8x1x64xf32>,
    return
  }
  func.func @transform_0(%arg0: i32) -> (i32, i32, i32) {
    %c0_i32 = arith.constant 0 : i32
    %c0_i32_0 = arith.constant 0 : i32
    %c0_i32_1 = arith.constant 0 : i32
    return %c0_i32, %arg0, %c0_i32_0 : i32, i32, i32
  }
  func.func @transform_1(%arg0: i32) -> (i32, i32, i32) {
    %c0_i32 = arith.constant 0 : i32
    %c0_i32_0 = arith.constant 0 : i32
    %c0_i32_1 = arith.constant 0 : i32
    return %arg0, %c0_i32, %c0_i32_0 : i32, i32, i32
  }
  func.func @transform_2(%arg0: i32) -> (i32, i32) {
    %c0_i32 = arith.constant 0 : i32
    %c0_i32_0 = arith.constant 0 : i32
    return %arg0, %c0_i32 : i32, i32
  }
  func.func @transform_3(%arg0: i32) -> (i32, i32) {
    %c0_i32 = arith.constant 0 : i32
    %c0_i32_0 = arith.constant 0 : i32
    %c0_i32_1 = arith.constant 0 : i32
    return %c0_i32, %c0_i32_0 : i32, i32
  }
  func.func @transform_4(%arg0: i32) -> (i32, i32) {
    %c0_i32 = arith.constant 0 : i32
    %c0_i32_0 = arith.constant 0 : i32
    %c0_i32_1 = arith.constant 0 : i32
    return %c0_i32, %c0_i32_0 : i32, i32
  }
  func.func @transform_5(%arg0: i32) -> (i32, i32) {
    %c0_i32 = arith.constant 0 : i32
    %c0_i32_0 = arith.constant 0 : i32
    %c0_i32_1 = arith.constant 0 : i32
    return %c0_i32, %c0_i32_0 : i32, i32
  }
  func.func @transform_6(%arg0: i32) -> (i32, i32) {
    %c0_i32 = arith.constant 0 : i32
    %c0_i32_0 = arith.constant 0 : i32
    %c0_i32_1 = arith.constant 0 : i32
    return %c0_i32, %c0_i32_0 : i32, i32
  }
  func.func @transform_7(%arg0: i32) -> (i32, i32) {
    %c0_i32 = arith.constant 0 : i32
    %c0_i32_0 = arith.constant 0 : i32
    %c0_i32_1 = arith.constant 0 : i32
    return %c0_i32, %c0_i32_0 : i32, i32
  }
  func.func @transform_8(%arg0: i32) -> (i32, i32) {
    %c0_i32 = arith.constant 0 : i32
    %c0_i32_0 = arith.constant 0 : i32
    %c0_i32_1 = arith.constant 0 : i32
    return %c0_i32, %c0_i32_0 : i32, i32
  }
  func.func @transform_9(%arg0: i32) -> (i32, i32) {
    %c0_i32 = arith.constant 0 : i32
    %c0_i32_0 = arith.constant 0 : i32
    %c0_i32_1 = arith.constant 0 : i32
    return %c0_i32, %c0_i32_0 : i32, i32
  }
  func.func @transform_10(%arg0: i32) -> (i32, i32) {
    %c0_i32 = arith.constant 0 : i32
    %c0_i32_0 = arith.constant 0 : i32
    %c0_i32_1 = arith.constant 0 : i32
    return %c0_i32, %c0_i32_0 : i32, i32
  }
  func.func @transform_11(%arg0: i32) -> (i32, i32) {
    %c0_i32 = arith.constant 0 : i32
    %c0_i32_0 = arith.constant 0 : i32
    %c0_i32_1 = arith.constant 0 : i32
    return %c0_i32, %c0_i32_0 : i32, i32
  }
  func.func @transform_12(%arg0: i32) -> (i32, i32) {
    %c0_i32 = arith.constant 0 : i32
    %c0_i32_0 = arith.constant 0 : i32
    %c0_i32_1 = arith.constant 0 : i32
    return %c0_i32, %c0_i32_0 : i32, i32
  }
  func.func @transform_13(%arg0: i32) -> (i32, i32, i32) {
    %c0_i32 = arith.constant 0 : i32
    %c0_i32_0 = arith.constant 0 : i32
    %c0_i32_1 = arith.constant 0 : i32
    return %arg0, %c0_i32, %c0_i32_0 : i32, i32, i32
  }
  func.func @transform_14(%arg0: i32) -> (i32, i32, i32) {
    %c0_i32 = arith.constant 0 : i32
    %c0_i32_0 = arith.constant 0 : i32
    %c0_i32_1 = arith.constant 0 : i32
    return %arg0, %c0_i32, %c0_i32_0 : i32, i32, i32
  }
}

</mosaic_0001>

<llo_original>
// kernel: morph_sequence_forward.1
$region0: #{morph_sequence_forward.1}
  #allocation0 [shape = 'u32[]', space=smem, size = 0x4, offset = 0x4, fixed_abs, tag = 'smem constant byte address 0x4 - core index']
  #allocation1 [shape = 'u32[144,128]{1,0:T(1,128)}', space=vmem, size = 0x12000, scoped, tag = 'internal scratch']
  %s0 = inlined_call_operand.vmem [shape: f32[2,8,32], index: 0, kind: input, shape index: {}]
  %s1 = inlined_call_operand.vmem [shape: f32[8,8,96], index: 1, kind: input, shape index: {}]
  %s2 = inlined_call_operand.vmem [shape: f32[8,8], index: 2, kind: input, shape index: {}]
  %s3 = inlined_call_operand.vmem [shape: f32[32,96], index: 3, kind: input, shape index: {}]
  %s4 = inlined_call_operand.vmem [shape: f32[1,96], index: 4, kind: input, shape index: {}]
  %s5 = inlined_call_operand.vmem [shape: f32[64,128], index: 5, kind: input, shape index: {}]
  %s6 = inlined_call_operand.vmem [shape: f32[1,128], index: 6, kind: input, shape index: {}]
  %s7 = inlined_call_operand.vmem [shape: f32[64,128], index: 7, kind: input, shape index: {}]
  %s8 = inlined_call_operand.vmem [shape: f32[1,128], index: 8, kind: input, shape index: {}]
  %s9 = inlined_call_operand.vmem [shape: f32[64,128], index: 9, kind: input, shape index: {}]
  %s10 = inlined_call_operand.vmem [shape: f32[1,128], index: 10, kind: input, shape index: {}]
  %s11 = inlined_call_operand.vmem [shape: f32[32,32], index: 11, kind: input, shape index: {}]
  %s12 = inlined_call_operand.vmem [shape: f32[1,32], index: 12, kind: input, shape index: {}]
  %s13 = inlined_call_operand.vmem [shape: f32[8,8,32], index: 13, kind: output, shape index: {0}]
  %s14 = inlined_call_operand.vmem [shape: f32[8,8,64], index: 14, kind: output, shape index: {1}]
  %15 = xla_tuple %s13, %s14
  %s16 = sld [smem:[#allocation0]]
  $region70: #{morph_sequence_forward.1} parent=0
    _
  %s18 = ssub.s32 1, %s16
  %s19 = scalar_select 0, %s18, %s16
  // Predicated region
  $region2: #{morph_sequence_forward.1} parent=0 // pred_check
    _
  $region3: #{morph_sequence_forward.1} parent=0 // pred_check_branch
    %21 = sbr.rel (0) target = $region5
  $region4: #{morph_sequence_forward.1} parent=0 // pred_region
    _
  $region5: #{morph_sequence_forward.1} parent=0 // pred_fallthru
    _
  // Predicated region
  $region6: #{morph_sequence_forward.1} parent=0 // pred_check
    _
  $region7: #{morph_sequence_forward.1} parent=0 // pred_check_branch
    %23 = sbr.rel (0) target = $region9
  $region8: #{morph_sequence_forward.1} parent=0 // pred_region
    _
  $region9: #{morph_sequence_forward.1} parent=0 // pred_fallthru
    _
  // Predicated region
  $region10: #{morph_sequence_forward.1} parent=0 // pred_check
    _
  $region11: #{morph_sequence_forward.1} parent=0 // pred_check_branch
    %25 = sbr.rel (0) target = $region13
  $region12: #{morph_sequence_forward.1} parent=0 // pred_region
    _
  $region13: #{morph_sequence_forward.1} parent=0 // pred_fallthru
    _
  // Predicated region
  $region14: #{morph_sequence_forward.1} parent=0 // pred_check
    _
  $region15: #{morph_sequence_forward.1} parent=0 // pred_check_branch
    %27 = sbr.rel (0) target = $region17
  $region16: #{morph_sequence_forward.1} parent=0 // pred_region
    _
  $region17: #{morph_sequence_forward.1} parent=0 // pred_fallthru
    _
  // Predicated region
  $region18: #{morph_sequence_forward.1} parent=0 // pred_check
    _
  $region19: #{morph_sequence_forward.1} parent=0 // pred_check_branch
    %29 = sbr.rel (0) target = $region21
  $region20: #{morph_sequence_forward.1} parent=0 // pred_region
    _
  $region21: #{morph_sequence_forward.1} parent=0 // pred_fallthru
    _
  // Predicated region
  $region22: #{morph_sequence_forward.1} parent=0 // pred_check
    _
  $region23: #{morph_sequence_forward.1} parent=0 // pred_check_branch
    %31 = sbr.rel (0) target = $region25
  $region24: #{morph_sequence_forward.1} parent=0 // pred_region
    _
  $region25: #{morph_sequence_forward.1} parent=0 // pred_fallthru
    _
  // Predicated region
  $region26: #{morph_sequence_forward.1} parent=0 // pred_check
    _
  $region27: #{morph_sequence_forward.1} parent=0 // pred_check_branch
    %33 = sbr.rel (0) target = $region29
  $region28: #{morph_sequence_forward.1} parent=0 // pred_region
    _
  $region29: #{morph_sequence_forward.1} parent=0 // pred_fallthru
    _
  // Predicated region
  $region30: #{morph_sequence_forward.1} parent=0 // pred_check
    _
  $region31: #{morph_sequence_forward.1} parent=0 // pred_check_branch
    %35 = sbr.rel (0) target = $region33
  $region32: #{morph_sequence_forward.1} parent=0 // pred_region
    _
  $region33: #{morph_sequence_forward.1} parent=0 // pred_fallthru
    _
  // Predicated region
  $region34: #{morph_sequence_forward.1} parent=0 // pred_check
    _
  $region35: #{morph_sequence_forward.1} parent=0 // pred_check_branch
    %37 = sbr.rel (0) target = $region37
  $region36: #{morph_sequence_forward.1} parent=0 // pred_region
    _
  $region37: #{morph_sequence_forward.1} parent=0 // pred_fallthru
    _
  // Predicated region
  $region38: #{morph_sequence_forward.1} parent=0 // pred_check
    _
  $region39: #{morph_sequence_forward.1} parent=0 // pred_check_branch
    %39 = sbr.rel (0) target = $region41
  $region40: #{morph_sequence_forward.1} parent=0 // pred_region
    _
  $region41: #{morph_sequence_forward.1} parent=0 // pred_fallthru
    _
  // Predicated region
  $region42: #{morph_sequence_forward.1} parent=0 // pred_check
    _
  $region43: #{morph_sequence_forward.1} parent=0 // pred_check_branch
    %41 = sbr.rel (0) target = $region45
  $region44: #{morph_sequence_forward.1} parent=0 // pred_region
    _
  $region45: #{morph_sequence_forward.1} parent=0 // pred_fallthru
    _
  // Predicated region
  $region46: #{morph_sequence_forward.1} parent=0 // pred_check
    _
  $region47: #{morph_sequence_forward.1} parent=0 // pred_check_branch
    %43 = sbr.rel (0) target = $region49
  $region48: #{morph_sequence_forward.1} parent=0 // pred_region
    _
  $region49: #{morph_sequence_forward.1} parent=0 // pred_fallthru
    _
  // Predicated region
  $region50: #{morph_sequence_forward.1} parent=0 // pred_check
    _
  $region51: #{morph_sequence_forward.1} parent=0 // pred_check_branch
    %45 = sbr.rel (0) target = $region53
  $region52: #{morph_sequence_forward.1} parent=0 // pred_region
    _
  $region53: #{morph_sequence_forward.1} parent=0 // pred_fallthru
    _
  %v46 = vld [vmem:[%s0] sm:$0xff]
  %s47 = scalar_lea.vmem %s0, 8
  %v48 = vld [vmem:[%s47] sm:$0xff]
  %v49 = vld [vmem:[%s4] sm:$0x1]
  %v50 = vld [vmem:[%s1] sm:$0x1]
  %v51 = vld [vmem:[%s1 + $0x8] sm:$0x1]
  %v52 = vld [vmem:[%s1 + $0x10] sm:$0x1]
  %v53 = vld [vmem:[%s1 + $0x18] sm:$0x1]
  %v54 = vld [vmem:[%s1 + $0x20] sm:$0x1]
  %v55 = vld [vmem:[%s1 + $0x28] sm:$0x1]
  %v56 = vld [vmem:[%s1 + $0x30] sm:$0x1]
  %v57 = vld [vmem:[%s1 + $0x38] sm:$0x1]
  %v58 = vld [vmem:[%s3] sm:$0xff]
  %v59 = vld [vmem:[%s3 + $0x8] sm:$0xff]
  %v60 = vld [vmem:[%s3 + $0x10] sm:$0xff]
  %v61 = vld [vmem:[%s3 + $0x18] sm:$0xff]
  %v63 = vlaneseq
  %v64 = vshrl.u32 %v63, 7
  %v65 = vsub.s32 0, %v64
  %v66 = vrot.slane %v49, %v65
  %vm68 = vcmask 261120
  %v70 = vsel %vm68, %v46, 0
  %72 = vmatprep.subr.mxu0 0.0
  %73 = vmatpush1.msra.mxu0 %v58
  %74 = vmatprep.subr.mxu0 0.0
  %75 = vmatpush1.msra.mxu0 %v59
  %76 = vmatprep.subr.mxu0 0.0
  %77 = vmatpush1.msra.mxu0 %v60
  %78 = vmatprep.subr.mxu0 0.0
  %79 = vmatpush1.msra.mxu0 %v61
  %80 = vmatprep.subr.mxu0 0.0
  %81 = vmatpush1.msra.mxu0 0.0
  %82 = vmatprep.subr.mxu0 0.0
  %83 = vmatpush1.msra.mxu0 0.0
  %84 = vmatprep.subr.mxu0 0.0
  %85 = vmatpush1.msra.mxu0 0.0
  %86 = vmatprep.subr.mxu0 0.0
  %87 = vmatpush1.msra.mxu0 0.0
  %88 = vmatprep.subr.mxu0 0.0
  %89 = vmatpush1.msra.mxu0 0.0
  %90 = vmatprep.subr.mxu0 0.0
  %91 = vmatpush1.msra.mxu0 0.0
  %92 = vmatprep.subr.mxu0 0.0
  %93 = vmatpush1.msra.mxu0 0.0
  %94 = vmatprep.subr.mxu0 0.0
  %95 = vmatpush1.msra.mxu0 0.0
  %96 = vmatprep.subr.mxu0 0.0
  %97 = vmatpush1.msra.mxu0 0.0
  %98 = vmatprep.subr.mxu0 0.0
  %99 = vmatpush1.msra.mxu0 0.0
  %100 = vmatprep.subr.mxu0 0.0
  %101 = vmatpush1.msra.mxu0 0.0
  %102 = vmatprep.subr.mxu0 0.0
  %103 = vmatpush1.msra.mxu0 0.0
  %104 = vmatprep.subr.mxu0 0.0
  %105 = vmatpush1.msra.mxu0 0.0
  %106 = vmatprep.subr.mxu0 0.0
  %107 = vmatpush1.msra.mxu0 0.0
  %108 = vmatprep.subr.mxu0 0.0
  %109 = vmatpush1.msra.mxu0 0.0
  %110 = vmatprep.subr.mxu0 0.0
  %111 = vmatpush1.msra.mxu0 0.0
  %112 = vmatprep.subr.mxu0 0.0
  %113 = vmatpush1.msra.mxu0 0.0
  %114 = vmatprep.subr.mxu0 0.0
  %115 = vmatpush1.msra.mxu0 0.0
  %116 = vmatprep.subr.mxu0 0.0
  %117 = vmatpush1.msra.mxu0 0.0
  %118 = vmatprep.subr.mxu0 0.0
  %119 = vmatpush1.msra.mxu0 0.0
  %120 = vmatprep.subr.mxu0 0.0
  %121 = vmatpush1.msra.mxu0 0.0
  %122 = vmatprep.subr.mxu0 0.0
  %123 = vmatpush1.msra.mxu0 0.0
  %124 = vmatprep.subr.mxu0 0.0
  %125 = vmatpush1.msra.mxu0 0.0
  %126 = vmatprep.subr.mxu0 0.0
  %127 = vmatpush1.msra.mxu0 0.0
  %128 = vmatprep.subr.mxu0 0.0
  %129 = vmatpush1.msra.mxu0 0.0
  %130 = vmatprep.subr.mxu0 0.0
  %131 = vmatpush1.msra.mxu0 0.0
  %132 = vmatprep.subr.mxu0 0.0
  %133 = vmatpush1.msra.mxu0 0.0
  %134 = vmatprep.subr.mxu0 0.0
  %135 = vmatpush1.msra.mxu0 0.0
  %136 = vmatprep.mubr.f32.mxu0 0.0
  %137 = vmatmul.mubr.f32.gmra.mrb[0].mxu0 %v70
  %v138 = vpop.f32.mrb[0].mxu0
  %v139 = vadd.f32 %v66, %v138
  %v140 = vpop.f32.mrb[0].mxu0
  %141 = vdwg.mxu0
  %v143 = vrot.slane %v139, 1
  %v144 = vrot.slane %v139, 2
  %v145 = vrot.slane %v139, 3
  %v146 = vrot.slane %v139, 4
  %v147 = vrot.slane %v139, 5
  %v148 = vrot.slane %v139, 6
  %v149 = vrot.slane %v139, 7
  %v158 = vadd.f32 %v50, %v139
  %v159 = vadd.f32 %v51, %v143
  %v160 = vadd.f32 %v52, %v144
  %v161 = vadd.f32 %v53, %v145
  %v162 = vadd.f32 %v54, %v146
  %v163 = vadd.f32 %v55, %v147
  %v164 = vadd.f32 %v56, %v148
  %v165 = vadd.f32 %v57, %v149
  %v166 = vxor.u32 %v158, 2147483648
  %v167 = vxor.u32 %v159, 2147483648
  %v168 = vxor.u32 %v160, 2147483648
  %v169 = vxor.u32 %v161, 2147483648
  %v170 = vxor.u32 %v162, 2147483648
  %v171 = vxor.u32 %v163, 2147483648
  %v172 = vxor.u32 %v164, 2147483648
  %v173 = vxor.u32 %v165, 2147483648
  %v174 = vmul.f32 %v166, 1.442695
  %v175 = vpow.pop %v174
  %v176 = vmul.f32 %v167, 1.442695
  %v177 = vpow.pop %v176
  %v178 = vmul.f32 %v168, 1.442695
  %v179 = vpow.pop %v178
  %v180 = vmul.f32 %v169, 1.442695
  %v181 = vpow.pop %v180
  %v182 = vmul.f32 %v170, 1.442695
  %v183 = vpow.pop %v182
  %v184 = vmul.f32 %v171, 1.442695
  %v185 = vpow.pop %v184
  %v186 = vmul.f32 %v172, 1.442695
  %v187 = vpow.pop %v186
  %v188 = vmul.f32 %v173, 1.442695
  %v189 = vpow.pop %v188
  %v190 = vadd.f32 %v175, 1.0
  %v191 = vadd.f32 %v177, 1.0
  %v192 = vadd.f32 %v179, 1.0
  %v193 = vadd.f32 %v181, 1.0
  %v194 = vadd.f32 %v183, 1.0
  %v195 = vadd.f32 %v185, 1.0
  %v196 = vadd.f32 %v187, 1.0
  %v197 = vadd.f32 %v189, 1.0
  %v198 = vrcp.pop %v190
  %v199 = vmul.f32 1.0, %v198
  %v200 = vrcp.pop %v191
  %v201 = vmul.f32 1.0, %v200
  %v202 = vrcp.pop %v192
  %v203 = vmul.f32 1.0, %v202
  %v204 = vrcp.pop %v193
  %v205 = vmul.f32 1.0, %v204
  %v206 = vrcp.pop %v194
  %v207 = vmul.f32 1.0, %v206
  %v208 = vrcp.pop %v195
  %v209 = vmul.f32 1.0, %v208
  %v210 = vrcp.pop %v196
  %v211 = vmul.f32 1.0, %v210
  %v212 = vrcp.pop %v197
  %v213 = vmul.f32 1.0, %v212
  %214 = vrot.lane.b32.xlu0 %v139, 64
  %v215 = vpop.permute.xlu0 %214
  %216 = vrot.lane.b32.xlu0 %v143, 64
  %v217 = vpop.permute.xlu0 %216
  %218 = vrot.lane.b32.xlu0 %v144, 64
  %v219 = vpop.permute.xlu0 %218
  %220 = vrot.lane.b32.xlu0 %v145, 64
  %v221 = vpop.permute.xlu0 %220
  %222 = vrot.lane.b32.xlu0 %v146, 64
  %v223 = vpop.permute.xlu0 %222
  %224 = vrot.lane.b32.xlu0 %v147, 64
  %v225 = vpop.permute.xlu0 %224
  %226 = vrot.lane.b32.xlu0 %v148, 64
  %v227 = vpop.permute.xlu0 %226
  %228 = vrot.lane.b32.xlu0 %v149, 64
  %v229 = vpop.permute.xlu0 %228
  %v238 = vmul.f32 %v199, %v215
  %v239 = vmul.f32 %v201, %v217
  %v240 = vmul.f32 %v203, %v219
  %v241 = vmul.f32 %v205, %v221
  %v242 = vmul.f32 %v207, %v223
  %v243 = vmul.f32 %v209, %v225
  %v244 = vmul.f32 %v211, %v227
  %v245 = vmul.f32 %v213, %v229
  %254 = vrot.lane.b32.xlu0 %v238, 64
  %v255 = vpop.permute.xlu0 %254
  %256 = vrot.lane.b32.xlu0 %v239, 64
  %v257 = vpop.permute.xlu0 %256
  %258 = vrot.lane.b32.xlu0 %v240, 64
  %v259 = vpop.permute.xlu0 %258
  %260 = vrot.lane.b32.xlu0 %v241, 64
  %v261 = vpop.permute.xlu0 %260
  %262 = vrot.lane.b32.xlu0 %v242, 64
  %v263 = vpop.permute.xlu0 %262
  %264 = vrot.lane.b32.xlu0 %v243, 64
  %v265 = vpop.permute.xlu0 %264
  %266 = vrot.lane.b32.xlu0 %v244, 64
  %v267 = vpop.permute.xlu0 %266
  %268 = vrot.lane.b32.xlu0 %v245, 64
  %v269 = vpop.permute.xlu0 %268
  %v278 = vadd.f32 %v50, %v255
  %v279 = vadd.f32 %v51, %v257
  %v280 = vadd.f32 %v52, %v259
  %v281 = vadd.f32 %v53, %v261
  %v282 = vadd.f32 %v54, %v263
  %v283 = vadd.f32 %v55, %v265
  %v284 = vadd.f32 %v56, %v267
  %v285 = vadd.f32 %v57, %v269
  %v286 = vtanh.pop %v278
  %v287 = vtanh.pop %v279
  %v288 = vtanh.pop %v280
  %v289 = vtanh.pop %v281
  %v290 = vtanh.pop %v282
  %v291 = vtanh.pop %v283
  %v292 = vtanh.pop %v284
  %v293 = vtanh.pop %v285
  %v294 = vsub.f32 1.0, %v199
  %v295 = vsub.f32 1.0, %v201
  %v296 = vsub.f32 1.0, %v203
  %v297 = vsub.f32 1.0, %v205
  %v298 = vsub.f32 1.0, %v207
  %v299 = vsub.f32 1.0, %v209
  %v300 = vsub.f32 1.0, %v211
  %v301 = vsub.f32 1.0, %v213
  %310 = vrot.lane.b32.xlu0 %v286, 96
  %v311 = vpop.permute.xlu0 %310
  %312 = vrot.lane.b32.xlu0 %v287, 96
  %v313 = vpop.permute.xlu0 %312
  %314 = vrot.lane.b32.xlu0 %v288, 96
  %v315 = vpop.permute.xlu0 %314
  %316 = vrot.lane.b32.xlu0 %v289, 96
  %v317 = vpop.permute.xlu0 %316
  %318 = vrot.lane.b32.xlu0 %v290, 96
  %v319 = vpop.permute.xlu0 %318
  %320 = vrot.lane.b32.xlu0 %v291, 96
  %v321 = vpop.permute.xlu0 %320
  %322 = vrot.lane.b32.xlu0 %v292, 96
  %v323 = vpop.permute.xlu0 %322
  %324 = vrot.lane.b32.xlu0 %v293, 96
  %v325 = vpop.permute.xlu0 %324
  %v334 = vmul.f32 %v294, %v311
  %v335 = vmul.f32 %v295, %v313
  %v336 = vmul.f32 %v296, %v315
  %v337 = vmul.f32 %v297, %v317
  %v338 = vmul.f32 %v298, %v319
  %v339 = vmul.f32 %v299, %v321
  %v340 = vmul.f32 %v300, %v323
  %v341 = vmul.f32 %v301, %v325
  %v342 = vrot.slane %v46, 1
  %v343 = vrot.slane %v46, 2
  %v344 = vrot.slane %v46, 3
  %v345 = vrot.slane %v46, 4
  %v346 = vrot.slane %v46, 5
  %v347 = vrot.slane %v46, 6
  %v348 = vrot.slane %v46, 7
  %349 = vrot.lane.b32.xlu0 %v46, 32
  %v350 = vpop.permute.xlu0 %349
  %351 = vrot.lane.b32.xlu0 %v342, 32
  %v352 = vpop.permute.xlu0 %351
  %353 = vrot.lane.b32.xlu0 %v343, 32
  %v354 = vpop.permute.xlu0 %353
  %355 = vrot.lane.b32.xlu0 %v344, 32
  %v356 = vpop.permute.xlu0 %355
  %357 = vrot.lane.b32.xlu0 %v345, 32
  %v358 = vpop.permute.xlu0 %357
  %359 = vrot.lane.b32.xlu0 %v346, 32
  %v360 = vpop.permute.xlu0 %359
  %361 = vrot.lane.b32.xlu0 %v347, 32
  %v362 = vpop.permute.xlu0 %361
  %363 = vrot.lane.b32.xlu0 %v348, 32
  %v364 = vpop.permute.xlu0 %363
  %v373 = vmul.f32 %v199, %v350
  %v374 = vmul.f32 %v201, %v352
  %v375 = vmul.f32 %v203, %v354
  %v376 = vmul.f32 %v205, %v356
  %v377 = vmul.f32 %v207, %v358
  %v378 = vmul.f32 %v209, %v360
  %v379 = vmul.f32 %v211, %v362
  %v380 = vmul.f32 %v213, %v364
  %v381 = vadd.f32 %v334, %v373
  %v382 = vadd.f32 %v335, %v374
  %v383 = vadd.f32 %v336, %v375
  %v384 = vadd.f32 %v337, %v376
  %v385 = vadd.f32 %v338, %v377
  %v386 = vadd.f32 %v339, %v378
  %v387 = vadd.f32 %v340, %v379
  %v388 = vadd.f32 %v341, %v380
  %v397 = vrot.slane %v382, 7
  %vm398 = vcmask 1041409
  %v399 = vsel %vm398, %v397, %v381
  %v400 = vrot.slane %v383, 6
  %vm401 = vcmask 1042434
  %v402 = vsel %vm401, %v400, %v399
  %v403 = vrot.slane %v384, 5
  %vm404 = vcmask 1043459
  %v405 = vsel %vm404, %v403, %v402
  %v406 = vrot.slane %v385, 4
  %vm407 = vcmask 1044484
  %v408 = vsel %vm407, %v406, %v405
  %v409 = vrot.slane %v386, 3
  %vm410 = vcmask 1045509
  %v411 = vsel %vm410, %v409, %v408
  %v412 = vrot.slane %v387, 2
  %vm413 = vcmask 1046534
  %v414 = vsel %vm413, %v412, %v411
  %v415 = vrot.slane %v388, 1
  %vm416 = vcmask 1047559
  %v417 = vsel %vm416, %v415, %v414
  %418 = vrot.lane.b32.xlu0 %v417, 96
  %v419 = vpop.permute.xlu0 %418
  %422 = vrot.lane.b32.xlu0 %v48, 32
  %v423 = vpop.permute.xlu0 %422
  %v425 = vsel %vm68, %v419, %v423
  %v426 = vld [vmem:[%s5] sm:$0xff]
  %v427 = vld [vmem:[%s5 + $0x8] sm:$0xff]
  %v428 = vld [vmem:[%s5 + $0x10] sm:$0xff]
  %v429 = vld [vmem:[%s5 + $0x18] sm:$0xff]
  %v430 = vld [vmem:[%s5 + $0x20] sm:$0xff]
  %v431 = vld [vmem:[%s5 + $0x28] sm:$0xff]
  %v432 = vld [vmem:[%s5 + $0x30] sm:$0xff]
  %v433 = vld [vmem:[%s5 + $0x38] sm:$0xff]
  %v434 = vld [vmem:[%s6] sm:$0x1]
  %v436 = vlaneseq
  %v437 = vshrl.u32 %v436, 7
  %v438 = vsub.s32 0, %v437
  %v439 = vrot.slane %v434, %v438
  %vm441 = vcmask 523264
  %v443 = vsel %vm441, %v425, 0
  %445 = vmatprep.subr.mxu0 0.0
  %446 = vmatpush1.msra.mxu0 %v426
  %447 = vmatprep.subr.mxu0 0.0
  %448 = vmatpush1.msra.mxu0 %v427
  %449 = vmatprep.subr.mxu0 0.0
  %450 = vmatpush1.msra.mxu0 %v428
  %451 = vmatprep.subr.mxu0 0.0
  %452 = vmatpush1.msra.mxu0 %v429
  %453 = vmatprep.subr.mxu0 0.0
  %454 = vmatpush1.msra.mxu0 %v430
  %455 = vmatprep.subr.mxu0 0.0
  %456 = vmatpush1.msra.mxu0 %v431
  %457 = vmatprep.subr.mxu0 0.0
  %458 = vmatpush1.msra.mxu0 %v432
  %459 = vmatprep.subr.mxu0 0.0
  %460 = vmatpush1.msra.mxu0 %v433
  %461 = vmatprep.subr.mxu0 0.0
  %462 = vmatpush1.msra.mxu0 0.0
  %463 = vmatprep.subr.mxu0 0.0
  %464 = vmatpush1.msra.mxu0 0.0
  %465 = vmatprep.subr.mxu0 0.0
  %466 = vmatpush1.msra.mxu0 0.0
  %467 = vmatprep.subr.mxu0 0.0
  %468 = vmatpush1.msra.mxu0 0.0
  %469 = vmatprep.subr.mxu0 0.0
  %470 = vmatpush1.msra.mxu0 0.0
  %471 = vmatprep.subr.mxu0 0.0
  %472 = vmatpush1.msra.mxu0 0.0
  %473 = vmatprep.subr.mxu0 0.0
  %474 = vmatpush1.msra.mxu0 0.0
  %475 = vmatprep.subr.mxu0 0.0
  %476 = vmatpush1.msra.mxu0 0.0
  %477 = vmatprep.subr.mxu0 0.0
  %478 = vmatpush1.msra.mxu0 0.0
  %479 = vmatprep.subr.mxu0 0.0
  %480 = vmatpush1.msra.mxu0 0.0
  %481 = vmatprep.subr.mxu0 0.0
  %482 = vmatpush1.msra.mxu0 0.0
  %483 = vmatprep.subr.mxu0 0.0
  %484 = vmatpush1.msra.mxu0 0.0
  %485 = vmatprep.subr.mxu0 0.0
  %486 = vmatpush1.msra.mxu0 0.0
  %487 = vmatprep.subr.mxu0 0.0
  %488 = vmatpush1.msra.mxu0 0.0
  %489 = vmatprep.subr.mxu0 0.0
  %490 = vmatpush1.msra.mxu0 0.0
  %491 = vmatprep.subr.mxu0 0.0
  %492 = vmatpush1.msra.mxu0 0.0
  %493 = vmatprep.subr.mxu0 0.0
  %494 = vmatpush1.msra.mxu0 0.0
  %495 = vmatprep.subr.mxu0 0.0
  %496 = vmatpush1.msra.mxu0 0.0
  %497 = vmatprep.subr.mxu0 0.0
  %498 = vmatpush1.msra.mxu0 0.0
  %499 = vmatprep.subr.mxu0 0.0
  %500 = vmatpush1.msra.mxu0 0.0
  %501 = vmatprep.subr.mxu0 0.0
  %502 = vmatpush1.msra.mxu0 0.0
  %503 = vmatprep.subr.mxu0 0.0
  %504 = vmatpush1.msra.mxu0 0.0
  %505 = vmatprep.subr.mxu0 0.0
  %506 = vmatpush1.msra.mxu0 0.0
  %507 = vmatprep.subr.mxu0 0.0
  %508 = vmatpush1.msra.mxu0 0.0
  %509 = vmatprep.mubr.f32.mxu0 0.0
  %510 = vmatmul.mubr.f32.gmra.mrb[0].mxu0 %v443
  %v511 = vpop.f32.mrb[0].mxu0
  %v512 = vadd.f32 %v439, %v511
  %v513 = vpop.f32.mrb[0].mxu0
  %514 = vdwg.mxu0
  %v515 = vxor.u32 %v512, 2147483648
  %v516 = vmul.f32 %v515, 1.442695
  %v517 = vpow.pop %v516
  %v518 = vadd.f32 %v517, 1.0
  %v519 = vrcp.pop %v518
  %v520 = vmul.f32 1.0, %v519
  %522 = vrot.lane.b32.xlu0 %v512, 32
  %v523 = vpop.permute.xlu0 %522
  %v525 = vmul.f32 %v520, %v523
  %527 = vrot.lane.b32.xlu0 %v525, 64
  %v528 = vpop.permute.xlu0 %527
  %v530 = vadd.f32 %v512, %v528
  %v531 = vtanh.pop %v530
  %v532 = vsub.f32 1.0, %v520
  %534 = vrot.lane.b32.xlu0 %v531, 96
  %v535 = vpop.permute.xlu0 %534
  %v537 = vmul.f32 %v532, %v535
  %v538 = vmul.f32 %v520, %v423
  %v539 = vadd.f32 %v537, %v538
  %v540 = vld [vmem:[%s2] sm:$0xff]
  %542 = vset.pattern.permute.xlu0 0
  %543 = vperm.xlu0 %542, %v540
  %v544 = vpop.permute.xlu0 %543
  %v546 = vmul.f32 %v544, %v419
  %v547 = vsub.f32 1.0, %v540
  %549 = vset.pattern.permute.xlu0 0
  %550 = vperm.xlu0 %549, %v547
  %v551 = vpop.permute.xlu0 %550
  %v553 = vmul.f32 %v551, %v46
  %v554 = vadd.f32 %v546, %v553
  %v555 = vmul.f32 %v544, %v539
  %v556 = vmul.f32 %v551, %v48
  %558 = vrot.lane.b32.xlu0 %v556, 32
  %v559 = vpop.permute.xlu0 %558
  %v561 = vadd.f32 %v555, %v559
  %v562 = vld [vmem:[%s1 + $0x1] sm:$0x1]
  %v563 = vld [vmem:[%s1 + $0x9] sm:$0x1]
  %v564 = vld [vmem:[%s1 + $0x11] sm:$0x1]
  %v565 = vld [vmem:[%s1 + $0x19] sm:$0x1]
  %v566 = vld [vmem:[%s1 + $0x21] sm:$0x1]
  %v567 = vld [vmem:[%s1 + $0x29] sm:$0x1]
  %v568 = vld [vmem:[%s1 + $0x31] sm:$0x1]
  %v569 = vld [vmem:[%s1 + $0x39] sm:$0x1]
  %v571 = vsel %vm68, %v554, 0
  %573 = vmatprep.subr.mxu0 0.0
  %574 = vmatpush1.msra.mxu0 %v58
  %575 = vmatprep.subr.mxu0 0.0
  %576 = vmatpush1.msra.mxu0 %v59
  %577 = vmatprep.subr.mxu0 0.0
  %578 = vmatpush1.msra.mxu0 %v60
  %579 = vmatprep.subr.mxu0 0.0
  %580 = vmatpush1.msra.mxu0 %v61
  %581 = vmatprep.subr.mxu0 0.0
  %582 = vmatpush1.msra.mxu0 0.0
  %583 = vmatprep.subr.mxu0 0.0
  %584 = vmatpush1.msra.mxu0 0.0
  %585 = vmatprep.subr.mxu0 0.0
  %586 = vmatpush1.msra.mxu0 0.0
  %587 = vmatprep.subr.mxu0 0.0
  %588 = vmatpush1.msra.mxu0 0.0
  %589 = vmatprep.subr.mxu0 0.0
  %590 = vmatpush1.msra.mxu0 0.0
  %591 = vmatprep.subr.mxu0 0.0
  %592 = vmatpush1.msra.mxu0 0.0
  %593 = vmatprep.subr.mxu0 0.0
  %594 = vmatpush1.msra.mxu0 0.0
  %595 = vmatprep.subr.mxu0 0.0
  %596 = vmatpush1.msra.mxu0 0.0
  %597 = vmatprep.subr.mxu0 0.0
  %598 = vmatpush1.msra.mxu0 0.0
  %599 = vmatprep.subr.mxu0 0.0
  %600 = vmatpush1.msra.mxu0 0.0
  %601 = vmatprep.subr.mxu0 0.0
  %602 = vmatpush1.msra.mxu0 0.0
  %603 = vmatprep.subr.mxu0 0.0
  %604 = vmatpush1.msra.mxu0 0.0
  %605 = vmatprep.subr.mxu0 0.0
  %606 = vmatpush1.msra.mxu0 0.0
  %607 = vmatprep.subr.mxu0 0.0
  %608 = vmatpush1.msra.mxu0 0.0
  %609 = vmatprep.subr.mxu0 0.0
  %610 = vmatpush1.msra.mxu0 0.0
  %611 = vmatprep.subr.mxu0 0.0
  %612 = vmatpush1.msra.mxu0 0.0
  %613 = vmatprep.subr.mxu0 0.0
  %614 = vmatpush1.msra.mxu0 0.0
  %615 = vmatprep.subr.mxu0 0.0
  %616 = vmatpush1.msra.mxu0 0.0
  %617 = vmatprep.subr.mxu0 0.0
  %618 = vmatpush1.msra.mxu0 0.0
  %619 = vmatprep.subr.mxu0 0.0
  %620 = vmatpush1.msra.mxu0 0.0
  %621 = vmatprep.subr.mxu0 0.0
  %622 = vmatpush1.msra.mxu0 0.0
  %623 = vmatprep.subr.mxu0 0.0
  %624 = vmatpush1.msra.mxu0 0.0
  %625 = vmatprep.subr.mxu0 0.0
  %626 = vmatpush1.msra.mxu0 0.0
  %627 = vmatprep.subr.mxu0 0.0
  %628 = vmatpush1.msra.mxu0 0.0
  %629 = vmatprep.subr.mxu0 0.0
  %630 = vmatpush1.msra.mxu0 0.0
  %631 = vmatprep.subr.mxu0 0.0
  %632 = vmatpush1.msra.mxu0 0.0
  %633 = vmatprep.subr.mxu0 0.0
  %634 = vmatpush1.msra.mxu0 0.0
  %635 = vmatprep.subr.mxu0 0.0
  %636 = vmatpush1.msra.mxu0 0.0
  %637 = vmatprep.mubr.f32.mxu0 0.0
  %638 = vmatmul.mubr.f32.gmra.mrb[0].mxu0 %v571
  %v639 = vpop.f32.mrb[0].mxu0
  %v640 = vadd.f32 %v66, %v639
  %v641 = vpop.f32.mrb[0].mxu0
  %642 = vdwg.mxu0
  %v644 = vrot.slane %v640, 1
  %v645 = vrot.slane %v640, 2
  %v646 = vrot.slane %v640, 3
  %v647 = vrot.slane %v640, 4
  %v648 = vrot.slane %v640, 5
  %v649 = vrot.slane %v640, 6
  %v650 = vrot.slane %v640, 7
  %v659 = vadd.f32 %v562, %v640
  %v660 = vadd.f32 %v563, %v644
  %v661 = vadd.f32 %v564, %v645
  %v662 = vadd.f32 %v565, %v646
  %v663 = vadd.f32 %v566, %v647
  %v664 = vadd.f32 %v567, %v648
  %v665 = vadd.f32 %v568, %v649
  %v666 = vadd.f32 %v569, %v650
  %v667 = vxor.u32 %v659, 2147483648
  %v668 = vxor.u32 %v660, 2147483648
  %v669 = vxor.u32 %v661, 2147483648
  %v670 = vxor.u32 %v662, 2147483648
  %v671 = vxor.u32 %v663, 2147483648
  %v672 = vxor.u32 %v664, 2147483648
  %v673 = vxor.u32 %v665, 2147483648
  %v674 = vxor.u32 %v666, 2147483648
  %v675 = vmul.f32 %v667, 1.442695
  %v676 = vpow.pop %v675
  %v677 = vmul.f32 %v668, 1.442695
  %v678 = vpow.pop %v677
  %v679 = vmul.f32 %v669, 1.442695
  %v680 = vpow.pop %v679
  %v681 = vmul.f32 %v670, 1.442695
  %v682 = vpow.pop %v681
  %v683 = vmul.f32 %v671, 1.442695
  %v684 = vpow.pop %v683
  %v685 = vmul.f32 %v672, 1.442695
  %v686 = vpow.pop %v685
  %v687 = vmul.f32 %v673, 1.442695
  %v688 = vpow.pop %v687
  %v689 = vmul.f32 %v674, 1.442695
  %v690 = vpow.pop %v689
  %v691 = vadd.f32 %v676, 1.0
  %v692 = vadd.f32 %v678, 1.0
  %v693 = vadd.f32 %v680, 1.0
  %v694 = vadd.f32 %v682, 1.0
  %v695 = vadd.f32 %v684, 1.0
  %v696 = vadd.f32 %v686, 1.0
  %v697 = vadd.f32 %v688, 1.0
  %v698 = vadd.f32 %v690, 1.0
  %v699 = vrcp.pop %v691
  %v700 = vmul.f32 1.0, %v699
  %v701 = vrcp.pop %v692
  %v702 = vmul.f32 1.0, %v701
  %v703 = vrcp.pop %v693
  %v704 = vmul.f32 1.0, %v703
  %v705 = vrcp.pop %v694
  %v706 = vmul.f32 1.0, %v705
  %v707 = vrcp.pop %v695
  %v708 = vmul.f32 1.0, %v707
  %v709 = vrcp.pop %v696
  %v710 = vmul.f32 1.0, %v709
  %v711 = vrcp.pop %v697
  %v712 = vmul.f32 1.0, %v711
  %v713 = vrcp.pop %v698
  %v714 = vmul.f32 1.0, %v713
  %715 = vrot.lane.b32.xlu0 %v640, 64
  %v716 = vpop.permute.xlu0 %715
  %717 = vrot.lane.b32.xlu0 %v644, 64
  %v718 = vpop.permute.xlu0 %717
  %719 = vrot.lane.b32.xlu0 %v645, 64
  %v720 = vpop.permute.xlu0 %719
  %721 = vrot.lane.b32.xlu0 %v646, 64
  %v722 = vpop.permute.xlu0 %721
  %723 = vrot.lane.b32.xlu0 %v647, 64
  %v724 = vpop.permute.xlu0 %723
  %725 = vrot.lane.b32.xlu0 %v648, 64
  %v726 = vpop.permute.xlu0 %725
  %727 = vrot.lane.b32.xlu0 %v649, 64
  %v728 = vpop.permute.xlu0 %727
  %729 = vrot.lane.b32.xlu0 %v650, 64
  %v730 = vpop.permute.xlu0 %729
  %v739 = vmul.f32 %v700, %v716
  %v740 = vmul.f32 %v702, %v718
  %v741 = vmul.f32 %v704, %v720
  %v742 = vmul.f32 %v706, %v722
  %v743 = vmul.f32 %v708, %v724
  %v744 = vmul.f32 %v710, %v726
  %v745 = vmul.f32 %v712, %v728
  %v746 = vmul.f32 %v714, %v730
  %755 = vrot.lane.b32.xlu0 %v739, 64
  %v756 = vpop.permute.xlu0 %755
  %757 = vrot.lane.b32.xlu0 %v740, 64
  %v758 = vpop.permute.xlu0 %757
  %759 = vrot.lane.b32.xlu0 %v741, 64
  %v760 = vpop.permute.xlu0 %759
  %761 = vrot.lane.b32.xlu0 %v742, 64
  %v762 = vpop.permute.xlu0 %761
  %763 = vrot.lane.b32.xlu0 %v743, 64
  %v764 = vpop.permute.xlu0 %763
  %765 = vrot.lane.b32.xlu0 %v744, 64
  %v766 = vpop.permute.xlu0 %765
  %767 = vrot.lane.b32.xlu0 %v745, 64
  %v768 = vpop.permute.xlu0 %767
  %769 = vrot.lane.b32.xlu0 %v746, 64
  %v770 = vpop.permute.xlu0 %769
  %v779 = vadd.f32 %v562, %v756
  %v780 = vadd.f32 %v563, %v758
  %v781 = vadd.f32 %v564, %v760
  %v782 = vadd.f32 %v565, %v762
  %v783 = vadd.f32 %v566, %v764
  %v784 = vadd.f32 %v567, %v766
  %v785 = vadd.f32 %v568, %v768
  %v786 = vadd.f32 %v569, %v770
  %v787 = vtanh.pop %v779
  %v788 = vtanh.pop %v780
  %v789 = vtanh.pop %v781
  %v790 = vtanh.pop %v782
  %v791 = vtanh.pop %v783
  %v792 = vtanh.pop %v784
  %v793 = vtanh.pop %v785
  %v794 = vtanh.pop %v786
  %v795 = vsub.f32 1.0, %v700
  %v796 = vsub.f32 1.0, %v702
  %v797 = vsub.f32 1.0, %v704
  %v798 = vsub.f32 1.0, %v706
  %v799 = vsub.f32 1.0, %v708
  %v800 = vsub.f32 1.0, %v710
  %v801 = vsub.f32 1.0, %v712
  %v802 = vsub.f32 1.0, %v714
  %811 = vrot.lane.b32.xlu0 %v787, 96
  %v812 = vpop.permute.xlu0 %811
  %813 = vrot.lane.b32.xlu0 %v788, 96
  %v814 = vpop.permute.xlu0 %813
  %815 = vrot.lane.b32.xlu0 %v789, 96
  %v816 = vpop.permute.xlu0 %815
  %817 = vrot.lane.b32.xlu0 %v790, 96
  %v818 = vpop.permute.xlu0 %817
  %819 = vrot.lane.b32.xlu0 %v791, 96
  %v820 = vpop.permute.xlu0 %819
  %821 = vrot.lane.b32.xlu0 %v792, 96
  %v822 = vpop.permute.xlu0 %821
  %823 = vrot.lane.b32.xlu0 %v793, 96
  %v824 = vpop.permute.xlu0 %823
  %825 = vrot.lane.b32.xlu0 %v794, 96
  %v826 = vpop.permute.xlu0 %825
  %v835 = vmul.f32 %v795, %v812
  %v836 = vmul.f32 %v796, %v814
  %v837 = vmul.f32 %v797, %v816
  %v838 = vmul.f32 %v798, %v818
  %v839 = vmul.f32 %v799, %v820
  %v840 = vmul.f32 %v800, %v822
  %v841 = vmul.f32 %v801, %v824
  %v842 = vmul.f32 %v802, %v826
  %v843 = vrot.slane %v554, 1
  %v844 = vrot.slane %v554, 2
  %v845 = vrot.slane %v554, 3
  %v846 = vrot.slane %v554, 4
  %v847 = vrot.slane %v554, 5
  %v848 = vrot.slane %v554, 6
  %v849 = vrot.slane %v554, 7
  %850 = vrot.lane.b32.xlu0 %v554, 32
  %v851 = vpop.permute.xlu0 %850
  %852 = vrot.lane.b32.xlu0 %v843, 32
  %v853 = vpop.permute.xlu0 %852
  %854 = vrot.lane.b32.xlu0 %v844, 32
  %v855 = vpop.permute.xlu0 %854
  %856 = vrot.lane.b32.xlu0 %v845, 32
  %v857 = vpop.permute.xlu0 %856
  %858 = vrot.lane.b32.xlu0 %v846, 32
  %v859 = vpop.permute.xlu0 %858
  %860 = vrot.lane.b32.xlu0 %v847, 32
  %v861 = vpop.permute.xlu0 %860
  %862 = vrot.lane.b32.xlu0 %v848, 32
  %v863 = vpop.permute.xlu0 %862
  %864 = vrot.lane.b32.xlu0 %v849, 32
  %v865 = vpop.permute.xlu0 %864
  %v874 = vmul.f32 %v700, %v851
  %v875 = vmul.f32 %v702, %v853
  %v876 = vmul.f32 %v704, %v855
  %v877 = vmul.f32 %v706, %v857
  %v878 = vmul.f32 %v708, %v859
  %v879 = vmul.f32 %v710, %v861
  %v880 = vmul.f32 %v712, %v863
  %v881 = vmul.f32 %v714, %v865
  %v882 = vadd.f32 %v835, %v874
  %v883 = vadd.f32 %v836, %v875
  %v884 = vadd.f32 %v837, %v876
  %v885 = vadd.f32 %v838, %v877
  %v886 = vadd.f32 %v839, %v878
  %v887 = vadd.f32 %v840, %v879
  %v888 = vadd.f32 %v841, %v880
  %v889 = vadd.f32 %v842, %v881
  %v898 = vrot.slane %v883, 7
  %v899 = vsel %vm398, %v898, %v882
  %v900 = vrot.slane %v884, 6
  %v901 = vsel %vm401, %v900, %v899
  %v902 = vrot.slane %v885, 5
  %v903 = vsel %vm404, %v902, %v901
  %v904 = vrot.slane %v886, 4
  %v905 = vsel %vm407, %v904, %v903
  %v906 = vrot.slane %v887, 3
  %v907 = vsel %vm410, %v906, %v905
  %v908 = vrot.slane %v888, 2
  %v909 = vsel %vm413, %v908, %v907
  %v910 = vrot.slane %v889, 1
  %v911 = vsel %vm416, %v910, %v909
  %912 = vrot.lane.b32.xlu0 %v911, 96
  %v913 = vpop.permute.xlu0 %912
  %v915 = vsel %vm68, %v913, %v561
  %v917 = vsel %vm441, %v915, 0
  %919 = vmatprep.subr.mxu0 0.0
  %920 = vmatpush1.msra.mxu0 %v426
  %921 = vmatprep.subr.mxu0 0.0
  %922 = vmatpush1.msra.mxu0 %v427
  %923 = vmatprep.subr.mxu0 0.0
  %924 = vmatpush1.msra.mxu0 %v428
  %925 = vmatprep.subr.mxu0 0.0
  %926 = vmatpush1.msra.mxu0 %v429
  %927 = vmatprep.subr.mxu0 0.0
  %928 = vmatpush1.msra.mxu0 %v430
  %929 = vmatprep.subr.mxu0 0.0
  %930 = vmatpush1.msra.mxu0 %v431
  %931 = vmatprep.subr.mxu0 0.0
  %932 = vmatpush1.msra.mxu0 %v432
  %933 = vmatprep.subr.mxu0 0.0
  %934 = vmatpush1.msra.mxu0 %v433
  %935 = vmatprep.subr.mxu0 0.0
  %936 = vmatpush1.msra.mxu0 0.0
  %937 = vmatprep.subr.mxu0 0.0
  %938 = vmatpush1.msra.mxu0 0.0
  %939 = vmatprep.subr.mxu0 0.0
  %940 = vmatpush1.msra.mxu0 0.0
  %941 = vmatprep.subr.mxu0 0.0
  %942 = vmatpush1.msra.mxu0 0.0
  %943 = vmatprep.subr.mxu0 0.0
  %944 = vmatpush1.msra.mxu0 0.0
  %945 = vmatprep.subr.mxu0 0.0
  %946 = vmatpush1.msra.mxu0 0.0
  %947 = vmatprep.subr.mxu0 0.0
  %948 = vmatpush1.msra.mxu0 0.0
  %949 = vmatprep.subr.mxu0 0.0
  %950 = vmatpush1.msra.mxu0 0.0
  %951 = vmatprep.subr.mxu0 0.0
  %952 = vmatpush1.msra.mxu0 0.0
  %953 = vmatprep.subr.mxu0 0.0
  %954 = vmatpush1.msra.mxu0 0.0
  %955 = vmatprep.subr.mxu0 0.0
  %956 = vmatpush1.msra.mxu0 0.0
  %957 = vmatprep.subr.mxu0 0.0
  %958 = vmatpush1.msra.mxu0 0.0
  %959 = vmatprep.subr.mxu0 0.0
  %960 = vmatpush1.msra.mxu0 0.0
  %961 = vmatprep.subr.mxu0 0.0
  %962 = vmatpush1.msra.mxu0 0.0
  %963 = vmatprep.subr.mxu0 0.0
  %964 = vmatpush1.msra.mxu0 0.0
  %965 = vmatprep.subr.mxu0 0.0
  %966 = vmatpush1.msra.mxu0 0.0
  %967 = vmatprep.subr.mxu0 0.0
  %968 = vmatpush1.msra.mxu0 0.0
  %969 = vmatprep.subr.mxu0 0.0
  %970 = vmatpush1.msra.mxu0 0.0
  %971 = vmatprep.subr.mxu0 0.0
  %972 = vmatpush1.msra.mxu0 0.0
  %973 = vmatprep.subr.mxu0 0.0
  %974 = vmatpush1.msra.mxu0 0.0
  %975 = vmatprep.subr.mxu0 0.0
  %976 = vmatpush1.msra.mxu0 0.0
  %977 = vmatprep.subr.mxu0 0.0
  %978 = vmatpush1.msra.mxu0 0.0
  %979 = vmatprep.subr.mxu0 0.0
  %980 = vmatpush1.msra.mxu0 0.0
  %981 = vmatprep.subr.mxu0 0.0
  %982 = vmatpush1.msra.mxu0 0.0
  %983 = vmatprep.mubr.f32.mxu0 0.0
  %984 = vmatmul.mubr.f32.gmra.mrb[0].mxu0 %v917
  %v985 = vpop.f32.mrb[0].mxu0
  %v986 = vadd.f32 %v439, %v985
  %v987 = vpop.f32.mrb[0].mxu0
  %988 = vdwg.mxu0
  %v989 = vxor.u32 %v986, 2147483648
  %v990 = vmul.f32 %v989, 1.442695
  %v991 = vpow.pop %v990
  %v992 = vadd.f32 %v991, 1.0
  %v993 = vrcp.pop %v992
  %v994 = vmul.f32 1.0, %v993
  %996 = vrot.lane.b32.xlu0 %v986, 32
  %v997 = vpop.permute.xlu0 %996
  %v999 = vmul.f32 %v994, %v997
  %1001 = vrot.lane.b32.xlu0 %v999, 64
  %v1002 = vpop.permute.xlu0 %1001
  %v1004 = vadd.f32 %v986, %v1002
  %v1005 = vtanh.pop %v1004
  %v1006 = vsub.f32 1.0, %v994
  %1008 = vrot.lane.b32.xlu0 %v1005, 96
  %v1009 = vpop.permute.xlu0 %1008
  %v1011 = vmul.f32 %v1006, %v1009
  %v1012 = vmul.f32 %v994, %v561
  %v1013 = vadd.f32 %v1011, %v1012
  %1014 = vset.pattern.permute.xlu0 1
  %1015 = vperm.xlu0 %1014, %v540
  %v1016 = vpop.permute.xlu0 %1015
  %v1018 = vmul.f32 %v1016, %v913
  %1019 = vset.pattern.permute.xlu0 1
  %1020 = vperm.xlu0 %1019, %v547
  %v1021 = vpop.permute.xlu0 %1020
  %v1023 = vmul.f32 %v1021, %v554
  %v1024 = vadd.f32 %v1018, %v1023
  %v1025 = vmul.f32 %v1016, %v1013
  %v1026 = vmul.f32 %v1021, %v561
  %v1027 = vadd.f32 %v1025, %v1026
  %v1028 = vld [vmem:[%s1 + $0x2] sm:$0x1]
  %v1029 = vld [vmem:[%s1 + $0xa] sm:$0x1]
  %v1030 = vld [vmem:[%s1 + $0x12] sm:$0x1]
  %v1031 = vld [vmem:[%s1 + $0x1a] sm:$0x1]
  %v1032 = vld [vmem:[%s1 + $0x22] sm:$0x1]
  %v1033 = vld [vmem:[%s1 + $0x2a] sm:$0x1]
  %v1034 = vld [vmem:[%s1 + $0x32] sm:$0x1]
  %v1035 = vld [vmem:[%s1 + $0x3a] sm:$0x1]
  %v1037 = vsel %vm68, %v1024, 0
  %1039 = vmatprep.subr.mxu0 0.0
  %1040 = vmatpush1.msra.mxu0 %v58
  %1041 = vmatprep.subr.mxu0 0.0
  %1042 = vmatpush1.msra.mxu0 %v59
  %1043 = vmatprep.subr.mxu0 0.0
  %1044 = vmatpush1.msra.mxu0 %v60
  %1045 = vmatprep.subr.mxu0 0.0
  %1046 = vmatpush1.msra.mxu0 %v61
  %1047 = vmatprep.subr.mxu0 0.0
  %1048 = vmatpush1.msra.mxu0 0.0
  %1049 = vmatprep.subr.mxu0 0.0
  %1050 = vmatpush1.msra.mxu0 0.0
  %1051 = vmatprep.subr.mxu0 0.0
  %1052 = vmatpush1.msra.mxu0 0.0
  %1053 = vmatprep.subr.mxu0 0.0
  %1054 = vmatpush1.msra.mxu0 0.0
  %1055 = vmatprep.subr.mxu0 0.0
  %1056 = vmatpush1.msra.mxu0 0.0
  %1057 = vmatprep.subr.mxu0 0.0
  %1058 = vmatpush1.msra.mxu0 0.0
  %1059 = vmatprep.subr.mxu0 0.0
  %1060 = vmatpush1.msra.mxu0 0.0
  %1061 = vmatprep.subr.mxu0 0.0
  %1062 = vmatpush1.msra.mxu0 0.0
  %1063 = vmatprep.subr.mxu0 0.0
  %1064 = vmatpush1.msra.mxu0 0.0
  %1065 = vmatprep.subr.mxu0 0.0
  %1066 = vmatpush1.msra.mxu0 0.0
  %1067 = vmatprep.subr.mxu0 0.0
  %1068 = vmatpush1.msra.mxu0 0.0
  %1069 = vmatprep.subr.mxu0 0.0
  %1070 = vmatpush1.msra.mxu0 0.0
  %1071 = vmatprep.subr.mxu0 0.0
  %1072 = vmatpush1.msra.mxu0 0.0
  %1073 = vmatprep.subr.mxu0 0.0
  %1074 = vmatpush1.msra.mxu0 0.0
  %1075 = vmatprep.subr.mxu0 0.0
  %1076 = vmatpush1.msra.mxu0 0.0
  %1077 = vmatprep.subr.mxu0 0.0
  %1078 = vmatpush1.msra.mxu0 0.0
  %1079 = vmatprep.subr.mxu0 0.0
  %1080 = vmatpush1.msra.mxu0 0.0
  %1081 = vmatprep.subr.mxu0 0.0
  %1082 = vmatpush1.msra.mxu0 0.0
  %1083 = vmatprep.subr.mxu0 0.0
  %1084 = vmatpush1.msra.mxu0 0.0
  %1085 = vmatprep.subr.mxu0 0.0
  %1086 = vmatpush1.msra.mxu0 0.0
  %1087 = vmatprep.subr.mxu0 0.0
  %1088 = vmatpush1.msra.mxu0 0.0
  %1089 = vmatprep.subr.mxu0 0.0
  %1090 = vmatpush1.msra.mxu0 0.0
  %1091 = vmatprep.subr.mxu0 0.0
  %1092 = vmatpush1.msra.mxu0 0.0
  %1093 = vmatprep.subr.mxu0 0.0
  %1094 = vmatpush1.msra.mxu0 0.0
  %1095 = vmatprep.subr.mxu0 0.0
  %1096 = vmatpush1.msra.mxu0 0.0
  %1097 = vmatprep.subr.mxu0 0.0
  %1098 = vmatpush1.msra.mxu0 0.0
  %1099 = vmatprep.subr.mxu0 0.0
  %1100 = vmatpush1.msra.mxu0 0.0
  %1101 = vmatprep.subr.mxu0 0.0
  %1102 = vmatpush1.msra.mxu0 0.0
  %1103 = vmatprep.mubr.f32.mxu0 0.0
  %1104 = vmatmul.mubr.f32.gmra.mrb[0].mxu0 %v1037
  %v1105 = vpop.f32.mrb[0].mxu0
  %v1106 = vadd.f32 %v66, %v1105
  %v1107 = vpop.f32.mrb[0].mxu0
  %1108 = vdwg.mxu0
  %v1110 = vrot.slane %v1106, 1
  %v1111 = vrot.slane %v1106, 2
  %v1112 = vrot.slane %v1106, 3
  %v1113 = vrot.slane %v1106, 4
  %v1114 = vrot.slane %v1106, 5
  %v1115 = vrot.slane %v1106, 6
  %v1116 = vrot.slane %v1106, 7
  %v1125 = vadd.f32 %v1028, %v1106
  %v1126 = vadd.f32 %v1029, %v1110
  %v1127 = vadd.f32 %v1030, %v1111
  %v1128 = vadd.f32 %v1031, %v1112
  %v1129 = vadd.f32 %v1032, %v1113
  %v1130 = vadd.f32 %v1033, %v1114
  %v1131 = vadd.f32 %v1034, %v1115
  %v1132 = vadd.f32 %v1035, %v1116
  %v1133 = vxor.u32 %v1125, 2147483648
  %v1134 = vxor.u32 %v1126, 2147483648
  %v1135 = vxor.u32 %v1127, 2147483648
  %v1136 = vxor.u32 %v1128, 2147483648
  %v1137 = vxor.u32 %v1129, 2147483648
  %v1138 = vxor.u32 %v1130, 2147483648
  %v1139 = vxor.u32 %v1131, 2147483648
  %v1140 = vxor.u32 %v1132, 2147483648
  %v1141 = vmul.f32 %v1133, 1.442695
  %v1142 = vpow.pop %v1141
  %v1143 = vmul.f32 %v1134, 1.442695
  %v1144 = vpow.pop %v1143
  %v1145 = vmul.f32 %v1135, 1.442695
  %v1146 = vpow.pop %v1145
  %v1147 = vmul.f32 %v1136, 1.442695
  %v1148 = vpow.pop %v1147
  %v1149 = vmul.f32 %v1137, 1.442695
  %v1150 = vpow.pop %v1149
  %v1151 = vmul.f32 %v1138, 1.442695
  %v1152 = vpow.pop %v1151
  %v1153 = vmul.f32 %v1139, 1.442695
  %v1154 = vpow.pop %v1153
  %v1155 = vmul.f32 %v1140, 1.442695
  %v1156 = vpow.pop %v1155
  %v1157 = vadd.f32 %v1142, 1.0
  %v1158 = vadd.f32 %v1144, 1.0
  %v1159 = vadd.f32 %v1146, 1.0
  %v1160 = vadd.f32 %v1148, 1.0
  %v1161 = vadd.f32 %v1150, 1.0
  %v1162 = vadd.f32 %v1152, 1.0
  %v1163 = vadd.f32 %v1154, 1.0
  %v1164 = vadd.f32 %v1156, 1.0
  %v1165 = vrcp.pop %v1157
  %v1166 = vmul.f32 1.0, %v1165
  %v1167 = vrcp.pop %v1158
  %v1168 = vmul.f32 1.0, %v1167
  %v1169 = vrcp.pop %v1159
  %v1170 = vmul.f32 1.0, %v1169
  %v1171 = vrcp.pop %v1160
  %v1172 = vmul.f32 1.0, %v1171
  %v1173 = vrcp.pop %v1161
  %v1174 = vmul.f32 1.0, %v1173
  %v1175 = vrcp.pop %v1162
  %v1176 = vmul.f32 1.0, %v1175
  %v1177 = vrcp.pop %v1163
  %v1178 = vmul.f32 1.0, %v1177
  %v1179 = vrcp.pop %v1164
  %v1180 = vmul.f32 1.0, %v1179
  %1181 = vrot.lane.b32.xlu0 %v1106, 64
  %v1182 = vpop.permute.xlu0 %1181
  %1183 = vrot.lane.b32.xlu0 %v1110, 64
  %v1184 = vpop.permute.xlu0 %1183
  %1185 = vrot.lane.b32.xlu0 %v1111, 64
  %v1186 = vpop.permute.xlu0 %1185
  %1187 = vrot.lane.b32.xlu0 %v1112, 64
  %v1188 = vpop.permute.xlu0 %1187
  %1189 = vrot.lane.b32.xlu0 %v1113, 64
  %v1190 = vpop.permute.xlu0 %1189
  %1191 = vrot.lane.b32.xlu0 %v1114, 64
  %v1192 = vpop.permute.xlu0 %1191
  %1193 = vrot.lane.b32.xlu0 %v1115, 64
  %v1194 = vpop.permute.xlu0 %1193
  %1195 = vrot.lane.b32.xlu0 %v1116, 64
  %v1196 = vpop.permute.xlu0 %1195
  %v1205 = vmul.f32 %v1166, %v1182
  %v1206 = vmul.f32 %v1168, %v1184
  %v1207 = vmul.f32 %v1170, %v1186
  %v1208 = vmul.f32 %v1172, %v1188
  %v1209 = vmul.f32 %v1174, %v1190
  %v1210 = vmul.f32 %v1176, %v1192
  %v1211 = vmul.f32 %v1178, %v1194
  %v1212 = vmul.f32 %v1180, %v1196
  %1221 = vrot.lane.b32.xlu0 %v1205, 64
  %v1222 = vpop.permute.xlu0 %1221
  %1223 = vrot.lane.b32.xlu0 %v1206, 64
  %v1224 = vpop.permute.xlu0 %1223
  %1225 = vrot.lane.b32.xlu0 %v1207, 64
  %v1226 = vpop.permute.xlu0 %1225
  %1227 = vrot.lane.b32.xlu0 %v1208, 64
  %v1228 = vpop.permute.xlu0 %1227
  %1229 = vrot.lane.b32.xlu0 %v1209, 64
  %v1230 = vpop.permute.xlu0 %1229
  %1231 = vrot.lane.b32.xlu0 %v1210, 64
  %v1232 = vpop.permute.xlu0 %1231
  %1233 = vrot.lane.b32.xlu0 %v1211, 64
  %v1234 = vpop.permute.xlu0 %1233
  %1235 = vrot.lane.b32.xlu0 %v1212, 64
  %v1236 = vpop.permute.xlu0 %1235
  %v1245 = vadd.f32 %v1028, %v1222
  %v1246 = vadd.f32 %v1029, %v1224
  %v1247 = vadd.f32 %v1030, %v1226
  %v1248 = vadd.f32 %v1031, %v1228
  %v1249 = vadd.f32 %v1032, %v1230
  %v1250 = vadd.f32 %v1033, %v1232
  %v1251 = vadd.f32 %v1034, %v1234
  %v1252 = vadd.f32 %v1035, %v1236
  %v1253 = vtanh.pop %v1245
  %v1254 = vtanh.pop %v1246
  %v1255 = vtanh.pop %v1247
  %v1256 = vtanh.pop %v1248
  %v1257 = vtanh.pop %v1249
  %v1258 = vtanh.pop %v1250
  %v1259 = vtanh.pop %v1251
  %v1260 = vtanh.pop %v1252
  %v1261 = vsub.f32 1.0, %v1166
  %v1262 = vsub.f32 1.0, %v1168
  %v1263 = vsub.f32 1.0, %v1170
  %v1264 = vsub.f32 1.0, %v1172
  %v1265 = vsub.f32 1.0, %v1174
  %v1266 = vsub.f32 1.0, %v1176
  %v1267 = vsub.f32 1.0, %v1178
  %v1268 = vsub.f32 1.0, %v1180
  %1277 = vrot.lane.b32.xlu0 %v1253, 96
  %v1278 = vpop.permute.xlu0 %1277
  %1279 = vrot.lane.b32.xlu0 %v1254, 96
  %v1280 = vpop.permute.xlu0 %1279
  %1281 = vrot.lane.b32.xlu0 %v1255, 96
  %v1282 = vpop.permute.xlu0 %1281
  %1283 = vrot.lane.b32.xlu0 %v1256, 96
  %v1284 = vpop.permute.xlu0 %1283
  %1285 = vrot.lane.b32.xlu0 %v1257, 96
  %v1286 = vpop.permute.xlu0 %1285
  %1287 = vrot.lane.b32.xlu0 %v1258, 96
  %v1288 = vpop.permute.xlu0 %1287
  %1289 = vrot.lane.b32.xlu0 %v1259, 96
  %v1290 = vpop.permute.xlu0 %1289
  %1291 = vrot.lane.b32.xlu0 %v1260, 96
  %v1292 = vpop.permute.xlu0 %1291
  %v1301 = vmul.f32 %v1261, %v1278
  %v1302 = vmul.f32 %v1262, %v1280
  %v1303 = vmul.f32 %v1263, %v1282
  %v1304 = vmul.f32 %v1264, %v1284
  %v1305 = vmul.f32 %v1265, %v1286
  %v1306 = vmul.f32 %v1266, %v1288
  %v1307 = vmul.f32 %v1267, %v1290
  %v1308 = vmul.f32 %v1268, %v1292
  %v1309 = vrot.slane %v1024, 1
  %v1310 = vrot.slane %v1024, 2
  %v1311 = vrot.slane %v1024, 3
  %v1312 = vrot.slane %v1024, 4
  %v1313 = vrot.slane %v1024, 5
  %v1314 = vrot.slane %v1024, 6
  %v1315 = vrot.slane %v1024, 7
  %1316 = vrot.lane.b32.xlu0 %v1024, 32
  %v1317 = vpop.permute.xlu0 %1316
  %1318 = vrot.lane.b32.xlu0 %v1309, 32
  %v1319 = vpop.permute.xlu0 %1318
  %1320 = vrot.lane.b32.xlu0 %v1310, 32
  %v1321 = vpop.permute.xlu0 %1320
  %1322 = vrot.lane.b32.xlu0 %v1311, 32
  %v1323 = vpop.permute.xlu0 %1322
  %1324 = vrot.lane.b32.xlu0 %v1312, 32
  %v1325 = vpop.permute.xlu0 %1324
  %1326 = vrot.lane.b32.xlu0 %v1313, 32
  %v1327 = vpop.permute.xlu0 %1326
  %1328 = vrot.lane.b32.xlu0 %v1314, 32
  %v1329 = vpop.permute.xlu0 %1328
  %1330 = vrot.lane.b32.xlu0 %v1315, 32
  %v1331 = vpop.permute.xlu0 %1330
  %v1340 = vmul.f32 %v1166, %v1317
  %v1341 = vmul.f32 %v1168, %v1319
  %v1342 = vmul.f32 %v1170, %v1321
  %v1343 = vmul.f32 %v1172, %v1323
  %v1344 = vmul.f32 %v1174, %v1325
  %v1345 = vmul.f32 %v1176, %v1327
  %v1346 = vmul.f32 %v1178, %v1329
  %v1347 = vmul.f32 %v1180, %v1331
  %v1348 = vadd.f32 %v1301, %v1340
  %v1349 = vadd.f32 %v1302, %v1341
  %v1350 = vadd.f32 %v1303, %v1342
  %v1351 = vadd.f32 %v1304, %v1343
  %v1352 = vadd.f32 %v1305, %v1344
  %v1353 = vadd.f32 %v1306, %v1345
  %v1354 = vadd.f32 %v1307, %v1346
  %v1355 = vadd.f32 %v1308, %v1347
  %v1364 = vrot.slane %v1349, 7
  %v1365 = vsel %vm398, %v1364, %v1348
  %v1366 = vrot.slane %v1350, 6
  %v1367 = vsel %vm401, %v1366, %v1365
  %v1368 = vrot.slane %v1351, 5
  %v1369 = vsel %vm404, %v1368, %v1367
  %v1370 = vrot.slane %v1352, 4
  %v1371 = vsel %vm407, %v1370, %v1369
  %v1372 = vrot.slane %v1353, 3
  %v1373 = vsel %vm410, %v1372, %v1371
  %v1374 = vrot.slane %v1354, 2
  %v1375 = vsel %vm413, %v1374, %v1373
  %v1376 = vrot.slane %v1355, 1
  %v1377 = vsel %vm416, %v1376, %v1375
  %1378 = vrot.lane.b32.xlu0 %v1377, 96
  %v1379 = vpop.permute.xlu0 %1378
  %v1381 = vsel %vm68, %v1379, %v1027
  %v1383 = vsel %vm441, %v1381, 0
  %1385 = vmatprep.subr.mxu0 0.0
  %1386 = vmatpush1.msra.mxu0 %v426
  %1387 = vmatprep.subr.mxu0 0.0
  %1388 = vmatpush1.msra.mxu0 %v427
  %1389 = vmatprep.subr.mxu0 0.0
  %1390 = vmatpush1.msra.mxu0 %v428
  %1391 = vmatprep.subr.mxu0 0.0
  %1392 = vmatpush1.msra.mxu0 %v429
  %1393 = vmatprep.subr.mxu0 0.0
  %1394 = vmatpush1.msra.mxu0 %v430
  %1395 = vmatprep.subr.mxu0 0.0
  %1396 = vmatpush1.msra.mxu0 %v431
  %1397 = vmatprep.subr.mxu0 0.0
  %1398 = vmatpush1.msra.mxu0 %v432
  %1399 = vmatprep.subr.mxu0 0.0
  %1400 = vmatpush1.msra.mxu0 %v433
  %1401 = vmatprep.subr.mxu0 0.0
  %1402 = vmatpush1.msra.mxu0 0.0
  %1403 = vmatprep.subr.mxu0 0.0
  %1404 = vmatpush1.msra.mxu0 0.0
  %1405 = vmatprep.subr.mxu0 0.0
  %1406 = vmatpush1.msra.mxu0 0.0
  %1407 = vmatprep.subr.mxu0 0.0
  %1408 = vmatpush1.msra.mxu0 0.0
  %1409 = vmatprep.subr.mxu0 0.0
  %1410 = vmatpush1.msra.mxu0 0.0
  %1411 = vmatprep.subr.mxu0 0.0
  %1412 = vmatpush1.msra.mxu0 0.0
  %1413 = vmatprep.subr.mxu0 0.0
  %1414 = vmatpush1.msra.mxu0 0.0
  %1415 = vmatprep.subr.mxu0 0.0
  %1416 = vmatpush1.msra.mxu0 0.0
  %1417 = vmatprep.subr.mxu0 0.0
  %1418 = vmatpush1.msra.mxu0 0.0
  %1419 = vmatprep.subr.mxu0 0.0
  %1420 = vmatpush1.msra.mxu0 0.0
  %1421 = vmatprep.subr.mxu0 0.0
  %1422 = vmatpush1.msra.mxu0 0.0
  %1423 = vmatprep.subr.mxu0 0.0
  %1424 = vmatpush1.msra.mxu0 0.0
  %1425 = vmatprep.subr.mxu0 0.0
  %1426 = vmatpush1.msra.mxu0 0.0
  %1427 = vmatprep.subr.mxu0 0.0
  %1428 = vmatpush1.msra.mxu0 0.0
  %1429 = vmatprep.subr.mxu0 0.0
  %1430 = vmatpush1.msra.mxu0 0.0
  %1431 = vmatprep.subr.mxu0 0.0
  %1432 = vmatpush1.msra.mxu0 0.0
  %1433 = vmatprep.subr.mxu0 0.0
  %1434 = vmatpush1.msra.mxu0 0.0
  %1435 = vmatprep.subr.mxu0 0.0
  %1436 = vmatpush1.msra.mxu0 0.0
  %1437 = vmatprep.subr.mxu0 0.0
  %1438 = vmatpush1.msra.mxu0 0.0
  %1439 = vmatprep.subr.mxu0 0.0
  %1440 = vmatpush1.msra.mxu0 0.0
  %1441 = vmatprep.subr.mxu0 0.0
  %1442 = vmatpush1.msra.mxu0 0.0
  %1443 = vmatprep.subr.mxu0 0.0
  %1444 = vmatpush1.msra.mxu0 0.0
  %1445 = vmatprep.subr.mxu0 0.0
  %1446 = vmatpush1.msra.mxu0 0.0
  %1447 = vmatprep.subr.mxu0 0.0
  %1448 = vmatpush1.msra.mxu0 0.0
  %1449 = vmatprep.mubr.f32.mxu0 0.0
  %1450 = vmatmul.mubr.f32.gmra.mrb[0].mxu0 %v1383
  %v1451 = vpop.f32.mrb[0].mxu0
  %v1452 = vadd.f32 %v439, %v1451
  %v1453 = vpop.f32.mrb[0].mxu0
  %1454 = vdwg.mxu0
  %v1455 = vxor.u32 %v1452, 2147483648
  %v1456 = vmul.f32 %v1455, 1.442695
  %v1457 = vpow.pop %v1456
  %v1458 = vadd.f32 %v1457, 1.0
  %v1459 = vrcp.pop %v1458
  %v1460 = vmul.f32 1.0, %v1459
  %1462 = vrot.lane.b32.xlu0 %v1452, 32
  %v1463 = vpop.permute.xlu0 %1462
  %v1465 = vmul.f32 %v1460, %v1463
  %1467 = vrot.lane.b32.xlu0 %v1465, 64
  %v1468 = vpop.permute.xlu0 %1467
  %v1470 = vadd.f32 %v1452, %v1468
  %v1471 = vtanh.pop %v1470
  %v1472 = vsub.f32 1.0, %v1460
  %1474 = vrot.lane.b32.xlu0 %v1471, 96
  %v1475 = vpop.permute.xlu0 %1474
  %v1477 = vmul.f32 %v1472, %v1475
  %v1478 = vmul.f32 %v1460, %v1027
  %v1479 = vadd.f32 %v1477, %v1478
  %1480 = vset.pattern.permute.xlu0 2
  %1481 = vperm.xlu0 %1480, %v540
  %v1482 = vpop.permute.xlu0 %1481
  %v1484 = vmul.f32 %v1482, %v1379
  %1485 = vset.pattern.permute.xlu0 2
  %1486 = vperm.xlu0 %1485, %v547
  %v1487 = vpop.permute.xlu0 %1486
  %v1489 = vmul.f32 %v1487, %v1024
  %v1490 = vadd.f32 %v1484, %v1489
  %v1491 = vmul.f32 %v1482, %v1479
  %v1492 = vmul.f32 %v1487, %v1027
  %v1493 = vadd.f32 %v1491, %v1492
  %v1494 = vld [vmem:[%s1 + $0x3] sm:$0x1]
  %v1495 = vld [vmem:[%s1 + $0xb] sm:$0x1]
  %v1496 = vld [vmem:[%s1 + $0x13] sm:$0x1]
  %v1497 = vld [vmem:[%s1 + $0x1b] sm:$0x1]
  %v1498 = vld [vmem:[%s1 + $0x23] sm:$0x1]
  %v1499 = vld [vmem:[%s1 + $0x2b] sm:$0x1]
  %v1500 = vld [vmem:[%s1 + $0x33] sm:$0x1]
  %v1501 = vld [vmem:[%s1 + $0x3b] sm:$0x1]
  %v1503 = vsel %vm68, %v1490, 0
  %1505 = vmatprep.subr.mxu0 0.0
  %1506 = vmatpush1.msra.mxu0 %v58
  %1507 = vmatprep.subr.mxu0 0.0
  %1508 = vmatpush1.msra.mxu0 %v59
  %1509 = vmatprep.subr.mxu0 0.0
  %1510 = vmatpush1.msra.mxu0 %v60
  %1511 = vmatprep.subr.mxu0 0.0
  %1512 = vmatpush1.msra.mxu0 %v61
  %1513 = vmatprep.subr.mxu0 0.0
  %1514 = vmatpush1.msra.mxu0 0.0
  %1515 = vmatprep.subr.mxu0 0.0
  %1516 = vmatpush1.msra.mxu0 0.0
  %1517 = vmatprep.subr.mxu0 0.0
  %1518 = vmatpush1.msra.mxu0 0.0
  %1519 = vmatprep.subr.mxu0 0.0
  %1520 = vmatpush1.msra.mxu0 0.0
  %1521 = vmatprep.subr.mxu0 0.0
  %1522 = vmatpush1.msra.mxu0 0.0
  %1523 = vmatprep.subr.mxu0 0.0
  %1524 = vmatpush1.msra.mxu0 0.0
  %1525 = vmatprep.subr.mxu0 0.0
  %1526 = vmatpush1.msra.mxu0 0.0
  %1527 = vmatprep.subr.mxu0 0.0
  %1528 = vmatpush1.msra.mxu0 0.0
  %1529 = vmatprep.subr.mxu0 0.0
  %1530 = vmatpush1.msra.mxu0 0.0
  %1531 = vmatprep.subr.mxu0 0.0
  %1532 = vmatpush1.msra.mxu0 0.0
  %1533 = vmatprep.subr.mxu0 0.0
  %1534 = vmatpush1.msra.mxu0 0.0
  %1535 = vmatprep.subr.mxu0 0.0
  %1536 = vmatpush1.msra.mxu0 0.0
  %1537 = vmatprep.subr.mxu0 0.0
  %1538 = vmatpush1.msra.mxu0 0.0
  %1539 = vmatprep.subr.mxu0 0.0
  %1540 = vmatpush1.msra.mxu0 0.0
  %1541 = vmatprep.subr.mxu0 0.0
  %1542 = vmatpush1.msra.mxu0 0.0
  %1543 = vmatprep.subr.mxu0 0.0
  %1544 = vmatpush1.msra.mxu0 0.0
  %1545 = vmatprep.subr.mxu0 0.0
  %1546 = vmatpush1.msra.mxu0 0.0
  %1547 = vmatprep.subr.mxu0 0.0
  %1548 = vmatpush1.msra.mxu0 0.0
  %1549 = vmatprep.subr.mxu0 0.0
  %1550 = vmatpush1.msra.mxu0 0.0
  %1551 = vmatprep.subr.mxu0 0.0
  %1552 = vmatpush1.msra.mxu0 0.0
  %1553 = vmatprep.subr.mxu0 0.0
  %1554 = vmatpush1.msra.mxu0 0.0
  %1555 = vmatprep.subr.mxu0 0.0
  %1556 = vmatpush1.msra.mxu0 0.0
  %1557 = vmatprep.subr.mxu0 0.0
  %1558 = vmatpush1.msra.mxu0 0.0
  %1559 = vmatprep.subr.mxu0 0.0
  %1560 = vmatpush1.msra.mxu0 0.0
  %1561 = vmatprep.subr.mxu0 0.0
  %1562 = vmatpush1.msra.mxu0 0.0
  %1563 = vmatprep.subr.mxu0 0.0
  %1564 = vmatpush1.msra.mxu0 0.0
  %1565 = vmatprep.subr.mxu0 0.0
  %1566 = vmatpush1.msra.mxu0 0.0
  %1567 = vmatprep.subr.mxu0 0.0
  %1568 = vmatpush1.msra.mxu0 0.0
  %1569 = vmatprep.mubr.f32.mxu0 0.0
  %1570 = vmatmul.mubr.f32.gmra.mrb[0].mxu0 %v1503
  %v1571 = vpop.f32.mrb[0].mxu0
  %v1572 = vadd.f32 %v66, %v1571
  %v1573 = vpop.f32.mrb[0].mxu0
  %1574 = vdwg.mxu0
  %v1576 = vrot.slane %v1572, 1
  %v1577 = vrot.slane %v1572, 2
  %v1578 = vrot.slane %v1572, 3
  %v1579 = vrot.slane %v1572, 4
  %v1580 = vrot.slane %v1572, 5
  %v1581 = vrot.slane %v1572, 6
  %v1582 = vrot.slane %v1572, 7
  %v1591 = vadd.f32 %v1494, %v1572
  %v1592 = vadd.f32 %v1495, %v1576
  %v1593 = vadd.f32 %v1496, %v1577
  %v1594 = vadd.f32 %v1497, %v1578
  %v1595 = vadd.f32 %v1498, %v1579
  %v1596 = vadd.f32 %v1499, %v1580
  %v1597 = vadd.f32 %v1500, %v1581
  %v1598 = vadd.f32 %v1501, %v1582
  %v1599 = vxor.u32 %v1591, 2147483648
  %v1600 = vxor.u32 %v1592, 2147483648
  %v1601 = vxor.u32 %v1593, 2147483648
  %v1602 = vxor.u32 %v1594, 2147483648
  %v1603 = vxor.u32 %v1595, 2147483648
  %v1604 = vxor.u32 %v1596, 2147483648
  %v1605 = vxor.u32 %v1597, 2147483648
  %v1606 = vxor.u32 %v1598, 2147483648
  %v1607 = vmul.f32 %v1599, 1.442695
  %v1608 = vpow.pop %v1607
  %v1609 = vmul.f32 %v1600, 1.442695
  %v1610 = vpow.pop %v1609
  %v1611 = vmul.f32 %v1601, 1.442695
  %v1612 = vpow.pop %v1611
  %v1613 = vmul.f32 %v1602, 1.442695
  %v1614 = vpow.pop %v1613
  %v1615 = vmul.f32 %v1603, 1.442695
  %v1616 = vpow.pop %v1615
  %v1617 = vmul.f32 %v1604, 1.442695
  %v1618 = vpow.pop %v1617
  %v1619 = vmul.f32 %v1605, 1.442695
  %v1620 = vpow.pop %v1619
  %v1621 = vmul.f32 %v1606, 1.442695
  %v1622 = vpow.pop %v1621
  %v1623 = vadd.f32 %v1608, 1.0
  %v1624 = vadd.f32 %v1610, 1.0
  %v1625 = vadd.f32 %v1612, 1.0
  %v1626 = vadd.f32 %v1614, 1.0
  %v1627 = vadd.f32 %v1616, 1.0
  %v1628 = vadd.f32 %v1618, 1.0
  %v1629 = vadd.f32 %v1620, 1.0
  %v1630 = vadd.f32 %v1622, 1.0
  %v1631 = vrcp.pop %v1623
  %v1632 = vmul.f32 1.0, %v1631
  %v1633 = vrcp.pop %v1624
  %v1634 = vmul.f32 1.0, %v1633
  %v1635 = vrcp.pop %v1625
  %v1636 = vmul.f32 1.0, %v1635
  %v1637 = vrcp.pop %v1626
  %v1638 = vmul.f32 1.0, %v1637
  %v1639 = vrcp.pop %v1627
  %v1640 = vmul.f32 1.0, %v1639
  %v1641 = vrcp.pop %v1628
  %v1642 = vmul.f32 1.0, %v1641
  %v1643 = vrcp.pop %v1629
  %v1644 = vmul.f32 1.0, %v1643
  %v1645 = vrcp.pop %v1630
  %v1646 = vmul.f32 1.0, %v1645
  %1647 = vrot.lane.b32.xlu0 %v1572, 64
  %v1648 = vpop.permute.xlu0 %1647
  %1649 = vrot.lane.b32.xlu0 %v1576, 64
  %v1650 = vpop.permute.xlu0 %1649
  %1651 = vrot.lane.b32.xlu0 %v1577, 64
  %v1652 = vpop.permute.xlu0 %1651
  %1653 = vrot.lane.b32.xlu0 %v1578, 64
  %v1654 = vpop.permute.xlu0 %1653
  %1655 = vrot.lane.b32.xlu0 %v1579, 64
  %v1656 = vpop.permute.xlu0 %1655
  %1657 = vrot.lane.b32.xlu0 %v1580, 64
  %v1658 = vpop.permute.xlu0 %1657
  %1659 = vrot.lane.b32.xlu0 %v1581, 64
  %v1660 = vpop.permute.xlu0 %1659
  %1661 = vrot.lane.b32.xlu0 %v1582, 64
  %v1662 = vpop.permute.xlu0 %1661
  %v1671 = vmul.f32 %v1632, %v1648
  %v1672 = vmul.f32 %v1634, %v1650
  %v1673 = vmul.f32 %v1636, %v1652
  %v1674 = vmul.f32 %v1638, %v1654
  %v1675 = vmul.f32 %v1640, %v1656
  %v1676 = vmul.f32 %v1642, %v1658
  %v1677 = vmul.f32 %v1644, %v1660
  %v1678 = vmul.f32 %v1646, %v1662
  %1687 = vrot.lane.b32.xlu0 %v1671, 64
  %v1688 = vpop.permute.xlu0 %1687
  %1689 = vrot.lane.b32.xlu0 %v1672, 64
  %v1690 = vpop.permute.xlu0 %1689
  %1691 = vrot.lane.b32.xlu0 %v1673, 64
  %v1692 = vpop.permute.xlu0 %1691
  %1693 = vrot.lane.b32.xlu0 %v1674, 64
  %v1694 = vpop.permute.xlu0 %1693
  %1695 = vrot.lane.b32.xlu0 %v1675, 64
  %v1696 = vpop.permute.xlu0 %1695
  %1697 = vrot.lane.b32.xlu0 %v1676, 64
  %v1698 = vpop.permute.xlu0 %1697
  %1699 = vrot.lane.b32.xlu0 %v1677, 64
  %v1700 = vpop.permute.xlu0 %1699
  %1701 = vrot.lane.b32.xlu0 %v1678, 64
  %v1702 = vpop.permute.xlu0 %1701
  %v1711 = vadd.f32 %v1494, %v1688
  %v1712 = vadd.f32 %v1495, %v1690
  %v1713 = vadd.f32 %v1496, %v1692
  %v1714 = vadd.f32 %v1497, %v1694
  %v1715 = vadd.f32 %v1498, %v1696
  %v1716 = vadd.f32 %v1499, %v1698
  %v1717 = vadd.f32 %v1500, %v1700
  %v1718 = vadd.f32 %v1501, %v1702
  %v1719 = vtanh.pop %v1711
  %v1720 = vtanh.pop %v1712
  %v1721 = vtanh.pop %v1713
  %v1722 = vtanh.pop %v1714
  %v1723 = vtanh.pop %v1715
  %v1724 = vtanh.pop %v1716
  %v1725 = vtanh.pop %v1717
  %v1726 = vtanh.pop %v1718
  %v1727 = vsub.f32 1.0, %v1632
  %v1728 = vsub.f32 1.0, %v1634
  %v1729 = vsub.f32 1.0, %v1636
  %v1730 = vsub.f32 1.0, %v1638
  %v1731 = vsub.f32 1.0, %v1640
  %v1732 = vsub.f32 1.0, %v1642
  %v1733 = vsub.f32 1.0, %v1644
  %v1734 = vsub.f32 1.0, %v1646
  %1743 = vrot.lane.b32.xlu0 %v1719, 96
  %v1744 = vpop.permute.xlu0 %1743
  %1745 = vrot.lane.b32.xlu0 %v1720, 96
  %v1746 = vpop.permute.xlu0 %1745
  %1747 = vrot.lane.b32.xlu0 %v1721, 96
  %v1748 = vpop.permute.xlu0 %1747
  %1749 = vrot.lane.b32.xlu0 %v1722, 96
  %v1750 = vpop.permute.xlu0 %1749
  %1751 = vrot.lane.b32.xlu0 %v1723, 96
  %v1752 = vpop.permute.xlu0 %1751
  %1753 = vrot.lane.b32.xlu0 %v1724, 96
  %v1754 = vpop.permute.xlu0 %1753
  %1755 = vrot.lane.b32.xlu0 %v1725, 96
  %v1756 = vpop.permute.xlu0 %1755
  %1757 = vrot.lane.b32.xlu0 %v1726, 96
  %v1758 = vpop.permute.xlu0 %1757
  %v1767 = vmul.f32 %v1727, %v1744
  %v1768 = vmul.f32 %v1728, %v1746
  %v1769 = vmul.f32 %v1729, %v1748
  %v1770 = vmul.f32 %v1730, %v1750
  %v1771 = vmul.f32 %v1731, %v1752
  %v1772 = vmul.f32 %v1732, %v1754
  %v1773 = vmul.f32 %v1733, %v1756
  %v1774 = vmul.f32 %v1734, %v1758
  %v1775 = vrot.slane %v1490, 1
  %v1776 = vrot.slane %v1490, 2
  %v1777 = vrot.slane %v1490, 3
  %v1778 = vrot.slane %v1490, 4
  %v1779 = vrot.slane %v1490, 5
  %v1780 = vrot.slane %v1490, 6
  %v1781 = vrot.slane %v1490, 7
  %1782 = vrot.lane.b32.xlu0 %v1490, 32
  %v1783 = vpop.permute.xlu0 %1782
  %1784 = vrot.lane.b32.xlu0 %v1775, 32
  %v1785 = vpop.permute.xlu0 %1784
  %1786 = vrot.lane.b32.xlu0 %v1776, 32
  %v1787 = vpop.permute.xlu0 %1786
  %1788 = vrot.lane.b32.xlu0 %v1777, 32
  %v1789 = vpop.permute.xlu0 %1788
  %1790 = vrot.lane.b32.xlu0 %v1778, 32
  %v1791 = vpop.permute.xlu0 %1790
  %1792 = vrot.lane.b32.xlu0 %v1779, 32
  %v1793 = vpop.permute.xlu0 %1792
  %1794 = vrot.lane.b32.xlu0 %v1780, 32
  %v1795 = vpop.permute.xlu0 %1794
  %1796 = vrot.lane.b32.xlu0 %v1781, 32
  %v1797 = vpop.permute.xlu0 %1796
  %v1806 = vmul.f32 %v1632, %v1783
  %v1807 = vmul.f32 %v1634, %v1785
  %v1808 = vmul.f32 %v1636, %v1787
  %v1809 = vmul.f32 %v1638, %v1789
  %v1810 = vmul.f32 %v1640, %v1791
  %v1811 = vmul.f32 %v1642, %v1793
  %v1812 = vmul.f32 %v1644, %v1795
  %v1813 = vmul.f32 %v1646, %v1797
  %v1814 = vadd.f32 %v1767, %v1806
  %v1815 = vadd.f32 %v1768, %v1807
  %v1816 = vadd.f32 %v1769, %v1808
  %v1817 = vadd.f32 %v1770, %v1809
  %v1818 = vadd.f32 %v1771, %v1810
  %v1819 = vadd.f32 %v1772, %v1811
  %v1820 = vadd.f32 %v1773, %v1812
  %v1821 = vadd.f32 %v1774, %v1813
  %v1830 = vrot.slane %v1815, 7
  %v1831 = vsel %vm398, %v1830, %v1814
  %v1832 = vrot.slane %v1816, 6
  %v1833 = vsel %vm401, %v1832, %v1831
  %v1834 = vrot.slane %v1817, 5
  %v1835 = vsel %vm404, %v1834, %v1833
  %v1836 = vrot.slane %v1818, 4
  %v1837 = vsel %vm407, %v1836, %v1835
  %v1838 = vrot.slane %v1819, 3
  %v1839 = vsel %vm410, %v1838, %v1837
  %v1840 = vrot.slane %v1820, 2
  %v1841 = vsel %vm413, %v1840, %v1839
  %v1842 = vrot.slane %v1821, 1
  %v1843 = vsel %vm416, %v1842, %v1841
  %1844 = vrot.lane.b32.xlu0 %v1843, 96
  %v1845 = vpop.permute.xlu0 %1844
  %v1847 = vsel %vm68, %v1845, %v1493
  %v1849 = vsel %vm441, %v1847, 0
  %1851 = vmatprep.subr.mxu0 0.0
  %1852 = vmatpush1.msra.mxu0 %v426
  %1853 = vmatprep.subr.mxu0 0.0
  %1854 = vmatpush1.msra.mxu0 %v427
  %1855 = vmatprep.subr.mxu0 0.0
  %1856 = vmatpush1.msra.mxu0 %v428
  %1857 = vmatprep.subr.mxu0 0.0
  %1858 = vmatpush1.msra.mxu0 %v429
  %1859 = vmatprep.subr.mxu0 0.0
  %1860 = vmatpush1.msra.mxu0 %v430
  %1861 = vmatprep.subr.mxu0 0.0
  %1862 = vmatpush1.msra.mxu0 %v431
  %1863 = vmatprep.subr.mxu0 0.0
  %1864 = vmatpush1.msra.mxu0 %v432
  %1865 = vmatprep.subr.mxu0 0.0
  %1866 = vmatpush1.msra.mxu0 %v433
  %1867 = vmatprep.subr.mxu0 0.0
  %1868 = vmatpush1.msra.mxu0 0.0
  %1869 = vmatprep.subr.mxu0 0.0
  %1870 = vmatpush1.msra.mxu0 0.0
  %1871 = vmatprep.subr.mxu0 0.0
  %1872 = vmatpush1.msra.mxu0 0.0
  %1873 = vmatprep.subr.mxu0 0.0
  %1874 = vmatpush1.msra.mxu0 0.0
  %1875 = vmatprep.subr.mxu0 0.0
  %1876 = vmatpush1.msra.mxu0 0.0
  %1877 = vmatprep.subr.mxu0 0.0
  %1878 = vmatpush1.msra.mxu0 0.0
  %1879 = vmatprep.subr.mxu0 0.0
  %1880 = vmatpush1.msra.mxu0 0.0
  %1881 = vmatprep.subr.mxu0 0.0
  %1882 = vmatpush1.msra.mxu0 0.0
  %1883 = vmatprep.subr.mxu0 0.0
  %1884 = vmatpush1.msra.mxu0 0.0
  %1885 = vmatprep.subr.mxu0 0.0
  %1886 = vmatpush1.msra.mxu0 0.0
  %1887 = vmatprep.subr.mxu0 0.0
  %1888 = vmatpush1.msra.mxu0 0.0
  %1889 = vmatprep.subr.mxu0 0.0
  %1890 = vmatpush1.msra.mxu0 0.0
  %1891 = vmatprep.subr.mxu0 0.0
  %1892 = vmatpush1.msra.mxu0 0.0
  %1893 = vmatprep.subr.mxu0 0.0
  %1894 = vmatpush1.msra.mxu0 0.0
  %1895 = vmatprep.subr.mxu0 0.0
  %1896 = vmatpush1.msra.mxu0 0.0
  %1897 = vmatprep.subr.mxu0 0.0
  %1898 = vmatpush1.msra.mxu0 0.0
  %1899 = vmatprep.subr.mxu0 0.0
  %1900 = vmatpush1.msra.mxu0 0.0
  %1901 = vmatprep.subr.mxu0 0.0
  %1902 = vmatpush1.msra.mxu0 0.0
  %1903 = vmatprep.subr.mxu0 0.0
  %1904 = vmatpush1.msra.mxu0 0.0
  %1905 = vmatprep.subr.mxu0 0.0
  %1906 = vmatpush1.msra.mxu0 0.0
  %1907 = vmatprep.subr.mxu0 0.0
  %1908 = vmatpush1.msra.mxu0 0.0
  %1909 = vmatprep.subr.mxu0 0.0
  %1910 = vmatpush1.msra.mxu0 0.0
  %1911 = vmatprep.subr.mxu0 0.0
  %1912 = vmatpush1.msra.mxu0 0.0
  %1913 = vmatprep.subr.mxu0 0.0
  %1914 = vmatpush1.msra.mxu0 0.0
  %1915 = vmatprep.mubr.f32.mxu0 0.0
  %1916 = vmatmul.mubr.f32.gmra.mrb[0].mxu0 %v1849
  %v1917 = vpop.f32.mrb[0].mxu0
  %v1918 = vadd.f32 %v439, %v1917
  %v1919 = vpop.f32.mrb[0].mxu0
  %1920 = vdwg.mxu0
  %v1921 = vxor.u32 %v1918, 2147483648
  %v1922 = vmul.f32 %v1921, 1.442695
  %v1923 = vpow.pop %v1922
  %v1924 = vadd.f32 %v1923, 1.0
  %v1925 = vrcp.pop %v1924
  %v1926 = vmul.f32 1.0, %v1925
  %1928 = vrot.lane.b32.xlu0 %v1918, 32
  %v1929 = vpop.permute.xlu0 %1928
  %v1931 = vmul.f32 %v1926, %v1929
  %1933 = vrot.lane.b32.xlu0 %v1931, 64
  %v1934 = vpop.permute.xlu0 %1933
  %v1936 = vadd.f32 %v1918, %v1934
  %v1937 = vtanh.pop %v1936
  %v1938 = vsub.f32 1.0, %v1926
  %1940 = vrot.lane.b32.xlu0 %v1937, 96
  %v1941 = vpop.permute.xlu0 %1940
  %v1943 = vmul.f32 %v1938, %v1941
  %v1944 = vmul.f32 %v1926, %v1493
  %v1945 = vadd.f32 %v1943, %v1944
  %1946 = vset.pattern.permute.xlu0 3
  %1947 = vperm.xlu0 %1946, %v540
  %v1948 = vpop.permute.xlu0 %1947
  %v1950 = vmul.f32 %v1948, %v1845
  %1951 = vset.pattern.permute.xlu0 3
  %1952 = vperm.xlu0 %1951, %v547
  %v1953 = vpop.permute.xlu0 %1952
  %v1955 = vmul.f32 %v1953, %v1490
  %v1956 = vadd.f32 %v1950, %v1955
  %v1957 = vmul.f32 %v1948, %v1945
  %v1958 = vmul.f32 %v1953, %v1493
  %v1959 = vadd.f32 %v1957, %v1958
  %v1960 = vld [vmem:[%s1 + $0x4] sm:$0x1]
  %v1961 = vld [vmem:[%s1 + $0xc] sm:$0x1]
  %v1962 = vld [vmem:[%s1 + $0x14] sm:$0x1]
  %v1963 = vld [vmem:[%s1 + $0x1c] sm:$0x1]
  %v1964 = vld [vmem:[%s1 + $0x24] sm:$0x1]
  %v1965 = vld [vmem:[%s1 + $0x2c] sm:$0x1]
  %v1966 = vld [vmem:[%s1 + $0x34] sm:$0x1]
  %v1967 = vld [vmem:[%s1 + $0x3c] sm:$0x1]
  %v1969 = vsel %vm68, %v1956, 0
  %1971 = vmatprep.subr.mxu0 0.0
  %1972 = vmatpush1.msra.mxu0 %v58
  %1973 = vmatprep.subr.mxu0 0.0
  %1974 = vmatpush1.msra.mxu0 %v59
  %1975 = vmatprep.subr.mxu0 0.0
  %1976 = vmatpush1.msra.mxu0 %v60
  %1977 = vmatprep.subr.mxu0 0.0
  %1978 = vmatpush1.msra.mxu0 %v61
  %1979 = vmatprep.subr.mxu0 0.0
  %1980 = vmatpush1.msra.mxu0 0.0
  %1981 = vmatprep.subr.mxu0 0.0
  %1982 = vmatpush1.msra.mxu0 0.0
  %1983 = vmatprep.subr.mxu0 0.0
  %1984 = vmatpush1.msra.mxu0 0.0
  %1985 = vmatprep.subr.mxu0 0.0
  %1986 = vmatpush1.msra.mxu0 0.0
  %1987 = vmatprep.subr.mxu0 0.0
  %1988 = vmatpush1.msra.mxu0 0.0
  %1989 = vmatprep.subr.mxu0 0.0
  %1990 = vmatpush1.msra.mxu0 0.0
  %1991 = vmatprep.subr.mxu0 0.0
  %1992 = vmatpush1.msra.mxu0 0.0
  %1993 = vmatprep.subr.mxu0 0.0
  %1994 = vmatpush1.msra.mxu0 0.0
  %1995 = vmatprep.subr.mxu0 0.0
  %1996 = vmatpush1.msra.mxu0 0.0
  %1997 = vmatprep.subr.mxu0 0.0
  %1998 = vmatpush1.msra.mxu0 0.0
  %1999 = vmatprep.subr.mxu0 0.0
  %2000 = vmatpush1.msra.mxu0 0.0
  %2001 = vmatprep.subr.mxu0 0.0
  %2002 = vmatpush1.msra.mxu0 0.0
  %2003 = vmatprep.subr.mxu0 0.0
  %2004 = vmatpush1.msra.mxu0 0.0
  %2005 = vmatprep.subr.mxu0 0.0
  %2006 = vmatpush1.msra.mxu0 0.0
  %2007 = vmatprep.subr.mxu0 0.0
  %2008 = vmatpush1.msra.mxu0 0.0
  %2009 = vmatprep.subr.mxu0 0.0
  %2010 = vmatpush1.msra.mxu0 0.0
  %2011 = vmatprep.subr.mxu0 0.0
  %2012 = vmatpush1.msra.mxu0 0.0
  %2013 = vmatprep.subr.mxu0 0.0
  %2014 = vmatpush1.msra.mxu0 0.0
  %2015 = vmatprep.subr.mxu0 0.0
  %2016 = vmatpush1.msra.mxu0 0.0
  %2017 = vmatprep.subr.mxu0 0.0
  %2018 = vmatpush1.msra.mxu0 0.0
  %2019 = vmatprep.subr.mxu0 0.0
  %2020 = vmatpush1.msra.mxu0 0.0
  %2021 = vmatprep.subr.mxu0 0.0
  %2022 = vmatpush1.msra.mxu0 0.0
  %2023 = vmatprep.subr.mxu0 0.0
  %2024 = vmatpush1.msra.mxu0 0.0
  %2025 = vmatprep.subr.mxu0 0.0
  %2026 = vmatpush1.msra.mxu0 0.0
  %2027 = vmatprep.subr.mxu0 0.0
  %2028 = vmatpush1.msra.mxu0 0.0
  %2029 = vmatprep.subr.mxu0 0.0
  %2030 = vmatpush1.msra.mxu0 0.0
  %2031 = vmatprep.subr.mxu0 0.0
  %2032 = vmatpush1.msra.mxu0 0.0
  %2033 = vmatprep.subr.mxu0 0.0
  %2034 = vmatpush1.msra.mxu0 0.0
  %2035 = vmatprep.mubr.f32.mxu0 0.0
  %2036 = vmatmul.mubr.f32.gmra.mrb[0].mxu0 %v1969
  %v2037 = vpop.f32.mrb[0].mxu0
  %v2038 = vadd.f32 %v66, %v2037
  %v2039 = vpop.f32.mrb[0].mxu0
  %2040 = vdwg.mxu0
  %v2042 = vrot.slane %v2038, 1
  %v2043 = vrot.slane %v2038, 2
  %v2044 = vrot.slane %v2038, 3
  %v2045 = vrot.slane %v2038, 4
  %v2046 = vrot.slane %v2038, 5
  %v2047 = vrot.slane %v2038, 6
  %v2048 = vrot.slane %v2038, 7
  %v2057 = vadd.f32 %v1960, %v2038
  %v2058 = vadd.f32 %v1961, %v2042
  %v2059 = vadd.f32 %v1962, %v2043
  %v2060 = vadd.f32 %v1963, %v2044
  %v2061 = vadd.f32 %v1964, %v2045
  %v2062 = vadd.f32 %v1965, %v2046
  %v2063 = vadd.f32 %v1966, %v2047
  %v2064 = vadd.f32 %v1967, %v2048
  %v2065 = vxor.u32 %v2057, 2147483648
  %v2066 = vxor.u32 %v2058, 2147483648
  %v2067 = vxor.u32 %v2059, 2147483648
  %v2068 = vxor.u32 %v2060, 2147483648
  %v2069 = vxor.u32 %v2061, 2147483648
  %v2070 = vxor.u32 %v2062, 2147483648
  %v2071 = vxor.u32 %v2063, 2147483648
  %v2072 = vxor.u32 %v2064, 2147483648
  %v2073 = vmul.f32 %v2065, 1.442695
  %v2074 = vpow.pop %v2073
  %v2075 = vmul.f32 %v2066, 1.442695
  %v2076 = vpow.pop %v2075
  %v2077 = vmul.f32 %v2067, 1.442695
  %v2078 = vpow.pop %v2077
  %v2079 = vmul.f32 %v2068, 1.442695
  %v2080 = vpow.pop %v2079
  %v2081 = vmul.f32 %v2069, 1.442695
  %v2082 = vpow.pop %v2081
  %v2083 = vmul.f32 %v2070, 1.442695
  %v2084 = vpow.pop %v2083
  %v2085 = vmul.f32 %v2071, 1.442695
  %v2086 = vpow.pop %v2085
  %v2087 = vmul.f32 %v2072, 1.442695
  %v2088 = vpow.pop %v2087
  %v2089 = vadd.f32 %v2074, 1.0
  %v2090 = vadd.f32 %v2076, 1.0
  %v2091 = vadd.f32 %v2078, 1.0
  %v2092 = vadd.f32 %v2080, 1.0
  %v2093 = vadd.f32 %v2082, 1.0
  %v2094 = vadd.f32 %v2084, 1.0
  %v2095 = vadd.f32 %v2086, 1.0
  %v2096 = vadd.f32 %v2088, 1.0
  %v2097 = vrcp.pop %v2089
  %v2098 = vmul.f32 1.0, %v2097
  %v2099 = vrcp.pop %v2090
  %v2100 = vmul.f32 1.0, %v2099
  %v2101 = vrcp.pop %v2091
  %v2102 = vmul.f32 1.0, %v2101
  %v2103 = vrcp.pop %v2092
  %v2104 = vmul.f32 1.0, %v2103
  %v2105 = vrcp.pop %v2093
  %v2106 = vmul.f32 1.0, %v2105
  %v2107 = vrcp.pop %v2094
  %v2108 = vmul.f32 1.0, %v2107
  %v2109 = vrcp.pop %v2095
  %v2110 = vmul.f32 1.0, %v2109
  %v2111 = vrcp.pop %v2096
  %v2112 = vmul.f32 1.0, %v2111
  %2113 = vrot.lane.b32.xlu0 %v2038, 64
  %v2114 = vpop.permute.xlu0 %2113
  %2115 = vrot.lane.b32.xlu0 %v2042, 64
  %v2116 = vpop.permute.xlu0 %2115
  %2117 = vrot.lane.b32.xlu0 %v2043, 64
  %v2118 = vpop.permute.xlu0 %2117
  %2119 = vrot.lane.b32.xlu0 %v2044, 64
  %v2120 = vpop.permute.xlu0 %2119
  %2121 = vrot.lane.b32.xlu0 %v2045, 64
  %v2122 = vpop.permute.xlu0 %2121
  %2123 = vrot.lane.b32.xlu0 %v2046, 64
  %v2124 = vpop.permute.xlu0 %2123
  %2125 = vrot.lane.b32.xlu0 %v2047, 64
  %v2126 = vpop.permute.xlu0 %2125
  %2127 = vrot.lane.b32.xlu0 %v2048, 64
  %v2128 = vpop.permute.xlu0 %2127
  %v2137 = vmul.f32 %v2098, %v2114
  %v2138 = vmul.f32 %v2100, %v2116
  %v2139 = vmul.f32 %v2102, %v2118
  %v2140 = vmul.f32 %v2104, %v2120
  %v2141 = vmul.f32 %v2106, %v2122
  %v2142 = vmul.f32 %v2108, %v2124
  %v2143 = vmul.f32 %v2110, %v2126
  %v2144 = vmul.f32 %v2112, %v2128
  %2153 = vrot.lane.b32.xlu0 %v2137, 64
  %v2154 = vpop.permute.xlu0 %2153
  %2155 = vrot.lane.b32.xlu0 %v2138, 64
  %v2156 = vpop.permute.xlu0 %2155
  %2157 = vrot.lane.b32.xlu0 %v2139, 64
  %v2158 = vpop.permute.xlu0 %2157
  %2159 = vrot.lane.b32.xlu0 %v2140, 64
  %v2160 = vpop.permute.xlu0 %2159
  %2161 = vrot.lane.b32.xlu0 %v2141, 64
  %v2162 = vpop.permute.xlu0 %2161
  %2163 = vrot.lane.b32.xlu0 %v2142, 64
  %v2164 = vpop.permute.xlu0 %2163
  %2165 = vrot.lane.b32.xlu0 %v2143, 64
  %v2166 = vpop.permute.xlu0 %2165
  %2167 = vrot.lane.b32.xlu0 %v2144, 64
  %v2168 = vpop.permute.xlu0 %2167
  %v2177 = vadd.f32 %v1960, %v2154
  %v2178 = vadd.f32 %v1961, %v2156
  %v2179 = vadd.f32 %v1962, %v2158
  %v2180 = vadd.f32 %v1963, %v2160
  %v2181 = vadd.f32 %v1964, %v2162
  %v2182 = vadd.f32 %v1965, %v2164
  %v2183 = vadd.f32 %v1966, %v2166
  %v2184 = vadd.f32 %v1967, %v2168
  %v2185 = vtanh.pop %v2177
  %v2186 = vtanh.pop %v2178
  %v2187 = vtanh.pop %v2179
  %v2188 = vtanh.pop %v2180
  %v2189 = vtanh.pop %v2181
  %v2190 = vtanh.pop %v2182
  %v2191 = vtanh.pop %v2183
  %v2192 = vtanh.pop %v2184
  %v2193 = vsub.f32 1.0, %v2098
  %v2194 = vsub.f32 1.0, %v2100
  %v2195 = vsub.f32 1.0, %v2102
  %v2196 = vsub.f32 1.0, %v2104
  %v2197 = vsub.f32 1.0, %v2106
  %v2198 = vsub.f32 1.0, %v2108
  %v2199 = vsub.f32 1.0, %v2110
  %v2200 = vsub.f32 1.0, %v2112
  %2209 = vrot.lane.b32.xlu0 %v2185, 96
  %v2210 = vpop.permute.xlu0 %2209
  %2211 = vrot.lane.b32.xlu0 %v2186, 96
  %v2212 = vpop.permute.xlu0 %2211
  %2213 = vrot.lane.b32.xlu0 %v2187, 96
  %v2214 = vpop.permute.xlu0 %2213
  %2215 = vrot.lane.b32.xlu0 %v2188, 96
  %v2216 = vpop.permute.xlu0 %2215
  %2217 = vrot.lane.b32.xlu0 %v2189, 96
  %v2218 = vpop.permute.xlu0 %2217
  %2219 = vrot.lane.b32.xlu0 %v2190, 96
  %v2220 = vpop.permute.xlu0 %2219
  %2221 = vrot.lane.b32.xlu0 %v2191, 96
  %v2222 = vpop.permute.xlu0 %2221
  %2223 = vrot.lane.b32.xlu0 %v2192, 96
  %v2224 = vpop.permute.xlu0 %2223
  %v2233 = vmul.f32 %v2193, %v2210
  %v2234 = vmul.f32 %v2194, %v2212
  %v2235 = vmul.f32 %v2195, %v2214
  %v2236 = vmul.f32 %v2196, %v2216
  %v2237 = vmul.f32 %v2197, %v2218
  %v2238 = vmul.f32 %v2198, %v2220
  %v2239 = vmul.f32 %v2199, %v2222
  %v2240 = vmul.f32 %v2200, %v2224
  %v2241 = vrot.slane %v1956, 1
  %v2242 = vrot.slane %v1956, 2
  %v2243 = vrot.slane %v1956, 3
  %v2244 = vrot.slane %v1956, 4
  %v2245 = vrot.slane %v1956, 5
  %v2246 = vrot.slane %v1956, 6
  %v2247 = vrot.slane %v1956, 7
  %2248 = vrot.lane.b32.xlu0 %v1956, 32
  %v2249 = vpop.permute.xlu0 %2248
  %2250 = vrot.lane.b32.xlu0 %v2241, 32
  %v2251 = vpop.permute.xlu0 %2250
  %2252 = vrot.lane.b32.xlu0 %v2242, 32
  %v2253 = vpop.permute.xlu0 %2252
  %2254 = vrot.lane.b32.xlu0 %v2243, 32
  %v2255 = vpop.permute.xlu0 %2254
  %2256 = vrot.lane.b32.xlu0 %v2244, 32
  %v2257 = vpop.permute.xlu0 %2256
  %2258 = vrot.lane.b32.xlu0 %v2245, 32
  %v2259 = vpop.permute.xlu0 %2258
  %2260 = vrot.lane.b32.xlu0 %v2246, 32
  %v2261 = vpop.permute.xlu0 %2260
  %2262 = vrot.lane.b32.xlu0 %v2247, 32
  %v2263 = vpop.permute.xlu0 %2262
  %v2272 = vmul.f32 %v2098, %v2249
  %v2273 = vmul.f32 %v2100, %v2251
  %v2274 = vmul.f32 %v2102, %v2253
  %v2275 = vmul.f32 %v2104, %v2255
  %v2276 = vmul.f32 %v2106, %v2257
  %v2277 = vmul.f32 %v2108, %v2259
  %v2278 = vmul.f32 %v2110, %v2261
  %v2279 = vmul.f32 %v2112, %v2263
  %v2280 = vadd.f32 %v2233, %v2272
  %v2281 = vadd.f32 %v2234, %v2273
  %v2282 = vadd.f32 %v2235, %v2274
  %v2283 = vadd.f32 %v2236, %v2275
  %v2284 = vadd.f32 %v2237, %v2276
  %v2285 = vadd.f32 %v2238, %v2277
  %v2286 = vadd.f32 %v2239, %v2278
  %v2287 = vadd.f32 %v2240, %v2279
  %v2296 = vrot.slane %v2281, 7
  %v2297 = vsel %vm398, %v2296, %v2280
  %v2298 = vrot.slane %v2282, 6
  %v2299 = vsel %vm401, %v2298, %v2297
  %v2300 = vrot.slane %v2283, 5
  %v2301 = vsel %vm404, %v2300, %v2299
  %v2302 = vrot.slane %v2284, 4
  %v2303 = vsel %vm407, %v2302, %v2301
  %v2304 = vrot.slane %v2285, 3
  %v2305 = vsel %vm410, %v2304, %v2303
  %v2306 = vrot.slane %v2286, 2
  %v2307 = vsel %vm413, %v2306, %v2305
  %v2308 = vrot.slane %v2287, 1
  %v2309 = vsel %vm416, %v2308, %v2307
  %2310 = vrot.lane.b32.xlu0 %v2309, 96
  %v2311 = vpop.permute.xlu0 %2310
  %v2313 = vsel %vm68, %v2311, %v1959
  %v2315 = vsel %vm441, %v2313, 0
  %2317 = vmatprep.subr.mxu0 0.0
  %2318 = vmatpush1.msra.mxu0 %v426
  %2319 = vmatprep.subr.mxu0 0.0
  %2320 = vmatpush1.msra.mxu0 %v427
  %2321 = vmatprep.subr.mxu0 0.0
  %2322 = vmatpush1.msra.mxu0 %v428
  %2323 = vmatprep.subr.mxu0 0.0
  %2324 = vmatpush1.msra.mxu0 %v429
  %2325 = vmatprep.subr.mxu0 0.0
  %2326 = vmatpush1.msra.mxu0 %v430
  %2327 = vmatprep.subr.mxu0 0.0
  %2328 = vmatpush1.msra.mxu0 %v431
  %2329 = vmatprep.subr.mxu0 0.0
  %2330 = vmatpush1.msra.mxu0 %v432
  %2331 = vmatprep.subr.mxu0 0.0
  %2332 = vmatpush1.msra.mxu0 %v433
  %2333 = vmatprep.subr.mxu0 0.0
  %2334 = vmatpush1.msra.mxu0 0.0
  %2335 = vmatprep.subr.mxu0 0.0
  %2336 = vmatpush1.msra.mxu0 0.0
  %2337 = vmatprep.subr.mxu0 0.0
  %2338 = vmatpush1.msra.mxu0 0.0
  %2339 = vmatprep.subr.mxu0 0.0
  %2340 = vmatpush1.msra.mxu0 0.0
  %2341 = vmatprep.subr.mxu0 0.0
  %2342 = vmatpush1.msra.mxu0 0.0
  %2343 = vmatprep.subr.mxu0 0.0
  %2344 = vmatpush1.msra.mxu0 0.0
  %2345 = vmatprep.subr.mxu0 0.0
  %2346 = vmatpush1.msra.mxu0 0.0
  %2347 = vmatprep.subr.mxu0 0.0
  %2348 = vmatpush1.msra.mxu0 0.0
  %2349 = vmatprep.subr.mxu0 0.0
  %2350 = vmatpush1.msra.mxu0 0.0
  %2351 = vmatprep.subr.mxu0 0.0
  %2352 = vmatpush1.msra.mxu0 0.0
  %2353 = vmatprep.subr.mxu0 0.0
  %2354 = vmatpush1.msra.mxu0 0.0
  %2355 = vmatprep.subr.mxu0 0.0
  %2356 = vmatpush1.msra.mxu0 0.0
  %2357 = vmatprep.subr.mxu0 0.0
  %2358 = vmatpush1.msra.mxu0 0.0
  %2359 = vmatprep.subr.mxu0 0.0
  %2360 = vmatpush1.msra.mxu0 0.0
  %2361 = vmatprep.subr.mxu0 0.0
  %2362 = vmatpush1.msra.mxu0 0.0
  %2363 = vmatprep.subr.mxu0 0.0
  %2364 = vmatpush1.msra.mxu0 0.0
  %2365 = vmatprep.subr.mxu0 0.0
  %2366 = vmatpush1.msra.mxu0 0.0
  %2367 = vmatprep.subr.mxu0 0.0
  %2368 = vmatpush1.msra.mxu0 0.0
  %2369 = vmatprep.subr.mxu0 0.0
  %2370 = vmatpush1.msra.mxu0 0.0
  %2371 = vmatprep.subr.mxu0 0.0
  %2372 = vmatpush1.msra.mxu0 0.0
  %2373 = vmatprep.subr.mxu0 0.0
  %2374 = vmatpush1.msra.mxu0 0.0
  %2375 = vmatprep.subr.mxu0 0.0
  %2376 = vmatpush1.msra.mxu0 0.0
  %2377 = vmatprep.subr.mxu0 0.0
  %2378 = vmatpush1.msra.mxu0 0.0
  %2379 = vmatprep.subr.mxu0 0.0
  %2380 = vmatpush1.msra.mxu0 0.0
  %2381 = vmatprep.mubr.f32.mxu0 0.0
  %2382 = vmatmul.mubr.f32.gmra.mrb[0].mxu0 %v2315
  %v2383 = vpop.f32.mrb[0].mxu0
  %v2384 = vadd.f32 %v439, %v2383
  %v2385 = vpop.f32.mrb[0].mxu0
  %2386 = vdwg.mxu0
  %v2387 = vxor.u32 %v2384, 2147483648
  %v2388 = vmul.f32 %v2387, 1.442695
  %v2389 = vpow.pop %v2388
  %v2390 = vadd.f32 %v2389, 1.0
  %v2391 = vrcp.pop %v2390
  %v2392 = vmul.f32 1.0, %v2391
  %2394 = vrot.lane.b32.xlu0 %v2384, 32
  %v2395 = vpop.permute.xlu0 %2394
  %v2397 = vmul.f32 %v2392, %v2395
  %2399 = vrot.lane.b32.xlu0 %v2397, 64
  %v2400 = vpop.permute.xlu0 %2399
  %v2402 = vadd.f32 %v2384, %v2400
  %v2403 = vtanh.pop %v2402
  %v2404 = vsub.f32 1.0, %v2392
  %2406 = vrot.lane.b32.xlu0 %v2403, 96
  %v2407 = vpop.permute.xlu0 %2406
  %v2409 = vmul.f32 %v2404, %v2407
  %v2410 = vmul.f32 %v2392, %v1959
  %v2411 = vadd.f32 %v2409, %v2410
  %2412 = vset.pattern.permute.xlu0 4
  %2413 = vperm.xlu0 %2412, %v540
  %v2414 = vpop.permute.xlu0 %2413
  %v2416 = vmul.f32 %v2414, %v2311
  %2417 = vset.pattern.permute.xlu0 4
  %2418 = vperm.xlu0 %2417, %v547
  %v2419 = vpop.permute.xlu0 %2418
  %v2421 = vmul.f32 %v2419, %v1956
  %v2422 = vadd.f32 %v2416, %v2421
  %v2423 = vmul.f32 %v2414, %v2411
  %v2424 = vmul.f32 %v2419, %v1959
  %v2425 = vadd.f32 %v2423, %v2424
  %v2426 = vld [vmem:[%s1 + $0x5] sm:$0x1]
  %v2427 = vld [vmem:[%s1 + $0xd] sm:$0x1]
  %v2428 = vld [vmem:[%s1 + $0x15] sm:$0x1]
  %v2429 = vld [vmem:[%s1 + $0x1d] sm:$0x1]
  %v2430 = vld [vmem:[%s1 + $0x25] sm:$0x1]
  %v2431 = vld [vmem:[%s1 + $0x2d] sm:$0x1]
  %v2432 = vld [vmem:[%s1 + $0x35] sm:$0x1]
  %v2433 = vld [vmem:[%s1 + $0x3d] sm:$0x1]
  %v2435 = vsel %vm68, %v2422, 0
  %2437 = vmatprep.subr.mxu0 0.0
  %2438 = vmatpush1.msra.mxu0 %v58
  %2439 = vmatprep.subr.mxu0 0.0
  %2440 = vmatpush1.msra.mxu0 %v59
  %2441 = vmatprep.subr.mxu0 0.0
  %2442 = vmatpush1.msra.mxu0 %v60
  %2443 = vmatprep.subr.mxu0 0.0
  %2444 = vmatpush1.msra.mxu0 %v61
  %2445 = vmatprep.subr.mxu0 0.0
  %2446 = vmatpush1.msra.mxu0 0.0
  %2447 = vmatprep.subr.mxu0 0.0
  %2448 = vmatpush1.msra.mxu0 0.0
  %2449 = vmatprep.subr.mxu0 0.0
  %2450 = vmatpush1.msra.mxu0 0.0
  %2451 = vmatprep.subr.mxu0 0.0
  %2452 = vmatpush1.msra.mxu0 0.0
  %2453 = vmatprep.subr.mxu0 0.0
  %2454 = vmatpush1.msra.mxu0 0.0
  %2455 = vmatprep.subr.mxu0 0.0
  %2456 = vmatpush1.msra.mxu0 0.0
  %2457 = vmatprep.subr.mxu0 0.0
  %2458 = vmatpush1.msra.mxu0 0.0
  %2459 = vmatprep.subr.mxu0 0.0
  %2460 = vmatpush1.msra.mxu0 0.0
  %2461 = vmatprep.subr.mxu0 0.0
  %2462 = vmatpush1.msra.mxu0 0.0
  %2463 = vmatprep.subr.mxu0 0.0
  %2464 = vmatpush1.msra.mxu0 0.0
  %2465 = vmatprep.subr.mxu0 0.0
  %2466 = vmatpush1.msra.mxu0 0.0
  %2467 = vmatprep.subr.mxu0 0.0
  %2468 = vmatpush1.msra.mxu0 0.0
  %2469 = vmatprep.subr.mxu0 0.0
  %2470 = vmatpush1.msra.mxu0 0.0
  %2471 = vmatprep.subr.mxu0 0.0
  %2472 = vmatpush1.msra.mxu0 0.0
  %2473 = vmatprep.subr.mxu0 0.0
  %2474 = vmatpush1.msra.mxu0 0.0
  %2475 = vmatprep.subr.mxu0 0.0
  %2476 = vmatpush1.msra.mxu0 0.0
  %2477 = vmatprep.subr.mxu0 0.0
  %2478 = vmatpush1.msra.mxu0 0.0
  %2479 = vmatprep.subr.mxu0 0.0
  %2480 = vmatpush1.msra.mxu0 0.0
  %2481 = vmatprep.subr.mxu0 0.0
  %2482 = vmatpush1.msra.mxu0 0.0
  %2483 = vmatprep.subr.mxu0 0.0
  %2484 = vmatpush1.msra.mxu0 0.0
  %2485 = vmatprep.subr.mxu0 0.0
  %2486 = vmatpush1.msra.mxu0 0.0
  %2487 = vmatprep.subr.mxu0 0.0
  %2488 = vmatpush1.msra.mxu0 0.0
  %2489 = vmatprep.subr.mxu0 0.0
  %2490 = vmatpush1.msra.mxu0 0.0
  %2491 = vmatprep.subr.mxu0 0.0
  %2492 = vmatpush1.msra.mxu0 0.0
  %2493 = vmatprep.subr.mxu0 0.0
  %2494 = vmatpush1.msra.mxu0 0.0
  %2495 = vmatprep.subr.mxu0 0.0
  %2496 = vmatpush1.msra.mxu0 0.0
  %2497 = vmatprep.subr.mxu0 0.0
  %2498 = vmatpush1.msra.mxu0 0.0
  %2499 = vmatprep.subr.mxu0 0.0
  %2500 = vmatpush1.msra.mxu0 0.0
  %2501 = vmatprep.mubr.f32.mxu0 0.0
  %2502 = vmatmul.mubr.f32.gmra.mrb[0].mxu0 %v2435
  %v2503 = vpop.f32.mrb[0].mxu0
  %v2504 = vadd.f32 %v66, %v2503
  %v2505 = vpop.f32.mrb[0].mxu0
  %2506 = vdwg.mxu0
  %v2508 = vrot.slane %v2504, 1
  %v2509 = vrot.slane %v2504, 2
  %v2510 = vrot.slane %v2504, 3
  %v2511 = vrot.slane %v2504, 4
  %v2512 = vrot.slane %v2504, 5
  %v2513 = vrot.slane %v2504, 6
  %v2514 = vrot.slane %v2504, 7
  %v2523 = vadd.f32 %v2426, %v2504
  %v2524 = vadd.f32 %v2427, %v2508
  %v2525 = vadd.f32 %v2428, %v2509
  %v2526 = vadd.f32 %v2429, %v2510
  %v2527 = vadd.f32 %v2430, %v2511
  %v2528 = vadd.f32 %v2431, %v2512
  %v2529 = vadd.f32 %v2432, %v2513
  %v2530 = vadd.f32 %v2433, %v2514
  %v2531 = vxor.u32 %v2523, 2147483648
  %v2532 = vxor.u32 %v2524, 2147483648
  %v2533 = vxor.u32 %v2525, 2147483648
  %v2534 = vxor.u32 %v2526, 2147483648
  %v2535 = vxor.u32 %v2527, 2147483648
  %v2536 = vxor.u32 %v2528, 2147483648
  %v2537 = vxor.u32 %v2529, 2147483648
  %v2538 = vxor.u32 %v2530, 2147483648
  %v2539 = vmul.f32 %v2531, 1.442695
  %v2540 = vpow.pop %v2539
  %v2541 = vmul.f32 %v2532, 1.442695
  %v2542 = vpow.pop %v2541
  %v2543 = vmul.f32 %v2533, 1.442695
  %v2544 = vpow.pop %v2543
  %v2545 = vmul.f32 %v2534, 1.442695
  %v2546 = vpow.pop %v2545
  %v2547 = vmul.f32 %v2535, 1.442695
  %v2548 = vpow.pop %v2547
  %v2549 = vmul.f32 %v2536, 1.442695
  %v2550 = vpow.pop %v2549
  %v2551 = vmul.f32 %v2537, 1.442695
  %v2552 = vpow.pop %v2551
  %v2553 = vmul.f32 %v2538, 1.442695
  %v2554 = vpow.pop %v2553
  %v2555 = vadd.f32 %v2540, 1.0
  %v2556 = vadd.f32 %v2542, 1.0
  %v2557 = vadd.f32 %v2544, 1.0
  %v2558 = vadd.f32 %v2546, 1.0
  %v2559 = vadd.f32 %v2548, 1.0
  %v2560 = vadd.f32 %v2550, 1.0
  %v2561 = vadd.f32 %v2552, 1.0
  %v2562 = vadd.f32 %v2554, 1.0
  %v2563 = vrcp.pop %v2555
  %v2564 = vmul.f32 1.0, %v2563
  %v2565 = vrcp.pop %v2556
  %v2566 = vmul.f32 1.0, %v2565
  %v2567 = vrcp.pop %v2557
  %v2568 = vmul.f32 1.0, %v2567
  %v2569 = vrcp.pop %v2558
  %v2570 = vmul.f32 1.0, %v2569
  %v2571 = vrcp.pop %v2559
  %v2572 = vmul.f32 1.0, %v2571
  %v2573 = vrcp.pop %v2560
  %v2574 = vmul.f32 1.0, %v2573
  %v2575 = vrcp.pop %v2561
  %v2576 = vmul.f32 1.0, %v2575
  %v2577 = vrcp.pop %v2562
  %v2578 = vmul.f32 1.0, %v2577
  %2579 = vrot.lane.b32.xlu0 %v2504, 64
  %v2580 = vpop.permute.xlu0 %2579
  %2581 = vrot.lane.b32.xlu0 %v2508, 64
  %v2582 = vpop.permute.xlu0 %2581
  %2583 = vrot.lane.b32.xlu0 %v2509, 64
  %v2584 = vpop.permute.xlu0 %2583
  %2585 = vrot.lane.b32.xlu0 %v2510, 64
  %v2586 = vpop.permute.xlu0 %2585
  %2587 = vrot.lane.b32.xlu0 %v2511, 64
  %v2588 = vpop.permute.xlu0 %2587
  %2589 = vrot.lane.b32.xlu0 %v2512, 64
  %v2590 = vpop.permute.xlu0 %2589
  %2591 = vrot.lane.b32.xlu0 %v2513, 64
  %v2592 = vpop.permute.xlu0 %2591
  %2593 = vrot.lane.b32.xlu0 %v2514, 64
  %v2594 = vpop.permute.xlu0 %2593
  %v2603 = vmul.f32 %v2564, %v2580
  %v2604 = vmul.f32 %v2566, %v2582
  %v2605 = vmul.f32 %v2568, %v2584
  %v2606 = vmul.f32 %v2570, %v2586
  %v2607 = vmul.f32 %v2572, %v2588
  %v2608 = vmul.f32 %v2574, %v2590
  %v2609 = vmul.f32 %v2576, %v2592
  %v2610 = vmul.f32 %v2578, %v2594
  %2619 = vrot.lane.b32.xlu0 %v2603, 64
  %v2620 = vpop.permute.xlu0 %2619
  %2621 = vrot.lane.b32.xlu0 %v2604, 64
  %v2622 = vpop.permute.xlu0 %2621
  %2623 = vrot.lane.b32.xlu0 %v2605, 64
  %v2624 = vpop.permute.xlu0 %2623
  %2625 = vrot.lane.b32.xlu0 %v2606, 64
  %v2626 = vpop.permute.xlu0 %2625
  %2627 = vrot.lane.b32.xlu0 %v2607, 64
  %v2628 = vpop.permute.xlu0 %2627
  %2629 = vrot.lane.b32.xlu0 %v2608, 64
  %v2630 = vpop.permute.xlu0 %2629
  %2631 = vrot.lane.b32.xlu0 %v2609, 64
  %v2632 = vpop.permute.xlu0 %2631
  %2633 = vrot.lane.b32.xlu0 %v2610, 64
  %v2634 = vpop.permute.xlu0 %2633
  %v2643 = vadd.f32 %v2426, %v2620
  %v2644 = vadd.f32 %v2427, %v2622
  %v2645 = vadd.f32 %v2428, %v2624
  %v2646 = vadd.f32 %v2429, %v2626
  %v2647 = vadd.f32 %v2430, %v2628
  %v2648 = vadd.f32 %v2431, %v2630
  %v2649 = vadd.f32 %v2432, %v2632
  %v2650 = vadd.f32 %v2433, %v2634
  %v2651 = vtanh.pop %v2643
  %v2652 = vtanh.pop %v2644
  %v2653 = vtanh.pop %v2645
  %v2654 = vtanh.pop %v2646
  %v2655 = vtanh.pop %v2647
  %v2656 = vtanh.pop %v2648
  %v2657 = vtanh.pop %v2649
  %v2658 = vtanh.pop %v2650
  %v2659 = vsub.f32 1.0, %v2564
  %v2660 = vsub.f32 1.0, %v2566
  %v2661 = vsub.f32 1.0, %v2568
  %v2662 = vsub.f32 1.0, %v2570
  %v2663 = vsub.f32 1.0, %v2572
  %v2664 = vsub.f32 1.0, %v2574
  %v2665 = vsub.f32 1.0, %v2576
  %v2666 = vsub.f32 1.0, %v2578
  %2675 = vrot.lane.b32.xlu0 %v2651, 96
  %v2676 = vpop.permute.xlu0 %2675
  %2677 = vrot.lane.b32.xlu0 %v2652, 96
  %v2678 = vpop.permute.xlu0 %2677
  %2679 = vrot.lane.b32.xlu0 %v2653, 96
  %v2680 = vpop.permute.xlu0 %2679
  %2681 = vrot.lane.b32.xlu0 %v2654, 96
  %v2682 = vpop.permute.xlu0 %2681
  %2683 = vrot.lane.b32.xlu0 %v2655, 96
  %v2684 = vpop.permute.xlu0 %2683
  %2685 = vrot.lane.b32.xlu0 %v2656, 96
  %v2686 = vpop.permute.xlu0 %2685
  %2687 = vrot.lane.b32.xlu0 %v2657, 96
  %v2688 = vpop.permute.xlu0 %2687
  %2689 = vrot.lane.b32.xlu0 %v2658, 96
  %v2690 = vpop.permute.xlu0 %2689
  %v2699 = vmul.f32 %v2659, %v2676
  %v2700 = vmul.f32 %v2660, %v2678
  %v2701 = vmul.f32 %v2661, %v2680
  %v2702 = vmul.f32 %v2662, %v2682
  %v2703 = vmul.f32 %v2663, %v2684
  %v2704 = vmul.f32 %v2664, %v2686
  %v2705 = vmul.f32 %v2665, %v2688
  %v2706 = vmul.f32 %v2666, %v2690
  %v2707 = vrot.slane %v2422, 1
  %v2708 = vrot.slane %v2422, 2
  %v2709 = vrot.slane %v2422, 3
  %v2710 = vrot.slane %v2422, 4
  %v2711 = vrot.slane %v2422, 5
  %v2712 = vrot.slane %v2422, 6
  %v2713 = vrot.slane %v2422, 7
  %2714 = vrot.lane.b32.xlu0 %v2422, 32
  %v2715 = vpop.permute.xlu0 %2714
  %2716 = vrot.lane.b32.xlu0 %v2707, 32
  %v2717 = vpop.permute.xlu0 %2716
  %2718 = vrot.lane.b32.xlu0 %v2708, 32
  %v2719 = vpop.permute.xlu0 %2718
  %2720 = vrot.lane.b32.xlu0 %v2709, 32
  %v2721 = vpop.permute.xlu0 %2720
  %2722 = vrot.lane.b32.xlu0 %v2710, 32
  %v2723 = vpop.permute.xlu0 %2722
  %2724 = vrot.lane.b32.xlu0 %v2711, 32
  %v2725 = vpop.permute.xlu0 %2724
  %2726 = vrot.lane.b32.xlu0 %v2712, 32
  %v2727 = vpop.permute.xlu0 %2726
  %2728 = vrot.lane.b32.xlu0 %v2713, 32
  %v2729 = vpop.permute.xlu0 %2728
  %v2738 = vmul.f32 %v2564, %v2715
  %v2739 = vmul.f32 %v2566, %v2717
  %v2740 = vmul.f32 %v2568, %v2719
  %v2741 = vmul.f32 %v2570, %v2721
  %v2742 = vmul.f32 %v2572, %v2723
  %v2743 = vmul.f32 %v2574, %v2725
  %v2744 = vmul.f32 %v2576, %v2727
  %v2745 = vmul.f32 %v2578, %v2729
  %v2746 = vadd.f32 %v2699, %v2738
  %v2747 = vadd.f32 %v2700, %v2739
  %v2748 = vadd.f32 %v2701, %v2740
  %v2749 = vadd.f32 %v2702, %v2741
  %v2750 = vadd.f32 %v2703, %v2742
  %v2751 = vadd.f32 %v2704, %v2743
  %v2752 = vadd.f32 %v2705, %v2744
  %v2753 = vadd.f32 %v2706, %v2745
  %v2762 = vrot.slane %v2747, 7
  %v2763 = vsel %vm398, %v2762, %v2746
  %v2764 = vrot.slane %v2748, 6
  %v2765 = vsel %vm401, %v2764, %v2763
  %v2766 = vrot.slane %v2749, 5
  %v2767 = vsel %vm404, %v2766, %v2765
  %v2768 = vrot.slane %v2750, 4
  %v2769 = vsel %vm407, %v2768, %v2767
  %v2770 = vrot.slane %v2751, 3
  %v2771 = vsel %vm410, %v2770, %v2769
  %v2772 = vrot.slane %v2752, 2
  %v2773 = vsel %vm413, %v2772, %v2771
  %v2774 = vrot.slane %v2753, 1
  %v2775 = vsel %vm416, %v2774, %v2773
  %2776 = vrot.lane.b32.xlu0 %v2775, 96
  %v2777 = vpop.permute.xlu0 %2776
  %v2779 = vsel %vm68, %v2777, %v2425
  %v2781 = vsel %vm441, %v2779, 0
  %2783 = vmatprep.subr.mxu0 0.0
  %2784 = vmatpush1.msra.mxu0 %v426
  %2785 = vmatprep.subr.mxu0 0.0
  %2786 = vmatpush1.msra.mxu0 %v427
  %2787 = vmatprep.subr.mxu0 0.0
  %2788 = vmatpush1.msra.mxu0 %v428
  %2789 = vmatprep.subr.mxu0 0.0
  %2790 = vmatpush1.msra.mxu0 %v429
  %2791 = vmatprep.subr.mxu0 0.0
  %2792 = vmatpush1.msra.mxu0 %v430
  %2793 = vmatprep.subr.mxu0 0.0
  %2794 = vmatpush1.msra.mxu0 %v431
  %2795 = vmatprep.subr.mxu0 0.0
  %2796 = vmatpush1.msra.mxu0 %v432
  %2797 = vmatprep.subr.mxu0 0.0
  %2798 = vmatpush1.msra.mxu0 %v433
  %2799 = vmatprep.subr.mxu0 0.0
  %2800 = vmatpush1.msra.mxu0 0.0
  %2801 = vmatprep.subr.mxu0 0.0
  %2802 = vmatpush1.msra.mxu0 0.0
  %2803 = vmatprep.subr.mxu0 0.0
  %2804 = vmatpush1.msra.mxu0 0.0
  %2805 = vmatprep.subr.mxu0 0.0
  %2806 = vmatpush1.msra.mxu0 0.0
  %2807 = vmatprep.subr.mxu0 0.0
  %2808 = vmatpush1.msra.mxu0 0.0
  %2809 = vmatprep.subr.mxu0 0.0
  %2810 = vmatpush1.msra.mxu0 0.0
  %2811 = vmatprep.subr.mxu0 0.0
  %2812 = vmatpush1.msra.mxu0 0.0
  %2813 = vmatprep.subr.mxu0 0.0
  %2814 = vmatpush1.msra.mxu0 0.0
  %2815 = vmatprep.subr.mxu0 0.0
  %2816 = vmatpush1.msra.mxu0 0.0
  %2817 = vmatprep.subr.mxu0 0.0
  %2818 = vmatpush1.msra.mxu0 0.0
  %2819 = vmatprep.subr.mxu0 0.0
  %2820 = vmatpush1.msra.mxu0 0.0
  %2821 = vmatprep.subr.mxu0 0.0
  %2822 = vmatpush1.msra.mxu0 0.0
  %2823 = vmatprep.subr.mxu0 0.0
  %2824 = vmatpush1.msra.mxu0 0.0
  %2825 = vmatprep.subr.mxu0 0.0
  %2826 = vmatpush1.msra.mxu0 0.0
  %2827 = vmatprep.subr.mxu0 0.0
  %2828 = vmatpush1.msra.mxu0 0.0
  %2829 = vmatprep.subr.mxu0 0.0
  %2830 = vmatpush1.msra.mxu0 0.0
  %2831 = vmatprep.subr.mxu0 0.0
  %2832 = vmatpush1.msra.mxu0 0.0
  %2833 = vmatprep.subr.mxu0 0.0
  %2834 = vmatpush1.msra.mxu0 0.0
  %2835 = vmatprep.subr.mxu0 0.0
  %2836 = vmatpush1.msra.mxu0 0.0
  %2837 = vmatprep.subr.mxu0 0.0
  %2838 = vmatpush1.msra.mxu0 0.0
  %2839 = vmatprep.subr.mxu0 0.0
  %2840 = vmatpush1.msra.mxu0 0.0
  %2841 = vmatprep.subr.mxu0 0.0
  %2842 = vmatpush1.msra.mxu0 0.0
  %2843 = vmatprep.subr.mxu0 0.0
  %2844 = vmatpush1.msra.mxu0 0.0
  %2845 = vmatprep.subr.mxu0 0.0
  %2846 = vmatpush1.msra.mxu0 0.0
  %2847 = vmatprep.mubr.f32.mxu0 0.0
  %2848 = vmatmul.mubr.f32.gmra.mrb[0].mxu0 %v2781
  %v2849 = vpop.f32.mrb[0].mxu0
  %v2850 = vadd.f32 %v439, %v2849
  %v2851 = vpop.f32.mrb[0].mxu0
  %2852 = vdwg.mxu0
  %v2853 = vxor.u32 %v2850, 2147483648
  %v2854 = vmul.f32 %v2853, 1.442695
  %v2855 = vpow.pop %v2854
  %v2856 = vadd.f32 %v2855, 1.0
  %v2857 = vrcp.pop %v2856
  %v2858 = vmul.f32 1.0, %v2857
  %2860 = vrot.lane.b32.xlu0 %v2850, 32
  %v2861 = vpop.permute.xlu0 %2860
  %v2863 = vmul.f32 %v2858, %v2861
  %2865 = vrot.lane.b32.xlu0 %v2863, 64
  %v2866 = vpop.permute.xlu0 %2865
  %v2868 = vadd.f32 %v2850, %v2866
  %v2869 = vtanh.pop %v2868
  %v2870 = vsub.f32 1.0, %v2858
  %2872 = vrot.lane.b32.xlu0 %v2869, 96
  %v2873 = vpop.permute.xlu0 %2872
  %v2875 = vmul.f32 %v2870, %v2873
  %v2876 = vmul.f32 %v2858, %v2425
  %v2877 = vadd.f32 %v2875, %v2876
  %2878 = vset.pattern.permute.xlu0 5
  %2879 = vperm.xlu0 %2878, %v540
  %v2880 = vpop.permute.xlu0 %2879
  %v2882 = vmul.f32 %v2880, %v2777
  %2883 = vset.pattern.permute.xlu0 5
  %2884 = vperm.xlu0 %2883, %v547
  %v2885 = vpop.permute.xlu0 %2884
  %v2887 = vmul.f32 %v2885, %v2422
  %v2888 = vadd.f32 %v2882, %v2887
  %v2889 = vmul.f32 %v2880, %v2877
  %v2890 = vmul.f32 %v2885, %v2425
  %v2891 = vadd.f32 %v2889, %v2890
  %v2892 = vld [vmem:[%s1 + $0x6] sm:$0x1]
  %v2893 = vld [vmem:[%s1 + $0xe] sm:$0x1]
  %v2894 = vld [vmem:[%s1 + $0x16] sm:$0x1]
  %v2895 = vld [vmem:[%s1 + $0x1e] sm:$0x1]
  %v2896 = vld [vmem:[%s1 + $0x26] sm:$0x1]
  %v2897 = vld [vmem:[%s1 + $0x2e] sm:$0x1]
  %v2898 = vld [vmem:[%s1 + $0x36] sm:$0x1]
  %v2899 = vld [vmem:[%s1 + $0x3e] sm:$0x1]
  %v2901 = vsel %vm68, %v2888, 0
  %2903 = vmatprep.subr.mxu0 0.0
  %2904 = vmatpush1.msra.mxu0 %v58
  %2905 = vmatprep.subr.mxu0 0.0
  %2906 = vmatpush1.msra.mxu0 %v59
  %2907 = vmatprep.subr.mxu0 0.0
  %2908 = vmatpush1.msra.mxu0 %v60
  %2909 = vmatprep.subr.mxu0 0.0
  %2910 = vmatpush1.msra.mxu0 %v61
  %2911 = vmatprep.subr.mxu0 0.0
  %2912 = vmatpush1.msra.mxu0 0.0
  %2913 = vmatprep.subr.mxu0 0.0
  %2914 = vmatpush1.msra.mxu0 0.0
  %2915 = vmatprep.subr.mxu0 0.0
  %2916 = vmatpush1.msra.mxu0 0.0
  %2917 = vmatprep.subr.mxu0 0.0
  %2918 = vmatpush1.msra.mxu0 0.0
  %2919 = vmatprep.subr.mxu0 0.0
  %2920 = vmatpush1.msra.mxu0 0.0
  %2921 = vmatprep.subr.mxu0 0.0
  %2922 = vmatpush1.msra.mxu0 0.0
  %2923 = vmatprep.subr.mxu0 0.0
  %2924 = vmatpush1.msra.mxu0 0.0
  %2925 = vmatprep.subr.mxu0 0.0
  %2926 = vmatpush1.msra.mxu0 0.0
  %2927 = vmatprep.subr.mxu0 0.0
  %2928 = vmatpush1.msra.mxu0 0.0
  %2929 = vmatprep.subr.mxu0 0.0
  %2930 = vmatpush1.msra.mxu0 0.0
  %2931 = vmatprep.subr.mxu0 0.0
  %2932 = vmatpush1.msra.mxu0 0.0
  %2933 = vmatprep.subr.mxu0 0.0
  %2934 = vmatpush1.msra.mxu0 0.0
  %2935 = vmatprep.subr.mxu0 0.0
  %2936 = vmatpush1.msra.mxu0 0.0
  %2937 = vmatprep.subr.mxu0 0.0
  %2938 = vmatpush1.msra.mxu0 0.0
  %2939 = vmatprep.subr.mxu0 0.0
  %2940 = vmatpush1.msra.mxu0 0.0
  %2941 = vmatprep.subr.mxu0 0.0
  %2942 = vmatpush1.msra.mxu0 0.0
  %2943 = vmatprep.subr.mxu0 0.0
  %2944 = vmatpush1.msra.mxu0 0.0
  %2945 = vmatprep.subr.mxu0 0.0
  %2946 = vmatpush1.msra.mxu0 0.0
  %2947 = vmatprep.subr.mxu0 0.0
  %2948 = vmatpush1.msra.mxu0 0.0
  %2949 = vmatprep.subr.mxu0 0.0
  %2950 = vmatpush1.msra.mxu0 0.0
  %2951 = vmatprep.subr.mxu0 0.0
  %2952 = vmatpush1.msra.mxu0 0.0
  %2953 = vmatprep.subr.mxu0 0.0
  %2954 = vmatpush1.msra.mxu0 0.0
  %2955 = vmatprep.subr.mxu0 0.0
  %2956 = vmatpush1.msra.mxu0 0.0
  %2957 = vmatprep.subr.mxu0 0.0
  %2958 = vmatpush1.msra.mxu0 0.0
  %2959 = vmatprep.subr.mxu0 0.0
  %2960 = vmatpush1.msra.mxu0 0.0
  %2961 = vmatprep.subr.mxu0 0.0
  %2962 = vmatpush1.msra.mxu0 0.0
  %2963 = vmatprep.subr.mxu0 0.0
  %2964 = vmatpush1.msra.mxu0 0.0
  %2965 = vmatprep.subr.mxu0 0.0
  %2966 = vmatpush1.msra.mxu0 0.0
  %2967 = vmatprep.mubr.f32.mxu0 0.0
  %2968 = vmatmul.mubr.f32.gmra.mrb[0].mxu0 %v2901
  %v2969 = vpop.f32.mrb[0].mxu0
  %v2970 = vadd.f32 %v66, %v2969
  %v2971 = vpop.f32.mrb[0].mxu0
  %2972 = vdwg.mxu0
  %v2974 = vrot.slane %v2970, 1
  %v2975 = vrot.slane %v2970, 2
  %v2976 = vrot.slane %v2970, 3
  %v2977 = vrot.slane %v2970, 4
  %v2978 = vrot.slane %v2970, 5
  %v2979 = vrot.slane %v2970, 6
  %v2980 = vrot.slane %v2970, 7
  %v2989 = vadd.f32 %v2892, %v2970
  %v2990 = vadd.f32 %v2893, %v2974
  %v2991 = vadd.f32 %v2894, %v2975
  %v2992 = vadd.f32 %v2895, %v2976
  %v2993 = vadd.f32 %v2896, %v2977
  %v2994 = vadd.f32 %v2897, %v2978
  %v2995 = vadd.f32 %v2898, %v2979
  %v2996 = vadd.f32 %v2899, %v2980
  %v2997 = vxor.u32 %v2989, 2147483648
  %v2998 = vxor.u32 %v2990, 2147483648
  %v2999 = vxor.u32 %v2991, 2147483648
  %v3000 = vxor.u32 %v2992, 2147483648
  %v3001 = vxor.u32 %v2993, 2147483648
  %v3002 = vxor.u32 %v2994, 2147483648
  %v3003 = vxor.u32 %v2995, 2147483648
  %v3004 = vxor.u32 %v2996, 2147483648
  %v3005 = vmul.f32 %v2997, 1.442695
  %v3006 = vpow.pop %v3005
  %v3007 = vmul.f32 %v2998, 1.442695
  %v3008 = vpow.pop %v3007
  %v3009 = vmul.f32 %v2999, 1.442695
  %v3010 = vpow.pop %v3009
  %v3011 = vmul.f32 %v3000, 1.442695
  %v3012 = vpow.pop %v3011
  %v3013 = vmul.f32 %v3001, 1.442695
  %v3014 = vpow.pop %v3013
  %v3015 = vmul.f32 %v3002, 1.442695
  %v3016 = vpow.pop %v3015
  %v3017 = vmul.f32 %v3003, 1.442695
  %v3018 = vpow.pop %v3017
  %v3019 = vmul.f32 %v3004, 1.442695
  %v3020 = vpow.pop %v3019
  %v3021 = vadd.f32 %v3006, 1.0
  %v3022 = vadd.f32 %v3008, 1.0
  %v3023 = vadd.f32 %v3010, 1.0
  %v3024 = vadd.f32 %v3012, 1.0
  %v3025 = vadd.f32 %v3014, 1.0
  %v3026 = vadd.f32 %v3016, 1.0
  %v3027 = vadd.f32 %v3018, 1.0
  %v3028 = vadd.f32 %v3020, 1.0
  %v3029 = vrcp.pop %v3021
  %v3030 = vmul.f32 1.0, %v3029
  %v3031 = vrcp.pop %v3022
  %v3032 = vmul.f32 1.0, %v3031
  %v3033 = vrcp.pop %v3023
  %v3034 = vmul.f32 1.0, %v3033
  %v3035 = vrcp.pop %v3024
  %v3036 = vmul.f32 1.0, %v3035
  %v3037 = vrcp.pop %v3025
  %v3038 = vmul.f32 1.0, %v3037
  %v3039 = vrcp.pop %v3026
  %v3040 = vmul.f32 1.0, %v3039
  %v3041 = vrcp.pop %v3027
  %v3042 = vmul.f32 1.0, %v3041
  %v3043 = vrcp.pop %v3028
  %v3044 = vmul.f32 1.0, %v3043
  %3045 = vrot.lane.b32.xlu0 %v2970, 64
  %v3046 = vpop.permute.xlu0 %3045
  %3047 = vrot.lane.b32.xlu0 %v2974, 64
  %v3048 = vpop.permute.xlu0 %3047
  %3049 = vrot.lane.b32.xlu0 %v2975, 64
  %v3050 = vpop.permute.xlu0 %3049
  %3051 = vrot.lane.b32.xlu0 %v2976, 64
  %v3052 = vpop.permute.xlu0 %3051
  %3053 = vrot.lane.b32.xlu0 %v2977, 64
  %v3054 = vpop.permute.xlu0 %3053
  %3055 = vrot.lane.b32.xlu0 %v2978, 64
  %v3056 = vpop.permute.xlu0 %3055
  %3057 = vrot.lane.b32.xlu0 %v2979, 64
  %v3058 = vpop.permute.xlu0 %3057
  %3059 = vrot.lane.b32.xlu0 %v2980, 64
  %v3060 = vpop.permute.xlu0 %3059
  %v3069 = vmul.f32 %v3030, %v3046
  %v3070 = vmul.f32 %v3032, %v3048
  %v3071 = vmul.f32 %v3034, %v3050
  %v3072 = vmul.f32 %v3036, %v3052
  %v3073 = vmul.f32 %v3038, %v3054
  %v3074 = vmul.f32 %v3040, %v3056
  %v3075 = vmul.f32 %v3042, %v3058
  %v3076 = vmul.f32 %v3044, %v3060
  %3085 = vrot.lane.b32.xlu0 %v3069, 64
  %v3086 = vpop.permute.xlu0 %3085
  %3087 = vrot.lane.b32.xlu0 %v3070, 64
  %v3088 = vpop.permute.xlu0 %3087
  %3089 = vrot.lane.b32.xlu0 %v3071, 64
  %v3090 = vpop.permute.xlu0 %3089
  %3091 = vrot.lane.b32.xlu0 %v3072, 64
  %v3092 = vpop.permute.xlu0 %3091
  %3093 = vrot.lane.b32.xlu0 %v3073, 64
  %v3094 = vpop.permute.xlu0 %3093
  %3095 = vrot.lane.b32.xlu0 %v3074, 64
  %v3096 = vpop.permute.xlu0 %3095
  %3097 = vrot.lane.b32.xlu0 %v3075, 64
  %v3098 = vpop.permute.xlu0 %3097
  %3099 = vrot.lane.b32.xlu0 %v3076, 64
  %v3100 = vpop.permute.xlu0 %3099
  %v3109 = vadd.f32 %v2892, %v3086
  %v3110 = vadd.f32 %v2893, %v3088
  %v3111 = vadd.f32 %v2894, %v3090
  %v3112 = vadd.f32 %v2895, %v3092
  %v3113 = vadd.f32 %v2896, %v3094
  %v3114 = vadd.f32 %v2897, %v3096
  %v3115 = vadd.f32 %v2898, %v3098
  %v3116 = vadd.f32 %v2899, %v3100
  %v3117 = vtanh.pop %v3109
  %v3118 = vtanh.pop %v3110
  %v3119 = vtanh.pop %v3111
  %v3120 = vtanh.pop %v3112
  %v3121 = vtanh.pop %v3113
  %v3122 = vtanh.pop %v3114
  %v3123 = vtanh.pop %v3115
  %v3124 = vtanh.pop %v3116
  %v3125 = vsub.f32 1.0, %v3030
  %v3126 = vsub.f32 1.0, %v3032
  %v3127 = vsub.f32 1.0, %v3034
  %v3128 = vsub.f32 1.0, %v3036
  %v3129 = vsub.f32 1.0, %v3038
  %v3130 = vsub.f32 1.0, %v3040
  %v3131 = vsub.f32 1.0, %v3042
  %v3132 = vsub.f32 1.0, %v3044
  %3141 = vrot.lane.b32.xlu0 %v3117, 96
  %v3142 = vpop.permute.xlu0 %3141
  %3143 = vrot.lane.b32.xlu0 %v3118, 96
  %v3144 = vpop.permute.xlu0 %3143
  %3145 = vrot.lane.b32.xlu0 %v3119, 96
  %v3146 = vpop.permute.xlu0 %3145
  %3147 = vrot.lane.b32.xlu0 %v3120, 96
  %v3148 = vpop.permute.xlu0 %3147
  %3149 = vrot.lane.b32.xlu0 %v3121, 96
  %v3150 = vpop.permute.xlu0 %3149
  %3151 = vrot.lane.b32.xlu0 %v3122, 96
  %v3152 = vpop.permute.xlu0 %3151
  %3153 = vrot.lane.b32.xlu0 %v3123, 96
  %v3154 = vpop.permute.xlu0 %3153
  %3155 = vrot.lane.b32.xlu0 %v3124, 96
  %v3156 = vpop.permute.xlu0 %3155
  %v3165 = vmul.f32 %v3125, %v3142
  %v3166 = vmul.f32 %v3126, %v3144
  %v3167 = vmul.f32 %v3127, %v3146
  %v3168 = vmul.f32 %v3128, %v3148
  %v3169 = vmul.f32 %v3129, %v3150
  %v3170 = vmul.f32 %v3130, %v3152
  %v3171 = vmul.f32 %v3131, %v3154
  %v3172 = vmul.f32 %v3132, %v3156
  %v3173 = vrot.slane %v2888, 1
  %v3174 = vrot.slane %v2888, 2
  %v3175 = vrot.slane %v2888, 3
  %v3176 = vrot.slane %v2888, 4
  %v3177 = vrot.slane %v2888, 5
  %v3178 = vrot.slane %v2888, 6
  %v3179 = vrot.slane %v2888, 7
  %3180 = vrot.lane.b32.xlu0 %v2888, 32
  %v3181 = vpop.permute.xlu0 %3180
  %3182 = vrot.lane.b32.xlu0 %v3173, 32
  %v3183 = vpop.permute.xlu0 %3182
  %3184 = vrot.lane.b32.xlu0 %v3174, 32
  %v3185 = vpop.permute.xlu0 %3184
  %3186 = vrot.lane.b32.xlu0 %v3175, 32
  %v3187 = vpop.permute.xlu0 %3186
  %3188 = vrot.lane.b32.xlu0 %v3176, 32
  %v3189 = vpop.permute.xlu0 %3188
  %3190 = vrot.lane.b32.xlu0 %v3177, 32
  %v3191 = vpop.permute.xlu0 %3190
  %3192 = vrot.lane.b32.xlu0 %v3178, 32
  %v3193 = vpop.permute.xlu0 %3192
  %3194 = vrot.lane.b32.xlu0 %v3179, 32
  %v3195 = vpop.permute.xlu0 %3194
  %v3204 = vmul.f32 %v3030, %v3181
  %v3205 = vmul.f32 %v3032, %v3183
  %v3206 = vmul.f32 %v3034, %v3185
  %v3207 = vmul.f32 %v3036, %v3187
  %v3208 = vmul.f32 %v3038, %v3189
  %v3209 = vmul.f32 %v3040, %v3191
  %v3210 = vmul.f32 %v3042, %v3193
  %v3211 = vmul.f32 %v3044, %v3195
  %v3212 = vadd.f32 %v3165, %v3204
  %v3213 = vadd.f32 %v3166, %v3205
  %v3214 = vadd.f32 %v3167, %v3206
  %v3215 = vadd.f32 %v3168, %v3207
  %v3216 = vadd.f32 %v3169, %v3208
  %v3217 = vadd.f32 %v3170, %v3209
  %v3218 = vadd.f32 %v3171, %v3210
  %v3219 = vadd.f32 %v3172, %v3211
  %v3228 = vrot.slane %v3213, 7
  %v3229 = vsel %vm398, %v3228, %v3212
  %v3230 = vrot.slane %v3214, 6
  %v3231 = vsel %vm401, %v3230, %v3229
  %v3232 = vrot.slane %v3215, 5
  %v3233 = vsel %vm404, %v3232, %v3231
  %v3234 = vrot.slane %v3216, 4
  %v3235 = vsel %vm407, %v3234, %v3233
  %v3236 = vrot.slane %v3217, 3
  %v3237 = vsel %vm410, %v3236, %v3235
  %v3238 = vrot.slane %v3218, 2
  %v3239 = vsel %vm413, %v3238, %v3237
  %v3240 = vrot.slane %v3219, 1
  %v3241 = vsel %vm416, %v3240, %v3239
  %3242 = vrot.lane.b32.xlu0 %v3241, 96
  %v3243 = vpop.permute.xlu0 %3242
  %v3245 = vsel %vm68, %v3243, %v2891
  %v3247 = vsel %vm441, %v3245, 0
  %3249 = vmatprep.subr.mxu0 0.0
  %3250 = vmatpush1.msra.mxu0 %v426
  %3251 = vmatprep.subr.mxu0 0.0
  %3252 = vmatpush1.msra.mxu0 %v427
  %3253 = vmatprep.subr.mxu0 0.0
  %3254 = vmatpush1.msra.mxu0 %v428
  %3255 = vmatprep.subr.mxu0 0.0
  %3256 = vmatpush1.msra.mxu0 %v429
  %3257 = vmatprep.subr.mxu0 0.0
  %3258 = vmatpush1.msra.mxu0 %v430
  %3259 = vmatprep.subr.mxu0 0.0
  %3260 = vmatpush1.msra.mxu0 %v431
  %3261 = vmatprep.subr.mxu0 0.0
  %3262 = vmatpush1.msra.mxu0 %v432
  %3263 = vmatprep.subr.mxu0 0.0
  %3264 = vmatpush1.msra.mxu0 %v433
  %3265 = vmatprep.subr.mxu0 0.0
  %3266 = vmatpush1.msra.mxu0 0.0
  %3267 = vmatprep.subr.mxu0 0.0
  %3268 = vmatpush1.msra.mxu0 0.0
  %3269 = vmatprep.subr.mxu0 0.0
  %3270 = vmatpush1.msra.mxu0 0.0
  %3271 = vmatprep.subr.mxu0 0.0
  %3272 = vmatpush1.msra.mxu0 0.0
  %3273 = vmatprep.subr.mxu0 0.0
  %3274 = vmatpush1.msra.mxu0 0.0
  %3275 = vmatprep.subr.mxu0 0.0
  %3276 = vmatpush1.msra.mxu0 0.0
  %3277 = vmatprep.subr.mxu0 0.0
  %3278 = vmatpush1.msra.mxu0 0.0
  %3279 = vmatprep.subr.mxu0 0.0
  %3280 = vmatpush1.msra.mxu0 0.0
  %3281 = vmatprep.subr.mxu0 0.0
  %3282 = vmatpush1.msra.mxu0 0.0
  %3283 = vmatprep.subr.mxu0 0.0
  %3284 = vmatpush1.msra.mxu0 0.0
  %3285 = vmatprep.subr.mxu0 0.0
  %3286 = vmatpush1.msra.mxu0 0.0
  %3287 = vmatprep.subr.mxu0 0.0
  %3288 = vmatpush1.msra.mxu0 0.0
  %3289 = vmatprep.subr.mxu0 0.0
  %3290 = vmatpush1.msra.mxu0 0.0
  %3291 = vmatprep.subr.mxu0 0.0
  %3292 = vmatpush1.msra.mxu0 0.0
  %3293 = vmatprep.subr.mxu0 0.0
  %3294 = vmatpush1.msra.mxu0 0.0
  %3295 = vmatprep.subr.mxu0 0.0
  %3296 = vmatpush1.msra.mxu0 0.0
  %3297 = vmatprep.subr.mxu0 0.0
  %3298 = vmatpush1.msra.mxu0 0.0
  %3299 = vmatprep.subr.mxu0 0.0
  %3300 = vmatpush1.msra.mxu0 0.0
  %3301 = vmatprep.subr.mxu0 0.0
  %3302 = vmatpush1.msra.mxu0 0.0
  %3303 = vmatprep.subr.mxu0 0.0
  %3304 = vmatpush1.msra.mxu0 0.0
  %3305 = vmatprep.subr.mxu0 0.0
  %3306 = vmatpush1.msra.mxu0 0.0
  %3307 = vmatprep.subr.mxu0 0.0
  %3308 = vmatpush1.msra.mxu0 0.0
  %3309 = vmatprep.subr.mxu0 0.0
  %3310 = vmatpush1.msra.mxu0 0.0
  %3311 = vmatprep.subr.mxu0 0.0
  %3312 = vmatpush1.msra.mxu0 0.0
  %3313 = vmatprep.mubr.f32.mxu0 0.0
  %3314 = vmatmul.mubr.f32.gmra.mrb[0].mxu0 %v3247
  %v3315 = vpop.f32.mrb[0].mxu0
  %v3316 = vadd.f32 %v439, %v3315
  %v3317 = vpop.f32.mrb[0].mxu0
  %3318 = vdwg.mxu0
  %v3319 = vxor.u32 %v3316, 2147483648
  %v3320 = vmul.f32 %v3319, 1.442695
  %v3321 = vpow.pop %v3320
  %v3322 = vadd.f32 %v3321, 1.0
  %v3323 = vrcp.pop %v3322
  %v3324 = vmul.f32 1.0, %v3323
  %3326 = vrot.lane.b32.xlu0 %v3316, 32
  %v3327 = vpop.permute.xlu0 %3326
  %v3329 = vmul.f32 %v3324, %v3327
  %3331 = vrot.lane.b32.xlu0 %v3329, 64
  %v3332 = vpop.permute.xlu0 %3331
  %v3334 = vadd.f32 %v3316, %v3332
  %v3335 = vtanh.pop %v3334
  %v3336 = vsub.f32 1.0, %v3324
  %3338 = vrot.lane.b32.xlu0 %v3335, 96
  %v3339 = vpop.permute.xlu0 %3338
  %v3341 = vmul.f32 %v3336, %v3339
  %v3342 = vmul.f32 %v3324, %v2891
  %v3343 = vadd.f32 %v3341, %v3342
  %3344 = vset.pattern.permute.xlu0 6
  %3345 = vperm.xlu0 %3344, %v540
  %v3346 = vpop.permute.xlu0 %3345
  %v3348 = vmul.f32 %v3346, %v3243
  %3349 = vset.pattern.permute.xlu0 6
  %3350 = vperm.xlu0 %3349, %v547
  %v3351 = vpop.permute.xlu0 %3350
  %v3353 = vmul.f32 %v3351, %v2888
  %v3354 = vadd.f32 %v3348, %v3353
  %v3355 = vmul.f32 %v3346, %v3343
  %v3356 = vmul.f32 %v3351, %v2891
  %v3357 = vadd.f32 %v3355, %v3356
  %v3358 = vld [vmem:[%s1 + $0x7] sm:$0x1]
  %v3359 = vld [vmem:[%s1 + $0xf] sm:$0x1]
  %v3360 = vld [vmem:[%s1 + $0x17] sm:$0x1]
  %v3361 = vld [vmem:[%s1 + $0x1f] sm:$0x1]
  %v3362 = vld [vmem:[%s1 + $0x27] sm:$0x1]
  %v3363 = vld [vmem:[%s1 + $0x2f] sm:$0x1]
  %v3364 = vld [vmem:[%s1 + $0x37] sm:$0x1]
  %v3365 = vld [vmem:[%s1 + $0x3f] sm:$0x1]
  %v3367 = vsel %vm68, %v3354, 0
  %3369 = vmatprep.subr.mxu0 0.0
  %3370 = vmatpush1.msra.mxu0 %v58
  %3371 = vmatprep.subr.mxu0 0.0
  %3372 = vmatpush1.msra.mxu0 %v59
  %3373 = vmatprep.subr.mxu0 0.0
  %3374 = vmatpush1.msra.mxu0 %v60
  %3375 = vmatprep.subr.mxu0 0.0
  %3376 = vmatpush1.msra.mxu0 %v61
  %3377 = vmatprep.subr.mxu0 0.0
  %3378 = vmatpush1.msra.mxu0 0.0
  %3379 = vmatprep.subr.mxu0 0.0
  %3380 = vmatpush1.msra.mxu0 0.0
  %3381 = vmatprep.subr.mxu0 0.0
  %3382 = vmatpush1.msra.mxu0 0.0
  %3383 = vmatprep.subr.mxu0 0.0
  %3384 = vmatpush1.msra.mxu0 0.0
  %3385 = vmatprep.subr.mxu0 0.0
  %3386 = vmatpush1.msra.mxu0 0.0
  %3387 = vmatprep.subr.mxu0 0.0
  %3388 = vmatpush1.msra.mxu0 0.0
  %3389 = vmatprep.subr.mxu0 0.0
  %3390 = vmatpush1.msra.mxu0 0.0
  %3391 = vmatprep.subr.mxu0 0.0
  %3392 = vmatpush1.msra.mxu0 0.0
  %3393 = vmatprep.subr.mxu0 0.0
  %3394 = vmatpush1.msra.mxu0 0.0
  %3395 = vmatprep.subr.mxu0 0.0
  %3396 = vmatpush1.msra.mxu0 0.0
  %3397 = vmatprep.subr.mxu0 0.0
  %3398 = vmatpush1.msra.mxu0 0.0
  %3399 = vmatprep.subr.mxu0 0.0
  %3400 = vmatpush1.msra.mxu0 0.0
  %3401 = vmatprep.subr.mxu0 0.0
  %3402 = vmatpush1.msra.mxu0 0.0
  %3403 = vmatprep.subr.mxu0 0.0
  %3404 = vmatpush1.msra.mxu0 0.0
  %3405 = vmatprep.subr.mxu0 0.0
  %3406 = vmatpush1.msra.mxu0 0.0
  %3407 = vmatprep.subr.mxu0 0.0
  %3408 = vmatpush1.msra.mxu0 0.0
  %3409 = vmatprep.subr.mxu0 0.0
  %3410 = vmatpush1.msra.mxu0 0.0
  %3411 = vmatprep.subr.mxu0 0.0
  %3412 = vmatpush1.msra.mxu0 0.0
  %3413 = vmatprep.subr.mxu0 0.0
  %3414 = vmatpush1.msra.mxu0 0.0
  %3415 = vmatprep.subr.mxu0 0.0
  %3416 = vmatpush1.msra.mxu0 0.0
  %3417 = vmatprep.subr.mxu0 0.0
  %3418 = vmatpush1.msra.mxu0 0.0
  %3419 = vmatprep.subr.mxu0 0.0
  %3420 = vmatpush1.msra.mxu0 0.0
  %3421 = vmatprep.subr.mxu0 0.0
  %3422 = vmatpush1.msra.mxu0 0.0
  %3423 = vmatprep.subr.mxu0 0.0
  %3424 = vmatpush1.msra.mxu0 0.0
  %3425 = vmatprep.subr.mxu0 0.0
  %3426 = vmatpush1.msra.mxu0 0.0
  %3427 = vmatprep.subr.mxu0 0.0
  %3428 = vmatpush1.msra.mxu0 0.0
  %3429 = vmatprep.subr.mxu0 0.0
  %3430 = vmatpush1.msra.mxu0 0.0
  %3431 = vmatprep.subr.mxu0 0.0
  %3432 = vmatpush1.msra.mxu0 0.0
  %3433 = vmatprep.mubr.f32.mxu0 0.0
  %3434 = vmatmul.mubr.f32.gmra.mrb[0].mxu0 %v3367
  %v3435 = vpop.f32.mrb[0].mxu0
  %v3436 = vadd.f32 %v66, %v3435
  %v3437 = vpop.f32.mrb[0].mxu0
  %3438 = vdwg.mxu0
  %v3440 = vrot.slane %v3436, 1
  %v3441 = vrot.slane %v3436, 2
  %v3442 = vrot.slane %v3436, 3
  %v3443 = vrot.slane %v3436, 4
  %v3444 = vrot.slane %v3436, 5
  %v3445 = vrot.slane %v3436, 6
  %v3446 = vrot.slane %v3436, 7
  %v3455 = vadd.f32 %v3358, %v3436
  %v3456 = vadd.f32 %v3359, %v3440
  %v3457 = vadd.f32 %v3360, %v3441
  %v3458 = vadd.f32 %v3361, %v3442
  %v3459 = vadd.f32 %v3362, %v3443
  %v3460 = vadd.f32 %v3363, %v3444
  %v3461 = vadd.f32 %v3364, %v3445
  %v3462 = vadd.f32 %v3365, %v3446
  %v3463 = vxor.u32 %v3455, 2147483648
  %v3464 = vxor.u32 %v3456, 2147483648
  %v3465 = vxor.u32 %v3457, 2147483648
  %v3466 = vxor.u32 %v3458, 2147483648
  %v3467 = vxor.u32 %v3459, 2147483648
  %v3468 = vxor.u32 %v3460, 2147483648
  %v3469 = vxor.u32 %v3461, 2147483648
  %v3470 = vxor.u32 %v3462, 2147483648
  %v3471 = vmul.f32 %v3463, 1.442695
  %v3472 = vpow.pop %v3471
  %v3473 = vmul.f32 %v3464, 1.442695
  %v3474 = vpow.pop %v3473
  %v3475 = vmul.f32 %v3465, 1.442695
  %v3476 = vpow.pop %v3475
  %v3477 = vmul.f32 %v3466, 1.442695
  %v3478 = vpow.pop %v3477
  %v3479 = vmul.f32 %v3467, 1.442695
  %v3480 = vpow.pop %v3479
  %v3481 = vmul.f32 %v3468, 1.442695
  %v3482 = vpow.pop %v3481
  %v3483 = vmul.f32 %v3469, 1.442695
  %v3484 = vpow.pop %v3483
  %v3485 = vmul.f32 %v3470, 1.442695
  %v3486 = vpow.pop %v3485
  %v3487 = vadd.f32 %v3472, 1.0
  %v3488 = vadd.f32 %v3474, 1.0
  %v3489 = vadd.f32 %v3476, 1.0
  %v3490 = vadd.f32 %v3478, 1.0
  %v3491 = vadd.f32 %v3480, 1.0
  %v3492 = vadd.f32 %v3482, 1.0
  %v3493 = vadd.f32 %v3484, 1.0
  %v3494 = vadd.f32 %v3486, 1.0
  %v3495 = vrcp.pop %v3487
  %v3496 = vmul.f32 1.0, %v3495
  %v3497 = vrcp.pop %v3488
  %v3498 = vmul.f32 1.0, %v3497
  %v3499 = vrcp.pop %v3489
  %v3500 = vmul.f32 1.0, %v3499
  %v3501 = vrcp.pop %v3490
  %v3502 = vmul.f32 1.0, %v3501
  %v3503 = vrcp.pop %v3491
  %v3504 = vmul.f32 1.0, %v3503
  %v3505 = vrcp.pop %v3492
  %v3506 = vmul.f32 1.0, %v3505
  %v3507 = vrcp.pop %v3493
  %v3508 = vmul.f32 1.0, %v3507
  %v3509 = vrcp.pop %v3494
  %v3510 = vmul.f32 1.0, %v3509
  %3511 = vrot.lane.b32.xlu0 %v3436, 64
  %v3512 = vpop.permute.xlu0 %3511
  %3513 = vrot.lane.b32.xlu0 %v3440, 64
  %v3514 = vpop.permute.xlu0 %3513
  %3515 = vrot.lane.b32.xlu0 %v3441, 64
  %v3516 = vpop.permute.xlu0 %3515
  %3517 = vrot.lane.b32.xlu0 %v3442, 64
  %v3518 = vpop.permute.xlu0 %3517
  %3519 = vrot.lane.b32.xlu0 %v3443, 64
  %v3520 = vpop.permute.xlu0 %3519
  %3521 = vrot.lane.b32.xlu0 %v3444, 64
  %v3522 = vpop.permute.xlu0 %3521
  %3523 = vrot.lane.b32.xlu0 %v3445, 64
  %v3524 = vpop.permute.xlu0 %3523
  %3525 = vrot.lane.b32.xlu0 %v3446, 64
  %v3526 = vpop.permute.xlu0 %3525
  %v3535 = vmul.f32 %v3496, %v3512
  %v3536 = vmul.f32 %v3498, %v3514
  %v3537 = vmul.f32 %v3500, %v3516
  %v3538 = vmul.f32 %v3502, %v3518
  %v3539 = vmul.f32 %v3504, %v3520
  %v3540 = vmul.f32 %v3506, %v3522
  %v3541 = vmul.f32 %v3508, %v3524
  %v3542 = vmul.f32 %v3510, %v3526
  %3551 = vrot.lane.b32.xlu0 %v3535, 64
  %v3552 = vpop.permute.xlu0 %3551
  %3553 = vrot.lane.b32.xlu0 %v3536, 64
  %v3554 = vpop.permute.xlu0 %3553
  %3555 = vrot.lane.b32.xlu0 %v3537, 64
  %v3556 = vpop.permute.xlu0 %3555
  %3557 = vrot.lane.b32.xlu0 %v3538, 64
  %v3558 = vpop.permute.xlu0 %3557
  %3559 = vrot.lane.b32.xlu0 %v3539, 64
  %v3560 = vpop.permute.xlu0 %3559
  %3561 = vrot.lane.b32.xlu0 %v3540, 64
  %v3562 = vpop.permute.xlu0 %3561
  %3563 = vrot.lane.b32.xlu0 %v3541, 64
  %v3564 = vpop.permute.xlu0 %3563
  %3565 = vrot.lane.b32.xlu0 %v3542, 64
  %v3566 = vpop.permute.xlu0 %3565
  %v3575 = vadd.f32 %v3358, %v3552
  %v3576 = vadd.f32 %v3359, %v3554
  %v3577 = vadd.f32 %v3360, %v3556
  %v3578 = vadd.f32 %v3361, %v3558
  %v3579 = vadd.f32 %v3362, %v3560
  %v3580 = vadd.f32 %v3363, %v3562
  %v3581 = vadd.f32 %v3364, %v3564
  %v3582 = vadd.f32 %v3365, %v3566
  %v3583 = vtanh.pop %v3575
  %v3584 = vtanh.pop %v3576
  %v3585 = vtanh.pop %v3577
  %v3586 = vtanh.pop %v3578
  %v3587 = vtanh.pop %v3579
  %v3588 = vtanh.pop %v3580
  %v3589 = vtanh.pop %v3581
  %v3590 = vtanh.pop %v3582
  %v3591 = vsub.f32 1.0, %v3496
  %v3592 = vsub.f32 1.0, %v3498
  %v3593 = vsub.f32 1.0, %v3500
  %v3594 = vsub.f32 1.0, %v3502
  %v3595 = vsub.f32 1.0, %v3504
  %v3596 = vsub.f32 1.0, %v3506
  %v3597 = vsub.f32 1.0, %v3508
  %v3598 = vsub.f32 1.0, %v3510
  %3607 = vrot.lane.b32.xlu0 %v3583, 96
  %v3608 = vpop.permute.xlu0 %3607
  %3609 = vrot.lane.b32.xlu0 %v3584, 96
  %v3610 = vpop.permute.xlu0 %3609
  %3611 = vrot.lane.b32.xlu0 %v3585, 96
  %v3612 = vpop.permute.xlu0 %3611
  %3613 = vrot.lane.b32.xlu0 %v3586, 96
  %v3614 = vpop.permute.xlu0 %3613
  %3615 = vrot.lane.b32.xlu0 %v3587, 96
  %v3616 = vpop.permute.xlu0 %3615
  %3617 = vrot.lane.b32.xlu0 %v3588, 96
  %v3618 = vpop.permute.xlu0 %3617
  %3619 = vrot.lane.b32.xlu0 %v3589, 96
  %v3620 = vpop.permute.xlu0 %3619
  %3621 = vrot.lane.b32.xlu0 %v3590, 96
  %v3622 = vpop.permute.xlu0 %3621
  %v3631 = vmul.f32 %v3591, %v3608
  %v3632 = vmul.f32 %v3592, %v3610
  %v3633 = vmul.f32 %v3593, %v3612
  %v3634 = vmul.f32 %v3594, %v3614
  %v3635 = vmul.f32 %v3595, %v3616
  %v3636 = vmul.f32 %v3596, %v3618
  %v3637 = vmul.f32 %v3597, %v3620
  %v3638 = vmul.f32 %v3598, %v3622
  %v3639 = vrot.slane %v3354, 1
  %v3640 = vrot.slane %v3354, 2
  %v3641 = vrot.slane %v3354, 3
  %v3642 = vrot.slane %v3354, 4
  %v3643 = vrot.slane %v3354, 5
  %v3644 = vrot.slane %v3354, 6
  %v3645 = vrot.slane %v3354, 7
  %3646 = vrot.lane.b32.xlu0 %v3354, 32
  %v3647 = vpop.permute.xlu0 %3646
  %3648 = vrot.lane.b32.xlu0 %v3639, 32
  %v3649 = vpop.permute.xlu0 %3648
  %3650 = vrot.lane.b32.xlu0 %v3640, 32
  %v3651 = vpop.permute.xlu0 %3650
  %3652 = vrot.lane.b32.xlu0 %v3641, 32
  %v3653 = vpop.permute.xlu0 %3652
  %3654 = vrot.lane.b32.xlu0 %v3642, 32
  %v3655 = vpop.permute.xlu0 %3654
  %3656 = vrot.lane.b32.xlu0 %v3643, 32
  %v3657 = vpop.permute.xlu0 %3656
  %3658 = vrot.lane.b32.xlu0 %v3644, 32
  %v3659 = vpop.permute.xlu0 %3658
  %3660 = vrot.lane.b32.xlu0 %v3645, 32
  %v3661 = vpop.permute.xlu0 %3660
  %v3670 = vmul.f32 %v3496, %v3647
  %v3671 = vmul.f32 %v3498, %v3649
  %v3672 = vmul.f32 %v3500, %v3651
  %v3673 = vmul.f32 %v3502, %v3653
  %v3674 = vmul.f32 %v3504, %v3655
  %v3675 = vmul.f32 %v3506, %v3657
  %v3676 = vmul.f32 %v3508, %v3659
  %v3677 = vmul.f32 %v3510, %v3661
  %v3678 = vadd.f32 %v3631, %v3670
  %v3679 = vadd.f32 %v3632, %v3671
  %v3680 = vadd.f32 %v3633, %v3672
  %v3681 = vadd.f32 %v3634, %v3673
  %v3682 = vadd.f32 %v3635, %v3674
  %v3683 = vadd.f32 %v3636, %v3675
  %v3684 = vadd.f32 %v3637, %v3676
  %v3685 = vadd.f32 %v3638, %v3677
  %v3694 = vrot.slane %v3679, 7
  %v3695 = vsel %vm398, %v3694, %v3678
  %v3696 = vrot.slane %v3680, 6
  %v3697 = vsel %vm401, %v3696, %v3695
  %v3698 = vrot.slane %v3681, 5
  %v3699 = vsel %vm404, %v3698, %v3697
  %v3700 = vrot.slane %v3682, 4
  %v3701 = vsel %vm407, %v3700, %v3699
  %v3702 = vrot.slane %v3683, 3
  %v3703 = vsel %vm410, %v3702, %v3701
  %v3704 = vrot.slane %v3684, 2
  %v3705 = vsel %vm413, %v3704, %v3703
  %v3706 = vrot.slane %v3685, 1
  %v3707 = vsel %vm416, %v3706, %v3705
  %3708 = vrot.lane.b32.xlu0 %v3707, 96
  %v3709 = vpop.permute.xlu0 %3708
  %v3711 = vsel %vm68, %v3709, %v3357
  %v3713 = vsel %vm441, %v3711, 0
  %3715 = vmatprep.subr.mxu0 0.0
  %3716 = vmatpush1.msra.mxu0 %v426
  %3717 = vmatprep.subr.mxu0 0.0
  %3718 = vmatpush1.msra.mxu0 %v427
  %3719 = vmatprep.subr.mxu0 0.0
  %3720 = vmatpush1.msra.mxu0 %v428
  %3721 = vmatprep.subr.mxu0 0.0
  %3722 = vmatpush1.msra.mxu0 %v429
  %3723 = vmatprep.subr.mxu0 0.0
  %3724 = vmatpush1.msra.mxu0 %v430
  %3725 = vmatprep.subr.mxu0 0.0
  %3726 = vmatpush1.msra.mxu0 %v431
  %3727 = vmatprep.subr.mxu0 0.0
  %3728 = vmatpush1.msra.mxu0 %v432
  %3729 = vmatprep.subr.mxu0 0.0
  %3730 = vmatpush1.msra.mxu0 %v433
  %3731 = vmatprep.subr.mxu0 0.0
  %3732 = vmatpush1.msra.mxu0 0.0
  %3733 = vmatprep.subr.mxu0 0.0
  %3734 = vmatpush1.msra.mxu0 0.0
  %3735 = vmatprep.subr.mxu0 0.0
  %3736 = vmatpush1.msra.mxu0 0.0
  %3737 = vmatprep.subr.mxu0 0.0
  %3738 = vmatpush1.msra.mxu0 0.0
  %3739 = vmatprep.subr.mxu0 0.0
  %3740 = vmatpush1.msra.mxu0 0.0
  %3741 = vmatprep.subr.mxu0 0.0
  %3742 = vmatpush1.msra.mxu0 0.0
  %3743 = vmatprep.subr.mxu0 0.0
  %3744 = vmatpush1.msra.mxu0 0.0
  %3745 = vmatprep.subr.mxu0 0.0
  %3746 = vmatpush1.msra.mxu0 0.0
  %3747 = vmatprep.subr.mxu0 0.0
  %3748 = vmatpush1.msra.mxu0 0.0
  %3749 = vmatprep.subr.mxu0 0.0
  %3750 = vmatpush1.msra.mxu0 0.0
  %3751 = vmatprep.subr.mxu0 0.0
  %3752 = vmatpush1.msra.mxu0 0.0
  %3753 = vmatprep.subr.mxu0 0.0
  %3754 = vmatpush1.msra.mxu0 0.0
  %3755 = vmatprep.subr.mxu0 0.0
  %3756 = vmatpush1.msra.mxu0 0.0
  %3757 = vmatprep.subr.mxu0 0.0
  %3758 = vmatpush1.msra.mxu0 0.0
  %3759 = vmatprep.subr.mxu0 0.0
  %3760 = vmatpush1.msra.mxu0 0.0
  %3761 = vmatprep.subr.mxu0 0.0
  %3762 = vmatpush1.msra.mxu0 0.0
  %3763 = vmatprep.subr.mxu0 0.0
  %3764 = vmatpush1.msra.mxu0 0.0
  %3765 = vmatprep.subr.mxu0 0.0
  %3766 = vmatpush1.msra.mxu0 0.0
  %3767 = vmatprep.subr.mxu0 0.0
  %3768 = vmatpush1.msra.mxu0 0.0
  %3769 = vmatprep.subr.mxu0 0.0
  %3770 = vmatpush1.msra.mxu0 0.0
  %3771 = vmatprep.subr.mxu0 0.0
  %3772 = vmatpush1.msra.mxu0 0.0
  %3773 = vmatprep.subr.mxu0 0.0
  %3774 = vmatpush1.msra.mxu0 0.0
  %3775 = vmatprep.subr.mxu0 0.0
  %3776 = vmatpush1.msra.mxu0 0.0
  %3777 = vmatprep.subr.mxu0 0.0
  %3778 = vmatpush1.msra.mxu0 0.0
  %3779 = vmatprep.mubr.f32.mxu0 0.0
  %3780 = vmatmul.mubr.f32.gmra.mrb[0].mxu0 %v3713
  %v3781 = vpop.f32.mrb[0].mxu0
  %v3782 = vadd.f32 %v439, %v3781
  %v3783 = vpop.f32.mrb[0].mxu0
  %3784 = vdwg.mxu0
  %v3785 = vxor.u32 %v3782, 2147483648
  %v3786 = vmul.f32 %v3785, 1.442695
  %v3787 = vpow.pop %v3786
  %v3788 = vadd.f32 %v3787, 1.0
  %v3789 = vrcp.pop %v3788
  %v3790 = vmul.f32 1.0, %v3789
  %3792 = vrot.lane.b32.xlu0 %v3782, 32
  %v3793 = vpop.permute.xlu0 %3792
  %v3795 = vmul.f32 %v3790, %v3793
  %3797 = vrot.lane.b32.xlu0 %v3795, 64
  %v3798 = vpop.permute.xlu0 %3797
  %v3800 = vadd.f32 %v3782, %v3798
  %v3801 = vtanh.pop %v3800
  %v3802 = vsub.f32 1.0, %v3790
  %3804 = vrot.lane.b32.xlu0 %v3801, 96
  %v3805 = vpop.permute.xlu0 %3804
  %v3807 = vmul.f32 %v3802, %v3805
  %v3808 = vmul.f32 %v3790, %v3357
  %v3809 = vadd.f32 %v3807, %v3808
  %3810 = vset.pattern.permute.xlu0 7
  %3811 = vperm.xlu0 %3810, %v540
  %v3812 = vpop.permute.xlu0 %3811
  %v3814 = vmul.f32 %v3812, %v3709
  %3815 = vset.pattern.permute.xlu0 7
  %3816 = vperm.xlu0 %3815, %v547
  %v3817 = vpop.permute.xlu0 %3816
  %v3819 = vmul.f32 %v3817, %v3354
  %v3820 = vadd.f32 %v3814, %v3819
  %v3821 = vmul.f32 %v3812, %v3809
  %v3822 = vmul.f32 %v3817, %v3357
  %v3823 = vadd.f32 %v3821, %v3822
  %v3824 = vlaneseq
  %v3825 = vand.u32 %v3824, 127
  %vm3826 = vcmp.eq.s32.totalorder %v3825, 1
  %v3827 = vsel %vm3826, 1, 0
  %v3828 = vcvt.s32.f32 %v3827
  %v3829 = vld [vmem:[%s11] sm:$0xff]
  %v3830 = vld [vmem:[%s11 + $0x8] sm:$0xff]
  %v3831 = vld [vmem:[%s11 + $0x10] sm:$0xff]
  %v3832 = vld [vmem:[%s11 + $0x18] sm:$0xff]
  %v3833 = vld [vmem:[%s12] sm:$0x1]
  %3835 = vrot.lane.b32.xlu0 %v3820, 32
  %v3836 = vpop.permute.xlu0 %3835
  %v3838 = vsel %vm68, %v3828, %v3836
  %v3839 = vld [vmem:[%s7] sm:$0xff]
  %v3840 = vld [vmem:[%s7 + $0x8] sm:$0xff]
  %v3841 = vld [vmem:[%s7 + $0x10] sm:$0xff]
  %v3842 = vld [vmem:[%s7 + $0x18] sm:$0xff]
  %v3843 = vld [vmem:[%s7 + $0x20] sm:$0xff]
  %v3844 = vld [vmem:[%s7 + $0x28] sm:$0xff]
  %v3845 = vld [vmem:[%s7 + $0x30] sm:$0xff]
  %v3846 = vld [vmem:[%s7 + $0x38] sm:$0xff]
  %v3847 = vld [vmem:[%s8] sm:$0x1]
  %v3849 = vlaneseq
  %v3850 = vshrl.u32 %v3849, 7
  %v3851 = vsub.s32 0, %v3850
  %v3852 = vrot.slane %v3847, %v3851
  %v3855 = vsel %vm441, %v3838, 0
  %3857 = vmatprep.subr.mxu0 0.0
  %3858 = vmatpush1.msra.mxu0 %v3839
  %3859 = vmatprep.subr.mxu0 0.0
  %3860 = vmatpush1.msra.mxu0 %v3840
  %3861 = vmatprep.subr.mxu0 0.0
  %3862 = vmatpush1.msra.mxu0 %v3841
  %3863 = vmatprep.subr.mxu0 0.0
  %3864 = vmatpush1.msra.mxu0 %v3842
  %3865 = vmatprep.subr.mxu0 0.0
  %3866 = vmatpush1.msra.mxu0 %v3843
  %3867 = vmatprep.subr.mxu0 0.0
  %3868 = vmatpush1.msra.mxu0 %v3844
  %3869 = vmatprep.subr.mxu0 0.0
  %3870 = vmatpush1.msra.mxu0 %v3845
  %3871 = vmatprep.subr.mxu0 0.0
  %3872 = vmatpush1.msra.mxu0 %v3846
  %3873 = vmatprep.subr.mxu0 0.0
  %3874 = vmatpush1.msra.mxu0 0.0
  %3875 = vmatprep.subr.mxu0 0.0
  %3876 = vmatpush1.msra.mxu0 0.0
  %3877 = vmatprep.subr.mxu0 0.0
  %3878 = vmatpush1.msra.mxu0 0.0
  %3879 = vmatprep.subr.mxu0 0.0
  %3880 = vmatpush1.msra.mxu0 0.0
  %3881 = vmatprep.subr.mxu0 0.0
  %3882 = vmatpush1.msra.mxu0 0.0
  %3883 = vmatprep.subr.mxu0 0.0
  %3884 = vmatpush1.msra.mxu0 0.0
  %3885 = vmatprep.subr.mxu0 0.0
  %3886 = vmatpush1.msra.mxu0 0.0
  %3887 = vmatprep.subr.mxu0 0.0
  %3888 = vmatpush1.msra.mxu0 0.0
  %3889 = vmatprep.subr.mxu0 0.0
  %3890 = vmatpush1.msra.mxu0 0.0
  %3891 = vmatprep.subr.mxu0 0.0
  %3892 = vmatpush1.msra.mxu0 0.0
  %3893 = vmatprep.subr.mxu0 0.0
  %3894 = vmatpush1.msra.mxu0 0.0
  %3895 = vmatprep.subr.mxu0 0.0
  %3896 = vmatpush1.msra.mxu0 0.0
  %3897 = vmatprep.subr.mxu0 0.0
  %3898 = vmatpush1.msra.mxu0 0.0
  %3899 = vmatprep.subr.mxu0 0.0
  %3900 = vmatpush1.msra.mxu0 0.0
  %3901 = vmatprep.subr.mxu0 0.0
  %3902 = vmatpush1.msra.mxu0 0.0
  %3903 = vmatprep.subr.mxu0 0.0
  %3904 = vmatpush1.msra.mxu0 0.0
  %3905 = vmatprep.subr.mxu0 0.0
  %3906 = vmatpush1.msra.mxu0 0.0
  %3907 = vmatprep.subr.mxu0 0.0
  %3908 = vmatpush1.msra.mxu0 0.0
  %3909 = vmatprep.subr.mxu0 0.0
  %3910 = vmatpush1.msra.mxu0 0.0
  %3911 = vmatprep.subr.mxu0 0.0
  %3912 = vmatpush1.msra.mxu0 0.0
  %3913 = vmatprep.subr.mxu0 0.0
  %3914 = vmatpush1.msra.mxu0 0.0
  %3915 = vmatprep.subr.mxu0 0.0
  %3916 = vmatpush1.msra.mxu0 0.0
  %3917 = vmatprep.subr.mxu0 0.0
  %3918 = vmatpush1.msra.mxu0 0.0
  %3919 = vmatprep.subr.mxu0 0.0
  %3920 = vmatpush1.msra.mxu0 0.0
  %3921 = vmatprep.mubr.f32.mxu0 0.0
  %3922 = vmatmul.mubr.f32.gmra.mrb[0].mxu0 %v3855
  %v3923 = vpop.f32.mrb[0].mxu0
  %v3924 = vadd.f32 %v3852, %v3923
  %v3925 = vpop.f32.mrb[0].mxu0
  %3926 = vdwg.mxu0
  %v3927 = vxor.u32 %v3924, 2147483648
  %v3928 = vmul.f32 %v3927, 1.442695
  %v3929 = vpow.pop %v3928
  %v3930 = vadd.f32 %v3929, 1.0
  %v3931 = vrcp.pop %v3930
  %v3932 = vmul.f32 1.0, %v3931
  %3934 = vrot.lane.b32.xlu0 %v3924, 32
  %v3935 = vpop.permute.xlu0 %3934
  %v3937 = vmul.f32 %v3932, %v3935
  %3939 = vrot.lane.b32.xlu0 %v3937, 64
  %v3940 = vpop.permute.xlu0 %3939
  %v3942 = vadd.f32 %v3924, %v3940
  %v3943 = vtanh.pop %v3942
  %v3944 = vsub.f32 1.0, %v3932
  %3946 = vrot.lane.b32.xlu0 %v3943, 96
  %v3947 = vpop.permute.xlu0 %3946
  %v3949 = vmul.f32 %v3944, %v3947
  %v3950 = vmul.f32 %v3932, %v3836
  %v3951 = vadd.f32 %v3949, %v3950
  %3953 = vrot.lane.b32.xlu0 %v3951, 96
  %v3954 = vpop.permute.xlu0 %3953
  %v3956 = vsel %vm68, %v3954, %v3823
  %v3957 = vld [vmem:[%s9] sm:$0xff]
  %v3958 = vld [vmem:[%s9 + $0x8] sm:$0xff]
  %v3959 = vld [vmem:[%s9 + $0x10] sm:$0xff]
  %v3960 = vld [vmem:[%s9 + $0x18] sm:$0xff]
  %v3961 = vld [vmem:[%s9 + $0x20] sm:$0xff]
  %v3962 = vld [vmem:[%s9 + $0x28] sm:$0xff]
  %v3963 = vld [vmem:[%s9 + $0x30] sm:$0xff]
  %v3964 = vld [vmem:[%s9 + $0x38] sm:$0xff]
  %v3965 = vld [vmem:[%s10] sm:$0x1]
  %v3967 = vlaneseq
  %v3968 = vshrl.u32 %v3967, 7
  %v3969 = vsub.s32 0, %v3968
  %v3970 = vrot.slane %v3965, %v3969
  %v3973 = vsel %vm441, %v3956, 0
  %3975 = vmatprep.subr.mxu0 0.0
  %3976 = vmatpush1.msra.mxu0 %v3957
  %3977 = vmatprep.subr.mxu0 0.0
  %3978 = vmatpush1.msra.mxu0 %v3958
  %3979 = vmatprep.subr.mxu0 0.0
  %3980 = vmatpush1.msra.mxu0 %v3959
  %3981 = vmatprep.subr.mxu0 0.0
  %3982 = vmatpush1.msra.mxu0 %v3960
  %3983 = vmatprep.subr.mxu0 0.0
  %3984 = vmatpush1.msra.mxu0 %v3961
  %3985 = vmatprep.subr.mxu0 0.0
  %3986 = vmatpush1.msra.mxu0 %v3962
  %3987 = vmatprep.subr.mxu0 0.0
  %3988 = vmatpush1.msra.mxu0 %v3963
  %3989 = vmatprep.subr.mxu0 0.0
  %3990 = vmatpush1.msra.mxu0 %v3964
  %3991 = vmatprep.subr.mxu0 0.0
  %3992 = vmatpush1.msra.mxu0 0.0
  %3993 = vmatprep.subr.mxu0 0.0
  %3994 = vmatpush1.msra.mxu0 0.0
  %3995 = vmatprep.subr.mxu0 0.0
  %3996 = vmatpush1.msra.mxu0 0.0
  %3997 = vmatprep.subr.mxu0 0.0
  %3998 = vmatpush1.msra.mxu0 0.0
  %3999 = vmatprep.subr.mxu0 0.0
  %4000 = vmatpush1.msra.mxu0 0.0
  %4001 = vmatprep.subr.mxu0 0.0
  %4002 = vmatpush1.msra.mxu0 0.0
  %4003 = vmatprep.subr.mxu0 0.0
  %4004 = vmatpush1.msra.mxu0 0.0
  %4005 = vmatprep.subr.mxu0 0.0
  %4006 = vmatpush1.msra.mxu0 0.0
  %4007 = vmatprep.subr.mxu0 0.0
  %4008 = vmatpush1.msra.mxu0 0.0
  %4009 = vmatprep.subr.mxu0 0.0
  %4010 = vmatpush1.msra.mxu0 0.0
  %4011 = vmatprep.subr.mxu0 0.0
  %4012 = vmatpush1.msra.mxu0 0.0
  %4013 = vmatprep.subr.mxu0 0.0
  %4014 = vmatpush1.msra.mxu0 0.0
  %4015 = vmatprep.subr.mxu0 0.0
  %4016 = vmatpush1.msra.mxu0 0.0
  %4017 = vmatprep.subr.mxu0 0.0
  %4018 = vmatpush1.msra.mxu0 0.0
  %4019 = vmatprep.subr.mxu0 0.0
  %4020 = vmatpush1.msra.mxu0 0.0
  %4021 = vmatprep.subr.mxu0 0.0
  %4022 = vmatpush1.msra.mxu0 0.0
  %4023 = vmatprep.subr.mxu0 0.0
  %4024 = vmatpush1.msra.mxu0 0.0
  %4025 = vmatprep.subr.mxu0 0.0
  %4026 = vmatpush1.msra.mxu0 0.0
  %4027 = vmatprep.subr.mxu0 0.0
  %4028 = vmatpush1.msra.mxu0 0.0
  %4029 = vmatprep.subr.mxu0 0.0
  %4030 = vmatpush1.msra.mxu0 0.0
  %4031 = vmatprep.subr.mxu0 0.0
  %4032 = vmatpush1.msra.mxu0 0.0
  %4033 = vmatprep.subr.mxu0 0.0
  %4034 = vmatpush1.msra.mxu0 0.0
  %4035 = vmatprep.subr.mxu0 0.0
  %4036 = vmatpush1.msra.mxu0 0.0
  %4037 = vmatprep.subr.mxu0 0.0
  %4038 = vmatpush1.msra.mxu0 0.0
  %4039 = vmatprep.mubr.f32.mxu0 0.0
  %4040 = vmatmul.mubr.f32.gmra.mrb[0].mxu0 %v3973
  %v4041 = vpop.f32.mrb[0].mxu0
  %v4042 = vadd.f32 %v3970, %v4041
  %v4043 = vpop.f32.mrb[0].mxu0
  %4044 = vdwg.mxu0
  %v4045 = vxor.u32 %v4042, 2147483648
  %v4046 = vmul.f32 %v4045, 1.442695
  %v4047 = vpow.pop %v4046
  %v4048 = vadd.f32 %v4047, 1.0
  %v4049 = vrcp.pop %v4048
  %v4050 = vmul.f32 1.0, %v4049
  %4052 = vrot.lane.b32.xlu0 %v4042, 32
  %v4053 = vpop.permute.xlu0 %4052
  %v4055 = vmul.f32 %v4050, %v4053
  %4057 = vrot.lane.b32.xlu0 %v4055, 64
  %v4058 = vpop.permute.xlu0 %4057
  %v4060 = vadd.f32 %v4042, %v4058
  %v4061 = vtanh.pop %v4060
  %v4062 = vsub.f32 1.0, %v4050
  %4064 = vrot.lane.b32.xlu0 %v4061, 96
  %v4065 = vpop.permute.xlu0 %4064
  %v4067 = vmul.f32 %v4062, %v4065
  %v4068 = vmul.f32 %v4050, %v3823
  %v4069 = vadd.f32 %v4067, %v4068
  %v4071 = vlaneseq
  %v4072 = vshrl.u32 %v4071, 7
  %v4073 = vsub.s32 0, %v4072
  %v4074 = vrot.slane %v3833, %v4073
  %4077 = vrot.lane.b32.xlu0 %v4069, 96
  %v4078 = vpop.permute.xlu0 %4077
  %v4079 = vsel %vm68, %v4078, 0
  %4081 = vmatprep.subr.mxu0 0.0
  %4082 = vmatpush1.msra.mxu0 %v3829
  %4083 = vmatprep.subr.mxu0 0.0
  %4084 = vmatpush1.msra.mxu0 %v3830
  %4085 = vmatprep.subr.mxu0 0.0
  %4086 = vmatpush1.msra.mxu0 %v3831
  %4087 = vmatprep.subr.mxu0 0.0
  %4088 = vmatpush1.msra.mxu0 %v3832
  %4089 = vmatprep.subr.mxu0 0.0
  %4090 = vmatpush1.msra.mxu0 0.0
  %4091 = vmatprep.subr.mxu0 0.0
  %4092 = vmatpush1.msra.mxu0 0.0
  %4093 = vmatprep.subr.mxu0 0.0
  %4094 = vmatpush1.msra.mxu0 0.0
  %4095 = vmatprep.subr.mxu0 0.0
  %4096 = vmatpush1.msra.mxu0 0.0
  %4097 = vmatprep.subr.mxu0 0.0
  %4098 = vmatpush1.msra.mxu0 0.0
  %4099 = vmatprep.subr.mxu0 0.0
  %4100 = vmatpush1.msra.mxu0 0.0
  %4101 = vmatprep.subr.mxu0 0.0
  %4102 = vmatpush1.msra.mxu0 0.0
  %4103 = vmatprep.subr.mxu0 0.0
  %4104 = vmatpush1.msra.mxu0 0.0
  %4105 = vmatprep.subr.mxu0 0.0
  %4106 = vmatpush1.msra.mxu0 0.0
  %4107 = vmatprep.subr.mxu0 0.0
  %4108 = vmatpush1.msra.mxu0 0.0
  %4109 = vmatprep.subr.mxu0 0.0
  %4110 = vmatpush1.msra.mxu0 0.0
  %4111 = vmatprep.subr.mxu0 0.0
  %4112 = vmatpush1.msra.mxu0 0.0
  %4113 = vmatprep.subr.mxu0 0.0
  %4114 = vmatpush1.msra.mxu0 0.0
  %4115 = vmatprep.subr.mxu0 0.0
  %4116 = vmatpush1.msra.mxu0 0.0
  %4117 = vmatprep.subr.mxu0 0.0
  %4118 = vmatpush1.msra.mxu0 0.0
  %4119 = vmatprep.subr.mxu0 0.0
  %4120 = vmatpush1.msra.mxu0 0.0
  %4121 = vmatprep.subr.mxu0 0.0
  %4122 = vmatpush1.msra.mxu0 0.0
  %4123 = vmatprep.subr.mxu0 0.0
  %4124 = vmatpush1.msra.mxu0 0.0
  %4125 = vmatprep.subr.mxu0 0.0
  %4126 = vmatpush1.msra.mxu0 0.0
  %4127 = vmatprep.subr.mxu0 0.0
  %4128 = vmatpush1.msra.mxu0 0.0
  %4129 = vmatprep.subr.mxu0 0.0
  %4130 = vmatpush1.msra.mxu0 0.0
  %4131 = vmatprep.subr.mxu0 0.0
  %4132 = vmatpush1.msra.mxu0 0.0
  %4133 = vmatprep.subr.mxu0 0.0
  %4134 = vmatpush1.msra.mxu0 0.0
  %4135 = vmatprep.subr.mxu0 0.0
  %4136 = vmatpush1.msra.mxu0 0.0
  %4137 = vmatprep.subr.mxu0 0.0
  %4138 = vmatpush1.msra.mxu0 0.0
  %4139 = vmatprep.subr.mxu0 0.0
  %4140 = vmatpush1.msra.mxu0 0.0
  %4141 = vmatprep.subr.mxu0 0.0
  %4142 = vmatpush1.msra.mxu0 0.0
  %4143 = vmatprep.subr.mxu0 0.0
  %4144 = vmatpush1.msra.mxu0 0.0
  %4145 = vmatprep.mubr.f32.mxu0 0.0
  %4146 = vmatmul.mubr.f32.gmra.mrb[0].mxu0 %v4079
  %v4147 = vpop.f32.mrb[0].mxu0
  %v4148 = vadd.f32 %v4074, %v4147
  %v4149 = vpop.f32.mrb[0].mxu0
  %4150 = vdwg.mxu0
  %v4152 = vcombine.high %v4148, %v4148
  %v4154 = vunpack.c.l.s4 1966171168
  %v4155 = vunpack.c.0.s8 %v4154
  %v4156 = vlaneseq
  %v4157 = vshrl.u32 %v4156, 7
  %v4158 = vsub.s32 %v4155, %v4157
  %v4159 = vrot.slane %v4148, %v4158
  %v4161 = vunpack.c.l.s4 1966171168
  %v4162 = vunpack.c.0.s8 %v4161
  %v4163 = vlaneseq
  %v4164 = vshrl.u32 %v4163, 7
  %v4165 = vsub.s32 %v4162, %v4164
  %v4166 = vrot.slane %v4152, %v4165
  %v4167 = vcombine.high %v4159, %v4159
  %v4168 = vcombine.high %v4166, %v4166
  %v4170 = vunpack.c.l.s4 1966171168
  %v4171 = vunpack.c.0.s8 %v4170
  %v4172 = vlaneseq
  %v4173 = vshrl.u32 %v4172, 7
  %v4174 = vsub.s32 %v4171, %v4173
  %v4175 = vrot.slane %v4159, %v4174
  %v4177 = vunpack.c.l.s4 1966171168
  %v4178 = vunpack.c.0.s8 %v4177
  %v4179 = vlaneseq
  %v4180 = vshrl.u32 %v4179, 7
  %v4181 = vsub.s32 %v4178, %v4180
  %v4182 = vrot.slane %v4166, %v4181
  %v4184 = vunpack.c.l.s4 1966171168
  %v4185 = vunpack.c.0.s8 %v4184
  %v4186 = vlaneseq
  %v4187 = vshrl.u32 %v4186, 7
  %v4188 = vsub.s32 %v4185, %v4187
  %v4189 = vrot.slane %v4167, %v4188
  %v4191 = vunpack.c.l.s4 1966171168
  %v4192 = vunpack.c.0.s8 %v4191
  %v4193 = vlaneseq
  %v4194 = vshrl.u32 %v4193, 7
  %v4195 = vsub.s32 %v4192, %v4194
  %v4196 = vrot.slane %v4168, %v4195
  %v4197 = vcombine.high %v4175, %v4175
  %v4198 = vcombine.high %v4182, %v4182
  %v4199 = vcombine.high %v4189, %v4189
  %v4200 = vcombine.high %v4196, %v4196
  %vm4209 = vcmask 253952
  %4210 = vst.msk [vmem:[%s13] sm:$0x1] %vm4209, %v4175
  %4211 = vst.msk [vmem:[%s13 + $0x8] sm:$0x1] %vm4209, %v4189
  %4212 = vst.msk [vmem:[%s13 + $0x10] sm:$0x1] %vm4209, %v4197
  %4213 = vst.msk [vmem:[%s13 + $0x18] sm:$0x1] %vm4209, %v4199
  %4214 = vst.msk [vmem:[%s13 + $0x20] sm:$0x1] %vm4209, %v4182
  %4215 = vst.msk [vmem:[%s13 + $0x28] sm:$0x1] %vm4209, %v4196
  %4216 = vst.msk [vmem:[%s13 + $0x30] sm:$0x1] %vm4209, %v4198
  %4217 = vst.msk [vmem:[%s13 + $0x38] sm:$0x1] %vm4209, %v4200
  %v4218 = vsel %vm68, %v3954, %v4069
  %v4220 = vcombine.high %v4218, %v4218
  %v4222 = vunpack.c.l.s4 1966171168
  %v4223 = vunpack.c.0.s8 %v4222
  %v4224 = vlaneseq
  %v4225 = vshrl.u32 %v4224, 7
  %v4226 = vsub.s32 %v4223, %v4225
  %v4227 = vrot.slane %v4218, %v4226
  %v4229 = vunpack.c.l.s4 1966171168
  %v4230 = vunpack.c.0.s8 %v4229
  %v4231 = vlaneseq
  %v4232 = vshrl.u32 %v4231, 7
  %v4233 = vsub.s32 %v4230, %v4232
  %v4234 = vrot.slane %v4220, %v4233
  %v4235 = vcombine.high %v4227, %v4227
  %v4236 = vcombine.high %v4234, %v4234
  %v4238 = vunpack.c.l.s4 1966171168
  %v4239 = vunpack.c.0.s8 %v4238
  %v4240 = vlaneseq
  %v4241 = vshrl.u32 %v4240, 7
  %v4242 = vsub.s32 %v4239, %v4241
  %v4243 = vrot.slane %v4227, %v4242
  %v4245 = vunpack.c.l.s4 1966171168
  %v4246 = vunpack.c.0.s8 %v4245
  %v4247 = vlaneseq
  %v4248 = vshrl.u32 %v4247, 7
  %v4249 = vsub.s32 %v4246, %v4248
  %v4250 = vrot.slane %v4234, %v4249
  %v4252 = vunpack.c.l.s4 1966171168
  %v4253 = vunpack.c.0.s8 %v4252
  %v4254 = vlaneseq
  %v4255 = vshrl.u32 %v4254, 7
  %v4256 = vsub.s32 %v4253, %v4255
  %v4257 = vrot.slane %v4235, %v4256
  %v4259 = vunpack.c.l.s4 1966171168
  %v4260 = vunpack.c.0.s8 %v4259
  %v4261 = vlaneseq
  %v4262 = vshrl.u32 %v4261, 7
  %v4263 = vsub.s32 %v4260, %v4262
  %v4264 = vrot.slane %v4236, %v4263
  %v4265 = vcombine.high %v4243, %v4243
  %v4266 = vcombine.high %v4250, %v4250
  %v4267 = vcombine.high %v4257, %v4257
  %v4268 = vcombine.high %v4264, %v4264
  %vm4277 = vcmask 516096
  %4278 = vst.msk [vmem:[%s14] sm:$0x1] %vm4277, %v4243
  %4279 = vst.msk [vmem:[%s14 + $0x8] sm:$0x1] %vm4277, %v4257
  %4280 = vst.msk [vmem:[%s14 + $0x10] sm:$0x1] %vm4277, %v4265
  %4281 = vst.msk [vmem:[%s14 + $0x18] sm:$0x1] %vm4277, %v4267
  %4282 = vst.msk [vmem:[%s14 + $0x20] sm:$0x1] %vm4277, %v4250
  %4283 = vst.msk [vmem:[%s14 + $0x28] sm:$0x1] %vm4277, %v4264
  %4284 = vst.msk [vmem:[%s14 + $0x30] sm:$0x1] %vm4277, %v4266
  %4285 = vst.msk [vmem:[%s14 + $0x38] sm:$0x1] %vm4277, %v4268
  %v4286 = vsel %vm68, %v4148, -inf
  %4287 = vmax.xlane.f32.xlu0 %v4286
  %v4288 = vpop.xlane.xlu0 %4287
  %vm4289 = vcmp.eq.f32.partialorder %v4148, %v4288
  %v4290 = vsel %vm4289, %v3825, 32
  %v4291 = vsel %vm68, %v4290, 2147483647
  %v4292 = vand.u32 %v4291, 65535
  %v4293 = vshra.s32 %v4291, 16
  %v4294 = vcvt.s32.f32 %v4292
  %v4295 = vcvt.s32.f32 %v4293
  %4296 = vmin.xlane.f32.xlu0 %v4295
  %v4297 = vpop.xlane.xlu0 %4296
  %vm4298 = vcmp.eq.f32.partialorder %v4295, %v4297
  %v4299 = vsel %vm4298, %v4294, inf
  %4300 = vmin.xlane.f32.xlu0 %v4299
  %v4301 = vpop.xlane.xlu0 %4300
  %v4302 = vcvt.f32.s32 %v4301
  %v4303 = vcvt.f32.s32 %v4297
  %v4304 = vshll.u32 %v4303, 16
  %v4305 = vadd.s32 %v4304, %v4302
  %vm4306 = vcmp.eq.s32.totalorder %v4305, 2
  %vm4307 = vcmp.eq.s32.totalorder %v3825, %v4305
  %v4308 = vsel %vm4307, 1, 0
  %v4309 = vcvt.s32.f32 %v4308
  %v4310 = vsel %vm68, %v4309, %v3951
  %v4311 = vld [vmem:[%s7] sm:$0xff]
  %v4312 = vld [vmem:[%s7 + $0x8] sm:$0xff]
  %v4313 = vld [vmem:[%s7 + $0x10] sm:$0xff]
  %v4314 = vld [vmem:[%s7 + $0x18] sm:$0xff]
  %v4315 = vld [vmem:[%s7 + $0x20] sm:$0xff]
  %v4316 = vld [vmem:[%s7 + $0x28] sm:$0xff]
  %v4317 = vld [vmem:[%s7 + $0x30] sm:$0xff]
  %v4318 = vld [vmem:[%s7 + $0x38] sm:$0xff]
  %v4319 = vld [vmem:[%s8] sm:$0x1]
  %v4321 = vlaneseq
  %v4322 = vshrl.u32 %v4321, 7
  %v4323 = vsub.s32 0, %v4322
  %v4324 = vrot.slane %v4319, %v4323
  %v4327 = vsel %vm441, %v4310, 0
  %4329 = vmatprep.subr.mxu0 0.0
  %4330 = vmatpush1.msra.mxu0 %v4311
  %4331 = vmatprep.subr.mxu0 0.0
  %4332 = vmatpush1.msra.mxu0 %v4312
  %4333 = vmatprep.subr.mxu0 0.0
  %4334 = vmatpush1.msra.mxu0 %v4313
  %4335 = vmatprep.subr.mxu0 0.0
  %4336 = vmatpush1.msra.mxu0 %v4314
  %4337 = vmatprep.subr.mxu0 0.0
  %4338 = vmatpush1.msra.mxu0 %v4315
  %4339 = vmatprep.subr.mxu0 0.0
  %4340 = vmatpush1.msra.mxu0 %v4316
  %4341 = vmatprep.subr.mxu0 0.0
  %4342 = vmatpush1.msra.mxu0 %v4317
  %4343 = vmatprep.subr.mxu0 0.0
  %4344 = vmatpush1.msra.mxu0 %v4318
  %4345 = vmatprep.subr.mxu0 0.0
  %4346 = vmatpush1.msra.mxu0 0.0
  %4347 = vmatprep.subr.mxu0 0.0
  %4348 = vmatpush1.msra.mxu0 0.0
  %4349 = vmatprep.subr.mxu0 0.0
  %4350 = vmatpush1.msra.mxu0 0.0
  %4351 = vmatprep.subr.mxu0 0.0
  %4352 = vmatpush1.msra.mxu0 0.0
  %4353 = vmatprep.subr.mxu0 0.0
  %4354 = vmatpush1.msra.mxu0 0.0
  %4355 = vmatprep.subr.mxu0 0.0
  %4356 = vmatpush1.msra.mxu0 0.0
  %4357 = vmatprep.subr.mxu0 0.0
  %4358 = vmatpush1.msra.mxu0 0.0
  %4359 = vmatprep.subr.mxu0 0.0
  %4360 = vmatpush1.msra.mxu0 0.0
  %4361 = vmatprep.subr.mxu0 0.0
  %4362 = vmatpush1.msra.mxu0 0.0
  %4363 = vmatprep.subr.mxu0 0.0
  %4364 = vmatpush1.msra.mxu0 0.0
  %4365 = vmatprep.subr.mxu0 0.0
  %4366 = vmatpush1.msra.mxu0 0.0
  %4367 = vmatprep.subr.mxu0 0.0
  %4368 = vmatpush1.msra.mxu0 0.0
  %4369 = vmatprep.subr.mxu0 0.0
  %4370 = vmatpush1.msra.mxu0 0.0
  %4371 = vmatprep.subr.mxu0 0.0
  %4372 = vmatpush1.msra.mxu0 0.0
  %4373 = vmatprep.subr.mxu0 0.0
  %4374 = vmatpush1.msra.mxu0 0.0
  %4375 = vmatprep.subr.mxu0 0.0
  %4376 = vmatpush1.msra.mxu0 0.0
  %4377 = vmatprep.subr.mxu0 0.0
  %4378 = vmatpush1.msra.mxu0 0.0
  %4379 = vmatprep.subr.mxu0 0.0
  %4380 = vmatpush1.msra.mxu0 0.0
  %4381 = vmatprep.subr.mxu0 0.0
  %4382 = vmatpush1.msra.mxu0 0.0
  %4383 = vmatprep.subr.mxu0 0.0
  %4384 = vmatpush1.msra.mxu0 0.0
  %4385 = vmatprep.subr.mxu0 0.0
  %4386 = vmatpush1.msra.mxu0 0.0
  %4387 = vmatprep.subr.mxu0 0.0
  %4388 = vmatpush1.msra.mxu0 0.0
  %4389 = vmatprep.subr.mxu0 0.0
  %4390 = vmatpush1.msra.mxu0 0.0
  %4391 = vmatprep.subr.mxu0 0.0
  %4392 = vmatpush1.msra.mxu0 0.0
  %4393 = vmatprep.mubr.f32.mxu0 0.0
  %4394 = vmatmul.mubr.f32.gmra.mrb[0].mxu0 %v4327
  %v4395 = vpop.f32.mrb[0].mxu0
  %v4396 = vadd.f32 %v4324, %v4395
  %v4397 = vpop.f32.mrb[0].mxu0
  %4398 = vdwg.mxu0
  %v4399 = vxor.u32 %v4396, 2147483648
  %v4400 = vmul.f32 %v4399, 1.442695
  %v4401 = vpow.pop %v4400
  %v4402 = vadd.f32 %v4401, 1.0
  %v4403 = vrcp.pop %v4402
  %v4404 = vmul.f32 1.0, %v4403
  %4406 = vrot.lane.b32.xlu0 %v4396, 32
  %v4407 = vpop.permute.xlu0 %4406
  %v4409 = vmul.f32 %v4404, %v4407
  %4411 = vrot.lane.b32.xlu0 %v4409, 64
  %v4412 = vpop.permute.xlu0 %4411
  %v4414 = vadd.f32 %v4396, %v4412
  %v4415 = vtanh.pop %v4414
  %v4416 = vsub.f32 1.0, %v4404
  %4418 = vrot.lane.b32.xlu0 %v4415, 96
  %v4419 = vpop.permute.xlu0 %4418
  %v4421 = vmul.f32 %v4416, %v4419
  %v4422 = vmul.f32 %v4404, %v3951
  %v4423 = vadd.f32 %v4421, %v4422
  %4425 = vrot.lane.b32.xlu0 %v4423, 96
  %v4426 = vpop.permute.xlu0 %4425
  %v4428 = vsel %vm68, %v4426, %v4069
  %v4429 = vld [vmem:[%s9] sm:$0xff]
  %v4430 = vld [vmem:[%s9 + $0x8] sm:$0xff]
  %v4431 = vld [vmem:[%s9 + $0x10] sm:$0xff]
  %v4432 = vld [vmem:[%s9 + $0x18] sm:$0xff]
  %v4433 = vld [vmem:[%s9 + $0x20] sm:$0xff]
  %v4434 = vld [vmem:[%s9 + $0x28] sm:$0xff]
  %v4435 = vld [vmem:[%s9 + $0x30] sm:$0xff]
  %v4436 = vld [vmem:[%s9 + $0x38] sm:$0xff]
  %v4437 = vld [vmem:[%s10] sm:$0x1]
  %v4439 = vlaneseq
  %v4440 = vshrl.u32 %v4439, 7
  %v4441 = vsub.s32 0, %v4440
  %v4442 = vrot.slane %v4437, %v4441
  %v4445 = vsel %vm441, %v4428, 0
  %4447 = vmatprep.subr.mxu0 0.0
  %4448 = vmatpush1.msra.mxu0 %v4429
  %4449 = vmatprep.subr.mxu0 0.0
  %4450 = vmatpush1.msra.mxu0 %v4430
  %4451 = vmatprep.subr.mxu0 0.0
  %4452 = vmatpush1.msra.mxu0 %v4431
  %4453 = vmatprep.subr.mxu0 0.0
  %4454 = vmatpush1.msra.mxu0 %v4432
  %4455 = vmatprep.subr.mxu0 0.0
  %4456 = vmatpush1.msra.mxu0 %v4433
  %4457 = vmatprep.subr.mxu0 0.0
  %4458 = vmatpush1.msra.mxu0 %v4434
  %4459 = vmatprep.subr.mxu0 0.0
  %4460 = vmatpush1.msra.mxu0 %v4435
  %4461 = vmatprep.subr.mxu0 0.0
  %4462 = vmatpush1.msra.mxu0 %v4436
  %4463 = vmatprep.subr.mxu0 0.0
  %4464 = vmatpush1.msra.mxu0 0.0
  %4465 = vmatprep.subr.mxu0 0.0
  %4466 = vmatpush1.msra.mxu0 0.0
  %4467 = vmatprep.subr.mxu0 0.0
  %4468 = vmatpush1.msra.mxu0 0.0
  %4469 = vmatprep.subr.mxu0 0.0
  %4470 = vmatpush1.msra.mxu0 0.0
  %4471 = vmatprep.subr.mxu0 0.0
  %4472 = vmatpush1.msra.mxu0 0.0
  %4473 = vmatprep.subr.mxu0 0.0
  %4474 = vmatpush1.msra.mxu0 0.0
  %4475 = vmatprep.subr.mxu0 0.0
  %4476 = vmatpush1.msra.mxu0 0.0
  %4477 = vmatprep.subr.mxu0 0.0
  %4478 = vmatpush1.msra.mxu0 0.0
  %4479 = vmatprep.subr.mxu0 0.0
  %4480 = vmatpush1.msra.mxu0 0.0
  %4481 = vmatprep.subr.mxu0 0.0
  %4482 = vmatpush1.msra.mxu0 0.0
  %4483 = vmatprep.subr.mxu0 0.0
  %4484 = vmatpush1.msra.mxu0 0.0
  %4485 = vmatprep.subr.mxu0 0.0
  %4486 = vmatpush1.msra.mxu0 0.0
  %4487 = vmatprep.subr.mxu0 0.0
  %4488 = vmatpush1.msra.mxu0 0.0
  %4489 = vmatprep.subr.mxu0 0.0
  %4490 = vmatpush1.msra.mxu0 0.0
  %4491 = vmatprep.subr.mxu0 0.0
  %4492 = vmatpush1.msra.mxu0 0.0
  %4493 = vmatprep.subr.mxu0 0.0
  %4494 = vmatpush1.msra.mxu0 0.0
  %4495 = vmatprep.subr.mxu0 0.0
  %4496 = vmatpush1.msra.mxu0 0.0
  %4497 = vmatprep.subr.mxu0 0.0
  %4498 = vmatpush1.msra.mxu0 0.0
  %4499 = vmatprep.subr.mxu0 0.0
  %4500 = vmatpush1.msra.mxu0 0.0
  %4501 = vmatprep.subr.mxu0 0.0
  %4502 = vmatpush1.msra.mxu0 0.0
  %4503 = vmatprep.subr.mxu0 0.0
  %4504 = vmatpush1.msra.mxu0 0.0
  %4505 = vmatprep.subr.mxu0 0.0
  %4506 = vmatpush1.msra.mxu0 0.0
  %4507 = vmatprep.subr.mxu0 0.0
  %4508 = vmatpush1.msra.mxu0 0.0
  %4509 = vmatprep.subr.mxu0 0.0
  %4510 = vmatpush1.msra.mxu0 0.0
  %4511 = vmatprep.mubr.f32.mxu0 0.0
  %4512 = vmatmul.mubr.f32.gmra.mrb[0].mxu0 %v4445
  %v4513 = vpop.f32.mrb[0].mxu0
  %v4514 = vadd.f32 %v4442, %v4513
  %v4515 = vpop.f32.mrb[0].mxu0
  %4516 = vdwg.mxu0
  %v4517 = vxor.u32 %v4514, 2147483648
  %v4518 = vmul.f32 %v4517, 1.442695
  %v4519 = vpow.pop %v4518
  %v4520 = vadd.f32 %v4519, 1.0
  %v4521 = vrcp.pop %v4520
  %v4522 = vmul.f32 1.0, %v4521
  %4524 = vrot.lane.b32.xlu0 %v4514, 32
  %v4525 = vpop.permute.xlu0 %4524
  %v4527 = vmul.f32 %v4522, %v4525
  %4529 = vrot.lane.b32.xlu0 %v4527, 64
  %v4530 = vpop.permute.xlu0 %4529
  %v4532 = vadd.f32 %v4514, %v4530
  %v4533 = vtanh.pop %v4532
  %v4534 = vsub.f32 1.0, %v4522
  %4536 = vrot.lane.b32.xlu0 %v4533, 96
  %v4537 = vpop.permute.xlu0 %4536
  %v4539 = vmul.f32 %v4534, %v4537
  %v4540 = vmul.f32 %v4522, %v4069
  %v4541 = vadd.f32 %v4539, %v4540
  %4543 = vrot.lane.b32.xlu0 %v4541, 96
  %v4544 = vpop.permute.xlu0 %4543
  %v4545 = vsel %vm68, %v4544, 0
  %4547 = vmatprep.subr.mxu0 0.0
  %4548 = vmatpush1.msra.mxu0 %v3829
  %4549 = vmatprep.subr.mxu0 0.0
  %4550 = vmatpush1.msra.mxu0 %v3830
  %4551 = vmatprep.subr.mxu0 0.0
  %4552 = vmatpush1.msra.mxu0 %v3831
  %4553 = vmatprep.subr.mxu0 0.0
  %4554 = vmatpush1.msra.mxu0 %v3832
  %4555 = vmatprep.subr.mxu0 0.0
  %4556 = vmatpush1.msra.mxu0 0.0
  %4557 = vmatprep.subr.mxu0 0.0
  %4558 = vmatpush1.msra.mxu0 0.0
  %4559 = vmatprep.subr.mxu0 0.0
  %4560 = vmatpush1.msra.mxu0 0.0
  %4561 = vmatprep.subr.mxu0 0.0
  %4562 = vmatpush1.msra.mxu0 0.0
  %4563 = vmatprep.subr.mxu0 0.0
  %4564 = vmatpush1.msra.mxu0 0.0
  %4565 = vmatprep.subr.mxu0 0.0
  %4566 = vmatpush1.msra.mxu0 0.0
  %4567 = vmatprep.subr.mxu0 0.0
  %4568 = vmatpush1.msra.mxu0 0.0
  %4569 = vmatprep.subr.mxu0 0.0
  %4570 = vmatpush1.msra.mxu0 0.0
  %4571 = vmatprep.subr.mxu0 0.0
  %4572 = vmatpush1.msra.mxu0 0.0
  %4573 = vmatprep.subr.mxu0 0.0
  %4574 = vmatpush1.msra.mxu0 0.0
  %4575 = vmatprep.subr.mxu0 0.0
  %4576 = vmatpush1.msra.mxu0 0.0
  %4577 = vmatprep.subr.mxu0 0.0
  %4578 = vmatpush1.msra.mxu0 0.0
  %4579 = vmatprep.subr.mxu0 0.0
  %4580 = vmatpush1.msra.mxu0 0.0
  %4581 = vmatprep.subr.mxu0 0.0
  %4582 = vmatpush1.msra.mxu0 0.0
  %4583 = vmatprep.subr.mxu0 0.0
  %4584 = vmatpush1.msra.mxu0 0.0
  %4585 = vmatprep.subr.mxu0 0.0
  %4586 = vmatpush1.msra.mxu0 0.0
  %4587 = vmatprep.subr.mxu0 0.0
  %4588 = vmatpush1.msra.mxu0 0.0
  %4589 = vmatprep.subr.mxu0 0.0
  %4590 = vmatpush1.msra.mxu0 0.0
  %4591 = vmatprep.subr.mxu0 0.0
  %4592 = vmatpush1.msra.mxu0 0.0
  %4593 = vmatprep.subr.mxu0 0.0
  %4594 = vmatpush1.msra.mxu0 0.0
  %4595 = vmatprep.subr.mxu0 0.0
  %4596 = vmatpush1.msra.mxu0 0.0
  %4597 = vmatprep.subr.mxu0 0.0
  %4598 = vmatpush1.msra.mxu0 0.0
  %4599 = vmatprep.subr.mxu0 0.0
  %4600 = vmatpush1.msra.mxu0 0.0
  %4601 = vmatprep.subr.mxu0 0.0
  %4602 = vmatpush1.msra.mxu0 0.0
  %4603 = vmatprep.subr.mxu0 0.0
  %4604 = vmatpush1.msra.mxu0 0.0
  %4605 = vmatprep.subr.mxu0 0.0
  %4606 = vmatpush1.msra.mxu0 0.0
  %4607 = vmatprep.subr.mxu0 0.0
  %4608 = vmatpush1.msra.mxu0 0.0
  %4609 = vmatprep.subr.mxu0 0.0
  %4610 = vmatpush1.msra.mxu0 0.0
  %4611 = vmatprep.mubr.f32.mxu0 0.0
  %4612 = vmatmul.mubr.f32.gmra.mrb[0].mxu0 %v4545
  %v4613 = vpop.f32.mrb[0].mxu0
  %v4614 = vadd.f32 %v4074, %v4613
  %v4615 = vpop.f32.mrb[0].mxu0
  %4616 = vdwg.mxu0
  %vm4617 = vmxor %vm4306, 1
  %v4618 = vsel %vm4617, 1, 0
  %vm4619 = vcmp.eq.s32.totalorder %v4618, 1
  %v4620 = vsel %vm4619, %v4614, 0.0
  %v4622 = vcombine.high %v4620, %v4620
  %v4624 = vunpack.c.l.s4 1966171168
  %v4625 = vunpack.c.0.s8 %v4624
  %v4626 = vlaneseq
  %v4627 = vshrl.u32 %v4626, 7
  %v4628 = vsub.s32 %v4625, %v4627
  %v4629 = vrot.slane %v4620, %v4628
  %v4631 = vunpack.c.l.s4 1966171168
  %v4632 = vunpack.c.0.s8 %v4631
  %v4633 = vlaneseq
  %v4634 = vshrl.u32 %v4633, 7
  %v4635 = vsub.s32 %v4632, %v4634
  %v4636 = vrot.slane %v4622, %v4635
  %v4637 = vcombine.high %v4629, %v4629
  %v4638 = vcombine.high %v4636, %v4636
  %v4640 = vunpack.c.l.s4 1966171168
  %v4641 = vunpack.c.0.s8 %v4640
  %v4642 = vlaneseq
  %v4643 = vshrl.u32 %v4642, 7
  %v4644 = vsub.s32 %v4641, %v4643
  %v4645 = vrot.slane %v4629, %v4644
  %v4647 = vunpack.c.l.s4 1966171168
  %v4648 = vunpack.c.0.s8 %v4647
  %v4649 = vlaneseq
  %v4650 = vshrl.u32 %v4649, 7
  %v4651 = vsub.s32 %v4648, %v4650
  %v4652 = vrot.slane %v4636, %v4651
  %v4654 = vunpack.c.l.s4 1966171168
  %v4655 = vunpack.c.0.s8 %v4654
  %v4656 = vlaneseq
  %v4657 = vshrl.u32 %v4656, 7
  %v4658 = vsub.s32 %v4655, %v4657
  %v4659 = vrot.slane %v4637, %v4658
  %v4661 = vunpack.c.l.s4 1966171168
  %v4662 = vunpack.c.0.s8 %v4661
  %v4663 = vlaneseq
  %v4664 = vshrl.u32 %v4663, 7
  %v4665 = vsub.s32 %v4662, %v4664
  %v4666 = vrot.slane %v4638, %v4665
  %v4667 = vcombine.high %v4645, %v4645
  %v4668 = vcombine.high %v4652, %v4652
  %v4669 = vcombine.high %v4659, %v4659
  %v4670 = vcombine.high %v4666, %v4666
  %4679 = vst.msk [vmem:[%s13 + $0x1] sm:$0x1] %vm4209, %v4645
  %4680 = vst.msk [vmem:[%s13 + $0x9] sm:$0x1] %vm4209, %v4659
  %4681 = vst.msk [vmem:[%s13 + $0x11] sm:$0x1] %vm4209, %v4667
  %4682 = vst.msk [vmem:[%s13 + $0x19] sm:$0x1] %vm4209, %v4669
  %4683 = vst.msk [vmem:[%s13 + $0x21] sm:$0x1] %vm4209, %v4652
  %4684 = vst.msk [vmem:[%s13 + $0x29] sm:$0x1] %vm4209, %v4666
  %4685 = vst.msk [vmem:[%s13 + $0x31] sm:$0x1] %vm4209, %v4668
  %4686 = vst.msk [vmem:[%s13 + $0x39] sm:$0x1] %vm4209, %v4670
  %v4687 = vsel %vm68, %v4426, %v4541
  %v4688 = vsel %vm4619, %v4687, 0.0
  %v4690 = vcombine.high %v4688, %v4688
  %v4692 = vunpack.c.l.s4 1966171168
  %v4693 = vunpack.c.0.s8 %v4692
  %v4694 = vlaneseq
  %v4695 = vshrl.u32 %v4694, 7
  %v4696 = vsub.s32 %v4693, %v4695
  %v4697 = vrot.slane %v4688, %v4696
  %v4699 = vunpack.c.l.s4 1966171168
  %v4700 = vunpack.c.0.s8 %v4699
  %v4701 = vlaneseq
  %v4702 = vshrl.u32 %v4701, 7
  %v4703 = vsub.s32 %v4700, %v4702
  %v4704 = vrot.slane %v4690, %v4703
  %v4705 = vcombine.high %v4697, %v4697
  %v4706 = vcombine.high %v4704, %v4704
  %v4708 = vunpack.c.l.s4 1966171168
  %v4709 = vunpack.c.0.s8 %v4708
  %v4710 = vlaneseq
  %v4711 = vshrl.u32 %v4710, 7
  %v4712 = vsub.s32 %v4709, %v4711
  %v4713 = vrot.slane %v4697, %v4712
  %v4715 = vunpack.c.l.s4 1966171168
  %v4716 = vunpack.c.0.s8 %v4715
  %v4717 = vlaneseq
  %v4718 = vshrl.u32 %v4717, 7
  %v4719 = vsub.s32 %v4716, %v4718
  %v4720 = vrot.slane %v4704, %v4719
  %v4722 = vunpack.c.l.s4 1966171168
  %v4723 = vunpack.c.0.s8 %v4722
  %v4724 = vlaneseq
  %v4725 = vshrl.u32 %v4724, 7
  %v4726 = vsub.s32 %v4723, %v4725
  %v4727 = vrot.slane %v4705, %v4726
  %v4729 = vunpack.c.l.s4 1966171168
  %v4730 = vunpack.c.0.s8 %v4729
  %v4731 = vlaneseq
  %v4732 = vshrl.u32 %v4731, 7
  %v4733 = vsub.s32 %v4730, %v4732
  %v4734 = vrot.slane %v4706, %v4733
  %v4735 = vcombine.high %v4713, %v4713
  %v4736 = vcombine.high %v4720, %v4720
  %v4737 = vcombine.high %v4727, %v4727
  %v4738 = vcombine.high %v4734, %v4734
  %4747 = vst.msk [vmem:[%s14 + $0x1] sm:$0x1] %vm4277, %v4713
  %4748 = vst.msk [vmem:[%s14 + $0x9] sm:$0x1] %vm4277, %v4727
  %4749 = vst.msk [vmem:[%s14 + $0x11] sm:$0x1] %vm4277, %v4735
  %4750 = vst.msk [vmem:[%s14 + $0x19] sm:$0x1] %vm4277, %v4737
  %4751 = vst.msk [vmem:[%s14 + $0x21] sm:$0x1] %vm4277, %v4720
  %4752 = vst.msk [vmem:[%s14 + $0x29] sm:$0x1] %vm4277, %v4734
  %4753 = vst.msk [vmem:[%s14 + $0x31] sm:$0x1] %vm4277, %v4736
  %4754 = vst.msk [vmem:[%s14 + $0x39] sm:$0x1] %vm4277, %v4738
  %v4755 = vsel %vm68, %v4614, -inf
  %4756 = vmax.xlane.f32.xlu0 %v4755
  %v4757 = vpop.xlane.xlu0 %4756
  %vm4758 = vcmp.eq.f32.partialorder %v4614, %v4757
  %v4759 = vsel %vm4758, %v3825, 32
  %v4760 = vsel %vm68, %v4759, 2147483647
  %v4761 = vand.u32 %v4760, 65535
  %v4762 = vshra.s32 %v4760, 16
  %v4763 = vcvt.s32.f32 %v4761
  %v4764 = vcvt.s32.f32 %v4762
  %4765 = vmin.xlane.f32.xlu0 %v4764
  %v4766 = vpop.xlane.xlu0 %4765
  %vm4767 = vcmp.eq.f32.partialorder %v4764, %v4766
  %v4768 = vsel %vm4767, %v4763, inf
  %4769 = vmin.xlane.f32.xlu0 %v4768
  %v4770 = vpop.xlane.xlu0 %4769
  %v4771 = vcvt.f32.s32 %v4770
  %v4772 = vcvt.f32.s32 %v4766
  %v4773 = vshll.u32 %v4772, 16
  %v4774 = vadd.s32 %v4773, %v4771
  %vm4775 = vcmp.eq.s32.totalorder %v4774, 2
  %vm4776 = vmor %vm4306, %vm4775
  %vm4777 = vcmp.eq.s32.totalorder %v3825, %v4774
  %v4778 = vsel %vm4777, 1, 0
  %v4779 = vcvt.s32.f32 %v4778
  %v4780 = vsel %vm68, %v4779, %v4423
  %v4781 = vld [vmem:[%s7] sm:$0xff]
  %v4782 = vld [vmem:[%s7 + $0x8] sm:$0xff]
  %v4783 = vld [vmem:[%s7 + $0x10] sm:$0xff]
  %v4784 = vld [vmem:[%s7 + $0x18] sm:$0xff]
  %v4785 = vld [vmem:[%s7 + $0x20] sm:$0xff]
  %v4786 = vld [vmem:[%s7 + $0x28] sm:$0xff]
  %v4787 = vld [vmem:[%s7 + $0x30] sm:$0xff]
  %v4788 = vld [vmem:[%s7 + $0x38] sm:$0xff]
  %v4789 = vld [vmem:[%s8] sm:$0x1]
  %v4791 = vlaneseq
  %v4792 = vshrl.u32 %v4791, 7
  %v4793 = vsub.s32 0, %v4792
  %v4794 = vrot.slane %v4789, %v4793
  %v4797 = vsel %vm441, %v4780, 0
  %4799 = vmatprep.subr.mxu0 0.0
  %4800 = vmatpush1.msra.mxu0 %v4781
  %4801 = vmatprep.subr.mxu0 0.0
  %4802 = vmatpush1.msra.mxu0 %v4782
  %4803 = vmatprep.subr.mxu0 0.0
  %4804 = vmatpush1.msra.mxu0 %v4783
  %4805 = vmatprep.subr.mxu0 0.0
  %4806 = vmatpush1.msra.mxu0 %v4784
  %4807 = vmatprep.subr.mxu0 0.0
  %4808 = vmatpush1.msra.mxu0 %v4785
  %4809 = vmatprep.subr.mxu0 0.0
  %4810 = vmatpush1.msra.mxu0 %v4786
  %4811 = vmatprep.subr.mxu0 0.0
  %4812 = vmatpush1.msra.mxu0 %v4787
  %4813 = vmatprep.subr.mxu0 0.0
  %4814 = vmatpush1.msra.mxu0 %v4788
  %4815 = vmatprep.subr.mxu0 0.0
  %4816 = vmatpush1.msra.mxu0 0.0
  %4817 = vmatprep.subr.mxu0 0.0
  %4818 = vmatpush1.msra.mxu0 0.0
  %4819 = vmatprep.subr.mxu0 0.0
  %4820 = vmatpush1.msra.mxu0 0.0
  %4821 = vmatprep.subr.mxu0 0.0
  %4822 = vmatpush1.msra.mxu0 0.0
  %4823 = vmatprep.subr.mxu0 0.0
  %4824 = vmatpush1.msra.mxu0 0.0
  %4825 = vmatprep.subr.mxu0 0.0
  %4826 = vmatpush1.msra.mxu0 0.0
  %4827 = vmatprep.subr.mxu0 0.0
  %4828 = vmatpush1.msra.mxu0 0.0
  %4829 = vmatprep.subr.mxu0 0.0
  %4830 = vmatpush1.msra.mxu0 0.0
  %4831 = vmatprep.subr.mxu0 0.0
  %4832 = vmatpush1.msra.mxu0 0.0
  %4833 = vmatprep.subr.mxu0 0.0
  %4834 = vmatpush1.msra.mxu0 0.0
  %4835 = vmatprep.subr.mxu0 0.0
  %4836 = vmatpush1.msra.mxu0 0.0
  %4837 = vmatprep.subr.mxu0 0.0
  %4838 = vmatpush1.msra.mxu0 0.0
  %4839 = vmatprep.subr.mxu0 0.0
  %4840 = vmatpush1.msra.mxu0 0.0
  %4841 = vmatprep.subr.mxu0 0.0
  %4842 = vmatpush1.msra.mxu0 0.0
  %4843 = vmatprep.subr.mxu0 0.0
  %4844 = vmatpush1.msra.mxu0 0.0
  %4845 = vmatprep.subr.mxu0 0.0
  %4846 = vmatpush1.msra.mxu0 0.0
  %4847 = vmatprep.subr.mxu0 0.0
  %4848 = vmatpush1.msra.mxu0 0.0
  %4849 = vmatprep.subr.mxu0 0.0
  %4850 = vmatpush1.msra.mxu0 0.0
  %4851 = vmatprep.subr.mxu0 0.0
  %4852 = vmatpush1.msra.mxu0 0.0
  %4853 = vmatprep.subr.mxu0 0.0
  %4854 = vmatpush1.msra.mxu0 0.0
  %4855 = vmatprep.subr.mxu0 0.0
  %4856 = vmatpush1.msra.mxu0 0.0
  %4857 = vmatprep.subr.mxu0 0.0
  %4858 = vmatpush1.msra.mxu0 0.0
  %4859 = vmatprep.subr.mxu0 0.0
  %4860 = vmatpush1.msra.mxu0 0.0
  %4861 = vmatprep.subr.mxu0 0.0
  %4862 = vmatpush1.msra.mxu0 0.0
  %4863 = vmatprep.mubr.f32.mxu0 0.0
  %4864 = vmatmul.mubr.f32.gmra.mrb[0].mxu0 %v4797
  %v4865 = vpop.f32.mrb[0].mxu0
  %v4866 = vadd.f32 %v4794, %v4865
  %v4867 = vpop.f32.mrb[0].mxu0
  %4868 = vdwg.mxu0
  %v4869 = vxor.u32 %v4866, 2147483648
  %v4870 = vmul.f32 %v4869, 1.442695
  %v4871 = vpow.pop %v4870
  %v4872 = vadd.f32 %v4871, 1.0
  %v4873 = vrcp.pop %v4872
  %v4874 = vmul.f32 1.0, %v4873
  %4876 = vrot.lane.b32.xlu0 %v4866, 32
  %v4877 = vpop.permute.xlu0 %4876
  %v4879 = vmul.f32 %v4874, %v4877
  %4881 = vrot.lane.b32.xlu0 %v4879, 64
  %v4882 = vpop.permute.xlu0 %4881
  %v4884 = vadd.f32 %v4866, %v4882
  %v4885 = vtanh.pop %v4884
  %v4886 = vsub.f32 1.0, %v4874
  %4888 = vrot.lane.b32.xlu0 %v4885, 96
  %v4889 = vpop.permute.xlu0 %4888
  %v4891 = vmul.f32 %v4886, %v4889
  %v4892 = vmul.f32 %v4874, %v4423
  %v4893 = vadd.f32 %v4891, %v4892
  %4895 = vrot.lane.b32.xlu0 %v4893, 96
  %v4896 = vpop.permute.xlu0 %4895
  %v4898 = vsel %vm68, %v4896, %v4541
  %v4899 = vld [vmem:[%s9] sm:$0xff]
  %v4900 = vld [vmem:[%s9 + $0x8] sm:$0xff]
  %v4901 = vld [vmem:[%s9 + $0x10] sm:$0xff]
  %v4902 = vld [vmem:[%s9 + $0x18] sm:$0xff]
  %v4903 = vld [vmem:[%s9 + $0x20] sm:$0xff]
  %v4904 = vld [vmem:[%s9 + $0x28] sm:$0xff]
  %v4905 = vld [vmem:[%s9 + $0x30] sm:$0xff]
  %v4906 = vld [vmem:[%s9 + $0x38] sm:$0xff]
  %v4907 = vld [vmem:[%s10] sm:$0x1]
  %v4909 = vlaneseq
  %v4910 = vshrl.u32 %v4909, 7
  %v4911 = vsub.s32 0, %v4910
  %v4912 = vrot.slane %v4907, %v4911
  %v4915 = vsel %vm441, %v4898, 0
  %4917 = vmatprep.subr.mxu0 0.0
  %4918 = vmatpush1.msra.mxu0 %v4899
  %4919 = vmatprep.subr.mxu0 0.0
  %4920 = vmatpush1.msra.mxu0 %v4900
  %4921 = vmatprep.subr.mxu0 0.0
  %4922 = vmatpush1.msra.mxu0 %v4901
  %4923 = vmatprep.subr.mxu0 0.0
  %4924 = vmatpush1.msra.mxu0 %v4902
  %4925 = vmatprep.subr.mxu0 0.0
  %4926 = vmatpush1.msra.mxu0 %v4903
  %4927 = vmatprep.subr.mxu0 0.0
  %4928 = vmatpush1.msra.mxu0 %v4904
  %4929 = vmatprep.subr.mxu0 0.0
  %4930 = vmatpush1.msra.mxu0 %v4905
  %4931 = vmatprep.subr.mxu0 0.0
  %4932 = vmatpush1.msra.mxu0 %v4906
  %4933 = vmatprep.subr.mxu0 0.0
  %4934 = vmatpush1.msra.mxu0 0.0
  %4935 = vmatprep.subr.mxu0 0.0
  %4936 = vmatpush1.msra.mxu0 0.0
  %4937 = vmatprep.subr.mxu0 0.0
  %4938 = vmatpush1.msra.mxu0 0.0
  %4939 = vmatprep.subr.mxu0 0.0
  %4940 = vmatpush1.msra.mxu0 0.0
  %4941 = vmatprep.subr.mxu0 0.0
  %4942 = vmatpush1.msra.mxu0 0.0
  %4943 = vmatprep.subr.mxu0 0.0
  %4944 = vmatpush1.msra.mxu0 0.0
  %4945 = vmatprep.subr.mxu0 0.0
  %4946 = vmatpush1.msra.mxu0 0.0
  %4947 = vmatprep.subr.mxu0 0.0
  %4948 = vmatpush1.msra.mxu0 0.0
  %4949 = vmatprep.subr.mxu0 0.0
  %4950 = vmatpush1.msra.mxu0 0.0
  %4951 = vmatprep.subr.mxu0 0.0
  %4952 = vmatpush1.msra.mxu0 0.0
  %4953 = vmatprep.subr.mxu0 0.0
  %4954 = vmatpush1.msra.mxu0 0.0
  %4955 = vmatprep.subr.mxu0 0.0
  %4956 = vmatpush1.msra.mxu0 0.0
  %4957 = vmatprep.subr.mxu0 0.0
  %4958 = vmatpush1.msra.mxu0 0.0
  %4959 = vmatprep.subr.mxu0 0.0
  %4960 = vmatpush1.msra.mxu0 0.0
  %4961 = vmatprep.subr.mxu0 0.0
  %4962 = vmatpush1.msra.mxu0 0.0
  %4963 = vmatprep.subr.mxu0 0.0
  %4964 = vmatpush1.msra.mxu0 0.0
  %4965 = vmatprep.subr.mxu0 0.0
  %4966 = vmatpush1.msra.mxu0 0.0
  %4967 = vmatprep.subr.mxu0 0.0
  %4968 = vmatpush1.msra.mxu0 0.0
  %4969 = vmatprep.subr.mxu0 0.0
  %4970 = vmatpush1.msra.mxu0 0.0
  %4971 = vmatprep.subr.mxu0 0.0
  %4972 = vmatpush1.msra.mxu0 0.0
  %4973 = vmatprep.subr.mxu0 0.0
  %4974 = vmatpush1.msra.mxu0 0.0
  %4975 = vmatprep.subr.mxu0 0.0
  %4976 = vmatpush1.msra.mxu0 0.0
  %4977 = vmatprep.subr.mxu0 0.0
  %4978 = vmatpush1.msra.mxu0 0.0
  %4979 = vmatprep.subr.mxu0 0.0
  %4980 = vmatpush1.msra.mxu0 0.0
  %4981 = vmatprep.mubr.f32.mxu0 0.0
  %4982 = vmatmul.mubr.f32.gmra.mrb[0].mxu0 %v4915
  %v4983 = vpop.f32.mrb[0].mxu0
  %v4984 = vadd.f32 %v4912, %v4983
  %v4985 = vpop.f32.mrb[0].mxu0
  %4986 = vdwg.mxu0
  %v4987 = vxor.u32 %v4984, 2147483648
  %v4988 = vmul.f32 %v4987, 1.442695
  %v4989 = vpow.pop %v4988
  %v4990 = vadd.f32 %v4989, 1.0
  %v4991 = vrcp.pop %v4990
  %v4992 = vmul.f32 1.0, %v4991
  %4994 = vrot.lane.b32.xlu0 %v4984, 32
  %v4995 = vpop.permute.xlu0 %4994
  %v4997 = vmul.f32 %v4992, %v4995
  %4999 = vrot.lane.b32.xlu0 %v4997, 64
  %v5000 = vpop.permute.xlu0 %4999
  %v5002 = vadd.f32 %v4984, %v5000
  %v5003 = vtanh.pop %v5002
  %v5004 = vsub.f32 1.0, %v4992
  %5006 = vrot.lane.b32.xlu0 %v5003, 96
  %v5007 = vpop.permute.xlu0 %5006
  %v5009 = vmul.f32 %v5004, %v5007
  %v5010 = vmul.f32 %v4992, %v4541
  %v5011 = vadd.f32 %v5009, %v5010
  %5013 = vrot.lane.b32.xlu0 %v5011, 96
  %v5014 = vpop.permute.xlu0 %5013
  %v5015 = vsel %vm68, %v5014, 0
  %5017 = vmatprep.subr.mxu0 0.0
  %5018 = vmatpush1.msra.mxu0 %v3829
  %5019 = vmatprep.subr.mxu0 0.0
  %5020 = vmatpush1.msra.mxu0 %v3830
  %5021 = vmatprep.subr.mxu0 0.0
  %5022 = vmatpush1.msra.mxu0 %v3831
  %5023 = vmatprep.subr.mxu0 0.0
  %5024 = vmatpush1.msra.mxu0 %v3832
  %5025 = vmatprep.subr.mxu0 0.0
  %5026 = vmatpush1.msra.mxu0 0.0
  %5027 = vmatprep.subr.mxu0 0.0
  %5028 = vmatpush1.msra.mxu0 0.0
  %5029 = vmatprep.subr.mxu0 0.0
  %5030 = vmatpush1.msra.mxu0 0.0
  %5031 = vmatprep.subr.mxu0 0.0
  %5032 = vmatpush1.msra.mxu0 0.0
  %5033 = vmatprep.subr.mxu0 0.0
  %5034 = vmatpush1.msra.mxu0 0.0
  %5035 = vmatprep.subr.mxu0 0.0
  %5036 = vmatpush1.msra.mxu0 0.0
  %5037 = vmatprep.subr.mxu0 0.0
  %5038 = vmatpush1.msra.mxu0 0.0
  %5039 = vmatprep.subr.mxu0 0.0
  %5040 = vmatpush1.msra.mxu0 0.0
  %5041 = vmatprep.subr.mxu0 0.0
  %5042 = vmatpush1.msra.mxu0 0.0
  %5043 = vmatprep.subr.mxu0 0.0
  %5044 = vmatpush1.msra.mxu0 0.0
  %5045 = vmatprep.subr.mxu0 0.0
  %5046 = vmatpush1.msra.mxu0 0.0
  %5047 = vmatprep.subr.mxu0 0.0
  %5048 = vmatpush1.msra.mxu0 0.0
  %5049 = vmatprep.subr.mxu0 0.0
  %5050 = vmatpush1.msra.mxu0 0.0
  %5051 = vmatprep.subr.mxu0 0.0
  %5052 = vmatpush1.msra.mxu0 0.0
  %5053 = vmatprep.subr.mxu0 0.0
  %5054 = vmatpush1.msra.mxu0 0.0
  %5055 = vmatprep.subr.mxu0 0.0
  %5056 = vmatpush1.msra.mxu0 0.0
  %5057 = vmatprep.subr.mxu0 0.0
  %5058 = vmatpush1.msra.mxu0 0.0
  %5059 = vmatprep.subr.mxu0 0.0
  %5060 = vmatpush1.msra.mxu0 0.0
  %5061 = vmatprep.subr.mxu0 0.0
  %5062 = vmatpush1.msra.mxu0 0.0
  %5063 = vmatprep.subr.mxu0 0.0
  %5064 = vmatpush1.msra.mxu0 0.0
  %5065 = vmatprep.subr.mxu0 0.0
  %5066 = vmatpush1.msra.mxu0 0.0
  %5067 = vmatprep.subr.mxu0 0.0
  %5068 = vmatpush1.msra.mxu0 0.0
  %5069 = vmatprep.subr.mxu0 0.0
  %5070 = vmatpush1.msra.mxu0 0.0
  %5071 = vmatprep.subr.mxu0 0.0
  %5072 = vmatpush1.msra.mxu0 0.0
  %5073 = vmatprep.subr.mxu0 0.0
  %5074 = vmatpush1.msra.mxu0 0.0
  %5075 = vmatprep.subr.mxu0 0.0
  %5076 = vmatpush1.msra.mxu0 0.0
  %5077 = vmatprep.subr.mxu0 0.0
  %5078 = vmatpush1.msra.mxu0 0.0
  %5079 = vmatprep.subr.mxu0 0.0
  %5080 = vmatpush1.msra.mxu0 0.0
  %5081 = vmatprep.mubr.f32.mxu0 0.0
  %5082 = vmatmul.mubr.f32.gmra.mrb[0].mxu0 %v5015
  %v5083 = vpop.f32.mrb[0].mxu0
  %v5084 = vadd.f32 %v4074, %v5083
  %v5085 = vpop.f32.mrb[0].mxu0
  %5086 = vdwg.mxu0
  %vm5087 = vmxor %vm4776, 1
  %v5088 = vsel %vm5087, 1, 0
  %vm5089 = vcmp.eq.s32.totalorder %v5088, 1
  %v5090 = vsel %vm5089, %v5084, 0.0
  %v5092 = vcombine.high %v5090, %v5090
  %v5094 = vunpack.c.l.s4 1966171168
  %v5095 = vunpack.c.0.s8 %v5094
  %v5096 = vlaneseq
  %v5097 = vshrl.u32 %v5096, 7
  %v5098 = vsub.s32 %v5095, %v5097
  %v5099 = vrot.slane %v5090, %v5098
  %v5101 = vunpack.c.l.s4 1966171168
  %v5102 = vunpack.c.0.s8 %v5101
  %v5103 = vlaneseq
  %v5104 = vshrl.u32 %v5103, 7
  %v5105 = vsub.s32 %v5102, %v5104
  %v5106 = vrot.slane %v5092, %v5105
  %v5107 = vcombine.high %v5099, %v5099
  %v5108 = vcombine.high %v5106, %v5106
  %v5110 = vunpack.c.l.s4 1966171168
  %v5111 = vunpack.c.0.s8 %v5110
  %v5112 = vlaneseq
  %v5113 = vshrl.u32 %v5112, 7
  %v5114 = vsub.s32 %v5111, %v5113
  %v5115 = vrot.slane %v5099, %v5114
  %v5117 = vunpack.c.l.s4 1966171168
  %v5118 = vunpack.c.0.s8 %v5117
  %v5119 = vlaneseq
  %v5120 = vshrl.u32 %v5119, 7
  %v5121 = vsub.s32 %v5118, %v5120
  %v5122 = vrot.slane %v5106, %v5121
  %v5124 = vunpack.c.l.s4 1966171168
  %v5125 = vunpack.c.0.s8 %v5124
  %v5126 = vlaneseq
  %v5127 = vshrl.u32 %v5126, 7
  %v5128 = vsub.s32 %v5125, %v5127
  %v5129 = vrot.slane %v5107, %v5128
  %v5131 = vunpack.c.l.s4 1966171168
  %v5132 = vunpack.c.0.s8 %v5131
  %v5133 = vlaneseq
  %v5134 = vshrl.u32 %v5133, 7
  %v5135 = vsub.s32 %v5132, %v5134
  %v5136 = vrot.slane %v5108, %v5135
  %v5137 = vcombine.high %v5115, %v5115
  %v5138 = vcombine.high %v5122, %v5122
  %v5139 = vcombine.high %v5129, %v5129
  %v5140 = vcombine.high %v5136, %v5136
  %5149 = vst.msk [vmem:[%s13 + $0x2] sm:$0x1] %vm4209, %v5115
  %5150 = vst.msk [vmem:[%s13 + $0xa] sm:$0x1] %vm4209, %v5129
  %5151 = vst.msk [vmem:[%s13 + $0x12] sm:$0x1] %vm4209, %v5137
  %5152 = vst.msk [vmem:[%s13 + $0x1a] sm:$0x1] %vm4209, %v5139
  %5153 = vst.msk [vmem:[%s13 + $0x22] sm:$0x1] %vm4209, %v5122
  %5154 = vst.msk [vmem:[%s13 + $0x2a] sm:$0x1] %vm4209, %v5136
  %5155 = vst.msk [vmem:[%s13 + $0x32] sm:$0x1] %vm4209, %v5138
  %5156 = vst.msk [vmem:[%s13 + $0x3a] sm:$0x1] %vm4209, %v5140
  %v5157 = vsel %vm68, %v4896, %v5011
  %v5158 = vsel %vm5089, %v5157, 0.0
  %v5160 = vcombine.high %v5158, %v5158
  %v5162 = vunpack.c.l.s4 1966171168
  %v5163 = vunpack.c.0.s8 %v5162
  %v5164 = vlaneseq
  %v5165 = vshrl.u32 %v5164, 7
  %v5166 = vsub.s32 %v5163, %v5165
  %v5167 = vrot.slane %v5158, %v5166
  %v5169 = vunpack.c.l.s4 1966171168
  %v5170 = vunpack.c.0.s8 %v5169
  %v5171 = vlaneseq
  %v5172 = vshrl.u32 %v5171, 7
  %v5173 = vsub.s32 %v5170, %v5172
  %v5174 = vrot.slane %v5160, %v5173
  %v5175 = vcombine.high %v5167, %v5167
  %v5176 = vcombine.high %v5174, %v5174
  %v5178 = vunpack.c.l.s4 1966171168
  %v5179 = vunpack.c.0.s8 %v5178
  %v5180 = vlaneseq
  %v5181 = vshrl.u32 %v5180, 7
  %v5182 = vsub.s32 %v5179, %v5181
  %v5183 = vrot.slane %v5167, %v5182
  %v5185 = vunpack.c.l.s4 1966171168
  %v5186 = vunpack.c.0.s8 %v5185
  %v5187 = vlaneseq
  %v5188 = vshrl.u32 %v5187, 7
  %v5189 = vsub.s32 %v5186, %v5188
  %v5190 = vrot.slane %v5174, %v5189
  %v5192 = vunpack.c.l.s4 1966171168
  %v5193 = vunpack.c.0.s8 %v5192
  %v5194 = vlaneseq
  %v5195 = vshrl.u32 %v5194, 7
  %v5196 = vsub.s32 %v5193, %v5195
  %v5197 = vrot.slane %v5175, %v5196
  %v5199 = vunpack.c.l.s4 1966171168
  %v5200 = vunpack.c.0.s8 %v5199
  %v5201 = vlaneseq
  %v5202 = vshrl.u32 %v5201, 7
  %v5203 = vsub.s32 %v5200, %v5202
  %v5204 = vrot.slane %v5176, %v5203
  %v5205 = vcombine.high %v5183, %v5183
  %v5206 = vcombine.high %v5190, %v5190
  %v5207 = vcombine.high %v5197, %v5197
  %v5208 = vcombine.high %v5204, %v5204
  %5217 = vst.msk [vmem:[%s14 + $0x2] sm:$0x1] %vm4277, %v5183
  %5218 = vst.msk [vmem:[%s14 + $0xa] sm:$0x1] %vm4277, %v5197
  %5219 = vst.msk [vmem:[%s14 + $0x12] sm:$0x1] %vm4277, %v5205
  %5220 = vst.msk [vmem:[%s14 + $0x1a] sm:$0x1] %vm4277, %v5207
  %5221 = vst.msk [vmem:[%s14 + $0x22] sm:$0x1] %vm4277, %v5190
  %5222 = vst.msk [vmem:[%s14 + $0x2a] sm:$0x1] %vm4277, %v5204
  %5223 = vst.msk [vmem:[%s14 + $0x32] sm:$0x1] %vm4277, %v5206
  %5224 = vst.msk [vmem:[%s14 + $0x3a] sm:$0x1] %vm4277, %v5208
  %v5225 = vsel %vm68, %v5084, -inf
  %5226 = vmax.xlane.f32.xlu0 %v5225
  %v5227 = vpop.xlane.xlu0 %5226
  %vm5228 = vcmp.eq.f32.partialorder %v5084, %v5227
  %v5229 = vsel %vm5228, %v3825, 32
  %v5230 = vsel %vm68, %v5229, 2147483647
  %v5231 = vand.u32 %v5230, 65535
  %v5232 = vshra.s32 %v5230, 16
  %v5233 = vcvt.s32.f32 %v5231
  %v5234 = vcvt.s32.f32 %v5232
  %5235 = vmin.xlane.f32.xlu0 %v5234
  %v5236 = vpop.xlane.xlu0 %5235
  %vm5237 = vcmp.eq.f32.partialorder %v5234, %v5236
  %v5238 = vsel %vm5237, %v5233, inf
  %5239 = vmin.xlane.f32.xlu0 %v5238
  %v5240 = vpop.xlane.xlu0 %5239
  %v5241 = vcvt.f32.s32 %v5240
  %v5242 = vcvt.f32.s32 %v5236
  %v5243 = vshll.u32 %v5242, 16
  %v5244 = vadd.s32 %v5243, %v5241
  %vm5245 = vcmp.eq.s32.totalorder %v5244, 2
  %vm5246 = vmor %vm4776, %vm5245
  %vm5247 = vcmp.eq.s32.totalorder %v3825, %v5244
  %v5248 = vsel %vm5247, 1, 0
  %v5249 = vcvt.s32.f32 %v5248
  %v5250 = vsel %vm68, %v5249, %v4893
  %v5251 = vld [vmem:[%s7] sm:$0xff]
  %v5252 = vld [vmem:[%s7 + $0x8] sm:$0xff]
  %v5253 = vld [vmem:[%s7 + $0x10] sm:$0xff]
  %v5254 = vld [vmem:[%s7 + $0x18] sm:$0xff]
  %v5255 = vld [vmem:[%s7 + $0x20] sm:$0xff]
  %v5256 = vld [vmem:[%s7 + $0x28] sm:$0xff]
  %v5257 = vld [vmem:[%s7 + $0x30] sm:$0xff]
  %v5258 = vld [vmem:[%s7 + $0x38] sm:$0xff]
  %v5259 = vld [vmem:[%s8] sm:$0x1]
  %v5261 = vlaneseq
  %v5262 = vshrl.u32 %v5261, 7
  %v5263 = vsub.s32 0, %v5262
  %v5264 = vrot.slane %v5259, %v5263
  %v5267 = vsel %vm441, %v5250, 0
  %5269 = vmatprep.subr.mxu0 0.0
  %5270 = vmatpush1.msra.mxu0 %v5251
  %5271 = vmatprep.subr.mxu0 0.0
  %5272 = vmatpush1.msra.mxu0 %v5252
  %5273 = vmatprep.subr.mxu0 0.0
  %5274 = vmatpush1.msra.mxu0 %v5253
  %5275 = vmatprep.subr.mxu0 0.0
  %5276 = vmatpush1.msra.mxu0 %v5254
  %5277 = vmatprep.subr.mxu0 0.0
  %5278 = vmatpush1.msra.mxu0 %v5255
  %5279 = vmatprep.subr.mxu0 0.0
  %5280 = vmatpush1.msra.mxu0 %v5256
  %5281 = vmatprep.subr.mxu0 0.0
  %5282 = vmatpush1.msra.mxu0 %v5257
  %5283 = vmatprep.subr.mxu0 0.0
  %5284 = vmatpush1.msra.mxu0 %v5258
  %5285 = vmatprep.subr.mxu0 0.0
  %5286 = vmatpush1.msra.mxu0 0.0
  %5287 = vmatprep.subr.mxu0 0.0
  %5288 = vmatpush1.msra.mxu0 0.0
  %5289 = vmatprep.subr.mxu0 0.0
  %5290 = vmatpush1.msra.mxu0 0.0
  %5291 = vmatprep.subr.mxu0 0.0
  %5292 = vmatpush1.msra.mxu0 0.0
  %5293 = vmatprep.subr.mxu0 0.0
  %5294 = vmatpush1.msra.mxu0 0.0
  %5295 = vmatprep.subr.mxu0 0.0
  %5296 = vmatpush1.msra.mxu0 0.0
  %5297 = vmatprep.subr.mxu0 0.0
  %5298 = vmatpush1.msra.mxu0 0.0
  %5299 = vmatprep.subr.mxu0 0.0
  %5300 = vmatpush1.msra.mxu0 0.0
  %5301 = vmatprep.subr.mxu0 0.0
  %5302 = vmatpush1.msra.mxu0 0.0
  %5303 = vmatprep.subr.mxu0 0.0
  %5304 = vmatpush1.msra.mxu0 0.0
  %5305 = vmatprep.subr.mxu0 0.0
  %5306 = vmatpush1.msra.mxu0 0.0
  %5307 = vmatprep.subr.mxu0 0.0
  %5308 = vmatpush1.msra.mxu0 0.0
  %5309 = vmatprep.subr.mxu0 0.0
  %5310 = vmatpush1.msra.mxu0 0.0
  %5311 = vmatprep.subr.mxu0 0.0
  %5312 = vmatpush1.msra.mxu0 0.0
  %5313 = vmatprep.subr.mxu0 0.0
  %5314 = vmatpush1.msra.mxu0 0.0
  %5315 = vmatprep.subr.mxu0 0.0
  %5316 = vmatpush1.msra.mxu0 0.0
  %5317 = vmatprep.subr.mxu0 0.0
  %5318 = vmatpush1.msra.mxu0 0.0
  %5319 = vmatprep.subr.mxu0 0.0
  %5320 = vmatpush1.msra.mxu0 0.0
  %5321 = vmatprep.subr.mxu0 0.0
  %5322 = vmatpush1.msra.mxu0 0.0
  %5323 = vmatprep.subr.mxu0 0.0
  %5324 = vmatpush1.msra.mxu0 0.0
  %5325 = vmatprep.subr.mxu0 0.0
  %5326 = vmatpush1.msra.mxu0 0.0
  %5327 = vmatprep.subr.mxu0 0.0
  %5328 = vmatpush1.msra.mxu0 0.0
  %5329 = vmatprep.subr.mxu0 0.0
  %5330 = vmatpush1.msra.mxu0 0.0
  %5331 = vmatprep.subr.mxu0 0.0
  %5332 = vmatpush1.msra.mxu0 0.0
  %5333 = vmatprep.mubr.f32.mxu0 0.0
  %5334 = vmatmul.mubr.f32.gmra.mrb[0].mxu0 %v5267
  %v5335 = vpop.f32.mrb[0].mxu0
  %v5336 = vadd.f32 %v5264, %v5335
  %v5337 = vpop.f32.mrb[0].mxu0
  %5338 = vdwg.mxu0
  %v5339 = vxor.u32 %v5336, 2147483648
  %v5340 = vmul.f32 %v5339, 1.442695
  %v5341 = vpow.pop %v5340
  %v5342 = vadd.f32 %v5341, 1.0
  %v5343 = vrcp.pop %v5342
  %v5344 = vmul.f32 1.0, %v5343
  %5346 = vrot.lane.b32.xlu0 %v5336, 32
  %v5347 = vpop.permute.xlu0 %5346
  %v5349 = vmul.f32 %v5344, %v5347
  %5351 = vrot.lane.b32.xlu0 %v5349, 64
  %v5352 = vpop.permute.xlu0 %5351
  %v5354 = vadd.f32 %v5336, %v5352
  %v5355 = vtanh.pop %v5354
  %v5356 = vsub.f32 1.0, %v5344
  %5358 = vrot.lane.b32.xlu0 %v5355, 96
  %v5359 = vpop.permute.xlu0 %5358
  %v5361 = vmul.f32 %v5356, %v5359
  %v5362 = vmul.f32 %v5344, %v4893
  %v5363 = vadd.f32 %v5361, %v5362
  %5365 = vrot.lane.b32.xlu0 %v5363, 96
  %v5366 = vpop.permute.xlu0 %5365
  %v5368 = vsel %vm68, %v5366, %v5011
  %v5369 = vld [vmem:[%s9] sm:$0xff]
  %v5370 = vld [vmem:[%s9 + $0x8] sm:$0xff]
  %v5371 = vld [vmem:[%s9 + $0x10] sm:$0xff]
  %v5372 = vld [vmem:[%s9 + $0x18] sm:$0xff]
  %v5373 = vld [vmem:[%s9 + $0x20] sm:$0xff]
  %v5374 = vld [vmem:[%s9 + $0x28] sm:$0xff]
  %v5375 = vld [vmem:[%s9 + $0x30] sm:$0xff]
  %v5376 = vld [vmem:[%s9 + $0x38] sm:$0xff]
  %v5377 = vld [vmem:[%s10] sm:$0x1]
  %v5379 = vlaneseq
  %v5380 = vshrl.u32 %v5379, 7
  %v5381 = vsub.s32 0, %v5380
  %v5382 = vrot.slane %v5377, %v5381
  %v5385 = vsel %vm441, %v5368, 0
  %5387 = vmatprep.subr.mxu0 0.0
  %5388 = vmatpush1.msra.mxu0 %v5369
  %5389 = vmatprep.subr.mxu0 0.0
  %5390 = vmatpush1.msra.mxu0 %v5370
  %5391 = vmatprep.subr.mxu0 0.0
  %5392 = vmatpush1.msra.mxu0 %v5371
  %5393 = vmatprep.subr.mxu0 0.0
  %5394 = vmatpush1.msra.mxu0 %v5372
  %5395 = vmatprep.subr.mxu0 0.0
  %5396 = vmatpush1.msra.mxu0 %v5373
  %5397 = vmatprep.subr.mxu0 0.0
  %5398 = vmatpush1.msra.mxu0 %v5374
  %5399 = vmatprep.subr.mxu0 0.0
  %5400 = vmatpush1.msra.mxu0 %v5375
  %5401 = vmatprep.subr.mxu0 0.0
  %5402 = vmatpush1.msra.mxu0 %v5376
  %5403 = vmatprep.subr.mxu0 0.0
  %5404 = vmatpush1.msra.mxu0 0.0
  %5405 = vmatprep.subr.mxu0 0.0
  %5406 = vmatpush1.msra.mxu0 0.0
  %5407 = vmatprep.subr.mxu0 0.0
  %5408 = vmatpush1.msra.mxu0 0.0
  %5409 = vmatprep.subr.mxu0 0.0
  %5410 = vmatpush1.msra.mxu0 0.0
  %5411 = vmatprep.subr.mxu0 0.0
  %5412 = vmatpush1.msra.mxu0 0.0
  %5413 = vmatprep.subr.mxu0 0.0
  %5414 = vmatpush1.msra.mxu0 0.0
  %5415 = vmatprep.subr.mxu0 0.0
  %5416 = vmatpush1.msra.mxu0 0.0
  %5417 = vmatprep.subr.mxu0 0.0
  %5418 = vmatpush1.msra.mxu0 0.0
  %5419 = vmatprep.subr.mxu0 0.0
  %5420 = vmatpush1.msra.mxu0 0.0
  %5421 = vmatprep.subr.mxu0 0.0
  %5422 = vmatpush1.msra.mxu0 0.0
  %5423 = vmatprep.subr.mxu0 0.0
  %5424 = vmatpush1.msra.mxu0 0.0
  %5425 = vmatprep.subr.mxu0 0.0
  %5426 = vmatpush1.msra.mxu0 0.0
  %5427 = vmatprep.subr.mxu0 0.0
  %5428 = vmatpush1.msra.mxu0 0.0
  %5429 = vmatprep.subr.mxu0 0.0
  %5430 = vmatpush1.msra.mxu0 0.0
  %5431 = vmatprep.subr.mxu0 0.0
  %5432 = vmatpush1.msra.mxu0 0.0
  %5433 = vmatprep.subr.mxu0 0.0
  %5434 = vmatpush1.msra.mxu0 0.0
  %5435 = vmatprep.subr.mxu0 0.0
  %5436 = vmatpush1.msra.mxu0 0.0
  %5437 = vmatprep.subr.mxu0 0.0
  %5438 = vmatpush1.msra.mxu0 0.0
  %5439 = vmatprep.subr.mxu0 0.0
  %5440 = vmatpush1.msra.mxu0 0.0
  %5441 = vmatprep.subr.mxu0 0.0
  %5442 = vmatpush1.msra.mxu0 0.0
  %5443 = vmatprep.subr.mxu0 0.0
  %5444 = vmatpush1.msra.mxu0 0.0
  %5445 = vmatprep.subr.mxu0 0.0
  %5446 = vmatpush1.msra.mxu0 0.0
  %5447 = vmatprep.subr.mxu0 0.0
  %5448 = vmatpush1.msra.mxu0 0.0
  %5449 = vmatprep.subr.mxu0 0.0
  %5450 = vmatpush1.msra.mxu0 0.0
  %5451 = vmatprep.mubr.f32.mxu0 0.0
  %5452 = vmatmul.mubr.f32.gmra.mrb[0].mxu0 %v5385
  %v5453 = vpop.f32.mrb[0].mxu0
  %v5454 = vadd.f32 %v5382, %v5453
  %v5455 = vpop.f32.mrb[0].mxu0
  %5456 = vdwg.mxu0
  %v5457 = vxor.u32 %v5454, 2147483648
  %v5458 = vmul.f32 %v5457, 1.442695
  %v5459 = vpow.pop %v5458
  %v5460 = vadd.f32 %v5459, 1.0
  %v5461 = vrcp.pop %v5460
  %v5462 = vmul.f32 1.0, %v5461
  %5464 = vrot.lane.b32.xlu0 %v5454, 32
  %v5465 = vpop.permute.xlu0 %5464
  %v5467 = vmul.f32 %v5462, %v5465
  %5469 = vrot.lane.b32.xlu0 %v5467, 64
  %v5470 = vpop.permute.xlu0 %5469
  %v5472 = vadd.f32 %v5454, %v5470
  %v5473 = vtanh.pop %v5472
  %v5474 = vsub.f32 1.0, %v5462
  %5476 = vrot.lane.b32.xlu0 %v5473, 96
  %v5477 = vpop.permute.xlu0 %5476
  %v5479 = vmul.f32 %v5474, %v5477
  %v5480 = vmul.f32 %v5462, %v5011
  %v5481 = vadd.f32 %v5479, %v5480
  %5483 = vrot.lane.b32.xlu0 %v5481, 96
  %v5484 = vpop.permute.xlu0 %5483
  %v5485 = vsel %vm68, %v5484, 0
  %5487 = vmatprep.subr.mxu0 0.0
  %5488 = vmatpush1.msra.mxu0 %v3829
  %5489 = vmatprep.subr.mxu0 0.0
  %5490 = vmatpush1.msra.mxu0 %v3830
  %5491 = vmatprep.subr.mxu0 0.0
  %5492 = vmatpush1.msra.mxu0 %v3831
  %5493 = vmatprep.subr.mxu0 0.0
  %5494 = vmatpush1.msra.mxu0 %v3832
  %5495 = vmatprep.subr.mxu0 0.0
  %5496 = vmatpush1.msra.mxu0 0.0
  %5497 = vmatprep.subr.mxu0 0.0
  %5498 = vmatpush1.msra.mxu0 0.0
  %5499 = vmatprep.subr.mxu0 0.0
  %5500 = vmatpush1.msra.mxu0 0.0
  %5501 = vmatprep.subr.mxu0 0.0
  %5502 = vmatpush1.msra.mxu0 0.0
  %5503 = vmatprep.subr.mxu0 0.0
  %5504 = vmatpush1.msra.mxu0 0.0
  %5505 = vmatprep.subr.mxu0 0.0
  %5506 = vmatpush1.msra.mxu0 0.0
  %5507 = vmatprep.subr.mxu0 0.0
  %5508 = vmatpush1.msra.mxu0 0.0
  %5509 = vmatprep.subr.mxu0 0.0
  %5510 = vmatpush1.msra.mxu0 0.0
  %5511 = vmatprep.subr.mxu0 0.0
  %5512 = vmatpush1.msra.mxu0 0.0
  %5513 = vmatprep.subr.mxu0 0.0
  %5514 = vmatpush1.msra.mxu0 0.0
  %5515 = vmatprep.subr.mxu0 0.0
  %5516 = vmatpush1.msra.mxu0 0.0
  %5517 = vmatprep.subr.mxu0 0.0
  %5518 = vmatpush1.msra.mxu0 0.0
  %5519 = vmatprep.subr.mxu0 0.0
  %5520 = vmatpush1.msra.mxu0 0.0
  %5521 = vmatprep.subr.mxu0 0.0
  %5522 = vmatpush1.msra.mxu0 0.0
  %5523 = vmatprep.subr.mxu0 0.0
  %5524 = vmatpush1.msra.mxu0 0.0
  %5525 = vmatprep.subr.mxu0 0.0
  %5526 = vmatpush1.msra.mxu0 0.0
  %5527 = vmatprep.subr.mxu0 0.0
  %5528 = vmatpush1.msra.mxu0 0.0
  %5529 = vmatprep.subr.mxu0 0.0
  %5530 = vmatpush1.msra.mxu0 0.0
  %5531 = vmatprep.subr.mxu0 0.0
  %5532 = vmatpush1.msra.mxu0 0.0
  %5533 = vmatprep.subr.mxu0 0.0
  %5534 = vmatpush1.msra.mxu0 0.0
  %5535 = vmatprep.subr.mxu0 0.0
  %5536 = vmatpush1.msra.mxu0 0.0
  %5537 = vmatprep.subr.mxu0 0.0
  %5538 = vmatpush1.msra.mxu0 0.0
  %5539 = vmatprep.subr.mxu0 0.0
  %5540 = vmatpush1.msra.mxu0 0.0
  %5541 = vmatprep.subr.mxu0 0.0
  %5542 = vmatpush1.msra.mxu0 0.0
  %5543 = vmatprep.subr.mxu0 0.0
  %5544 = vmatpush1.msra.mxu0 0.0
  %5545 = vmatprep.subr.mxu0 0.0
  %5546 = vmatpush1.msra.mxu0 0.0
  %5547 = vmatprep.subr.mxu0 0.0
  %5548 = vmatpush1.msra.mxu0 0.0
  %5549 = vmatprep.subr.mxu0 0.0
  %5550 = vmatpush1.msra.mxu0 0.0
  %5551 = vmatprep.mubr.f32.mxu0 0.0
  %5552 = vmatmul.mubr.f32.gmra.mrb[0].mxu0 %v5485
  %v5553 = vpop.f32.mrb[0].mxu0
  %v5554 = vadd.f32 %v4074, %v5553
  %v5555 = vpop.f32.mrb[0].mxu0
  %5556 = vdwg.mxu0
  %vm5557 = vmxor %vm5246, 1
  %v5558 = vsel %vm5557, 1, 0
  %vm5559 = vcmp.eq.s32.totalorder %v5558, 1
  %v5560 = vsel %vm5559, %v5554, 0.0
  %v5562 = vcombine.high %v5560, %v5560
  %v5564 = vunpack.c.l.s4 1966171168
  %v5565 = vunpack.c.0.s8 %v5564
  %v5566 = vlaneseq
  %v5567 = vshrl.u32 %v5566, 7
  %v5568 = vsub.s32 %v5565, %v5567
  %v5569 = vrot.slane %v5560, %v5568
  %v5571 = vunpack.c.l.s4 1966171168
  %v5572 = vunpack.c.0.s8 %v5571
  %v5573 = vlaneseq
  %v5574 = vshrl.u32 %v5573, 7
  %v5575 = vsub.s32 %v5572, %v5574
  %v5576 = vrot.slane %v5562, %v5575
  %v5577 = vcombine.high %v5569, %v5569
  %v5578 = vcombine.high %v5576, %v5576
  %v5580 = vunpack.c.l.s4 1966171168
  %v5581 = vunpack.c.0.s8 %v5580
  %v5582 = vlaneseq
  %v5583 = vshrl.u32 %v5582, 7
  %v5584 = vsub.s32 %v5581, %v5583
  %v5585 = vrot.slane %v5569, %v5584
  %v5587 = vunpack.c.l.s4 1966171168
  %v5588 = vunpack.c.0.s8 %v5587
  %v5589 = vlaneseq
  %v5590 = vshrl.u32 %v5589, 7
  %v5591 = vsub.s32 %v5588, %v5590
  %v5592 = vrot.slane %v5576, %v5591
  %v5594 = vunpack.c.l.s4 1966171168
  %v5595 = vunpack.c.0.s8 %v5594
  %v5596 = vlaneseq
  %v5597 = vshrl.u32 %v5596, 7
  %v5598 = vsub.s32 %v5595, %v5597
  %v5599 = vrot.slane %v5577, %v5598
  %v5601 = vunpack.c.l.s4 1966171168
  %v5602 = vunpack.c.0.s8 %v5601
  %v5603 = vlaneseq
  %v5604 = vshrl.u32 %v5603, 7
  %v5605 = vsub.s32 %v5602, %v5604
  %v5606 = vrot.slane %v5578, %v5605
  %v5607 = vcombine.high %v5585, %v5585
  %v5608 = vcombine.high %v5592, %v5592
  %v5609 = vcombine.high %v5599, %v5599
  %v5610 = vcombine.high %v5606, %v5606
  %5619 = vst.msk [vmem:[%s13 + $0x3] sm:$0x1] %vm4209, %v5585
  %5620 = vst.msk [vmem:[%s13 + $0xb] sm:$0x1] %vm4209, %v5599
  %5621 = vst.msk [vmem:[%s13 + $0x13] sm:$0x1] %vm4209, %v5607
  %5622 = vst.msk [vmem:[%s13 + $0x1b] sm:$0x1] %vm4209, %v5609
  %5623 = vst.msk [vmem:[%s13 + $0x23] sm:$0x1] %vm4209, %v5592
  %5624 = vst.msk [vmem:[%s13 + $0x2b] sm:$0x1] %vm4209, %v5606
  %5625 = vst.msk [vmem:[%s13 + $0x33] sm:$0x1] %vm4209, %v5608
  %5626 = vst.msk [vmem:[%s13 + $0x3b] sm:$0x1] %vm4209, %v5610
  %v5627 = vsel %vm68, %v5366, %v5481
  %v5628 = vsel %vm5559, %v5627, 0.0
  %v5630 = vcombine.high %v5628, %v5628
  %v5632 = vunpack.c.l.s4 1966171168
  %v5633 = vunpack.c.0.s8 %v5632
  %v5634 = vlaneseq
  %v5635 = vshrl.u32 %v5634, 7
  %v5636 = vsub.s32 %v5633, %v5635
  %v5637 = vrot.slane %v5628, %v5636
  %v5639 = vunpack.c.l.s4 1966171168
  %v5640 = vunpack.c.0.s8 %v5639
  %v5641 = vlaneseq
  %v5642 = vshrl.u32 %v5641, 7
  %v5643 = vsub.s32 %v5640, %v5642
  %v5644 = vrot.slane %v5630, %v5643
  %v5645 = vcombine.high %v5637, %v5637
  %v5646 = vcombine.high %v5644, %v5644
  %v5648 = vunpack.c.l.s4 1966171168
  %v5649 = vunpack.c.0.s8 %v5648
  %v5650 = vlaneseq
  %v5651 = vshrl.u32 %v5650, 7
  %v5652 = vsub.s32 %v5649, %v5651
  %v5653 = vrot.slane %v5637, %v5652
  %v5655 = vunpack.c.l.s4 1966171168
  %v5656 = vunpack.c.0.s8 %v5655
  %v5657 = vlaneseq
  %v5658 = vshrl.u32 %v5657, 7
  %v5659 = vsub.s32 %v5656, %v5658
  %v5660 = vrot.slane %v5644, %v5659
  %v5662 = vunpack.c.l.s4 1966171168
  %v5663 = vunpack.c.0.s8 %v5662
  %v5664 = vlaneseq
  %v5665 = vshrl.u32 %v5664, 7
  %v5666 = vsub.s32 %v5663, %v5665
  %v5667 = vrot.slane %v5645, %v5666
  %v5669 = vunpack.c.l.s4 1966171168
  %v5670 = vunpack.c.0.s8 %v5669
  %v5671 = vlaneseq
  %v5672 = vshrl.u32 %v5671, 7
  %v5673 = vsub.s32 %v5670, %v5672
  %v5674 = vrot.slane %v5646, %v5673
  %v5675 = vcombine.high %v5653, %v5653
  %v5676 = vcombine.high %v5660, %v5660
  %v5677 = vcombine.high %v5667, %v5667
  %v5678 = vcombine.high %v5674, %v5674
  %5687 = vst.msk [vmem:[%s14 + $0x3] sm:$0x1] %vm4277, %v5653
  %5688 = vst.msk [vmem:[%s14 + $0xb] sm:$0x1] %vm4277, %v5667
  %5689 = vst.msk [vmem:[%s14 + $0x13] sm:$0x1] %vm4277, %v5675
  %5690 = vst.msk [vmem:[%s14 + $0x1b] sm:$0x1] %vm4277, %v5677
  %5691 = vst.msk [vmem:[%s14 + $0x23] sm:$0x1] %vm4277, %v5660
  %5692 = vst.msk [vmem:[%s14 + $0x2b] sm:$0x1] %vm4277, %v5674
  %5693 = vst.msk [vmem:[%s14 + $0x33] sm:$0x1] %vm4277, %v5676
  %5694 = vst.msk [vmem:[%s14 + $0x3b] sm:$0x1] %vm4277, %v5678
  %v5695 = vsel %vm68, %v5554, -inf
  %5696 = vmax.xlane.f32.xlu0 %v5695
  %v5697 = vpop.xlane.xlu0 %5696
  %vm5698 = vcmp.eq.f32.partialorder %v5554, %v5697
  %v5699 = vsel %vm5698, %v3825, 32
  %v5700 = vsel %vm68, %v5699, 2147483647
  %v5701 = vand.u32 %v5700, 65535
  %v5702 = vshra.s32 %v5700, 16
  %v5703 = vcvt.s32.f32 %v5701
  %v5704 = vcvt.s32.f32 %v5702
  %5705 = vmin.xlane.f32.xlu0 %v5704
  %v5706 = vpop.xlane.xlu0 %5705
  %vm5707 = vcmp.eq.f32.partialorder %v5704, %v5706
  %v5708 = vsel %vm5707, %v5703, inf
  %5709 = vmin.xlane.f32.xlu0 %v5708
  %v5710 = vpop.xlane.xlu0 %5709
  %v5711 = vcvt.f32.s32 %v5710
  %v5712 = vcvt.f32.s32 %v5706
  %v5713 = vshll.u32 %v5712, 16
  %v5714 = vadd.s32 %v5713, %v5711
  %vm5715 = vcmp.eq.s32.totalorder %v5714, 2
  %vm5716 = vmor %vm5246, %vm5715
  %vm5717 = vcmp.eq.s32.totalorder %v3825, %v5714
  %v5718 = vsel %vm5717, 1, 0
  %v5719 = vcvt.s32.f32 %v5718
  %v5720 = vsel %vm68, %v5719, %v5363
  %v5721 = vld [vmem:[%s7] sm:$0xff]
  %v5722 = vld [vmem:[%s7 + $0x8] sm:$0xff]
  %v5723 = vld [vmem:[%s7 + $0x10] sm:$0xff]
  %v5724 = vld [vmem:[%s7 + $0x18] sm:$0xff]
  %v5725 = vld [vmem:[%s7 + $0x20] sm:$0xff]
  %v5726 = vld [vmem:[%s7 + $0x28] sm:$0xff]
  %v5727 = vld [vmem:[%s7 + $0x30] sm:$0xff]
  %v5728 = vld [vmem:[%s7 + $0x38] sm:$0xff]
  %v5729 = vld [vmem:[%s8] sm:$0x1]
  %v5731 = vlaneseq
  %v5732 = vshrl.u32 %v5731, 7
  %v5733 = vsub.s32 0, %v5732
  %v5734 = vrot.slane %v5729, %v5733
  %v5737 = vsel %vm441, %v5720, 0
  %5739 = vmatprep.subr.mxu0 0.0
  %5740 = vmatpush1.msra.mxu0 %v5721
  %5741 = vmatprep.subr.mxu0 0.0
  %5742 = vmatpush1.msra.mxu0 %v5722
  %5743 = vmatprep.subr.mxu0 0.0
  %5744 = vmatpush1.msra.mxu0 %v5723
  %5745 = vmatprep.subr.mxu0 0.0
  %5746 = vmatpush1.msra.mxu0 %v5724
  %5747 = vmatprep.subr.mxu0 0.0
  %5748 = vmatpush1.msra.mxu0 %v5725
  %5749 = vmatprep.subr.mxu0 0.0
  %5750 = vmatpush1.msra.mxu0 %v5726
  %5751 = vmatprep.subr.mxu0 0.0
  %5752 = vmatpush1.msra.mxu0 %v5727
  %5753 = vmatprep.subr.mxu0 0.0
  %5754 = vmatpush1.msra.mxu0 %v5728
  %5755 = vmatprep.subr.mxu0 0.0
  %5756 = vmatpush1.msra.mxu0 0.0
  %5757 = vmatprep.subr.mxu0 0.0
  %5758 = vmatpush1.msra.mxu0 0.0
  %5759 = vmatprep.subr.mxu0 0.0
  %5760 = vmatpush1.msra.mxu0 0.0
  %5761 = vmatprep.subr.mxu0 0.0
  %5762 = vmatpush1.msra.mxu0 0.0
  %5763 = vmatprep.subr.mxu0 0.0
  %5764 = vmatpush1.msra.mxu0 0.0
  %5765 = vmatprep.subr.mxu0 0.0
  %5766 = vmatpush1.msra.mxu0 0.0
  %5767 = vmatprep.subr.mxu0 0.0
  %5768 = vmatpush1.msra.mxu0 0.0
  %5769 = vmatprep.subr.mxu0 0.0
  %5770 = vmatpush1.msra.mxu0 0.0
  %5771 = vmatprep.subr.mxu0 0.0
  %5772 = vmatpush1.msra.mxu0 0.0
  %5773 = vmatprep.subr.mxu0 0.0
  %5774 = vmatpush1.msra.mxu0 0.0
  %5775 = vmatprep.subr.mxu0 0.0
  %5776 = vmatpush1.msra.mxu0 0.0
  %5777 = vmatprep.subr.mxu0 0.0
  %5778 = vmatpush1.msra.mxu0 0.0
  %5779 = vmatprep.subr.mxu0 0.0
  %5780 = vmatpush1.msra.mxu0 0.0
  %5781 = vmatprep.subr.mxu0 0.0
  %5782 = vmatpush1.msra.mxu0 0.0
  %5783 = vmatprep.subr.mxu0 0.0
  %5784 = vmatpush1.msra.mxu0 0.0
  %5785 = vmatprep.subr.mxu0 0.0
  %5786 = vmatpush1.msra.mxu0 0.0
  %5787 = vmatprep.subr.mxu0 0.0
  %5788 = vmatpush1.msra.mxu0 0.0
  %5789 = vmatprep.subr.mxu0 0.0
  %5790 = vmatpush1.msra.mxu0 0.0
  %5791 = vmatprep.subr.mxu0 0.0
  %5792 = vmatpush1.msra.mxu0 0.0
  %5793 = vmatprep.subr.mxu0 0.0
  %5794 = vmatpush1.msra.mxu0 0.0
  %5795 = vmatprep.subr.mxu0 0.0
  %5796 = vmatpush1.msra.mxu0 0.0
  %5797 = vmatprep.subr.mxu0 0.0
  %5798 = vmatpush1.msra.mxu0 0.0
  %5799 = vmatprep.subr.mxu0 0.0
  %5800 = vmatpush1.msra.mxu0 0.0
  %5801 = vmatprep.subr.mxu0 0.0
  %5802 = vmatpush1.msra.mxu0 0.0
  %5803 = vmatprep.mubr.f32.mxu0 0.0
  %5804 = vmatmul.mubr.f32.gmra.mrb[0].mxu0 %v5737
  %v5805 = vpop.f32.mrb[0].mxu0
  %v5806 = vadd.f32 %v5734, %v5805
  %v5807 = vpop.f32.mrb[0].mxu0
  %5808 = vdwg.mxu0
  %v5809 = vxor.u32 %v5806, 2147483648
  %v5810 = vmul.f32 %v5809, 1.442695
  %v5811 = vpow.pop %v5810
  %v5812 = vadd.f32 %v5811, 1.0
  %v5813 = vrcp.pop %v5812
  %v5814 = vmul.f32 1.0, %v5813
  %5816 = vrot.lane.b32.xlu0 %v5806, 32
  %v5817 = vpop.permute.xlu0 %5816
  %v5819 = vmul.f32 %v5814, %v5817
  %5821 = vrot.lane.b32.xlu0 %v5819, 64
  %v5822 = vpop.permute.xlu0 %5821
  %v5824 = vadd.f32 %v5806, %v5822
  %v5825 = vtanh.pop %v5824
  %v5826 = vsub.f32 1.0, %v5814
  %5828 = vrot.lane.b32.xlu0 %v5825, 96
  %v5829 = vpop.permute.xlu0 %5828
  %v5831 = vmul.f32 %v5826, %v5829
  %v5832 = vmul.f32 %v5814, %v5363
  %v5833 = vadd.f32 %v5831, %v5832
  %5835 = vrot.lane.b32.xlu0 %v5833, 96
  %v5836 = vpop.permute.xlu0 %5835
  %v5838 = vsel %vm68, %v5836, %v5481
  %v5839 = vld [vmem:[%s9] sm:$0xff]
  %v5840 = vld [vmem:[%s9 + $0x8] sm:$0xff]
  %v5841 = vld [vmem:[%s9 + $0x10] sm:$0xff]
  %v5842 = vld [vmem:[%s9 + $0x18] sm:$0xff]
  %v5843 = vld [vmem:[%s9 + $0x20] sm:$0xff]
  %v5844 = vld [vmem:[%s9 + $0x28] sm:$0xff]
  %v5845 = vld [vmem:[%s9 + $0x30] sm:$0xff]
  %v5846 = vld [vmem:[%s9 + $0x38] sm:$0xff]
  %v5847 = vld [vmem:[%s10] sm:$0x1]
  %v5849 = vlaneseq
  %v5850 = vshrl.u32 %v5849, 7
  %v5851 = vsub.s32 0, %v5850
  %v5852 = vrot.slane %v5847, %v5851
  %v5855 = vsel %vm441, %v5838, 0
  %5857 = vmatprep.subr.mxu0 0.0
  %5858 = vmatpush1.msra.mxu0 %v5839
  %5859 = vmatprep.subr.mxu0 0.0
  %5860 = vmatpush1.msra.mxu0 %v5840
  %5861 = vmatprep.subr.mxu0 0.0
  %5862 = vmatpush1.msra.mxu0 %v5841
  %5863 = vmatprep.subr.mxu0 0.0
  %5864 = vmatpush1.msra.mxu0 %v5842
  %5865 = vmatprep.subr.mxu0 0.0
  %5866 = vmatpush1.msra.mxu0 %v5843
  %5867 = vmatprep.subr.mxu0 0.0
  %5868 = vmatpush1.msra.mxu0 %v5844
  %5869 = vmatprep.subr.mxu0 0.0
  %5870 = vmatpush1.msra.mxu0 %v5845
  %5871 = vmatprep.subr.mxu0 0.0
  %5872 = vmatpush1.msra.mxu0 %v5846
  %5873 = vmatprep.subr.mxu0 0.0
  %5874 = vmatpush1.msra.mxu0 0.0
  %5875 = vmatprep.subr.mxu0 0.0
  %5876 = vmatpush1.msra.mxu0 0.0
  %5877 = vmatprep.subr.mxu0 0.0
  %5878 = vmatpush1.msra.mxu0 0.0
  %5879 = vmatprep.subr.mxu0 0.0
  %5880 = vmatpush1.msra.mxu0 0.0
  %5881 = vmatprep.subr.mxu0 0.0
  %5882 = vmatpush1.msra.mxu0 0.0
  %5883 = vmatprep.subr.mxu0 0.0
  %5884 = vmatpush1.msra.mxu0 0.0
  %5885 = vmatprep.subr.mxu0 0.0
  %5886 = vmatpush1.msra.mxu0 0.0
  %5887 = vmatprep.subr.mxu0 0.0
  %5888 = vmatpush1.msra.mxu0 0.0
  %5889 = vmatprep.subr.mxu0 0.0
  %5890 = vmatpush1.msra.mxu0 0.0
  %5891 = vmatprep.subr.mxu0 0.0
  %5892 = vmatpush1.msra.mxu0 0.0
  %5893 = vmatprep.subr.mxu0 0.0
  %5894 = vmatpush1.msra.mxu0 0.0
  %5895 = vmatprep.subr.mxu0 0.0
  %5896 = vmatpush1.msra.mxu0 0.0
  %5897 = vmatprep.subr.mxu0 0.0
  %5898 = vmatpush1.msra.mxu0 0.0
  %5899 = vmatprep.subr.mxu0 0.0
  %5900 = vmatpush1.msra.mxu0 0.0
  %5901 = vmatprep.subr.mxu0 0.0
  %5902 = vmatpush1.msra.mxu0 0.0
  %5903 = vmatprep.subr.mxu0 0.0
  %5904 = vmatpush1.msra.mxu0 0.0
  %5905 = vmatprep.subr.mxu0 0.0
  %5906 = vmatpush1.msra.mxu0 0.0
  %5907 = vmatprep.subr.mxu0 0.0
  %5908 = vmatpush1.msra.mxu0 0.0
  %5909 = vmatprep.subr.mxu0 0.0
  %5910 = vmatpush1.msra.mxu0 0.0
  %5911 = vmatprep.subr.mxu0 0.0
  %5912 = vmatpush1.msra.mxu0 0.0
  %5913 = vmatprep.subr.mxu0 0.0
  %5914 = vmatpush1.msra.mxu0 0.0
  %5915 = vmatprep.subr.mxu0 0.0
  %5916 = vmatpush1.msra.mxu0 0.0
  %5917 = vmatprep.subr.mxu0 0.0
  %5918 = vmatpush1.msra.mxu0 0.0
  %5919 = vmatprep.subr.mxu0 0.0
  %5920 = vmatpush1.msra.mxu0 0.0
  %5921 = vmatprep.mubr.f32.mxu0 0.0
  %5922 = vmatmul.mubr.f32.gmra.mrb[0].mxu0 %v5855
  %v5923 = vpop.f32.mrb[0].mxu0
  %v5924 = vadd.f32 %v5852, %v5923
  %v5925 = vpop.f32.mrb[0].mxu0
  %5926 = vdwg.mxu0
  %v5927 = vxor.u32 %v5924, 2147483648
  %v5928 = vmul.f32 %v5927, 1.442695
  %v5929 = vpow.pop %v5928
  %v5930 = vadd.f32 %v5929, 1.0
  %v5931 = vrcp.pop %v5930
  %v5932 = vmul.f32 1.0, %v5931
  %5934 = vrot.lane.b32.xlu0 %v5924, 32
  %v5935 = vpop.permute.xlu0 %5934
  %v5937 = vmul.f32 %v5932, %v5935
  %5939 = vrot.lane.b32.xlu0 %v5937, 64
  %v5940 = vpop.permute.xlu0 %5939
  %v5942 = vadd.f32 %v5924, %v5940
  %v5943 = vtanh.pop %v5942
  %v5944 = vsub.f32 1.0, %v5932
  %5946 = vrot.lane.b32.xlu0 %v5943, 96
  %v5947 = vpop.permute.xlu0 %5946
  %v5949 = vmul.f32 %v5944, %v5947
  %v5950 = vmul.f32 %v5932, %v5481
  %v5951 = vadd.f32 %v5949, %v5950
  %5953 = vrot.lane.b32.xlu0 %v5951, 96
  %v5954 = vpop.permute.xlu0 %5953
  %v5955 = vsel %vm68, %v5954, 0
  %5957 = vmatprep.subr.mxu0 0.0
  %5958 = vmatpush1.msra.mxu0 %v3829
  %5959 = vmatprep.subr.mxu0 0.0
  %5960 = vmatpush1.msra.mxu0 %v3830
  %5961 = vmatprep.subr.mxu0 0.0
  %5962 = vmatpush1.msra.mxu0 %v3831
  %5963 = vmatprep.subr.mxu0 0.0
  %5964 = vmatpush1.msra.mxu0 %v3832
  %5965 = vmatprep.subr.mxu0 0.0
  %5966 = vmatpush1.msra.mxu0 0.0
  %5967 = vmatprep.subr.mxu0 0.0
  %5968 = vmatpush1.msra.mxu0 0.0
  %5969 = vmatprep.subr.mxu0 0.0
  %5970 = vmatpush1.msra.mxu0 0.0
  %5971 = vmatprep.subr.mxu0 0.0
  %5972 = vmatpush1.msra.mxu0 0.0
  %5973 = vmatprep.subr.mxu0 0.0
  %5974 = vmatpush1.msra.mxu0 0.0
  %5975 = vmatprep.subr.mxu0 0.0
  %5976 = vmatpush1.msra.mxu0 0.0
  %5977 = vmatprep.subr.mxu0 0.0
  %5978 = vmatpush1.msra.mxu0 0.0
  %5979 = vmatprep.subr.mxu0 0.0
  %5980 = vmatpush1.msra.mxu0 0.0
  %5981 = vmatprep.subr.mxu0 0.0
  %5982 = vmatpush1.msra.mxu0 0.0
  %5983 = vmatprep.subr.mxu0 0.0
  %5984 = vmatpush1.msra.mxu0 0.0
  %5985 = vmatprep.subr.mxu0 0.0
  %5986 = vmatpush1.msra.mxu0 0.0
  %5987 = vmatprep.subr.mxu0 0.0
  %5988 = vmatpush1.msra.mxu0 0.0
  %5989 = vmatprep.subr.mxu0 0.0
  %5990 = vmatpush1.msra.mxu0 0.0
  %5991 = vmatprep.subr.mxu0 0.0
  %5992 = vmatpush1.msra.mxu0 0.0
  %5993 = vmatprep.subr.mxu0 0.0
  %5994 = vmatpush1.msra.mxu0 0.0
  %5995 = vmatprep.subr.mxu0 0.0
  %5996 = vmatpush1.msra.mxu0 0.0
  %5997 = vmatprep.subr.mxu0 0.0
  %5998 = vmatpush1.msra.mxu0 0.0
  %5999 = vmatprep.subr.mxu0 0.0
  %6000 = vmatpush1.msra.mxu0 0.0
  %6001 = vmatprep.subr.mxu0 0.0
  %6002 = vmatpush1.msra.mxu0 0.0
  %6003 = vmatprep.subr.mxu0 0.0
  %6004 = vmatpush1.msra.mxu0 0.0
  %6005 = vmatprep.subr.mxu0 0.0
  %6006 = vmatpush1.msra.mxu0 0.0
  %6007 = vmatprep.subr.mxu0 0.0
  %6008 = vmatpush1.msra.mxu0 0.0
  %6009 = vmatprep.subr.mxu0 0.0
  %6010 = vmatpush1.msra.mxu0 0.0
  %6011 = vmatprep.subr.mxu0 0.0
  %6012 = vmatpush1.msra.mxu0 0.0
  %6013 = vmatprep.subr.mxu0 0.0
  %6014 = vmatpush1.msra.mxu0 0.0
  %6015 = vmatprep.subr.mxu0 0.0
  %6016 = vmatpush1.msra.mxu0 0.0
  %6017 = vmatprep.subr.mxu0 0.0
  %6018 = vmatpush1.msra.mxu0 0.0
  %6019 = vmatprep.subr.mxu0 0.0
  %6020 = vmatpush1.msra.mxu0 0.0
  %6021 = vmatprep.mubr.f32.mxu0 0.0
  %6022 = vmatmul.mubr.f32.gmra.mrb[0].mxu0 %v5955
  %v6023 = vpop.f32.mrb[0].mxu0
  %v6024 = vadd.f32 %v4074, %v6023
  %v6025 = vpop.f32.mrb[0].mxu0
  %6026 = vdwg.mxu0
  %vm6027 = vmxor %vm5716, 1
  %v6028 = vsel %vm6027, 1, 0
  %vm6029 = vcmp.eq.s32.totalorder %v6028, 1
  %v6030 = vsel %vm6029, %v6024, 0.0
  %v6032 = vcombine.high %v6030, %v6030
  %v6034 = vunpack.c.l.s4 1966171168
  %v6035 = vunpack.c.0.s8 %v6034
  %v6036 = vlaneseq
  %v6037 = vshrl.u32 %v6036, 7
  %v6038 = vsub.s32 %v6035, %v6037
  %v6039 = vrot.slane %v6030, %v6038
  %v6041 = vunpack.c.l.s4 1966171168
  %v6042 = vunpack.c.0.s8 %v6041
  %v6043 = vlaneseq
  %v6044 = vshrl.u32 %v6043, 7
  %v6045 = vsub.s32 %v6042, %v6044
  %v6046 = vrot.slane %v6032, %v6045
  %v6047 = vcombine.high %v6039, %v6039
  %v6048 = vcombine.high %v6046, %v6046
  %v6050 = vunpack.c.l.s4 1966171168
  %v6051 = vunpack.c.0.s8 %v6050
  %v6052 = vlaneseq
  %v6053 = vshrl.u32 %v6052, 7
  %v6054 = vsub.s32 %v6051, %v6053
  %v6055 = vrot.slane %v6039, %v6054
  %v6057 = vunpack.c.l.s4 1966171168
  %v6058 = vunpack.c.0.s8 %v6057
  %v6059 = vlaneseq
  %v6060 = vshrl.u32 %v6059, 7
  %v6061 = vsub.s32 %v6058, %v6060
  %v6062 = vrot.slane %v6046, %v6061
  %v6064 = vunpack.c.l.s4 1966171168
  %v6065 = vunpack.c.0.s8 %v6064
  %v6066 = vlaneseq
  %v6067 = vshrl.u32 %v6066, 7
  %v6068 = vsub.s32 %v6065, %v6067
  %v6069 = vrot.slane %v6047, %v6068
  %v6071 = vunpack.c.l.s4 1966171168
  %v6072 = vunpack.c.0.s8 %v6071
  %v6073 = vlaneseq
  %v6074 = vshrl.u32 %v6073, 7
  %v6075 = vsub.s32 %v6072, %v6074
  %v6076 = vrot.slane %v6048, %v6075
  %v6077 = vcombine.high %v6055, %v6055
  %v6078 = vcombine.high %v6062, %v6062
  %v6079 = vcombine.high %v6069, %v6069
  %v6080 = vcombine.high %v6076, %v6076
  %6089 = vst.msk [vmem:[%s13 + $0x4] sm:$0x1] %vm4209, %v6055
  %6090 = vst.msk [vmem:[%s13 + $0xc] sm:$0x1] %vm4209, %v6069
  %6091 = vst.msk [vmem:[%s13 + $0x14] sm:$0x1] %vm4209, %v6077
  %6092 = vst.msk [vmem:[%s13 + $0x1c] sm:$0x1] %vm4209, %v6079
  %6093 = vst.msk [vmem:[%s13 + $0x24] sm:$0x1] %vm4209, %v6062
  %6094 = vst.msk [vmem:[%s13 + $0x2c] sm:$0x1] %vm4209, %v6076
  %6095 = vst.msk [vmem:[%s13 + $0x34] sm:$0x1] %vm4209, %v6078
  %6096 = vst.msk [vmem:[%s13 + $0x3c] sm:$0x1] %vm4209, %v6080
  %v6097 = vsel %vm68, %v5836, %v5951
  %v6098 = vsel %vm6029, %v6097, 0.0
  %v6100 = vcombine.high %v6098, %v6098
  %v6102 = vunpack.c.l.s4 1966171168
  %v6103 = vunpack.c.0.s8 %v6102
  %v6104 = vlaneseq
  %v6105 = vshrl.u32 %v6104, 7
  %v6106 = vsub.s32 %v6103, %v6105
  %v6107 = vrot.slane %v6098, %v6106
  %v6109 = vunpack.c.l.s4 1966171168
  %v6110 = vunpack.c.0.s8 %v6109
  %v6111 = vlaneseq
  %v6112 = vshrl.u32 %v6111, 7
  %v6113 = vsub.s32 %v6110, %v6112
  %v6114 = vrot.slane %v6100, %v6113
  %v6115 = vcombine.high %v6107, %v6107
  %v6116 = vcombine.high %v6114, %v6114
  %v6118 = vunpack.c.l.s4 1966171168
  %v6119 = vunpack.c.0.s8 %v6118
  %v6120 = vlaneseq
  %v6121 = vshrl.u32 %v6120, 7
  %v6122 = vsub.s32 %v6119, %v6121
  %v6123 = vrot.slane %v6107, %v6122
  %v6125 = vunpack.c.l.s4 1966171168
  %v6126 = vunpack.c.0.s8 %v6125
  %v6127 = vlaneseq
  %v6128 = vshrl.u32 %v6127, 7
  %v6129 = vsub.s32 %v6126, %v6128
  %v6130 = vrot.slane %v6114, %v6129
  %v6132 = vunpack.c.l.s4 1966171168
  %v6133 = vunpack.c.0.s8 %v6132
  %v6134 = vlaneseq
  %v6135 = vshrl.u32 %v6134, 7
  %v6136 = vsub.s32 %v6133, %v6135
  %v6137 = vrot.slane %v6115, %v6136
  %v6139 = vunpack.c.l.s4 1966171168
  %v6140 = vunpack.c.0.s8 %v6139
  %v6141 = vlaneseq
  %v6142 = vshrl.u32 %v6141, 7
  %v6143 = vsub.s32 %v6140, %v6142
  %v6144 = vrot.slane %v6116, %v6143
  %v6145 = vcombine.high %v6123, %v6123
  %v6146 = vcombine.high %v6130, %v6130
  %v6147 = vcombine.high %v6137, %v6137
  %v6148 = vcombine.high %v6144, %v6144
  %6157 = vst.msk [vmem:[%s14 + $0x4] sm:$0x1] %vm4277, %v6123
  %6158 = vst.msk [vmem:[%s14 + $0xc] sm:$0x1] %vm4277, %v6137
  %6159 = vst.msk [vmem:[%s14 + $0x14] sm:$0x1] %vm4277, %v6145
  %6160 = vst.msk [vmem:[%s14 + $0x1c] sm:$0x1] %vm4277, %v6147
  %6161 = vst.msk [vmem:[%s14 + $0x24] sm:$0x1] %vm4277, %v6130
  %6162 = vst.msk [vmem:[%s14 + $0x2c] sm:$0x1] %vm4277, %v6144
  %6163 = vst.msk [vmem:[%s14 + $0x34] sm:$0x1] %vm4277, %v6146
  %6164 = vst.msk [vmem:[%s14 + $0x3c] sm:$0x1] %vm4277, %v6148
  %v6165 = vsel %vm68, %v6024, -inf
  %6166 = vmax.xlane.f32.xlu0 %v6165
  %v6167 = vpop.xlane.xlu0 %6166
  %vm6168 = vcmp.eq.f32.partialorder %v6024, %v6167
  %v6169 = vsel %vm6168, %v3825, 32
  %v6170 = vsel %vm68, %v6169, 2147483647
  %v6171 = vand.u32 %v6170, 65535
  %v6172 = vshra.s32 %v6170, 16
  %v6173 = vcvt.s32.f32 %v6171
  %v6174 = vcvt.s32.f32 %v6172
  %6175 = vmin.xlane.f32.xlu0 %v6174
  %v6176 = vpop.xlane.xlu0 %6175
  %vm6177 = vcmp.eq.f32.partialorder %v6174, %v6176
  %v6178 = vsel %vm6177, %v6173, inf
  %6179 = vmin.xlane.f32.xlu0 %v6178
  %v6180 = vpop.xlane.xlu0 %6179
  %v6181 = vcvt.f32.s32 %v6180
  %v6182 = vcvt.f32.s32 %v6176
  %v6183 = vshll.u32 %v6182, 16
  %v6184 = vadd.s32 %v6183, %v6181
  %vm6185 = vcmp.eq.s32.totalorder %v6184, 2
  %vm6186 = vmor %vm5716, %vm6185
  %vm6187 = vcmp.eq.s32.totalorder %v3825, %v6184
  %v6188 = vsel %vm6187, 1, 0
  %v6189 = vcvt.s32.f32 %v6188
  %v6190 = vsel %vm68, %v6189, %v5833
  %v6191 = vld [vmem:[%s7] sm:$0xff]
  %v6192 = vld [vmem:[%s7 + $0x8] sm:$0xff]
  %v6193 = vld [vmem:[%s7 + $0x10] sm:$0xff]
  %v6194 = vld [vmem:[%s7 + $0x18] sm:$0xff]
  %v6195 = vld [vmem:[%s7 + $0x20] sm:$0xff]
  %v6196 = vld [vmem:[%s7 + $0x28] sm:$0xff]
  %v6197 = vld [vmem:[%s7 + $0x30] sm:$0xff]
  %v6198 = vld [vmem:[%s7 + $0x38] sm:$0xff]
  %v6199 = vld [vmem:[%s8] sm:$0x1]
  %v6201 = vlaneseq
  %v6202 = vshrl.u32 %v6201, 7
  %v6203 = vsub.s32 0, %v6202
  %v6204 = vrot.slane %v6199, %v6203
  %v6207 = vsel %vm441, %v6190, 0
  %6209 = vmatprep.subr.mxu0 0.0
  %6210 = vmatpush1.msra.mxu0 %v6191
  %6211 = vmatprep.subr.mxu0 0.0
  %6212 = vmatpush1.msra.mxu0 %v6192
  %6213 = vmatprep.subr.mxu0 0.0
  %6214 = vmatpush1.msra.mxu0 %v6193
  %6215 = vmatprep.subr.mxu0 0.0
  %6216 = vmatpush1.msra.mxu0 %v6194
  %6217 = vmatprep.subr.mxu0 0.0
  %6218 = vmatpush1.msra.mxu0 %v6195
  %6219 = vmatprep.subr.mxu0 0.0
  %6220 = vmatpush1.msra.mxu0 %v6196
  %6221 = vmatprep.subr.mxu0 0.0
  %6222 = vmatpush1.msra.mxu0 %v6197
  %6223 = vmatprep.subr.mxu0 0.0
  %6224 = vmatpush1.msra.mxu0 %v6198
  %6225 = vmatprep.subr.mxu0 0.0
  %6226 = vmatpush1.msra.mxu0 0.0
  %6227 = vmatprep.subr.mxu0 0.0
  %6228 = vmatpush1.msra.mxu0 0.0
  %6229 = vmatprep.subr.mxu0 0.0
  %6230 = vmatpush1.msra.mxu0 0.0
  %6231 = vmatprep.subr.mxu0 0.0
  %6232 = vmatpush1.msra.mxu0 0.0
  %6233 = vmatprep.subr.mxu0 0.0
  %6234 = vmatpush1.msra.mxu0 0.0
  %6235 = vmatprep.subr.mxu0 0.0
  %6236 = vmatpush1.msra.mxu0 0.0
  %6237 = vmatprep.subr.mxu0 0.0
  %6238 = vmatpush1.msra.mxu0 0.0
  %6239 = vmatprep.subr.mxu0 0.0
  %6240 = vmatpush1.msra.mxu0 0.0
  %6241 = vmatprep.subr.mxu0 0.0
  %6242 = vmatpush1.msra.mxu0 0.0
  %6243 = vmatprep.subr.mxu0 0.0
  %6244 = vmatpush1.msra.mxu0 0.0
  %6245 = vmatprep.subr.mxu0 0.0
  %6246 = vmatpush1.msra.mxu0 0.0
  %6247 = vmatprep.subr.mxu0 0.0
  %6248 = vmatpush1.msra.mxu0 0.0
  %6249 = vmatprep.subr.mxu0 0.0
  %6250 = vmatpush1.msra.mxu0 0.0
  %6251 = vmatprep.subr.mxu0 0.0
  %6252 = vmatpush1.msra.mxu0 0.0
  %6253 = vmatprep.subr.mxu0 0.0
  %6254 = vmatpush1.msra.mxu0 0.0
  %6255 = vmatprep.subr.mxu0 0.0
  %6256 = vmatpush1.msra.mxu0 0.0
  %6257 = vmatprep.subr.mxu0 0.0
  %6258 = vmatpush1.msra.mxu0 0.0
  %6259 = vmatprep.subr.mxu0 0.0
  %6260 = vmatpush1.msra.mxu0 0.0
  %6261 = vmatprep.subr.mxu0 0.0
  %6262 = vmatpush1.msra.mxu0 0.0
  %6263 = vmatprep.subr.mxu0 0.0
  %6264 = vmatpush1.msra.mxu0 0.0
  %6265 = vmatprep.subr.mxu0 0.0
  %6266 = vmatpush1.msra.mxu0 0.0
  %6267 = vmatprep.subr.mxu0 0.0
  %6268 = vmatpush1.msra.mxu0 0.0
  %6269 = vmatprep.subr.mxu0 0.0
  %6270 = vmatpush1.msra.mxu0 0.0
  %6271 = vmatprep.subr.mxu0 0.0
  %6272 = vmatpush1.msra.mxu0 0.0
  %6273 = vmatprep.mubr.f32.mxu0 0.0
  %6274 = vmatmul.mubr.f32.gmra.mrb[0].mxu0 %v6207
  %v6275 = vpop.f32.mrb[0].mxu0
  %v6276 = vadd.f32 %v6204, %v6275
  %v6277 = vpop.f32.mrb[0].mxu0
  %6278 = vdwg.mxu0
  %v6279 = vxor.u32 %v6276, 2147483648
  %v6280 = vmul.f32 %v6279, 1.442695
  %v6281 = vpow.pop %v6280
  %v6282 = vadd.f32 %v6281, 1.0
  %v6283 = vrcp.pop %v6282
  %v6284 = vmul.f32 1.0, %v6283
  %6286 = vrot.lane.b32.xlu0 %v6276, 32
  %v6287 = vpop.permute.xlu0 %6286
  %v6289 = vmul.f32 %v6284, %v6287
  %6291 = vrot.lane.b32.xlu0 %v6289, 64
  %v6292 = vpop.permute.xlu0 %6291
  %v6294 = vadd.f32 %v6276, %v6292
  %v6295 = vtanh.pop %v6294
  %v6296 = vsub.f32 1.0, %v6284
  %6298 = vrot.lane.b32.xlu0 %v6295, 96
  %v6299 = vpop.permute.xlu0 %6298
  %v6301 = vmul.f32 %v6296, %v6299
  %v6302 = vmul.f32 %v6284, %v5833
  %v6303 = vadd.f32 %v6301, %v6302
  %6305 = vrot.lane.b32.xlu0 %v6303, 96
  %v6306 = vpop.permute.xlu0 %6305
  %v6308 = vsel %vm68, %v6306, %v5951
  %v6309 = vld [vmem:[%s9] sm:$0xff]
  %v6310 = vld [vmem:[%s9 + $0x8] sm:$0xff]
  %v6311 = vld [vmem:[%s9 + $0x10] sm:$0xff]
  %v6312 = vld [vmem:[%s9 + $0x18] sm:$0xff]
  %v6313 = vld [vmem:[%s9 + $0x20] sm:$0xff]
  %v6314 = vld [vmem:[%s9 + $0x28] sm:$0xff]
  %v6315 = vld [vmem:[%s9 + $0x30] sm:$0xff]
  %v6316 = vld [vmem:[%s9 + $0x38] sm:$0xff]
  %v6317 = vld [vmem:[%s10] sm:$0x1]
  %v6319 = vlaneseq
  %v6320 = vshrl.u32 %v6319, 7
  %v6321 = vsub.s32 0, %v6320
  %v6322 = vrot.slane %v6317, %v6321
  %v6325 = vsel %vm441, %v6308, 0
  %6327 = vmatprep.subr.mxu0 0.0
  %6328 = vmatpush1.msra.mxu0 %v6309
  %6329 = vmatprep.subr.mxu0 0.0
  %6330 = vmatpush1.msra.mxu0 %v6310
  %6331 = vmatprep.subr.mxu0 0.0
  %6332 = vmatpush1.msra.mxu0 %v6311
  %6333 = vmatprep.subr.mxu0 0.0
  %6334 = vmatpush1.msra.mxu0 %v6312
  %6335 = vmatprep.subr.mxu0 0.0
  %6336 = vmatpush1.msra.mxu0 %v6313
  %6337 = vmatprep.subr.mxu0 0.0
  %6338 = vmatpush1.msra.mxu0 %v6314
  %6339 = vmatprep.subr.mxu0 0.0
  %6340 = vmatpush1.msra.mxu0 %v6315
  %6341 = vmatprep.subr.mxu0 0.0
  %6342 = vmatpush1.msra.mxu0 %v6316
  %6343 = vmatprep.subr.mxu0 0.0
  %6344 = vmatpush1.msra.mxu0 0.0
  %6345 = vmatprep.subr.mxu0 0.0
  %6346 = vmatpush1.msra.mxu0 0.0
  %6347 = vmatprep.subr.mxu0 0.0
  %6348 = vmatpush1.msra.mxu0 0.0
  %6349 = vmatprep.subr.mxu0 0.0
  %6350 = vmatpush1.msra.mxu0 0.0
  %6351 = vmatprep.subr.mxu0 0.0
  %6352 = vmatpush1.msra.mxu0 0.0
  %6353 = vmatprep.subr.mxu0 0.0
  %6354 = vmatpush1.msra.mxu0 0.0
  %6355 = vmatprep.subr.mxu0 0.0
  %6356 = vmatpush1.msra.mxu0 0.0
  %6357 = vmatprep.subr.mxu0 0.0
  %6358 = vmatpush1.msra.mxu0 0.0
  %6359 = vmatprep.subr.mxu0 0.0
  %6360 = vmatpush1.msra.mxu0 0.0
  %6361 = vmatprep.subr.mxu0 0.0
  %6362 = vmatpush1.msra.mxu0 0.0
  %6363 = vmatprep.subr.mxu0 0.0
  %6364 = vmatpush1.msra.mxu0 0.0
  %6365 = vmatprep.subr.mxu0 0.0
  %6366 = vmatpush1.msra.mxu0 0.0
  %6367 = vmatprep.subr.mxu0 0.0
  %6368 = vmatpush1.msra.mxu0 0.0
  %6369 = vmatprep.subr.mxu0 0.0
  %6370 = vmatpush1.msra.mxu0 0.0
  %6371 = vmatprep.subr.mxu0 0.0
  %6372 = vmatpush1.msra.mxu0 0.0
  %6373 = vmatprep.subr.mxu0 0.0
  %6374 = vmatpush1.msra.mxu0 0.0
  %6375 = vmatprep.subr.mxu0 0.0
  %6376 = vmatpush1.msra.mxu0 0.0
  %6377 = vmatprep.subr.mxu0 0.0
  %6378 = vmatpush1.msra.mxu0 0.0
  %6379 = vmatprep.subr.mxu0 0.0
  %6380 = vmatpush1.msra.mxu0 0.0
  %6381 = vmatprep.subr.mxu0 0.0
  %6382 = vmatpush1.msra.mxu0 0.0
  %6383 = vmatprep.subr.mxu0 0.0
  %6384 = vmatpush1.msra.mxu0 0.0
  %6385 = vmatprep.subr.mxu0 0.0
  %6386 = vmatpush1.msra.mxu0 0.0
  %6387 = vmatprep.subr.mxu0 0.0
  %6388 = vmatpush1.msra.mxu0 0.0
  %6389 = vmatprep.subr.mxu0 0.0
  %6390 = vmatpush1.msra.mxu0 0.0
  %6391 = vmatprep.mubr.f32.mxu0 0.0
  %6392 = vmatmul.mubr.f32.gmra.mrb[0].mxu0 %v6325
  %v6393 = vpop.f32.mrb[0].mxu0
  %v6394 = vadd.f32 %v6322, %v6393
  %v6395 = vpop.f32.mrb[0].mxu0
  %6396 = vdwg.mxu0
  %v6397 = vxor.u32 %v6394, 2147483648
  %v6398 = vmul.f32 %v6397, 1.442695
  %v6399 = vpow.pop %v6398
  %v6400 = vadd.f32 %v6399, 1.0
  %v6401 = vrcp.pop %v6400
  %v6402 = vmul.f32 1.0, %v6401
  %6404 = vrot.lane.b32.xlu0 %v6394, 32
  %v6405 = vpop.permute.xlu0 %6404
  %v6407 = vmul.f32 %v6402, %v6405
  %6409 = vrot.lane.b32.xlu0 %v6407, 64
  %v6410 = vpop.permute.xlu0 %6409
  %v6412 = vadd.f32 %v6394, %v6410
  %v6413 = vtanh.pop %v6412
  %v6414 = vsub.f32 1.0, %v6402
  %6416 = vrot.lane.b32.xlu0 %v6413, 96
  %v6417 = vpop.permute.xlu0 %6416
  %v6419 = vmul.f32 %v6414, %v6417
  %v6420 = vmul.f32 %v6402, %v5951
  %v6421 = vadd.f32 %v6419, %v6420
  %6423 = vrot.lane.b32.xlu0 %v6421, 96
  %v6424 = vpop.permute.xlu0 %6423
  %v6425 = vsel %vm68, %v6424, 0
  %6427 = vmatprep.subr.mxu0 0.0
  %6428 = vmatpush1.msra.mxu0 %v3829
  %6429 = vmatprep.subr.mxu0 0.0
  %6430 = vmatpush1.msra.mxu0 %v3830
  %6431 = vmatprep.subr.mxu0 0.0
  %6432 = vmatpush1.msra.mxu0 %v3831
  %6433 = vmatprep.subr.mxu0 0.0
  %6434 = vmatpush1.msra.mxu0 %v3832
  %6435 = vmatprep.subr.mxu0 0.0
  %6436 = vmatpush1.msra.mxu0 0.0
  %6437 = vmatprep.subr.mxu0 0.0
  %6438 = vmatpush1.msra.mxu0 0.0
  %6439 = vmatprep.subr.mxu0 0.0
  %6440 = vmatpush1.msra.mxu0 0.0
  %6441 = vmatprep.subr.mxu0 0.0
  %6442 = vmatpush1.msra.mxu0 0.0
  %6443 = vmatprep.subr.mxu0 0.0
  %6444 = vmatpush1.msra.mxu0 0.0
  %6445 = vmatprep.subr.mxu0 0.0
  %6446 = vmatpush1.msra.mxu0 0.0
  %6447 = vmatprep.subr.mxu0 0.0
  %6448 = vmatpush1.msra.mxu0 0.0
  %6449 = vmatprep.subr.mxu0 0.0
  %6450 = vmatpush1.msra.mxu0 0.0
  %6451 = vmatprep.subr.mxu0 0.0
  %6452 = vmatpush1.msra.mxu0 0.0
  %6453 = vmatprep.subr.mxu0 0.0
  %6454 = vmatpush1.msra.mxu0 0.0
  %6455 = vmatprep.subr.mxu0 0.0
  %6456 = vmatpush1.msra.mxu0 0.0
  %6457 = vmatprep.subr.mxu0 0.0
  %6458 = vmatpush1.msra.mxu0 0.0
  %6459 = vmatprep.subr.mxu0 0.0
  %6460 = vmatpush1.msra.mxu0 0.0
  %6461 = vmatprep.subr.mxu0 0.0
  %6462 = vmatpush1.msra.mxu0 0.0
  %6463 = vmatprep.subr.mxu0 0.0
  %6464 = vmatpush1.msra.mxu0 0.0
  %6465 = vmatprep.subr.mxu0 0.0
  %6466 = vmatpush1.msra.mxu0 0.0
  %6467 = vmatprep.subr.mxu0 0.0
  %6468 = vmatpush1.msra.mxu0 0.0
  %6469 = vmatprep.subr.mxu0 0.0
  %6470 = vmatpush1.msra.mxu0 0.0
  %6471 = vmatprep.subr.mxu0 0.0
  %6472 = vmatpush1.msra.mxu0 0.0
  %6473 = vmatprep.subr.mxu0 0.0
  %6474 = vmatpush1.msra.mxu0 0.0
  %6475 = vmatprep.subr.mxu0 0.0
  %6476 = vmatpush1.msra.mxu0 0.0
  %6477 = vmatprep.subr.mxu0 0.0
  %6478 = vmatpush1.msra.mxu0 0.0
  %6479 = vmatprep.subr.mxu0 0.0
  %6480 = vmatpush1.msra.mxu0 0.0
  %6481 = vmatprep.subr.mxu0 0.0
  %6482 = vmatpush1.msra.mxu0 0.0
  %6483 = vmatprep.subr.mxu0 0.0
  %6484 = vmatpush1.msra.mxu0 0.0
  %6485 = vmatprep.subr.mxu0 0.0
  %6486 = vmatpush1.msra.mxu0 0.0
  %6487 = vmatprep.subr.mxu0 0.0
  %6488 = vmatpush1.msra.mxu0 0.0
  %6489 = vmatprep.subr.mxu0 0.0
  %6490 = vmatpush1.msra.mxu0 0.0
  %6491 = vmatprep.mubr.f32.mxu0 0.0
  %6492 = vmatmul.mubr.f32.gmra.mrb[0].mxu0 %v6425
  %v6493 = vpop.f32.mrb[0].mxu0
  %v6494 = vadd.f32 %v4074, %v6493
  %v6495 = vpop.f32.mrb[0].mxu0
  %6496 = vdwg.mxu0
  %vm6497 = vmxor %vm6186, 1
  %v6498 = vsel %vm6497, 1, 0
  %vm6499 = vcmp.eq.s32.totalorder %v6498, 1
  %v6500 = vsel %vm6499, %v6494, 0.0
  %v6502 = vcombine.high %v6500, %v6500
  %v6504 = vunpack.c.l.s4 1966171168
  %v6505 = vunpack.c.0.s8 %v6504
  %v6506 = vlaneseq
  %v6507 = vshrl.u32 %v6506, 7
  %v6508 = vsub.s32 %v6505, %v6507
  %v6509 = vrot.slane %v6500, %v6508
  %v6511 = vunpack.c.l.s4 1966171168
  %v6512 = vunpack.c.0.s8 %v6511
  %v6513 = vlaneseq
  %v6514 = vshrl.u32 %v6513, 7
  %v6515 = vsub.s32 %v6512, %v6514
  %v6516 = vrot.slane %v6502, %v6515
  %v6517 = vcombine.high %v6509, %v6509
  %v6518 = vcombine.high %v6516, %v6516
  %v6520 = vunpack.c.l.s4 1966171168
  %v6521 = vunpack.c.0.s8 %v6520
  %v6522 = vlaneseq
  %v6523 = vshrl.u32 %v6522, 7
  %v6524 = vsub.s32 %v6521, %v6523
  %v6525 = vrot.slane %v6509, %v6524
  %v6527 = vunpack.c.l.s4 1966171168
  %v6528 = vunpack.c.0.s8 %v6527
  %v6529 = vlaneseq
  %v6530 = vshrl.u32 %v6529, 7
  %v6531 = vsub.s32 %v6528, %v6530
  %v6532 = vrot.slane %v6516, %v6531
  %v6534 = vunpack.c.l.s4 1966171168
  %v6535 = vunpack.c.0.s8 %v6534
  %v6536 = vlaneseq
  %v6537 = vshrl.u32 %v6536, 7
  %v6538 = vsub.s32 %v6535, %v6537
  %v6539 = vrot.slane %v6517, %v6538
  %v6541 = vunpack.c.l.s4 1966171168
  %v6542 = vunpack.c.0.s8 %v6541
  %v6543 = vlaneseq
  %v6544 = vshrl.u32 %v6543, 7
  %v6545 = vsub.s32 %v6542, %v6544
  %v6546 = vrot.slane %v6518, %v6545
  %v6547 = vcombine.high %v6525, %v6525
  %v6548 = vcombine.high %v6532, %v6532
  %v6549 = vcombine.high %v6539, %v6539
  %v6550 = vcombine.high %v6546, %v6546
  %6559 = vst.msk [vmem:[%s13 + $0x5] sm:$0x1] %vm4209, %v6525
  %6560 = vst.msk [vmem:[%s13 + $0xd] sm:$0x1] %vm4209, %v6539
  %6561 = vst.msk [vmem:[%s13 + $0x15] sm:$0x1] %vm4209, %v6547
  %6562 = vst.msk [vmem:[%s13 + $0x1d] sm:$0x1] %vm4209, %v6549
  %6563 = vst.msk [vmem:[%s13 + $0x25] sm:$0x1] %vm4209, %v6532
  %6564 = vst.msk [vmem:[%s13 + $0x2d] sm:$0x1] %vm4209, %v6546
  %6565 = vst.msk [vmem:[%s13 + $0x35] sm:$0x1] %vm4209, %v6548
  %6566 = vst.msk [vmem:[%s13 + $0x3d] sm:$0x1] %vm4209, %v6550
  %v6567 = vsel %vm68, %v6306, %v6421
  %v6568 = vsel %vm6499, %v6567, 0.0
  %v6570 = vcombine.high %v6568, %v6568
  %v6572 = vunpack.c.l.s4 1966171168
  %v6573 = vunpack.c.0.s8 %v6572
  %v6574 = vlaneseq
  %v6575 = vshrl.u32 %v6574, 7
  %v6576 = vsub.s32 %v6573, %v6575
  %v6577 = vrot.slane %v6568, %v6576
  %v6579 = vunpack.c.l.s4 1966171168
  %v6580 = vunpack.c.0.s8 %v6579
  %v6581 = vlaneseq
  %v6582 = vshrl.u32 %v6581, 7
  %v6583 = vsub.s32 %v6580, %v6582
  %v6584 = vrot.slane %v6570, %v6583
  %v6585 = vcombine.high %v6577, %v6577
  %v6586 = vcombine.high %v6584, %v6584
  %v6588 = vunpack.c.l.s4 1966171168
  %v6589 = vunpack.c.0.s8 %v6588
  %v6590 = vlaneseq
  %v6591 = vshrl.u32 %v6590, 7
  %v6592 = vsub.s32 %v6589, %v6591
  %v6593 = vrot.slane %v6577, %v6592
  %v6595 = vunpack.c.l.s4 1966171168
  %v6596 = vunpack.c.0.s8 %v6595
  %v6597 = vlaneseq
  %v6598 = vshrl.u32 %v6597, 7
  %v6599 = vsub.s32 %v6596, %v6598
  %v6600 = vrot.slane %v6584, %v6599
  %v6602 = vunpack.c.l.s4 1966171168
  %v6603 = vunpack.c.0.s8 %v6602
  %v6604 = vlaneseq
  %v6605 = vshrl.u32 %v6604, 7
  %v6606 = vsub.s32 %v6603, %v6605
  %v6607 = vrot.slane %v6585, %v6606
  %v6609 = vunpack.c.l.s4 1966171168
  %v6610 = vunpack.c.0.s8 %v6609
  %v6611 = vlaneseq
  %v6612 = vshrl.u32 %v6611, 7
  %v6613 = vsub.s32 %v6610, %v6612
  %v6614 = vrot.slane %v6586, %v6613
  %v6615 = vcombine.high %v6593, %v6593
  %v6616 = vcombine.high %v6600, %v6600
  %v6617 = vcombine.high %v6607, %v6607
  %v6618 = vcombine.high %v6614, %v6614
  %6627 = vst.msk [vmem:[%s14 + $0x5] sm:$0x1] %vm4277, %v6593
  %6628 = vst.msk [vmem:[%s14 + $0xd] sm:$0x1] %vm4277, %v6607
  %6629 = vst.msk [vmem:[%s14 + $0x15] sm:$0x1] %vm4277, %v6615
  %6630 = vst.msk [vmem:[%s14 + $0x1d] sm:$0x1] %vm4277, %v6617
  %6631 = vst.msk [vmem:[%s14 + $0x25] sm:$0x1] %vm4277, %v6600
  %6632 = vst.msk [vmem:[%s14 + $0x2d] sm:$0x1] %vm4277, %v6614
  %6633 = vst.msk [vmem:[%s14 + $0x35] sm:$0x1] %vm4277, %v6616
  %6634 = vst.msk [vmem:[%s14 + $0x3d] sm:$0x1] %vm4277, %v6618
  %v6635 = vsel %vm68, %v6494, -inf
  %6636 = vmax.xlane.f32.xlu0 %v6635
  %v6637 = vpop.xlane.xlu0 %6636
  %vm6638 = vcmp.eq.f32.partialorder %v6494, %v6637
  %v6639 = vsel %vm6638, %v3825, 32
  %v6640 = vsel %vm68, %v6639, 2147483647
  %v6641 = vand.u32 %v6640, 65535
  %v6642 = vshra.s32 %v6640, 16
  %v6643 = vcvt.s32.f32 %v6641
  %v6644 = vcvt.s32.f32 %v6642
  %6645 = vmin.xlane.f32.xlu0 %v6644
  %v6646 = vpop.xlane.xlu0 %6645
  %vm6647 = vcmp.eq.f32.partialorder %v6644, %v6646
  %v6648 = vsel %vm6647, %v6643, inf
  %6649 = vmin.xlane.f32.xlu0 %v6648
  %v6650 = vpop.xlane.xlu0 %6649
  %v6651 = vcvt.f32.s32 %v6650
  %v6652 = vcvt.f32.s32 %v6646
  %v6653 = vshll.u32 %v6652, 16
  %v6654 = vadd.s32 %v6653, %v6651
  %vm6655 = vcmp.eq.s32.totalorder %v6654, 2
  %vm6656 = vmor %vm6186, %vm6655
  %vm6657 = vcmp.eq.s32.totalorder %v3825, %v6654
  %v6658 = vsel %vm6657, 1, 0
  %v6659 = vcvt.s32.f32 %v6658
  %v6660 = vsel %vm68, %v6659, %v6303
  %v6661 = vld [vmem:[%s7] sm:$0xff]
  %v6662 = vld [vmem:[%s7 + $0x8] sm:$0xff]
  %v6663 = vld [vmem:[%s7 + $0x10] sm:$0xff]
  %v6664 = vld [vmem:[%s7 + $0x18] sm:$0xff]
  %v6665 = vld [vmem:[%s7 + $0x20] sm:$0xff]
  %v6666 = vld [vmem:[%s7 + $0x28] sm:$0xff]
  %v6667 = vld [vmem:[%s7 + $0x30] sm:$0xff]
  %v6668 = vld [vmem:[%s7 + $0x38] sm:$0xff]
  %v6669 = vld [vmem:[%s8] sm:$0x1]
  %v6671 = vlaneseq
  %v6672 = vshrl.u32 %v6671, 7
  %v6673 = vsub.s32 0, %v6672
  %v6674 = vrot.slane %v6669, %v6673
  %v6677 = vsel %vm441, %v6660, 0
  %6679 = vmatprep.subr.mxu0 0.0
  %6680 = vmatpush1.msra.mxu0 %v6661
  %6681 = vmatprep.subr.mxu0 0.0
  %6682 = vmatpush1.msra.mxu0 %v6662
  %6683 = vmatprep.subr.mxu0 0.0
  %6684 = vmatpush1.msra.mxu0 %v6663
  %6685 = vmatprep.subr.mxu0 0.0
  %6686 = vmatpush1.msra.mxu0 %v6664
  %6687 = vmatprep.subr.mxu0 0.0
  %6688 = vmatpush1.msra.mxu0 %v6665
  %6689 = vmatprep.subr.mxu0 0.0
  %6690 = vmatpush1.msra.mxu0 %v6666
  %6691 = vmatprep.subr.mxu0 0.0
  %6692 = vmatpush1.msra.mxu0 %v6667
  %6693 = vmatprep.subr.mxu0 0.0
  %6694 = vmatpush1.msra.mxu0 %v6668
  %6695 = vmatprep.subr.mxu0 0.0
  %6696 = vmatpush1.msra.mxu0 0.0
  %6697 = vmatprep.subr.mxu0 0.0
  %6698 = vmatpush1.msra.mxu0 0.0
  %6699 = vmatprep.subr.mxu0 0.0
  %6700 = vmatpush1.msra.mxu0 0.0
  %6701 = vmatprep.subr.mxu0 0.0
  %6702 = vmatpush1.msra.mxu0 0.0
  %6703 = vmatprep.subr.mxu0 0.0
  %6704 = vmatpush1.msra.mxu0 0.0
  %6705 = vmatprep.subr.mxu0 0.0
  %6706 = vmatpush1.msra.mxu0 0.0
  %6707 = vmatprep.subr.mxu0 0.0
  %6708 = vmatpush1.msra.mxu0 0.0
  %6709 = vmatprep.subr.mxu0 0.0
  %6710 = vmatpush1.msra.mxu0 0.0
  %6711 = vmatprep.subr.mxu0 0.0
  %6712 = vmatpush1.msra.mxu0 0.0
  %6713 = vmatprep.subr.mxu0 0.0
  %6714 = vmatpush1.msra.mxu0 0.0
  %6715 = vmatprep.subr.mxu0 0.0
  %6716 = vmatpush1.msra.mxu0 0.0
  %6717 = vmatprep.subr.mxu0 0.0
  %6718 = vmatpush1.msra.mxu0 0.0
  %6719 = vmatprep.subr.mxu0 0.0
  %6720 = vmatpush1.msra.mxu0 0.0
  %6721 = vmatprep.subr.mxu0 0.0
  %6722 = vmatpush1.msra.mxu0 0.0
  %6723 = vmatprep.subr.mxu0 0.0
  %6724 = vmatpush1.msra.mxu0 0.0
  %6725 = vmatprep.subr.mxu0 0.0
  %6726 = vmatpush1.msra.mxu0 0.0
  %6727 = vmatprep.subr.mxu0 0.0
  %6728 = vmatpush1.msra.mxu0 0.0
  %6729 = vmatprep.subr.mxu0 0.0
  %6730 = vmatpush1.msra.mxu0 0.0
  %6731 = vmatprep.subr.mxu0 0.0
  %6732 = vmatpush1.msra.mxu0 0.0
  %6733 = vmatprep.subr.mxu0 0.0
  %6734 = vmatpush1.msra.mxu0 0.0
  %6735 = vmatprep.subr.mxu0 0.0
  %6736 = vmatpush1.msra.mxu0 0.0
  %6737 = vmatprep.subr.mxu0 0.0
  %6738 = vmatpush1.msra.mxu0 0.0
  %6739 = vmatprep.subr.mxu0 0.0
  %6740 = vmatpush1.msra.mxu0 0.0
  %6741 = vmatprep.subr.mxu0 0.0
  %6742 = vmatpush1.msra.mxu0 0.0
  %6743 = vmatprep.mubr.f32.mxu0 0.0
  %6744 = vmatmul.mubr.f32.gmra.mrb[0].mxu0 %v6677
  %v6745 = vpop.f32.mrb[0].mxu0
  %v6746 = vadd.f32 %v6674, %v6745
  %v6747 = vpop.f32.mrb[0].mxu0
  %6748 = vdwg.mxu0
  %v6749 = vxor.u32 %v6746, 2147483648
  %v6750 = vmul.f32 %v6749, 1.442695
  %v6751 = vpow.pop %v6750
  %v6752 = vadd.f32 %v6751, 1.0
  %v6753 = vrcp.pop %v6752
  %v6754 = vmul.f32 1.0, %v6753
  %6756 = vrot.lane.b32.xlu0 %v6746, 32
  %v6757 = vpop.permute.xlu0 %6756
  %v6759 = vmul.f32 %v6754, %v6757
  %6761 = vrot.lane.b32.xlu0 %v6759, 64
  %v6762 = vpop.permute.xlu0 %6761
  %v6764 = vadd.f32 %v6746, %v6762
  %v6765 = vtanh.pop %v6764
  %v6766 = vsub.f32 1.0, %v6754
  %6768 = vrot.lane.b32.xlu0 %v6765, 96
  %v6769 = vpop.permute.xlu0 %6768
  %v6771 = vmul.f32 %v6766, %v6769
  %v6772 = vmul.f32 %v6754, %v6303
  %v6773 = vadd.f32 %v6771, %v6772
  %6775 = vrot.lane.b32.xlu0 %v6773, 96
  %v6776 = vpop.permute.xlu0 %6775
  %v6778 = vsel %vm68, %v6776, %v6421
  %v6779 = vld [vmem:[%s9] sm:$0xff]
  %v6780 = vld [vmem:[%s9 + $0x8] sm:$0xff]
  %v6781 = vld [vmem:[%s9 + $0x10] sm:$0xff]
  %v6782 = vld [vmem:[%s9 + $0x18] sm:$0xff]
  %v6783 = vld [vmem:[%s9 + $0x20] sm:$0xff]
  %v6784 = vld [vmem:[%s9 + $0x28] sm:$0xff]
  %v6785 = vld [vmem:[%s9 + $0x30] sm:$0xff]
  %v6786 = vld [vmem:[%s9 + $0x38] sm:$0xff]
  %v6787 = vld [vmem:[%s10] sm:$0x1]
  %v6789 = vlaneseq
  %v6790 = vshrl.u32 %v6789, 7
  %v6791 = vsub.s32 0, %v6790
  %v6792 = vrot.slane %v6787, %v6791
  %v6795 = vsel %vm441, %v6778, 0
  %6797 = vmatprep.subr.mxu0 0.0
  %6798 = vmatpush1.msra.mxu0 %v6779
  %6799 = vmatprep.subr.mxu0 0.0
  %6800 = vmatpush1.msra.mxu0 %v6780
  %6801 = vmatprep.subr.mxu0 0.0
  %6802 = vmatpush1.msra.mxu0 %v6781
  %6803 = vmatprep.subr.mxu0 0.0
  %6804 = vmatpush1.msra.mxu0 %v6782
  %6805 = vmatprep.subr.mxu0 0.0
  %6806 = vmatpush1.msra.mxu0 %v6783
  %6807 = vmatprep.subr.mxu0 0.0
  %6808 = vmatpush1.msra.mxu0 %v6784
  %6809 = vmatprep.subr.mxu0 0.0
  %6810 = vmatpush1.msra.mxu0 %v6785
  %6811 = vmatprep.subr.mxu0 0.0
  %6812 = vmatpush1.msra.mxu0 %v6786
  %6813 = vmatprep.subr.mxu0 0.0
  %6814 = vmatpush1.msra.mxu0 0.0
  %6815 = vmatprep.subr.mxu0 0.0
  %6816 = vmatpush1.msra.mxu0 0.0
  %6817 = vmatprep.subr.mxu0 0.0
  %6818 = vmatpush1.msra.mxu0 0.0
  %6819 = vmatprep.subr.mxu0 0.0
  %6820 = vmatpush1.msra.mxu0 0.0
  %6821 = vmatprep.subr.mxu0 0.0
  %6822 = vmatpush1.msra.mxu0 0.0
  %6823 = vmatprep.subr.mxu0 0.0
  %6824 = vmatpush1.msra.mxu0 0.0
  %6825 = vmatprep.subr.mxu0 0.0
  %6826 = vmatpush1.msra.mxu0 0.0
  %6827 = vmatprep.subr.mxu0 0.0
  %6828 = vmatpush1.msra.mxu0 0.0
  %6829 = vmatprep.subr.mxu0 0.0
  %6830 = vmatpush1.msra.mxu0 0.0
  %6831 = vmatprep.subr.mxu0 0.0
  %6832 = vmatpush1.msra.mxu0 0.0
  %6833 = vmatprep.subr.mxu0 0.0
  %6834 = vmatpush1.msra.mxu0 0.0
  %6835 = vmatprep.subr.mxu0 0.0
  %6836 = vmatpush1.msra.mxu0 0.0
  %6837 = vmatprep.subr.mxu0 0.0
  %6838 = vmatpush1.msra.mxu0 0.0
  %6839 = vmatprep.subr.mxu0 0.0
  %6840 = vmatpush1.msra.mxu0 0.0
  %6841 = vmatprep.subr.mxu0 0.0
  %6842 = vmatpush1.msra.mxu0 0.0
  %6843 = vmatprep.subr.mxu0 0.0
  %6844 = vmatpush1.msra.mxu0 0.0
  %6845 = vmatprep.subr.mxu0 0.0
  %6846 = vmatpush1.msra.mxu0 0.0
  %6847 = vmatprep.subr.mxu0 0.0
  %6848 = vmatpush1.msra.mxu0 0.0
  %6849 = vmatprep.subr.mxu0 0.0
  %6850 = vmatpush1.msra.mxu0 0.0
  %6851 = vmatprep.subr.mxu0 0.0
  %6852 = vmatpush1.msra.mxu0 0.0
  %6853 = vmatprep.subr.mxu0 0.0
  %6854 = vmatpush1.msra.mxu0 0.0
  %6855 = vmatprep.subr.mxu0 0.0
  %6856 = vmatpush1.msra.mxu0 0.0
  %6857 = vmatprep.subr.mxu0 0.0
  %6858 = vmatpush1.msra.mxu0 0.0
  %6859 = vmatprep.subr.mxu0 0.0
  %6860 = vmatpush1.msra.mxu0 0.0
  %6861 = vmatprep.mubr.f32.mxu0 0.0
  %6862 = vmatmul.mubr.f32.gmra.mrb[0].mxu0 %v6795
  %v6863 = vpop.f32.mrb[0].mxu0
  %v6864 = vadd.f32 %v6792, %v6863
  %v6865 = vpop.f32.mrb[0].mxu0
  %6866 = vdwg.mxu0
  %v6867 = vxor.u32 %v6864, 2147483648
  %v6868 = vmul.f32 %v6867, 1.442695
  %v6869 = vpow.pop %v6868
  %v6870 = vadd.f32 %v6869, 1.0
  %v6871 = vrcp.pop %v6870
  %v6872 = vmul.f32 1.0, %v6871
  %6874 = vrot.lane.b32.xlu0 %v6864, 32
  %v6875 = vpop.permute.xlu0 %6874
  %v6877 = vmul.f32 %v6872, %v6875
  %6879 = vrot.lane.b32.xlu0 %v6877, 64
  %v6880 = vpop.permute.xlu0 %6879
  %v6882 = vadd.f32 %v6864, %v6880
  %v6883 = vtanh.pop %v6882
  %v6884 = vsub.f32 1.0, %v6872
  %6886 = vrot.lane.b32.xlu0 %v6883, 96
  %v6887 = vpop.permute.xlu0 %6886
  %v6889 = vmul.f32 %v6884, %v6887
  %v6890 = vmul.f32 %v6872, %v6421
  %v6891 = vadd.f32 %v6889, %v6890
  %6893 = vrot.lane.b32.xlu0 %v6891, 96
  %v6894 = vpop.permute.xlu0 %6893
  %v6895 = vsel %vm68, %v6894, 0
  %6897 = vmatprep.subr.mxu0 0.0
  %6898 = vmatpush1.msra.mxu0 %v3829
  %6899 = vmatprep.subr.mxu0 0.0
  %6900 = vmatpush1.msra.mxu0 %v3830
  %6901 = vmatprep.subr.mxu0 0.0
  %6902 = vmatpush1.msra.mxu0 %v3831
  %6903 = vmatprep.subr.mxu0 0.0
  %6904 = vmatpush1.msra.mxu0 %v3832
  %6905 = vmatprep.subr.mxu0 0.0
  %6906 = vmatpush1.msra.mxu0 0.0
  %6907 = vmatprep.subr.mxu0 0.0
  %6908 = vmatpush1.msra.mxu0 0.0
  %6909 = vmatprep.subr.mxu0 0.0
  %6910 = vmatpush1.msra.mxu0 0.0
  %6911 = vmatprep.subr.mxu0 0.0
  %6912 = vmatpush1.msra.mxu0 0.0
  %6913 = vmatprep.subr.mxu0 0.0
  %6914 = vmatpush1.msra.mxu0 0.0
  %6915 = vmatprep.subr.mxu0 0.0
  %6916 = vmatpush1.msra.mxu0 0.0
  %6917 = vmatprep.subr.mxu0 0.0
  %6918 = vmatpush1.msra.mxu0 0.0
  %6919 = vmatprep.subr.mxu0 0.0
  %6920 = vmatpush1.msra.mxu0 0.0
  %6921 = vmatprep.subr.mxu0 0.0
  %6922 = vmatpush1.msra.mxu0 0.0
  %6923 = vmatprep.subr.mxu0 0.0
  %6924 = vmatpush1.msra.mxu0 0.0
  %6925 = vmatprep.subr.mxu0 0.0
  %6926 = vmatpush1.msra.mxu0 0.0
  %6927 = vmatprep.subr.mxu0 0.0
  %6928 = vmatpush1.msra.mxu0 0.0
  %6929 = vmatprep.subr.mxu0 0.0
  %6930 = vmatpush1.msra.mxu0 0.0
  %6931 = vmatprep.subr.mxu0 0.0
  %6932 = vmatpush1.msra.mxu0 0.0
  %6933 = vmatprep.subr.mxu0 0.0
  %6934 = vmatpush1.msra.mxu0 0.0
  %6935 = vmatprep.subr.mxu0 0.0
  %6936 = vmatpush1.msra.mxu0 0.0
  %6937 = vmatprep.subr.mxu0 0.0
  %6938 = vmatpush1.msra.mxu0 0.0
  %6939 = vmatprep.subr.mxu0 0.0
  %6940 = vmatpush1.msra.mxu0 0.0
  %6941 = vmatprep.subr.mxu0 0.0
  %6942 = vmatpush1.msra.mxu0 0.0
  %6943 = vmatprep.subr.mxu0 0.0
  %6944 = vmatpush1.msra.mxu0 0.0
  %6945 = vmatprep.subr.mxu0 0.0
  %6946 = vmatpush1.msra.mxu0 0.0
  %6947 = vmatprep.subr.mxu0 0.0
  %6948 = vmatpush1.msra.mxu0 0.0
  %6949 = vmatprep.subr.mxu0 0.0
  %6950 = vmatpush1.msra.mxu0 0.0
  %6951 = vmatprep.subr.mxu0 0.0
  %6952 = vmatpush1.msra.mxu0 0.0
  %6953 = vmatprep.subr.mxu0 0.0
  %6954 = vmatpush1.msra.mxu0 0.0
  %6955 = vmatprep.subr.mxu0 0.0
  %6956 = vmatpush1.msra.mxu0 0.0
  %6957 = vmatprep.subr.mxu0 0.0
  %6958 = vmatpush1.msra.mxu0 0.0
  %6959 = vmatprep.subr.mxu0 0.0
  %6960 = vmatpush1.msra.mxu0 0.0
  %6961 = vmatprep.mubr.f32.mxu0 0.0
  %6962 = vmatmul.mubr.f32.gmra.mrb[0].mxu0 %v6895
  %v6963 = vpop.f32.mrb[0].mxu0
  %v6964 = vadd.f32 %v4074, %v6963
  %v6965 = vpop.f32.mrb[0].mxu0
  %6966 = vdwg.mxu0
  %vm6967 = vmxor %vm6656, 1
  %v6968 = vsel %vm6967, 1, 0
  %vm6969 = vcmp.eq.s32.totalorder %v6968, 1
  %v6970 = vsel %vm6969, %v6964, 0.0
  %v6972 = vcombine.high %v6970, %v6970
  %v6974 = vunpack.c.l.s4 1966171168
  %v6975 = vunpack.c.0.s8 %v6974
  %v6976 = vlaneseq
  %v6977 = vshrl.u32 %v6976, 7
  %v6978 = vsub.s32 %v6975, %v6977
  %v6979 = vrot.slane %v6970, %v6978
  %v6981 = vunpack.c.l.s4 1966171168
  %v6982 = vunpack.c.0.s8 %v6981
  %v6983 = vlaneseq
  %v6984 = vshrl.u32 %v6983, 7
  %v6985 = vsub.s32 %v6982, %v6984
  %v6986 = vrot.slane %v6972, %v6985
  %v6987 = vcombine.high %v6979, %v6979
  %v6988 = vcombine.high %v6986, %v6986
  %v6990 = vunpack.c.l.s4 1966171168
  %v6991 = vunpack.c.0.s8 %v6990
  %v6992 = vlaneseq
  %v6993 = vshrl.u32 %v6992, 7
  %v6994 = vsub.s32 %v6991, %v6993
  %v6995 = vrot.slane %v6979, %v6994
  %v6997 = vunpack.c.l.s4 1966171168
  %v6998 = vunpack.c.0.s8 %v6997
  %v6999 = vlaneseq
  %v7000 = vshrl.u32 %v6999, 7
  %v7001 = vsub.s32 %v6998, %v7000
  %v7002 = vrot.slane %v6986, %v7001
  %v7004 = vunpack.c.l.s4 1966171168
  %v7005 = vunpack.c.0.s8 %v7004
  %v7006 = vlaneseq
  %v7007 = vshrl.u32 %v7006, 7
  %v7008 = vsub.s32 %v7005, %v7007
  %v7009 = vrot.slane %v6987, %v7008
  %v7011 = vunpack.c.l.s4 1966171168
  %v7012 = vunpack.c.0.s8 %v7011
  %v7013 = vlaneseq
  %v7014 = vshrl.u32 %v7013, 7
  %v7015 = vsub.s32 %v7012, %v7014
  %v7016 = vrot.slane %v6988, %v7015
  %v7017 = vcombine.high %v6995, %v6995
  %v7018 = vcombine.high %v7002, %v7002
  %v7019 = vcombine.high %v7009, %v7009
  %v7020 = vcombine.high %v7016, %v7016
  %7029 = vst.msk [vmem:[%s13 + $0x6] sm:$0x1] %vm4209, %v6995
  %7030 = vst.msk [vmem:[%s13 + $0xe] sm:$0x1] %vm4209, %v7009
  %7031 = vst.msk [vmem:[%s13 + $0x16] sm:$0x1] %vm4209, %v7017
  %7032 = vst.msk [vmem:[%s13 + $0x1e] sm:$0x1] %vm4209, %v7019
  %7033 = vst.msk [vmem:[%s13 + $0x26] sm:$0x1] %vm4209, %v7002
  %7034 = vst.msk [vmem:[%s13 + $0x2e] sm:$0x1] %vm4209, %v7016
  %7035 = vst.msk [vmem:[%s13 + $0x36] sm:$0x1] %vm4209, %v7018
  %7036 = vst.msk [vmem:[%s13 + $0x3e] sm:$0x1] %vm4209, %v7020
  %v7037 = vsel %vm68, %v6776, %v6891
  %v7038 = vsel %vm6969, %v7037, 0.0
  %v7040 = vcombine.high %v7038, %v7038
  %v7042 = vunpack.c.l.s4 1966171168
  %v7043 = vunpack.c.0.s8 %v7042
  %v7044 = vlaneseq
  %v7045 = vshrl.u32 %v7044, 7
  %v7046 = vsub.s32 %v7043, %v7045
  %v7047 = vrot.slane %v7038, %v7046
  %v7049 = vunpack.c.l.s4 1966171168
  %v7050 = vunpack.c.0.s8 %v7049
  %v7051 = vlaneseq
  %v7052 = vshrl.u32 %v7051, 7
  %v7053 = vsub.s32 %v7050, %v7052
  %v7054 = vrot.slane %v7040, %v7053
  %v7055 = vcombine.high %v7047, %v7047
  %v7056 = vcombine.high %v7054, %v7054
  %v7058 = vunpack.c.l.s4 1966171168
  %v7059 = vunpack.c.0.s8 %v7058
  %v7060 = vlaneseq
  %v7061 = vshrl.u32 %v7060, 7
  %v7062 = vsub.s32 %v7059, %v7061
  %v7063 = vrot.slane %v7047, %v7062
  %v7065 = vunpack.c.l.s4 1966171168
  %v7066 = vunpack.c.0.s8 %v7065
  %v7067 = vlaneseq
  %v7068 = vshrl.u32 %v7067, 7
  %v7069 = vsub.s32 %v7066, %v7068
  %v7070 = vrot.slane %v7054, %v7069
  %v7072 = vunpack.c.l.s4 1966171168
  %v7073 = vunpack.c.0.s8 %v7072
  %v7074 = vlaneseq
  %v7075 = vshrl.u32 %v7074, 7
  %v7076 = vsub.s32 %v7073, %v7075
  %v7077 = vrot.slane %v7055, %v7076
  %v7079 = vunpack.c.l.s4 1966171168
  %v7080 = vunpack.c.0.s8 %v7079
  %v7081 = vlaneseq
  %v7082 = vshrl.u32 %v7081, 7
  %v7083 = vsub.s32 %v7080, %v7082
  %v7084 = vrot.slane %v7056, %v7083
  %v7085 = vcombine.high %v7063, %v7063
  %v7086 = vcombine.high %v7070, %v7070
  %v7087 = vcombine.high %v7077, %v7077
  %v7088 = vcombine.high %v7084, %v7084
  %7097 = vst.msk [vmem:[%s14 + $0x6] sm:$0x1] %vm4277, %v7063
  %7098 = vst.msk [vmem:[%s14 + $0xe] sm:$0x1] %vm4277, %v7077
  %7099 = vst.msk [vmem:[%s14 + $0x16] sm:$0x1] %vm4277, %v7085
  %7100 = vst.msk [vmem:[%s14 + $0x1e] sm:$0x1] %vm4277, %v7087
  %7101 = vst.msk [vmem:[%s14 + $0x26] sm:$0x1] %vm4277, %v7070
  %7102 = vst.msk [vmem:[%s14 + $0x2e] sm:$0x1] %vm4277, %v7084
  %7103 = vst.msk [vmem:[%s14 + $0x36] sm:$0x1] %vm4277, %v7086
  %7104 = vst.msk [vmem:[%s14 + $0x3e] sm:$0x1] %vm4277, %v7088
  %v7105 = vsel %vm68, %v6964, -inf
  %7106 = vmax.xlane.f32.xlu0 %v7105
  %v7107 = vpop.xlane.xlu0 %7106
  %vm7108 = vcmp.eq.f32.partialorder %v6964, %v7107
  %v7109 = vsel %vm7108, %v3825, 32
  %v7110 = vsel %vm68, %v7109, 2147483647
  %v7111 = vand.u32 %v7110, 65535
  %v7112 = vshra.s32 %v7110, 16
  %v7113 = vcvt.s32.f32 %v7111
  %v7114 = vcvt.s32.f32 %v7112
  %7115 = vmin.xlane.f32.xlu0 %v7114
  %v7116 = vpop.xlane.xlu0 %7115
  %vm7117 = vcmp.eq.f32.partialorder %v7114, %v7116
  %v7118 = vsel %vm7117, %v7113, inf
  %7119 = vmin.xlane.f32.xlu0 %v7118
  %v7120 = vpop.xlane.xlu0 %7119
  %v7121 = vcvt.f32.s32 %v7120
  %v7122 = vcvt.f32.s32 %v7116
  %v7123 = vshll.u32 %v7122, 16
  %v7124 = vadd.s32 %v7123, %v7121
  %vm7125 = vcmp.eq.s32.totalorder %v7124, 2
  %vm7126 = vmor %vm6656, %vm7125
  %vm7127 = vcmp.eq.s32.totalorder %v3825, %v7124
  %v7128 = vsel %vm7127, 1, 0
  %v7129 = vcvt.s32.f32 %v7128
  %v7130 = vsel %vm68, %v7129, %v6773
  %v7131 = vld [vmem:[%s7] sm:$0xff]
  %v7132 = vld [vmem:[%s7 + $0x8] sm:$0xff]
  %v7133 = vld [vmem:[%s7 + $0x10] sm:$0xff]
  %v7134 = vld [vmem:[%s7 + $0x18] sm:$0xff]
  %v7135 = vld [vmem:[%s7 + $0x20] sm:$0xff]
  %v7136 = vld [vmem:[%s7 + $0x28] sm:$0xff]
  %v7137 = vld [vmem:[%s7 + $0x30] sm:$0xff]
  %v7138 = vld [vmem:[%s7 + $0x38] sm:$0xff]
  %v7139 = vld [vmem:[%s8] sm:$0x1]
  %v7141 = vlaneseq
  %v7142 = vshrl.u32 %v7141, 7
  %v7143 = vsub.s32 0, %v7142
  %v7144 = vrot.slane %v7139, %v7143
  %v7147 = vsel %vm441, %v7130, 0
  %7149 = vmatprep.subr.mxu0 0.0
  %7150 = vmatpush1.msra.mxu0 %v7131
  %7151 = vmatprep.subr.mxu0 0.0
  %7152 = vmatpush1.msra.mxu0 %v7132
  %7153 = vmatprep.subr.mxu0 0.0
  %7154 = vmatpush1.msra.mxu0 %v7133
  %7155 = vmatprep.subr.mxu0 0.0
  %7156 = vmatpush1.msra.mxu0 %v7134
  %7157 = vmatprep.subr.mxu0 0.0
  %7158 = vmatpush1.msra.mxu0 %v7135
  %7159 = vmatprep.subr.mxu0 0.0
  %7160 = vmatpush1.msra.mxu0 %v7136
  %7161 = vmatprep.subr.mxu0 0.0
  %7162 = vmatpush1.msra.mxu0 %v7137
  %7163 = vmatprep.subr.mxu0 0.0
  %7164 = vmatpush1.msra.mxu0 %v7138
  %7165 = vmatprep.subr.mxu0 0.0
  %7166 = vmatpush1.msra.mxu0 0.0
  %7167 = vmatprep.subr.mxu0 0.0
  %7168 = vmatpush1.msra.mxu0 0.0
  %7169 = vmatprep.subr.mxu0 0.0
  %7170 = vmatpush1.msra.mxu0 0.0
  %7171 = vmatprep.subr.mxu0 0.0
  %7172 = vmatpush1.msra.mxu0 0.0
  %7173 = vmatprep.subr.mxu0 0.0
  %7174 = vmatpush1.msra.mxu0 0.0
  %7175 = vmatprep.subr.mxu0 0.0
  %7176 = vmatpush1.msra.mxu0 0.0
  %7177 = vmatprep.subr.mxu0 0.0
  %7178 = vmatpush1.msra.mxu0 0.0
  %7179 = vmatprep.subr.mxu0 0.0
  %7180 = vmatpush1.msra.mxu0 0.0
  %7181 = vmatprep.subr.mxu0 0.0
  %7182 = vmatpush1.msra.mxu0 0.0
  %7183 = vmatprep.subr.mxu0 0.0
  %7184 = vmatpush1.msra.mxu0 0.0
  %7185 = vmatprep.subr.mxu0 0.0
  %7186 = vmatpush1.msra.mxu0 0.0
  %7187 = vmatprep.subr.mxu0 0.0
  %7188 = vmatpush1.msra.mxu0 0.0
  %7189 = vmatprep.subr.mxu0 0.0
  %7190 = vmatpush1.msra.mxu0 0.0
  %7191 = vmatprep.subr.mxu0 0.0
  %7192 = vmatpush1.msra.mxu0 0.0
  %7193 = vmatprep.subr.mxu0 0.0
  %7194 = vmatpush1.msra.mxu0 0.0
  %7195 = vmatprep.subr.mxu0 0.0
  %7196 = vmatpush1.msra.mxu0 0.0
  %7197 = vmatprep.subr.mxu0 0.0
  %7198 = vmatpush1.msra.mxu0 0.0
  %7199 = vmatprep.subr.mxu0 0.0
  %7200 = vmatpush1.msra.mxu0 0.0
  %7201 = vmatprep.subr.mxu0 0.0
  %7202 = vmatpush1.msra.mxu0 0.0
  %7203 = vmatprep.subr.mxu0 0.0
  %7204 = vmatpush1.msra.mxu0 0.0
  %7205 = vmatprep.subr.mxu0 0.0
  %7206 = vmatpush1.msra.mxu0 0.0
  %7207 = vmatprep.subr.mxu0 0.0
  %7208 = vmatpush1.msra.mxu0 0.0
  %7209 = vmatprep.subr.mxu0 0.0
  %7210 = vmatpush1.msra.mxu0 0.0
  %7211 = vmatprep.subr.mxu0 0.0
  %7212 = vmatpush1.msra.mxu0 0.0
  %7213 = vmatprep.mubr.f32.mxu0 0.0
  %7214 = vmatmul.mubr.f32.gmra.mrb[0].mxu0 %v7147
  %v7215 = vpop.f32.mrb[0].mxu0
  %v7216 = vadd.f32 %v7144, %v7215
  %v7217 = vpop.f32.mrb[0].mxu0
  %7218 = vdwg.mxu0
  %v7219 = vxor.u32 %v7216, 2147483648
  %v7220 = vmul.f32 %v7219, 1.442695
  %v7221 = vpow.pop %v7220
  %v7222 = vadd.f32 %v7221, 1.0
  %v7223 = vrcp.pop %v7222
  %v7224 = vmul.f32 1.0, %v7223
  %7226 = vrot.lane.b32.xlu0 %v7216, 32
  %v7227 = vpop.permute.xlu0 %7226
  %v7229 = vmul.f32 %v7224, %v7227
  %7231 = vrot.lane.b32.xlu0 %v7229, 64
  %v7232 = vpop.permute.xlu0 %7231
  %v7234 = vadd.f32 %v7216, %v7232
  %v7235 = vtanh.pop %v7234
  %v7236 = vsub.f32 1.0, %v7224
  %7238 = vrot.lane.b32.xlu0 %v7235, 96
  %v7239 = vpop.permute.xlu0 %7238
  %v7241 = vmul.f32 %v7236, %v7239
  %v7242 = vmul.f32 %v7224, %v6773
  %v7243 = vadd.f32 %v7241, %v7242
  %7245 = vrot.lane.b32.xlu0 %v7243, 96
  %v7246 = vpop.permute.xlu0 %7245
  %v7248 = vsel %vm68, %v7246, %v6891
  %v7249 = vld [vmem:[%s9] sm:$0xff]
  %v7250 = vld [vmem:[%s9 + $0x8] sm:$0xff]
  %v7251 = vld [vmem:[%s9 + $0x10] sm:$0xff]
  %v7252 = vld [vmem:[%s9 + $0x18] sm:$0xff]
  %v7253 = vld [vmem:[%s9 + $0x20] sm:$0xff]
  %v7254 = vld [vmem:[%s9 + $0x28] sm:$0xff]
  %v7255 = vld [vmem:[%s9 + $0x30] sm:$0xff]
  %v7256 = vld [vmem:[%s9 + $0x38] sm:$0xff]
  %v7257 = vld [vmem:[%s10] sm:$0x1]
  %v7259 = vlaneseq
  %v7260 = vshrl.u32 %v7259, 7
  %v7261 = vsub.s32 0, %v7260
  %v7262 = vrot.slane %v7257, %v7261
  %v7265 = vsel %vm441, %v7248, 0
  %7267 = vmatprep.subr.mxu0 0.0
  %7268 = vmatpush1.msra.mxu0 %v7249
  %7269 = vmatprep.subr.mxu0 0.0
  %7270 = vmatpush1.msra.mxu0 %v7250
  %7271 = vmatprep.subr.mxu0 0.0
  %7272 = vmatpush1.msra.mxu0 %v7251
  %7273 = vmatprep.subr.mxu0 0.0
  %7274 = vmatpush1.msra.mxu0 %v7252
  %7275 = vmatprep.subr.mxu0 0.0
  %7276 = vmatpush1.msra.mxu0 %v7253
  %7277 = vmatprep.subr.mxu0 0.0
  %7278 = vmatpush1.msra.mxu0 %v7254
  %7279 = vmatprep.subr.mxu0 0.0
  %7280 = vmatpush1.msra.mxu0 %v7255
  %7281 = vmatprep.subr.mxu0 0.0
  %7282 = vmatpush1.msra.mxu0 %v7256
  %7283 = vmatprep.subr.mxu0 0.0
  %7284 = vmatpush1.msra.mxu0 0.0
  %7285 = vmatprep.subr.mxu0 0.0
  %7286 = vmatpush1.msra.mxu0 0.0
  %7287 = vmatprep.subr.mxu0 0.0
  %7288 = vmatpush1.msra.mxu0 0.0
  %7289 = vmatprep.subr.mxu0 0.0
  %7290 = vmatpush1.msra.mxu0 0.0
  %7291 = vmatprep.subr.mxu0 0.0
  %7292 = vmatpush1.msra.mxu0 0.0
  %7293 = vmatprep.subr.mxu0 0.0
  %7294 = vmatpush1.msra.mxu0 0.0
  %7295 = vmatprep.subr.mxu0 0.0
  %7296 = vmatpush1.msra.mxu0 0.0
  %7297 = vmatprep.subr.mxu0 0.0
  %7298 = vmatpush1.msra.mxu0 0.0
  %7299 = vmatprep.subr.mxu0 0.0
  %7300 = vmatpush1.msra.mxu0 0.0
  %7301 = vmatprep.subr.mxu0 0.0
  %7302 = vmatpush1.msra.mxu0 0.0
  %7303 = vmatprep.subr.mxu0 0.0
  %7304 = vmatpush1.msra.mxu0 0.0
  %7305 = vmatprep.subr.mxu0 0.0
  %7306 = vmatpush1.msra.mxu0 0.0
  %7307 = vmatprep.subr.mxu0 0.0
  %7308 = vmatpush1.msra.mxu0 0.0
  %7309 = vmatprep.subr.mxu0 0.0
  %7310 = vmatpush1.msra.mxu0 0.0
  %7311 = vmatprep.subr.mxu0 0.0
  %7312 = vmatpush1.msra.mxu0 0.0
  %7313 = vmatprep.subr.mxu0 0.0
  %7314 = vmatpush1.msra.mxu0 0.0
  %7315 = vmatprep.subr.mxu0 0.0
  %7316 = vmatpush1.msra.mxu0 0.0
  %7317 = vmatprep.subr.mxu0 0.0
  %7318 = vmatpush1.msra.mxu0 0.0
  %7319 = vmatprep.subr.mxu0 0.0
  %7320 = vmatpush1.msra.mxu0 0.0
  %7321 = vmatprep.subr.mxu0 0.0
  %7322 = vmatpush1.msra.mxu0 0.0
  %7323 = vmatprep.subr.mxu0 0.0
  %7324 = vmatpush1.msra.mxu0 0.0
  %7325 = vmatprep.subr.mxu0 0.0
  %7326 = vmatpush1.msra.mxu0 0.0
  %7327 = vmatprep.subr.mxu0 0.0
  %7328 = vmatpush1.msra.mxu0 0.0
  %7329 = vmatprep.subr.mxu0 0.0
  %7330 = vmatpush1.msra.mxu0 0.0
  %7331 = vmatprep.mubr.f32.mxu0 0.0
  %7332 = vmatmul.mubr.f32.gmra.mrb[0].mxu0 %v7265
  %v7333 = vpop.f32.mrb[0].mxu0
  %v7334 = vadd.f32 %v7262, %v7333
  %v7335 = vpop.f32.mrb[0].mxu0
  %7336 = vdwg.mxu0
  %v7337 = vxor.u32 %v7334, 2147483648
  %v7338 = vmul.f32 %v7337, 1.442695
  %v7339 = vpow.pop %v7338
  %v7340 = vadd.f32 %v7339, 1.0
  %v7341 = vrcp.pop %v7340
  %v7342 = vmul.f32 1.0, %v7341
  %7344 = vrot.lane.b32.xlu0 %v7334, 32
  %v7345 = vpop.permute.xlu0 %7344
  %v7347 = vmul.f32 %v7342, %v7345
  %7349 = vrot.lane.b32.xlu0 %v7347, 64
  %v7350 = vpop.permute.xlu0 %7349
  %v7352 = vadd.f32 %v7334, %v7350
  %v7353 = vtanh.pop %v7352
  %v7354 = vsub.f32 1.0, %v7342
  %7356 = vrot.lane.b32.xlu0 %v7353, 96
  %v7357 = vpop.permute.xlu0 %7356
  %v7359 = vmul.f32 %v7354, %v7357
  %v7360 = vmul.f32 %v7342, %v6891
  %v7361 = vadd.f32 %v7359, %v7360
  %7363 = vrot.lane.b32.xlu0 %v7361, 96
  %v7364 = vpop.permute.xlu0 %7363
  %v7365 = vsel %vm68, %v7364, 0
  %7367 = vmatprep.subr.mxu0 0.0
  %7368 = vmatpush1.msra.mxu0 %v3829
  %7369 = vmatprep.subr.mxu0 0.0
  %7370 = vmatpush1.msra.mxu0 %v3830
  %7371 = vmatprep.subr.mxu0 0.0
  %7372 = vmatpush1.msra.mxu0 %v3831
  %7373 = vmatprep.subr.mxu0 0.0
  %7374 = vmatpush1.msra.mxu0 %v3832
  %7375 = vmatprep.subr.mxu0 0.0
  %7376 = vmatpush1.msra.mxu0 0.0
  %7377 = vmatprep.subr.mxu0 0.0
  %7378 = vmatpush1.msra.mxu0 0.0
  %7379 = vmatprep.subr.mxu0 0.0
  %7380 = vmatpush1.msra.mxu0 0.0
  %7381 = vmatprep.subr.mxu0 0.0
  %7382 = vmatpush1.msra.mxu0 0.0
  %7383 = vmatprep.subr.mxu0 0.0
  %7384 = vmatpush1.msra.mxu0 0.0
  %7385 = vmatprep.subr.mxu0 0.0
  %7386 = vmatpush1.msra.mxu0 0.0
  %7387 = vmatprep.subr.mxu0 0.0
  %7388 = vmatpush1.msra.mxu0 0.0
  %7389 = vmatprep.subr.mxu0 0.0
  %7390 = vmatpush1.msra.mxu0 0.0
  %7391 = vmatprep.subr.mxu0 0.0
  %7392 = vmatpush1.msra.mxu0 0.0
  %7393 = vmatprep.subr.mxu0 0.0
  %7394 = vmatpush1.msra.mxu0 0.0
  %7395 = vmatprep.subr.mxu0 0.0
  %7396 = vmatpush1.msra.mxu0 0.0
  %7397 = vmatprep.subr.mxu0 0.0
  %7398 = vmatpush1.msra.mxu0 0.0
  %7399 = vmatprep.subr.mxu0 0.0
  %7400 = vmatpush1.msra.mxu0 0.0
  %7401 = vmatprep.subr.mxu0 0.0
  %7402 = vmatpush1.msra.mxu0 0.0
  %7403 = vmatprep.subr.mxu0 0.0
  %7404 = vmatpush1.msra.mxu0 0.0
  %7405 = vmatprep.subr.mxu0 0.0
  %7406 = vmatpush1.msra.mxu0 0.0
  %7407 = vmatprep.subr.mxu0 0.0
  %7408 = vmatpush1.msra.mxu0 0.0
  %7409 = vmatprep.subr.mxu0 0.0
  %7410 = vmatpush1.msra.mxu0 0.0
  %7411 = vmatprep.subr.mxu0 0.0
  %7412 = vmatpush1.msra.mxu0 0.0
  %7413 = vmatprep.subr.mxu0 0.0
  %7414 = vmatpush1.msra.mxu0 0.0
  %7415 = vmatprep.subr.mxu0 0.0
  %7416 = vmatpush1.msra.mxu0 0.0
  %7417 = vmatprep.subr.mxu0 0.0
  %7418 = vmatpush1.msra.mxu0 0.0
  %7419 = vmatprep.subr.mxu0 0.0
  %7420 = vmatpush1.msra.mxu0 0.0
  %7421 = vmatprep.subr.mxu0 0.0
  %7422 = vmatpush1.msra.mxu0 0.0
  %7423 = vmatprep.subr.mxu0 0.0
  %7424 = vmatpush1.msra.mxu0 0.0
  %7425 = vmatprep.subr.mxu0 0.0
  %7426 = vmatpush1.msra.mxu0 0.0
  %7427 = vmatprep.subr.mxu0 0.0
  %7428 = vmatpush1.msra.mxu0 0.0
  %7429 = vmatprep.subr.mxu0 0.0
  %7430 = vmatpush1.msra.mxu0 0.0
  %7431 = vmatprep.mubr.f32.mxu0 0.0
  %7432 = vmatmul.mubr.f32.gmra.mrb[0].mxu0 %v7365
  %v7433 = vpop.f32.mrb[0].mxu0
  %v7434 = vadd.f32 %v4074, %v7433
  %v7435 = vpop.f32.mrb[0].mxu0
  %7436 = vdwg.mxu0
  %vm7437 = vmxor %vm7126, 1
  %v7438 = vsel %vm7437, 1, 0
  %vm7439 = vcmp.eq.s32.totalorder %v7438, 1
  %v7440 = vsel %vm7439, %v7434, 0.0
  %v7442 = vcombine.high %v7440, %v7440
  %v7444 = vunpack.c.l.s4 1966171168
  %v7445 = vunpack.c.0.s8 %v7444
  %v7446 = vlaneseq
  %v7447 = vshrl.u32 %v7446, 7
  %v7448 = vsub.s32 %v7445, %v7447
  %v7449 = vrot.slane %v7440, %v7448
  %v7451 = vunpack.c.l.s4 1966171168
  %v7452 = vunpack.c.0.s8 %v7451
  %v7453 = vlaneseq
  %v7454 = vshrl.u32 %v7453, 7
  %v7455 = vsub.s32 %v7452, %v7454
  %v7456 = vrot.slane %v7442, %v7455
  %v7457 = vcombine.high %v7449, %v7449
  %v7458 = vcombine.high %v7456, %v7456
  %v7460 = vunpack.c.l.s4 1966171168
  %v7461 = vunpack.c.0.s8 %v7460
  %v7462 = vlaneseq
  %v7463 = vshrl.u32 %v7462, 7
  %v7464 = vsub.s32 %v7461, %v7463
  %v7465 = vrot.slane %v7449, %v7464
  %v7467 = vunpack.c.l.s4 1966171168
  %v7468 = vunpack.c.0.s8 %v7467
  %v7469 = vlaneseq
  %v7470 = vshrl.u32 %v7469, 7
  %v7471 = vsub.s32 %v7468, %v7470
  %v7472 = vrot.slane %v7456, %v7471
  %v7474 = vunpack.c.l.s4 1966171168
  %v7475 = vunpack.c.0.s8 %v7474
  %v7476 = vlaneseq
  %v7477 = vshrl.u32 %v7476, 7
  %v7478 = vsub.s32 %v7475, %v7477
  %v7479 = vrot.slane %v7457, %v7478
  %v7481 = vunpack.c.l.s4 1966171168
  %v7482 = vunpack.c.0.s8 %v7481
  %v7483 = vlaneseq
  %v7484 = vshrl.u32 %v7483, 7
  %v7485 = vsub.s32 %v7482, %v7484
  %v7486 = vrot.slane %v7458, %v7485
  %v7487 = vcombine.high %v7465, %v7465
  %v7488 = vcombine.high %v7472, %v7472
  %v7489 = vcombine.high %v7479, %v7479
  %v7490 = vcombine.high %v7486, %v7486
  %7499 = vst.msk [vmem:[%s13 + $0x7] sm:$0x1] %vm4209, %v7465
  %7500 = vst.msk [vmem:[%s13 + $0xf] sm:$0x1] %vm4209, %v7479
  %7501 = vst.msk [vmem:[%s13 + $0x17] sm:$0x1] %vm4209, %v7487
  %7502 = vst.msk [vmem:[%s13 + $0x1f] sm:$0x1] %vm4209, %v7489
  %7503 = vst.msk [vmem:[%s13 + $0x27] sm:$0x1] %vm4209, %v7472
  %7504 = vst.msk [vmem:[%s13 + $0x2f] sm:$0x1] %vm4209, %v7486
  %7505 = vst.msk [vmem:[%s13 + $0x37] sm:$0x1] %vm4209, %v7488
  %7506 = vst.msk [vmem:[%s13 + $0x3f] sm:$0x1] %vm4209, %v7490
  %v7507 = vsel %vm68, %v7246, %v7361
  %v7508 = vsel %vm7439, %v7507, 0.0
  %v7510 = vcombine.high %v7508, %v7508
  %v7512 = vunpack.c.l.s4 1966171168
  %v7513 = vunpack.c.0.s8 %v7512
  %v7514 = vlaneseq
  %v7515 = vshrl.u32 %v7514, 7
  %v7516 = vsub.s32 %v7513, %v7515
  %v7517 = vrot.slane %v7508, %v7516
  %v7519 = vunpack.c.l.s4 1966171168
  %v7520 = vunpack.c.0.s8 %v7519
  %v7521 = vlaneseq
  %v7522 = vshrl.u32 %v7521, 7
  %v7523 = vsub.s32 %v7520, %v7522
  %v7524 = vrot.slane %v7510, %v7523
  %v7525 = vcombine.high %v7517, %v7517
  %v7526 = vcombine.high %v7524, %v7524
  %v7528 = vunpack.c.l.s4 1966171168
  %v7529 = vunpack.c.0.s8 %v7528
  %v7530 = vlaneseq
  %v7531 = vshrl.u32 %v7530, 7
  %v7532 = vsub.s32 %v7529, %v7531
  %v7533 = vrot.slane %v7517, %v7532
  %v7535 = vunpack.c.l.s4 1966171168
  %v7536 = vunpack.c.0.s8 %v7535
  %v7537 = vlaneseq
  %v7538 = vshrl.u32 %v7537, 7
  %v7539 = vsub.s32 %v7536, %v7538
  %v7540 = vrot.slane %v7524, %v7539
  %v7542 = vunpack.c.l.s4 1966171168
  %v7543 = vunpack.c.0.s8 %v7542
  %v7544 = vlaneseq
  %v7545 = vshrl.u32 %v7544, 7
  %v7546 = vsub.s32 %v7543, %v7545
  %v7547 = vrot.slane %v7525, %v7546
  %v7549 = vunpack.c.l.s4 1966171168
  %v7550 = vunpack.c.0.s8 %v7549
  %v7551 = vlaneseq
  %v7552 = vshrl.u32 %v7551, 7
  %v7553 = vsub.s32 %v7550, %v7552
  %v7554 = vrot.slane %v7526, %v7553
  %v7555 = vcombine.high %v7533, %v7533
  %v7556 = vcombine.high %v7540, %v7540
  %v7557 = vcombine.high %v7547, %v7547
  %v7558 = vcombine.high %v7554, %v7554
  %7567 = vst.msk [vmem:[%s14 + $0x7] sm:$0x1] %vm4277, %v7533
  %7568 = vst.msk [vmem:[%s14 + $0xf] sm:$0x1] %vm4277, %v7547
  %7569 = vst.msk [vmem:[%s14 + $0x17] sm:$0x1] %vm4277, %v7555
  %7570 = vst.msk [vmem:[%s14 + $0x1f] sm:$0x1] %vm4277, %v7557
  %7571 = vst.msk [vmem:[%s14 + $0x27] sm:$0x1] %vm4277, %v7540
  %7572 = vst.msk [vmem:[%s14 + $0x2f] sm:$0x1] %vm4277, %v7554
  %7573 = vst.msk [vmem:[%s14 + $0x37] sm:$0x1] %vm4277, %v7556
  %7574 = vst.msk [vmem:[%s14 + $0x3f] sm:$0x1] %vm4277, %v7558
  // Predicated region
  $region54: #{morph_sequence_forward.1} parent=0 // pred_check
    _
  $region55: #{morph_sequence_forward.1} parent=0 // pred_check_branch
    %7576 = sbr.rel (0) target = $region57
  $region56: #{morph_sequence_forward.1} parent=0 // pred_region
    _
  $region57: #{morph_sequence_forward.1} parent=0 // pred_fallthru
    _
  // Predicated region
  $region58: #{morph_sequence_forward.1} parent=0 // pred_check
    _
  $region59: #{morph_sequence_forward.1} parent=0 // pred_check_branch
    %7578 = sbr.rel (0) target = $region61
  $region60: #{morph_sequence_forward.1} parent=0 // pred_region
    _
  $region61: #{morph_sequence_forward.1} parent=0 // pred_fallthru
    _
  // Predicated region
  $region62: #{morph_sequence_forward.1} parent=0 // pred_check
    _
  $region63: #{morph_sequence_forward.1} parent=0 // pred_check_branch
    %7580 = sbr.rel (0) target = $region65
  $region64: #{morph_sequence_forward.1} parent=0 // pred_region
    _
  $region65: #{morph_sequence_forward.1} parent=0 // pred_fallthru
    _
  // Predicated region
  $region66: #{morph_sequence_forward.1} parent=0 // pred_check
    _
  $region67: #{morph_sequence_forward.1} parent=0 // pred_check_branch
    %7582 = sbr.rel (0) target = $region69
  $region68: #{morph_sequence_forward.1} parent=0 // pred_region
    _
  $region69: #{morph_sequence_forward.1} parent=0 // pred_fallthru
    _

</llo_original>
